<compile_context>
chip_gen: v7x
topology: tpu7x:2x2x1
jax: 0.10.0
libtpu: 0.0.40
codegen_flags: <defaults>
</compile_context>

<pallas_src>
import functools

import jax
import jax.numpy as jnp
from jax.experimental import pallas as pl
from jax.experimental.pallas import tpu as pltpu

LATENT_DIM = 32
KSIZE = 4
BN_EPS = 1e-5
CHANNELS = (LATENT_DIM, 28 * 8, 28 * 4, 28 * 2, 28 * 1, 1)


# ------------------------------ small helpers ------------------------------

def _round_up(x, m):
    return ((x + m - 1) // m) * m


def _choose_tm(m):
    """M-tile size.

    Target ~512-row tiles (amortizes the ~0.35us per-grid-step overhead on the
    HBM-bound stream), but keep the number of tiles even (>= 2) whenever m > 8
    so v7x's two TensorCores split a `parallel` grid evenly.
    """
    if m <= 8:
        return 8
    nt = max(2, -(-m // 512))          # ceil(m / 512)
    if nt % 2:
        nt += 1
    return _round_up(-(-m // nt), 8)


def _pad2d(x, rows, cols):
    r, c = x.shape
    if r == rows and c == cols:
        return x
    return jnp.pad(x, ((0, rows - r), (0, cols - c)))


def _vmem_limit_bytes(*block_shape_dtypes):
    """Scoped-VMEM request sized from the double-buffered block footprint.

    Floor 16 MiB (headroom for Mosaic internals), cap 48 MiB so the request is
    always valid on v7x's 64 MiB physical VMEM.
    """
    total = 0
    for shape, dtype in block_shape_dtypes:
        n = 1
        for d in shape:
            n *= d
        total += n * jnp.dtype(dtype).itemsize
    return int(min(max(3 * total + (4 << 20), 16 << 20), 48 << 20))


def _cparams(vmem_bytes):
    return pltpu.CompilerParams(dimension_semantics=("parallel",),
                                vmem_limit_bytes=vmem_bytes)


# ----------------------------- Pallas kernels ------------------------------

def _mm_act_kernel(a_ref, b_ref, y_ref, *, act):
    """Tiled matmul with optional fused tanh epilogue (bf16 in, f32 accumulate)."""
    y = jnp.dot(a_ref[...], b_ref[...], preferred_element_type=jnp.float32)
    if act == "tanh":
        y = jnp.tanh(y)
    y_ref[...] = y.astype(y_ref.dtype)


def _mm_stats_kernel(a_ref, b_ref, y_ref, s_ref, q_ref):
    """Tiled matmul storing bf16 output plus per-tile per-column sum / sum-sq.

    Statistics are reduced from the f32 accumulator before the bf16 store and
    written as a single (1, 1, C) row — no sublane broadcast."""
    y = jnp.dot(a_ref[...], b_ref[...], preferred_element_type=jnp.float32)
    y_ref[...] = y.astype(y_ref.dtype)
    s_ref[...] = jnp.sum(y, axis=0, keepdims=True).reshape(s_ref.shape)
    q_ref[...] = jnp.sum(y * y, axis=0, keepdims=True).reshape(q_ref.shape)


def _bn_apply_relu_kernel(y_ref, scale_ref, shift_ref, o_ref):
    """y * scale + shift, ReLU; reads bf16, writes bf16 for the next matmul."""
    y = y_ref[...].astype(jnp.float32)
    o_ref[...] = jnp.maximum(y * scale_ref[...] + shift_ref[...], 0.0).astype(o_ref.dtype)


# ----------------------------- Pallas wrappers ------------------------------

def pallas_matmul(a, b, tm, act=None, out_dtype=jnp.float32):
    """(Mp, K) @ (K, Cp) -> (Mp, Cp), tiled over M, optional fused tanh."""
    mp, k = a.shape
    _, cp = b.shape
    vmem = _vmem_limit_bytes(((tm, k), a.dtype), ((k, cp), b.dtype),
                             ((tm, cp), out_dtype))
    # TODO(synk): on v5e, if profiling shows exposed A-tile DMA, add
    # pipeline_mode=pl.Buffered(3) to the A BlockSpec below.
    return pl.pallas_call(
        functools.partial(_mm_act_kernel, act=act),
        out_shape=jax.ShapeDtypeStruct((mp, cp), out_dtype),
        grid=(mp // tm,),
        in_specs=[pl.BlockSpec((tm, k), lambda i: (i, 0)),
                  pl.BlockSpec((k, cp), lambda i: (0, 0))],
        out_specs=pl.BlockSpec((tm, cp), lambda i: (i, 0)),
        compiler_params=_cparams(vmem),
    )(a, b)


def pallas_matmul_stats(a, b, tm):
    """bf16-output matmul tiled over M with fused per-tile BN partial stats.

    Returns (y bf16 (Mp, Cp), s (nt, 1, Cp) f32, q (nt, 1, Cp) f32)."""
    mp, k = a.shape
    _, cp = b.shape
    nt = mp // tm
    vmem = _vmem_limit_bytes(((tm, k), a.dtype), ((k, cp), b.dtype),
                             ((tm, cp), jnp.bfloat16),
                             ((1, 1, cp), jnp.float32), ((1, 1, cp), jnp.float32))
    return pl.pallas_call(
        _mm_stats_kernel,
        out_shape=(jax.ShapeDtypeStruct((mp, cp), jnp.bfloat16),
                   jax.ShapeDtypeStruct((nt, 1, cp), jnp.float32),
                   jax.ShapeDtypeStruct((nt, 1, cp), jnp.float32)),
        grid=(nt,),
        in_specs=[pl.BlockSpec((tm, k), lambda i: (i, 0)),
                  pl.BlockSpec((k, cp), lambda i: (0, 0))],
        out_specs=(pl.BlockSpec((tm, cp), lambda i: (i, 0)),
                   pl.BlockSpec((1, 1, cp), lambda i: (i, 0, 0)),
                   pl.BlockSpec((1, 1, cp), lambda i: (i, 0, 0))),
        compiler_params=_cparams(vmem),
    )(a, b)


def pallas_bn_apply_relu(y, scale_cols, shift_cols, tm):
    """Tiled scale*y + shift, ReLU over a bf16 (Mp, Cp) intermediate."""
    mp, cp = y.shape
    s2 = scale_cols.reshape(1, cp).astype(jnp.float32)
    t2 = shift_cols.reshape(1, cp).astype(jnp.float32)
    vmem = _vmem_limit_bytes(((tm, cp), y.dtype), ((1, cp), jnp.float32),
                             ((1, cp), jnp.float32), ((tm, cp), jnp.bfloat16))
    return pl.pallas_call(
        _bn_apply_relu_kernel,
        out_shape=jax.ShapeDtypeStruct((mp, cp), jnp.bfloat16),
        grid=(mp // tm,),
        in_specs=[pl.BlockSpec((tm, cp), lambda i: (i, 0)),
                  pl.BlockSpec((1, cp), lambda i: (0, 0)),
                  pl.BlockSpec((1, cp), lambda i: (0, 0))],
        out_specs=pl.BlockSpec((tm, cp), lambda i: (i, 0)),
        compiler_params=_cparams(vmem),
    )(y, s2, t2)


# --------------------------- plain-JAX glue (layout) -----------------------

def _bn_scale_shift(s_ch, q_ch, count, gamma, beta):
    """Per-channel BN scale/shift from channel sum / sum-of-squares (f32)."""
    mean = s_ch / count
    var = jnp.maximum(q_ch / count - mean * mean, 0.0)   # biased var (torch train)
    inv = jax.lax.rsqrt(var + BN_EPS)
    scale = gamma.astype(jnp.float32) * inv
    shift = beta.astype(jnp.float32) - mean * scale
    return scale, shift


def _phase_patches(x_nhwc):
    """Shared 2x2-tap patches for the 4 output-parity phases of a stride-2,
    k=4 ConvTranspose2d (no structurally-zero K columns)."""
    n, h, w, c = x_nhwc.shape
    hop, wop = h + 1, w + 1
    xp = jnp.pad(x_nhwc, ((0, 0), (1, 1), (1, 1), (0, 0)))
    cols = [xp[:, rh:rh + hop, rw:rw + wop, :] for rh in range(2) for rw in range(2)]
    patches = jnp.stack(cols, axis=3).reshape(n * hop * wop, 4 * c)
    return patches, (n, hop, wop)


def _phase_weight_mat(w_ct, k_pad, c_pad):
    """(Cin, Cout, 4, 4) ConvTranspose weight -> (k_pad, c_pad) matrix whose
    rows match the (rh, rw, cin) patch layout and whose columns hold the four
    output phases laid out (ph, pw, cout)."""
    row_blocks = []
    for rh in range(2):
        for rw in range(2):
            col_blocks = []
            for ph in range(2):
                for pw in range(2):
                    kh = ph + 2 * (1 - rh)
                    kw = pw + 2 * (1 - rw)
                    col_blocks.append(w_ct[:, :, kh, kw])          # (Cin, Cout)
            row_blocks.append(jnp.concatenate(col_blocks, axis=1))  # (Cin, 4*Cout)
    wmat = jnp.concatenate(row_blocks, axis=0)                       # (4Cin, 4Cout)
    return _pad2d(wmat, k_pad, c_pad)


def _im2col_stride1(x_nhwc, k):
    """stride-1 ConvTranspose2d == correlation of the (k-1)-padded input with
    the spatially flipped kernel; returns the im2col patch matrix."""
    n, h, w, c = x_nhwc.shape
    ho, wo = h + k - 1, w + k - 1
    xp = jnp.pad(x_nhwc, ((0, 0), (k - 1, k - 1), (k - 1, k - 1), (0, 0)))
    cols = [xp[:, kh:kh + ho, kw:kw + wo, :] for kh in range(k) for kw in range(k)]
    patches = jnp.stack(cols, axis=3).reshape(n * ho * wo, k * k * c)
    return patches, (n, ho, wo)


def _convT_weight_to_mat(w_ct, k, k_pad, c_pad):
    """PyTorch ConvTranspose2d weight (Cin, Cout, k, k) -> zero-padded
    (k_pad, c_pad) matrix matching the stride-1 im2col (kh, kw, cin) order."""
    cin, cout = w_ct.shape[0], w_ct.shape[1]
    w_flip = w_ct[:, :, ::-1, ::-1]
    wmat = jnp.transpose(w_flip, (2, 3, 0, 1)).reshape(k * k * cin, cout)
    return _pad2d(wmat, k_pad, c_pad)


def mnist_generator_forward(z_nchw, params):
    """z_nchw: (N, LATENT_DIM, 1, 1) -> (N, 1, 28, 28), matching the PyTorch module."""
    n = z_nchw.shape[0]
    weights, gammas, betas = params["weights"], params["gammas"], params["betas"]

    # ---- layer 0: 1x1 spatial input => ConvTranspose2d is a dense
    # (N, Cin) @ (Cin, 16*Cout) matmul; BN statistics are fused into it.
    w0 = weights[0]
    cin0, cout0 = w0.shape[0], w0.shape[1]
    cp0 = _round_up(cout0, 128)
    w0p = jnp.pad(w0, ((0, 0), (0, cp0 - cout0), (0, 0), (0, 0)))
    b0 = jnp.transpose(w0p, (0, 2, 3, 1)).reshape(cin0, KSIZE * KSIZE * cp0)
    tm0 = _choose_tm(n)
    a0 = _pad2d(z_nchw.reshape(n, cin0), _round_up(n, tm0), cin0).astype(jnp.bfloat16)
    y0, s0, q0 = pallas_matmul_stats(a0, b0.astype(jnp.bfloat16), tm0)
    # regroup the 16 spatial taps into per-channel sums over N*4*4 samples
    s_ch = s0.sum(axis=(0, 1)).reshape(KSIZE * KSIZE, cp0)[:, :cout0].sum(axis=0)
    q_ch = q0.sum(axis=(0, 1)).reshape(KSIZE * KSIZE, cp0)[:, :cout0].sum(axis=0)
    scale, shift = _bn_scale_shift(s_ch, q_ch, n * KSIZE * KSIZE, gammas[0], betas[0])
    scale_cols = jnp.tile(jnp.pad(scale, (0, cp0 - cout0)), KSIZE * KSIZE)
    shift_cols = jnp.tile(jnp.pad(shift, (0, cp0 - cout0)), KSIZE * KSIZE)
    act0 = pallas_bn_apply_relu(y0, scale_cols, shift_cols, tm0)
    x = act0[:n].reshape(n, KSIZE, KSIZE, cp0)[..., :cout0]          # (N,4,4,224) bf16

    # ---- layers 1..2: stride-2 ConvTranspose via 4-phase decomposition
    # (single matmul with K = 4*Cin, no structurally-zero columns), with BN
    # statistics fused into the matmul, then tiled BN-affine + ReLU.
    for i in (1, 2):
        w = weights[i]
        cin, cout = w.shape[0], w.shape[1]
        patches, (nb, hop, wop) = _phase_patches(x)
        m = nb * hop * wop
        kp = _round_up(4 * cin, 128)
        cpt = _round_up(4 * cout, 128)
        tm = _choose_tm(m)
        a_mat = _pad2d(patches, _round_up(m, tm), kp)                # bf16
        wmat = _phase_weight_mat(w, kp, cpt).astype(jnp.bfloat16)
        y, s, q = pallas_matmul_stats(a_mat, wmat, tm)               # y bf16
        s_ch = s.sum(axis=(0, 1))[:4 * cout].reshape(4, cout).sum(axis=0)
        q_ch = q.sum(axis=(0, 1))[:4 * cout].reshape(4, cout).sum(axis=0)
        ho, wo = 2 * hop, 2 * wop
        scale, shift = _bn_scale_shift(s_ch, q_ch, nb * ho * wo, gammas[i], betas[i])
        scale_cols = jnp.pad(jnp.tile(scale, 4), (0, cpt - 4 * cout))
        shift_cols = jnp.pad(jnp.tile(shift, 4), (0, cpt - 4 * cout))
        act = pallas_bn_apply_relu(y, scale_cols, shift_cols, tm)    # bf16
        y4 = act[:m, :4 * cout].reshape(nb, hop, wop, 2, 2, cout)
        x = jnp.transpose(y4, (0, 1, 3, 2, 4, 5)).reshape(nb, ho, wo, cout)

    # ---- layer 3: stride-1 ConvTranspose via im2col, BN stats fused.
    w = weights[3]
    cin, cout = w.shape[0], w.shape[1]
    patches, (nb, ho, wo) = _im2col_stride1(x, KSIZE)
    m = nb * ho * wo
    kp = _round_up(KSIZE * KSIZE * cin, 128)
    cp = _round_up(cout, 128)
    tm = _choose_tm(m)
    a_mat = _pad2d(patches, _round_up(m, tm), kp)
    wmat = _convT_weight_to_mat(w, KSIZE, kp, cp).astype(jnp.bfloat16)
    y, s, q = pallas_matmul_stats(a_mat, wmat, tm)
    scale, shift = _bn_scale_shift(s.sum(axis=(0, 1))[:cout],
                                   q.sum(axis=(0, 1))[:cout], m, gammas[3], betas[3])
    act = pallas_bn_apply_relu(y, jnp.pad(scale, (0, cp - cout)),
                               jnp.pad(shift, (0, cp - cout)), tm)
    x = act[:m, :cout].reshape(nb, ho, wo, cout)

    # ---- layer 4: stride-1 ConvTranspose with fused tanh epilogue.
    w = weights[4]
    cin, cout = w.shape[0], w.shape[1]
    patches, (nb, ho, wo) = _im2col_stride1(x, KSIZE)
    m = nb * ho * wo
    kp = _round_up(KSIZE * KSIZE * cin, 128)                         # 448 -> 512
    cp = _round_up(cout, 128)                                        # 1 -> 128
    tm = _choose_tm(m)
    a_mat = _pad2d(patches, _round_up(m, tm), kp)
    wmat = _convT_weight_to_mat(w, KSIZE, kp, cp).astype(jnp.bfloat16)
    y = pallas_matmul(a_mat, wmat, tm, act="tanh")                   # f32
    img = y[:m, :cout].reshape(nb, ho, wo, cout)
    return jnp.transpose(img, (0, 3, 1, 2)).astype(jnp.float32)      # -> NCHW


# ------------------------------- parameters --------------------------------

def init_params(key):
    weights, gammas, betas = [], [], []
    for i in range(5):
        key, sub = jax.random.split(key)
        cin, cout = CHANNELS[i], CHANNELS[i + 1]
        # PyTorch ConvTranspose2d weight shape: (in_channels, out_channels, kH, kW).
        weights.append(0.05 * jax.random.normal(sub, (cin, cout, KSIZE, KSIZE),
                                                dtype=jnp.float32))
        if i < 4:
            # BatchNorm2d default init: weight=1, bias=0.
            gammas.append(jnp.ones((cout,), jnp.float32))
            betas.append(jnp.zeros((cout,), jnp.float32))
    return {"weights": weights, "gammas": gammas, "betas": betas}


# ----------------------------------- main -----------------------------------

if __name__ == "__main__":
    key = jax.random.PRNGKey(0)
    kparam, kz = jax.random.split(key)
    params = init_params(kparam)

    batch = 2
    z = jax.random.normal(kz, (batch, LATENT_DIM, 1, 1), dtype=jnp.float32)

    fwd = jax.jit(mnist_generator_forward)
    out = jax.block_until_ready(fwd(z, params))

    assert out.shape == (batch, 1, 28, 28), out.shape
    assert bool(jnp.all(jnp.isfinite(out)))
    print("KERNEL_OK")
</pallas_src>

<mosaic_0001>
module attributes {stable_mosaic.version = 11 : i64} {
  func.func @_mm_stats_kernel(%arg0: i32, %arg1: memref<8x32xbf16, #tpu.memory_space<vmem>>, %arg2: memref<32x4096xbf16, #tpu.memory_space<vmem>>, %arg3: memref<8x4096xbf16, #tpu.memory_space<vmem>>, %arg4: memref<1x1x4096xf32, #tpu.memory_space<vmem>>, %arg5: memref<1x1x4096xf32, #tpu.memory_space<vmem>>) attributes {dimension_semantics = [#tpu.dimension_semantics<parallel>], iteration_bounds = array<i64: 1>, scalar_prefetch = 0 : i64, scratch_operands = 0 : i64, tpu.core_type = #tpu.core_type<tc>, window_params = [{transform_indices = @transform_0, window_bounds = array<i64: 8, 32>}, {pipeline_mode = #tpu.pipeline_mode<synchronous>, transform_indices = @transform_1, window_bounds = array<i64: 32, 4096>}, {transform_indices = @transform_2, window_bounds = array<i64: 8, 4096>}, {transform_indices = @transform_3, window_bounds = array<i64: 1, 1, 4096>}, {transform_indices = @transform_4, window_bounds = array<i64: 1, 1, 4096>}]} {
    %c0 = arith.constant 0 : index
    %c0_0 = arith.constant 0 : index
    %0 = vector.load %arg1[%c0, %c0_0] : memref<8x32xbf16, #tpu.memory_space<vmem>>, vector<8x32xbf16>
    %c0_1 = arith.constant 0 : index
    %c0_2 = arith.constant 0 : index
    %1 = vector.load %arg2[%c0_1, %c0_2] : memref<32x4096xbf16, #tpu.memory_space<vmem>>, vector<32x4096xbf16>
    %cst = arith.constant dense<0.000000e+00> : vector<8x4096xf32>
    %2 = tpu.matmul %0, %1, %cst {dimension_numbers = #tpu.dot_dimension_numbers<[1], [0], [0], [1], [0, 0, 1, 1], [], []>} : vector<8x32xbf16>, vector<32x4096xbf16>, vector<8x4096xf32> -> vector<8x4096xf32>
    %3 = arith.truncf %2 : vector<8x4096xf32> to vector<8x4096xbf16>
    %c0_3 = arith.constant 0 : index
    %c0_4 = arith.constant 0 : index
    %4 = vector.load %arg3[%c0_3, %c0_4] : memref<8x4096xbf16, #tpu.memory_space<vmem>>, vector<8x4096xbf16>
    tpu.vector_store %arg3[%c0_3, %c0_4], %3 {strides = array<i32>} : memref<8x4096xbf16, #tpu.memory_space<vmem>>, vector<8x4096xbf16>,
    %cst_5 = arith.constant dense<0.000000e+00> : vector<4096xf32>
    %5 = vector.multi_reduction <add>, %2, %cst_5 [0] : vector<8x4096xf32> to vector<4096xf32>
    %6 = vector.shape_cast %5 : vector<4096xf32> to vector<1x4096xf32>
    %7 = vector.shape_cast %6 : vector<1x4096xf32> to vector<1x1x4096xf32>
    %c0_6 = arith.constant 0 : index
    %c0_7 = arith.constant 0 : index
    %c0_8 = arith.constant 0 : index
    %8 = vector.load %arg4[%c0_6, %c0_7, %c0_8] : memref<1x1x4096xf32, #tpu.memory_space<vmem>>, vector<1x1x4096xf32>
    tpu.vector_store %arg4[%c0_6, %c0_7, %c0_8], %7 {strides = array<i32>} : memref<1x1x4096xf32, #tpu.memory_space<vmem>>, vector<1x1x4096xf32>,
    %9 = arith.mulf %2, %2 : vector<8x4096xf32>
    %cst_9 = arith.constant dense<0.000000e+00> : vector<4096xf32>
    %10 = vector.multi_reduction <add>, %9, %cst_9 [0] : vector<8x4096xf32> to vector<4096xf32>
    %11 = vector.shape_cast %10 : vector<4096xf32> to vector<1x4096xf32>
    %12 = vector.shape_cast %11 : vector<1x4096xf32> to vector<1x1x4096xf32>
    %c0_10 = arith.constant 0 : index
    %c0_11 = arith.constant 0 : index
    %c0_12 = arith.constant 0 : index
    %13 = vector.load %arg5[%c0_10, %c0_11, %c0_12] : memref<1x1x4096xf32, #tpu.memory_space<vmem>>, vector<1x1x4096xf32>
    tpu.vector_store %arg5[%c0_10, %c0_11, %c0_12], %12 {strides = array<i32>} : memref<1x1x4096xf32, #tpu.memory_space<vmem>>, vector<1x1x4096xf32>,
    return
  }
  func.func @transform_0(%arg0: i32) -> (i32, i32) {
    %c0_i32 = arith.constant 0 : i32
    %c0_i32_0 = arith.constant 0 : i32
    return %arg0, %c0_i32 : i32, i32
  }
  func.func @transform_1(%arg0: i32) -> (i32, i32) {
    %c0_i32 = arith.constant 0 : i32
    %c0_i32_0 = arith.constant 0 : i32
    %c0_i32_1 = arith.constant 0 : i32
    return %c0_i32, %c0_i32_0 : i32, i32
  }
  func.func @transform_2(%arg0: i32) -> (i32, i32) {
    %c0_i32 = arith.constant 0 : i32
    %c0_i32_0 = arith.constant 0 : i32
    return %arg0, %c0_i32 : i32, i32
  }
  func.func @transform_3(%arg0: i32) -> (i32, i32, i32) {
    %c0_i32 = arith.constant 0 : i32
    %c0_i32_0 = arith.constant 0 : i32
    %c0_i32_1 = arith.constant 0 : i32
    return %arg0, %c0_i32, %c0_i32_0 : i32, i32, i32
  }
  func.func @transform_4(%arg0: i32) -> (i32, i32, i32) {
    %c0_i32 = arith.constant 0 : i32
    %c0_i32_0 = arith.constant 0 : i32
    %c0_i32_1 = arith.constant 0 : i32
    return %arg0, %c0_i32, %c0_i32_0 : i32, i32, i32
  }
}

module attributes {stable_mosaic.version = 11 : i64} {
  func.func @_bn_apply_relu_kernel(%arg0: i32, %arg1: memref<8x4096xbf16, #tpu.memory_space<vmem>>, %arg2: memref<1x4096xf32, #tpu.memory_space<vmem>>, %arg3: memref<1x4096xf32, #tpu.memory_space<vmem>>, %arg4: memref<8x4096xbf16, #tpu.memory_space<vmem>>) attributes {dimension_semantics = [#tpu.dimension_semantics<parallel>], iteration_bounds = array<i64: 1>, scalar_prefetch = 0 : i64, scratch_operands = 0 : i64, tpu.core_type = #tpu.core_type<tc>, window_params = [{transform_indices = @transform_0, window_bounds = array<i64: 8, 4096>}, {pipeline_mode = #tpu.pipeline_mode<synchronous>, transform_indices = @transform_1, window_bounds = array<i64: 1, 4096>}, {pipeline_mode = #tpu.pipeline_mode<synchronous>, transform_indices = @transform_2, window_bounds = array<i64: 1, 4096>}, {transform_indices = @transform_3, window_bounds = array<i64: 8, 4096>}]} {
    %c0 = arith.constant 0 : index
    %c0_0 = arith.constant 0 : index
    %0 = vector.load %arg1[%c0, %c0_0] : memref<8x4096xbf16, #tpu.memory_space<vmem>>, vector<8x4096xbf16>
    %1 = arith.extf %0 : vector<8x4096xbf16> to vector<8x4096xf32>
    %c0_1 = arith.constant 0 : index
    %c0_2 = arith.constant 0 : index
    %2 = vector.load %arg2[%c0_1, %c0_2] : memref<1x4096xf32, #tpu.memory_space<vmem>>, vector<1x4096xf32>
    %3 = vector.broadcast %2 : vector<1x4096xf32> to vector<8x4096xf32>
    %4 = arith.mulf %1, %3 : vector<8x4096xf32>
    %c0_3 = arith.constant 0 : index
    %c0_4 = arith.constant 0 : index
    %5 = vector.load %arg3[%c0_3, %c0_4] : memref<1x4096xf32, #tpu.memory_space<vmem>>, vector<1x4096xf32>
    %6 = vector.broadcast %5 : vector<1x4096xf32> to vector<8x4096xf32>
    %7 = arith.addf %4, %6 : vector<8x4096xf32>
    %cst = arith.constant 0.000000e+00 : f32
    %8 = vector.broadcast %cst : f32 to vector<8x4096xf32>
    %9 = arith.maximumf %7, %8 : vector<8x4096xf32>
    %10 = arith.truncf %9 : vector<8x4096xf32> to vector<8x4096xbf16>
    %c0_5 = arith.constant 0 : index
    %c0_6 = arith.constant 0 : index
    %11 = vector.load %arg4[%c0_5, %c0_6] : memref<8x4096xbf16, #tpu.memory_space<vmem>>, vector<8x4096xbf16>
    tpu.vector_store %arg4[%c0_5, %c0_6], %10 {strides = array<i32>} : memref<8x4096xbf16, #tpu.memory_space<vmem>>, vector<8x4096xbf16>,
    return
  }
  func.func @transform_0(%arg0: i32) -> (i32, i32) {
    %c0_i32 = arith.constant 0 : i32
    %c0_i32_0 = arith.constant 0 : i32
    return %arg0, %c0_i32 : i32, i32
  }
  func.func @transform_1(%arg0: i32) -> (i32, i32) {
    %c0_i32 = arith.constant 0 : i32
    %c0_i32_0 = arith.constant 0 : i32
    %c0_i32_1 = arith.constant 0 : i32
    return %c0_i32, %c0_i32_0 : i32, i32
  }
  func.func @transform_2(%arg0: i32) -> (i32, i32) {
    %c0_i32 = arith.constant 0 : i32
    %c0_i32_0 = arith.constant 0 : i32
    %c0_i32_1 = arith.constant 0 : i32
    return %c0_i32, %c0_i32_0 : i32, i32
  }
  func.func @transform_3(%arg0: i32) -> (i32, i32) {
    %c0_i32 = arith.constant 0 : i32
    %c0_i32_0 = arith.constant 0 : i32
    return %arg0, %c0_i32 : i32, i32
  }
}

module attributes {stable_mosaic.version = 11 : i64} {
  func.func @_mm_stats_kernel(%arg0: i32, %arg1: memref<32x896xbf16, #tpu.memory_space<vmem>>, %arg2: memref<896x512xbf16, #tpu.memory_space<vmem>>, %arg3: memref<32x512xbf16, #tpu.memory_space<vmem>>, %arg4: memref<1x1x512xf32, #tpu.memory_space<vmem>>, %arg5: memref<1x1x512xf32, #tpu.memory_space<vmem>>) attributes {dimension_semantics = [#tpu.dimension_semantics<parallel>], iteration_bounds = array<i64: 2>, scalar_prefetch = 0 : i64, scratch_operands = 0 : i64, tpu.core_type = #tpu.core_type<tc>, window_params = [{transform_indices = @transform_0, window_bounds = array<i64: 32, 896>}, {pipeline_mode = #tpu.pipeline_mode<synchronous>, transform_indices = @transform_1, window_bounds = array<i64: 896, 512>}, {transform_indices = @transform_2, window_bounds = array<i64: 32, 512>}, {transform_indices = @transform_3, window_bounds = array<i64: 1, 1, 512>}, {transform_indices = @transform_4, window_bounds = array<i64: 1, 1, 512>}]} {
    %c0 = arith.constant 0 : index
    %c0_0 = arith.constant 0 : index
    %0 = vector.load %arg1[%c0, %c0_0] : memref<32x896xbf16, #tpu.memory_space<vmem>>, vector<32x896xbf16>
    %c0_1 = arith.constant 0 : index
    %c0_2 = arith.constant 0 : index
    %1 = vector.load %arg2[%c0_1, %c0_2] : memref<896x512xbf16, #tpu.memory_space<vmem>>, vector<896x512xbf16>
    %cst = arith.constant dense<0.000000e+00> : vector<32x512xf32>
    %2 = tpu.matmul %0, %1, %cst {dimension_numbers = #tpu.dot_dimension_numbers<[1], [0], [0], [1], [0, 0, 1, 1], [], []>} : vector<32x896xbf16>, vector<896x512xbf16>, vector<32x512xf32> -> vector<32x512xf32>
    %3 = arith.truncf %2 : vector<32x512xf32> to vector<32x512xbf16>
    %c0_3 = arith.constant 0 : index
    %c0_4 = arith.constant 0 : index
    %4 = vector.load %arg3[%c0_3, %c0_4] : memref<32x512xbf16, #tpu.memory_space<vmem>>, vector<32x512xbf16>
    tpu.vector_store %arg3[%c0_3, %c0_4], %3 {strides = array<i32>} : memref<32x512xbf16, #tpu.memory_space<vmem>>, vector<32x512xbf16>,
    %cst_5 = arith.constant dense<0.000000e+00> : vector<512xf32>
    %5 = vector.multi_reduction <add>, %2, %cst_5 [0] : vector<32x512xf32> to vector<512xf32>
    %6 = vector.shape_cast %5 : vector<512xf32> to vector<1x512xf32>
    %7 = vector.shape_cast %6 : vector<1x512xf32> to vector<1x1x512xf32>
    %c0_6 = arith.constant 0 : index
    %c0_7 = arith.constant 0 : index
    %c0_8 = arith.constant 0 : index
    %8 = vector.load %arg4[%c0_6, %c0_7, %c0_8] : memref<1x1x512xf32, #tpu.memory_space<vmem>>, vector<1x1x512xf32>
    tpu.vector_store %arg4[%c0_6, %c0_7, %c0_8], %7 {strides = array<i32>} : memref<1x1x512xf32, #tpu.memory_space<vmem>>, vector<1x1x512xf32>,
    %9 = arith.mulf %2, %2 : vector<32x512xf32>
    %cst_9 = arith.constant dense<0.000000e+00> : vector<512xf32>
    %10 = vector.multi_reduction <add>, %9, %cst_9 [0] : vector<32x512xf32> to vector<512xf32>
    %11 = vector.shape_cast %10 : vector<512xf32> to vector<1x512xf32>
    %12 = vector.shape_cast %11 : vector<1x512xf32> to vector<1x1x512xf32>
    %c0_10 = arith.constant 0 : index
    %c0_11 = arith.constant 0 : index
    %c0_12 = arith.constant 0 : index
    %13 = vector.load %arg5[%c0_10, %c0_11, %c0_12] : memref<1x1x512xf32, #tpu.memory_space<vmem>>, vector<1x1x512xf32>
    tpu.vector_store %arg5[%c0_10, %c0_11, %c0_12], %12 {strides = array<i32>} : memref<1x1x512xf32, #tpu.memory_space<vmem>>, vector<1x1x512xf32>,
    return
  }
  func.func @transform_0(%arg0: i32) -> (i32, i32) {
    %c0_i32 = arith.constant 0 : i32
    %c0_i32_0 = arith.constant 0 : i32
    return %arg0, %c0_i32 : i32, i32
  }
  func.func @transform_1(%arg0: i32) -> (i32, i32) {
    %c0_i32 = arith.constant 0 : i32
    %c0_i32_0 = arith.constant 0 : i32
    %c0_i32_1 = arith.constant 0 : i32
    return %c0_i32, %c0_i32_0 : i32, i32
  }
  func.func @transform_2(%arg0: i32) -> (i32, i32) {
    %c0_i32 = arith.constant 0 : i32
    %c0_i32_0 = arith.constant 0 : i32
    return %arg0, %c0_i32 : i32, i32
  }
  func.func @transform_3(%arg0: i32) -> (i32, i32, i32) {
    %c0_i32 = arith.constant 0 : i32
    %c0_i32_0 = arith.constant 0 : i32
    %c0_i32_1 = arith.constant 0 : i32
    return %arg0, %c0_i32, %c0_i32_0 : i32, i32, i32
  }
  func.func @transform_4(%arg0: i32) -> (i32, i32, i32) {
    %c0_i32 = arith.constant 0 : i32
    %c0_i32_0 = arith.constant 0 : i32
    %c0_i32_1 = arith.constant 0 : i32
    return %arg0, %c0_i32, %c0_i32_0 : i32, i32, i32
  }
}

module attributes {stable_mosaic.version = 11 : i64} {
  func.func @_bn_apply_relu_kernel(%arg0: i32, %arg1: memref<32x512xbf16, #tpu.memory_space<vmem>>, %arg2: memref<1x512xf32, #tpu.memory_space<vmem>>, %arg3: memref<1x512xf32, #tpu.memory_space<vmem>>, %arg4: memref<32x512xbf16, #tpu.memory_space<vmem>>) attributes {dimension_semantics = [#tpu.dimension_semantics<parallel>], iteration_bounds = array<i64: 2>, scalar_prefetch = 0 : i64, scratch_operands = 0 : i64, tpu.core_type = #tpu.core_type<tc>, window_params = [{transform_indices = @transform_0, window_bounds = array<i64: 32, 512>}, {pipeline_mode = #tpu.pipeline_mode<synchronous>, transform_indices = @transform_1, window_bounds = array<i64: 1, 512>}, {pipeline_mode = #tpu.pipeline_mode<synchronous>, transform_indices = @transform_2, window_bounds = array<i64: 1, 512>}, {transform_indices = @transform_3, window_bounds = array<i64: 32, 512>}]} {
    %c0 = arith.constant 0 : index
    %c0_0 = arith.constant 0 : index
    %0 = vector.load %arg1[%c0, %c0_0] : memref<32x512xbf16, #tpu.memory_space<vmem>>, vector<32x512xbf16>
    %1 = arith.extf %0 : vector<32x512xbf16> to vector<32x512xf32>
    %c0_1 = arith.constant 0 : index
    %c0_2 = arith.constant 0 : index
    %2 = vector.load %arg2[%c0_1, %c0_2] : memref<1x512xf32, #tpu.memory_space<vmem>>, vector<1x512xf32>
    %3 = vector.broadcast %2 : vector<1x512xf32> to vector<32x512xf32>
    %4 = arith.mulf %1, %3 : vector<32x512xf32>
    %c0_3 = arith.constant 0 : index
    %c0_4 = arith.constant 0 : index
    %5 = vector.load %arg3[%c0_3, %c0_4] : memref<1x512xf32, #tpu.memory_space<vmem>>, vector<1x512xf32>
    %6 = vector.broadcast %5 : vector<1x512xf32> to vector<32x512xf32>
    %7 = arith.addf %4, %6 : vector<32x512xf32>
    %cst = arith.constant 0.000000e+00 : f32
    %8 = vector.broadcast %cst : f32 to vector<32x512xf32>
    %9 = arith.maximumf %7, %8 : vector<32x512xf32>
    %10 = arith.truncf %9 : vector<32x512xf32> to vector<32x512xbf16>
    %c0_5 = arith.constant 0 : index
    %c0_6 = arith.constant 0 : index
    %11 = vector.load %arg4[%c0_5, %c0_6] : memref<32x512xbf16, #tpu.memory_space<vmem>>, vector<32x512xbf16>
    tpu.vector_store %arg4[%c0_5, %c0_6], %10 {strides = array<i32>} : memref<32x512xbf16, #tpu.memory_space<vmem>>, vector<32x512xbf16>,
    return
  }
  func.func @transform_0(%arg0: i32) -> (i32, i32) {
    %c0_i32 = arith.constant 0 : i32
    %c0_i32_0 = arith.constant 0 : i32
    return %arg0, %c0_i32 : i32, i32
  }
  func.func @transform_1(%arg0: i32) -> (i32, i32) {
    %c0_i32 = arith.constant 0 : i32
    %c0_i32_0 = arith.constant 0 : i32
    %c0_i32_1 = arith.constant 0 : i32
    return %c0_i32, %c0_i32_0 : i32, i32
  }
  func.func @transform_2(%arg0: i32) -> (i32, i32) {
    %c0_i32 = arith.constant 0 : i32
    %c0_i32_0 = arith.constant 0 : i32
    %c0_i32_1 = arith.constant 0 : i32
    return %c0_i32, %c0_i32_0 : i32, i32
  }
  func.func @transform_3(%arg0: i32) -> (i32, i32) {
    %c0_i32 = arith.constant 0 : i32
    %c0_i32_0 = arith.constant 0 : i32
    return %arg0, %c0_i32 : i32, i32
  }
}

module attributes {stable_mosaic.version = 11 : i64} {
  func.func @_mm_stats_kernel(%arg0: i32, %arg1: memref<128x512xbf16, #tpu.memory_space<vmem>>, %arg2: memref<512x256xbf16, #tpu.memory_space<vmem>>, %arg3: memref<128x256xbf16, #tpu.memory_space<vmem>>, %arg4: memref<1x1x256xf32, #tpu.memory_space<vmem>>, %arg5: memref<1x1x256xf32, #tpu.memory_space<vmem>>) attributes {dimension_semantics = [#tpu.dimension_semantics<parallel>], iteration_bounds = array<i64: 2>, scalar_prefetch = 0 : i64, scratch_operands = 0 : i64, tpu.core_type = #tpu.core_type<tc>, window_params = [{transform_indices = @transform_0, window_bounds = array<i64: 128, 512>}, {pipeline_mode = #tpu.pipeline_mode<synchronous>, transform_indices = @transform_1, window_bounds = array<i64: 512, 256>}, {transform_indices = @transform_2, window_bounds = array<i64: 128, 256>}, {transform_indices = @transform_3, window_bounds = array<i64: 1, 1, 256>}, {transform_indices = @transform_4, window_bounds = array<i64: 1, 1, 256>}]} {
    %c0 = arith.constant 0 : index
    %c0_0 = arith.constant 0 : index
    %0 = vector.load %arg1[%c0, %c0_0] : memref<128x512xbf16, #tpu.memory_space<vmem>>, vector<128x512xbf16>
    %c0_1 = arith.constant 0 : index
    %c0_2 = arith.constant 0 : index
    %1 = vector.load %arg2[%c0_1, %c0_2] : memref<512x256xbf16, #tpu.memory_space<vmem>>, vector<512x256xbf16>
    %cst = arith.constant dense<0.000000e+00> : vector<128x256xf32>
    %2 = tpu.matmul %0, %1, %cst {dimension_numbers = #tpu.dot_dimension_numbers<[1], [0], [0], [1], [0, 0, 1, 1], [], []>} : vector<128x512xbf16>, vector<512x256xbf16>, vector<128x256xf32> -> vector<128x256xf32>
    %3 = arith.truncf %2 : vector<128x256xf32> to vector<128x256xbf16>
    %c0_3 = arith.constant 0 : index
    %c0_4 = arith.constant 0 : index
    %4 = vector.load %arg3[%c0_3, %c0_4] : memref<128x256xbf16, #tpu.memory_space<vmem>>, vector<128x256xbf16>
    tpu.vector_store %arg3[%c0_3, %c0_4], %3 {strides = array<i32>} : memref<128x256xbf16, #tpu.memory_space<vmem>>, vector<128x256xbf16>,
    %cst_5 = arith.constant dense<0.000000e+00> : vector<256xf32>
    %5 = vector.multi_reduction <add>, %2, %cst_5 [0] : vector<128x256xf32> to vector<256xf32>
    %6 = vector.shape_cast %5 : vector<256xf32> to vector<1x256xf32>
    %7 = vector.shape_cast %6 : vector<1x256xf32> to vector<1x1x256xf32>
    %c0_6 = arith.constant 0 : index
    %c0_7 = arith.constant 0 : index
    %c0_8 = arith.constant 0 : index
    %8 = vector.load %arg4[%c0_6, %c0_7, %c0_8] : memref<1x1x256xf32, #tpu.memory_space<vmem>>, vector<1x1x256xf32>
    tpu.vector_store %arg4[%c0_6, %c0_7, %c0_8], %7 {strides = array<i32>} : memref<1x1x256xf32, #tpu.memory_space<vmem>>, vector<1x1x256xf32>,
    %9 = arith.mulf %2, %2 : vector<128x256xf32>
    %cst_9 = arith.constant dense<0.000000e+00> : vector<256xf32>
    %10 = vector.multi_reduction <add>, %9, %cst_9 [0] : vector<128x256xf32> to vector<256xf32>
    %11 = vector.shape_cast %10 : vector<256xf32> to vector<1x256xf32>
    %12 = vector.shape_cast %11 : vector<1x256xf32> to vector<1x1x256xf32>
    %c0_10 = arith.constant 0 : index
    %c0_11 = arith.constant 0 : index
    %c0_12 = arith.constant 0 : index
    %13 = vector.load %arg5[%c0_10, %c0_11, %c0_12] : memref<1x1x256xf32, #tpu.memory_space<vmem>>, vector<1x1x256xf32>
    tpu.vector_store %arg5[%c0_10, %c0_11, %c0_12], %12 {strides = array<i32>} : memref<1x1x256xf32, #tpu.memory_space<vmem>>, vector<1x1x256xf32>,
    return
  }
  func.func @transform_0(%arg0: i32) -> (i32, i32) {
    %c0_i32 = arith.constant 0 : i32
    %c0_i32_0 = arith.constant 0 : i32
    return %arg0, %c0_i32 : i32, i32
  }
  func.func @transform_1(%arg0: i32) -> (i32, i32) {
    %c0_i32 = arith.constant 0 : i32
    %c0_i32_0 = arith.constant 0 : i32
    %c0_i32_1 = arith.constant 0 : i32
    return %c0_i32, %c0_i32_0 : i32, i32
  }
  func.func @transform_2(%arg0: i32) -> (i32, i32) {
    %c0_i32 = arith.constant 0 : i32
    %c0_i32_0 = arith.constant 0 : i32
    return %arg0, %c0_i32 : i32, i32
  }
  func.func @transform_3(%arg0: i32) -> (i32, i32, i32) {
    %c0_i32 = arith.constant 0 : i32
    %c0_i32_0 = arith.constant 0 : i32
    %c0_i32_1 = arith.constant 0 : i32
    return %arg0, %c0_i32, %c0_i32_0 : i32, i32, i32
  }
  func.func @transform_4(%arg0: i32) -> (i32, i32, i32) {
    %c0_i32 = arith.constant 0 : i32
    %c0_i32_0 = arith.constant 0 : i32
    %c0_i32_1 = arith.constant 0 : i32
    return %arg0, %c0_i32, %c0_i32_0 : i32, i32, i32
  }
}

module attributes {stable_mosaic.version = 11 : i64} {
  func.func @_bn_apply_relu_kernel(%arg0: i32, %arg1: memref<128x256xbf16, #tpu.memory_space<vmem>>, %arg2: memref<1x256xf32, #tpu.memory_space<vmem>>, %arg3: memref<1x256xf32, #tpu.memory_space<vmem>>, %arg4: memref<128x256xbf16, #tpu.memory_space<vmem>>) attributes {dimension_semantics = [#tpu.dimension_semantics<parallel>], iteration_bounds = array<i64: 2>, scalar_prefetch = 0 : i64, scratch_operands = 0 : i64, tpu.core_type = #tpu.core_type<tc>, window_params = [{transform_indices = @transform_0, window_bounds = array<i64: 128, 256>}, {pipeline_mode = #tpu.pipeline_mode<synchronous>, transform_indices = @transform_1, window_bounds = array<i64: 1, 256>}, {pipeline_mode = #tpu.pipeline_mode<synchronous>, transform_indices = @transform_2, window_bounds = array<i64: 1, 256>}, {transform_indices = @transform_3, window_bounds = array<i64: 128, 256>}]} {
    %c0 = arith.constant 0 : index
    %c0_0 = arith.constant 0 : index
    %0 = vector.load %arg1[%c0, %c0_0] : memref<128x256xbf16, #tpu.memory_space<vmem>>, vector<128x256xbf16>
    %1 = arith.extf %0 : vector<128x256xbf16> to vector<128x256xf32>
    %c0_1 = arith.constant 0 : index
    %c0_2 = arith.constant 0 : index
    %2 = vector.load %arg2[%c0_1, %c0_2] : memref<1x256xf32, #tpu.memory_space<vmem>>, vector<1x256xf32>
    %3 = vector.broadcast %2 : vector<1x256xf32> to vector<128x256xf32>
    %4 = arith.mulf %1, %3 : vector<128x256xf32>
    %c0_3 = arith.constant 0 : index
    %c0_4 = arith.constant 0 : index
    %5 = vector.load %arg3[%c0_3, %c0_4] : memref<1x256xf32, #tpu.memory_space<vmem>>, vector<1x256xf32>
    %6 = vector.broadcast %5 : vector<1x256xf32> to vector<128x256xf32>
    %7 = arith.addf %4, %6 : vector<128x256xf32>
    %cst = arith.constant 0.000000e+00 : f32
    %8 = vector.broadcast %cst : f32 to vector<128x256xf32>
    %9 = arith.maximumf %7, %8 : vector<128x256xf32>
    %10 = arith.truncf %9 : vector<128x256xf32> to vector<128x256xbf16>
    %c0_5 = arith.constant 0 : index
    %c0_6 = arith.constant 0 : index
    %11 = vector.load %arg4[%c0_5, %c0_6] : memref<128x256xbf16, #tpu.memory_space<vmem>>, vector<128x256xbf16>
    tpu.vector_store %arg4[%c0_5, %c0_6], %10 {strides = array<i32>} : memref<128x256xbf16, #tpu.memory_space<vmem>>, vector<128x256xbf16>,
    return
  }
  func.func @transform_0(%arg0: i32) -> (i32, i32) {
    %c0_i32 = arith.constant 0 : i32
    %c0_i32_0 = arith.constant 0 : i32
    return %arg0, %c0_i32 : i32, i32
  }
  func.func @transform_1(%arg0: i32) -> (i32, i32) {
    %c0_i32 = arith.constant 0 : i32
    %c0_i32_0 = arith.constant 0 : i32
    %c0_i32_1 = arith.constant 0 : i32
    return %c0_i32, %c0_i32_0 : i32, i32
  }
  func.func @transform_2(%arg0: i32) -> (i32, i32) {
    %c0_i32 = arith.constant 0 : i32
    %c0_i32_0 = arith.constant 0 : i32
    %c0_i32_1 = arith.constant 0 : i32
    return %c0_i32, %c0_i32_0 : i32, i32
  }
  func.func @transform_3(%arg0: i32) -> (i32, i32) {
    %c0_i32 = arith.constant 0 : i32
    %c0_i32_0 = arith.constant 0 : i32
    return %arg0, %c0_i32 : i32, i32
  }
}

module attributes {stable_mosaic.version = 11 : i64} {
  func.func @_mm_stats_kernel(%arg0: i32, %arg1: memref<320x896xbf16, #tpu.memory_space<vmem>>, %arg2: memref<896x128xbf16, #tpu.memory_space<vmem>>, %arg3: memref<320x128xbf16, #tpu.memory_space<vmem>>, %arg4: memref<1x1x128xf32, #tpu.memory_space<vmem>>, %arg5: memref<1x1x128xf32, #tpu.memory_space<vmem>>) attributes {dimension_semantics = [#tpu.dimension_semantics<parallel>], iteration_bounds = array<i64: 4>, scalar_prefetch = 0 : i64, scratch_operands = 0 : i64, tpu.core_type = #tpu.core_type<tc>, window_params = [{transform_indices = @transform_0, window_bounds = array<i64: 320, 896>}, {pipeline_mode = #tpu.pipeline_mode<synchronous>, transform_indices = @transform_1, window_bounds = array<i64: 896, 128>}, {transform_indices = @transform_2, window_bounds = array<i64: 320, 128>}, {transform_indices = @transform_3, window_bounds = array<i64: 1, 1, 128>}, {transform_indices = @transform_4, window_bounds = array<i64: 1, 1, 128>}]} {
    %c0 = arith.constant 0 : index
    %c0_0 = arith.constant 0 : index
    %0 = vector.load %arg1[%c0, %c0_0] : memref<320x896xbf16, #tpu.memory_space<vmem>>, vector<320x896xbf16>
    %c0_1 = arith.constant 0 : index
    %c0_2 = arith.constant 0 : index
    %1 = vector.load %arg2[%c0_1, %c0_2] : memref<896x128xbf16, #tpu.memory_space<vmem>>, vector<896x128xbf16>
    %cst = arith.constant dense<0.000000e+00> : vector<320x128xf32>
    %2 = tpu.matmul %0, %1, %cst {dimension_numbers = #tpu.dot_dimension_numbers<[1], [0], [0], [1], [0, 0, 1, 1], [], []>} : vector<320x896xbf16>, vector<896x128xbf16>, vector<320x128xf32> -> vector<320x128xf32>
    %3 = arith.truncf %2 : vector<320x128xf32> to vector<320x128xbf16>
    %c0_3 = arith.constant 0 : index
    %c0_4 = arith.constant 0 : index
    %4 = vector.load %arg3[%c0_3, %c0_4] : memref<320x128xbf16, #tpu.memory_space<vmem>>, vector<320x128xbf16>
    tpu.vector_store %arg3[%c0_3, %c0_4], %3 {strides = array<i32>} : memref<320x128xbf16, #tpu.memory_space<vmem>>, vector<320x128xbf16>,
    %cst_5 = arith.constant dense<0.000000e+00> : vector<128xf32>
    %5 = vector.multi_reduction <add>, %2, %cst_5 [0] : vector<320x128xf32> to vector<128xf32>
    %6 = vector.shape_cast %5 : vector<128xf32> to vector<1x128xf32>
    %7 = vector.shape_cast %6 : vector<1x128xf32> to vector<1x1x128xf32>
    %c0_6 = arith.constant 0 : index
    %c0_7 = arith.constant 0 : index
    %c0_8 = arith.constant 0 : index
    %8 = vector.load %arg4[%c0_6, %c0_7, %c0_8] : memref<1x1x128xf32, #tpu.memory_space<vmem>>, vector<1x1x128xf32>
    tpu.vector_store %arg4[%c0_6, %c0_7, %c0_8], %7 {strides = array<i32>} : memref<1x1x128xf32, #tpu.memory_space<vmem>>, vector<1x1x128xf32>,
    %9 = arith.mulf %2, %2 : vector<320x128xf32>
    %cst_9 = arith.constant dense<0.000000e+00> : vector<128xf32>
    %10 = vector.multi_reduction <add>, %9, %cst_9 [0] : vector<320x128xf32> to vector<128xf32>
    %11 = vector.shape_cast %10 : vector<128xf32> to vector<1x128xf32>
    %12 = vector.shape_cast %11 : vector<1x128xf32> to vector<1x1x128xf32>
    %c0_10 = arith.constant 0 : index
    %c0_11 = arith.constant 0 : index
    %c0_12 = arith.constant 0 : index
    %13 = vector.load %arg5[%c0_10, %c0_11, %c0_12] : memref<1x1x128xf32, #tpu.memory_space<vmem>>, vector<1x1x128xf32>
    tpu.vector_store %arg5[%c0_10, %c0_11, %c0_12], %12 {strides = array<i32>} : memref<1x1x128xf32, #tpu.memory_space<vmem>>, vector<1x1x128xf32>,
    return
  }
  func.func @transform_0(%arg0: i32) -> (i32, i32) {
    %c0_i32 = arith.constant 0 : i32
    %c0_i32_0 = arith.constant 0 : i32
    return %arg0, %c0_i32 : i32, i32
  }
  func.func @transform_1(%arg0: i32) -> (i32, i32) {
    %c0_i32 = arith.constant 0 : i32
    %c0_i32_0 = arith.constant 0 : i32
    %c0_i32_1 = arith.constant 0 : i32
    return %c0_i32, %c0_i32_0 : i32, i32
  }
  func.func @transform_2(%arg0: i32) -> (i32, i32) {
    %c0_i32 = arith.constant 0 : i32
    %c0_i32_0 = arith.constant 0 : i32
    return %arg0, %c0_i32 : i32, i32
  }
  func.func @transform_3(%arg0: i32) -> (i32, i32, i32) {
    %c0_i32 = arith.constant 0 : i32
    %c0_i32_0 = arith.constant 0 : i32
    %c0_i32_1 = arith.constant 0 : i32
    return %arg0, %c0_i32, %c0_i32_0 : i32, i32, i32
  }
  func.func @transform_4(%arg0: i32) -> (i32, i32, i32) {
    %c0_i32 = arith.constant 0 : i32
    %c0_i32_0 = arith.constant 0 : i32
    %c0_i32_1 = arith.constant 0 : i32
    return %arg0, %c0_i32, %c0_i32_0 : i32, i32, i32
  }
}

module attributes {stable_mosaic.version = 11 : i64} {
  func.func @_bn_apply_relu_kernel(%arg0: i32, %arg1: memref<320x128xbf16, #tpu.memory_space<vmem>>, %arg2: memref<1x128xf32, #tpu.memory_space<vmem>>, %arg3: memref<1x128xf32, #tpu.memory_space<vmem>>, %arg4: memref<320x128xbf16, #tpu.memory_space<vmem>>) attributes {dimension_semantics = [#tpu.dimension_semantics<parallel>], iteration_bounds = array<i64: 4>, scalar_prefetch = 0 : i64, scratch_operands = 0 : i64, tpu.core_type = #tpu.core_type<tc>, window_params = [{transform_indices = @transform_0, window_bounds = array<i64: 320, 128>}, {pipeline_mode = #tpu.pipeline_mode<synchronous>, transform_indices = @transform_1, window_bounds = array<i64: 1, 128>}, {pipeline_mode = #tpu.pipeline_mode<synchronous>, transform_indices = @transform_2, window_bounds = array<i64: 1, 128>}, {transform_indices = @transform_3, window_bounds = array<i64: 320, 128>}]} {
    %c0 = arith.constant 0 : index
    %c0_0 = arith.constant 0 : index
    %0 = vector.load %arg1[%c0, %c0_0] : memref<320x128xbf16, #tpu.memory_space<vmem>>, vector<320x128xbf16>
    %1 = arith.extf %0 : vector<320x128xbf16> to vector<320x128xf32>
    %c0_1 = arith.constant 0 : index
    %c0_2 = arith.constant 0 : index
    %2 = vector.load %arg2[%c0_1, %c0_2] : memref<1x128xf32, #tpu.memory_space<vmem>>, vector<1x128xf32>
    %3 = vector.broadcast %2 : vector<1x128xf32> to vector<320x128xf32>
    %4 = arith.mulf %1, %3 : vector<320x128xf32>
    %c0_3 = arith.constant 0 : index
    %c0_4 = arith.constant 0 : index
    %5 = vector.load %arg3[%c0_3, %c0_4] : memref<1x128xf32, #tpu.memory_space<vmem>>, vector<1x128xf32>
    %6 = vector.broadcast %5 : vector<1x128xf32> to vector<320x128xf32>
    %7 = arith.addf %4, %6 : vector<320x128xf32>
    %cst = arith.constant 0.000000e+00 : f32
    %8 = vector.broadcast %cst : f32 to vector<320x128xf32>
    %9 = arith.maximumf %7, %8 : vector<320x128xf32>
    %10 = arith.truncf %9 : vector<320x128xf32> to vector<320x128xbf16>
    %c0_5 = arith.constant 0 : index
    %c0_6 = arith.constant 0 : index
    %11 = vector.load %arg4[%c0_5, %c0_6] : memref<320x128xbf16, #tpu.memory_space<vmem>>, vector<320x128xbf16>
    tpu.vector_store %arg4[%c0_5, %c0_6], %10 {strides = array<i32>} : memref<320x128xbf16, #tpu.memory_space<vmem>>, vector<320x128xbf16>,
    return
  }
  func.func @transform_0(%arg0: i32) -> (i32, i32) {
    %c0_i32 = arith.constant 0 : i32
    %c0_i32_0 = arith.constant 0 : i32
    return %arg0, %c0_i32 : i32, i32
  }
  func.func @transform_1(%arg0: i32) -> (i32, i32) {
    %c0_i32 = arith.constant 0 : i32
    %c0_i32_0 = arith.constant 0 : i32
    %c0_i32_1 = arith.constant 0 : i32
    return %c0_i32, %c0_i32_0 : i32, i32
  }
  func.func @transform_2(%arg0: i32) -> (i32, i32) {
    %c0_i32 = arith.constant 0 : i32
    %c0_i32_0 = arith.constant 0 : i32
    %c0_i32_1 = arith.constant 0 : i32
    return %c0_i32, %c0_i32_0 : i32, i32
  }
  func.func @transform_3(%arg0: i32) -> (i32, i32) {
    %c0_i32 = arith.constant 0 : i32
    %c0_i32_0 = arith.constant 0 : i32
    return %arg0, %c0_i32 : i32, i32
  }
}

module attributes {stable_mosaic.version = 11 : i64} {
  func.func @_mm_act_kernel(%arg0: i32, %arg1: memref<392x512xbf16, #tpu.memory_space<vmem>>, %arg2: memref<512x128xbf16, #tpu.memory_space<vmem>>, %arg3: memref<392x128xf32, #tpu.memory_space<vmem>>) attributes {dimension_semantics = [#tpu.dimension_semantics<parallel>], iteration_bounds = array<i64: 4>, scalar_prefetch = 0 : i64, scratch_operands = 0 : i64, tpu.core_type = #tpu.core_type<tc>, window_params = [{transform_indices = @transform_0, window_bounds = array<i64: 392, 512>}, {pipeline_mode = #tpu.pipeline_mode<synchronous>, transform_indices = @transform_1, window_bounds = array<i64: 512, 128>}, {transform_indices = @transform_2, window_bounds = array<i64: 392, 128>}]} {
    %c0 = arith.constant 0 : index
    %c0_0 = arith.constant 0 : index
    %0 = vector.load %arg1[%c0, %c0_0] : memref<392x512xbf16, #tpu.memory_space<vmem>>, vector<392x512xbf16>
    %c0_1 = arith.constant 0 : index
    %c0_2 = arith.constant 0 : index
    %1 = vector.load %arg2[%c0_1, %c0_2] : memref<512x128xbf16, #tpu.memory_space<vmem>>, vector<512x128xbf16>
    %cst = arith.constant dense<0.000000e+00> : vector<392x128xf32>
    %2 = tpu.matmul %0, %1, %cst {dimension_numbers = #tpu.dot_dimension_numbers<[1], [0], [0], [1], [0, 0, 1, 1], [], []>} : vector<392x512xbf16>, vector<512x128xbf16>, vector<392x128xf32> -> vector<392x128xf32>
    %3 = math.tanh %2 : vector<392x128xf32>
    %c0_3 = arith.constant 0 : index
    %c0_4 = arith.constant 0 : index
    %4 = vector.load %arg3[%c0_3, %c0_4] : memref<392x128xf32, #tpu.memory_space<vmem>>, vector<392x128xf32>
    tpu.vector_store %arg3[%c0_3, %c0_4], %3 {strides = array<i32>} : memref<392x128xf32, #tpu.memory_space<vmem>>, vector<392x128xf32>,
    return
  }
  func.func @transform_0(%arg0: i32) -> (i32, i32) {
    %c0_i32 = arith.constant 0 : i32
    %c0_i32_0 = arith.constant 0 : i32
    return %arg0, %c0_i32 : i32, i32
  }
  func.func @transform_1(%arg0: i32) -> (i32, i32) {
    %c0_i32 = arith.constant 0 : i32
    %c0_i32_0 = arith.constant 0 : i32
    %c0_i32_1 = arith.constant 0 : i32
    return %c0_i32, %c0_i32_0 : i32, i32
  }
  func.func @transform_2(%arg0: i32) -> (i32, i32) {
    %c0_i32 = arith.constant 0 : i32
    %c0_i32_0 = arith.constant 0 : i32
    return %arg0, %c0_i32 : i32, i32
  }
}

</mosaic_0001>

<llo_original>
// kernel: mnist_generator_forward.9
$region0: #{mnist_generator_forward.9}
  #allocation0 [shape = 'u32[]', space=smem, size = 0x4, offset = 0x4, fixed_abs, tag = 'smem constant byte address 0x4 - core index']
  #allocation1 [shape = 'u32[144,128]{1,0:T(1,128)}', space=vmem, size = 0x12000, scoped, tag = 'internal scratch']
  %s0 = inlined_call_operand.vmem [shape: bf16[8,32], index: 0, kind: input, shape index: {}]
  %s1 = inlined_call_operand.vmem [shape: bf16[32,4096], index: 1, kind: input, shape index: {}]
  %s2 = inlined_call_operand.vmem [shape: bf16[8,4096], index: 2, kind: output, shape index: {0}]
  %s3 = inlined_call_operand.vmem [shape: f32[1,1,4096], index: 3, kind: output, shape index: {1}]
  %s4 = inlined_call_operand.vmem [shape: f32[1,1,4096], index: 4, kind: output, shape index: {2}]
  %5 = xla_tuple %s2, %s3, %s4
  %s6 = sld [smem:[#allocation0]]
  $region34: #{mnist_generator_forward.9} parent=0
    _
  %s8 = ssub.s32 1, %s6
  %s9 = scalar_select 0, %s8, %s6
  // Predicated region
  $region2: #{mnist_generator_forward.9} parent=0 // pred_check
    _
  $region3: #{mnist_generator_forward.9} parent=0 // pred_check_branch
    %11 = sbr.rel (0) target = $region5
  $region4: #{mnist_generator_forward.9} parent=0 // pred_region
    _
  $region5: #{mnist_generator_forward.9} parent=0 // pred_fallthru
    _
  // Predicated region
  $region6: #{mnist_generator_forward.9} parent=0 // pred_check
    _
  $region7: #{mnist_generator_forward.9} parent=0 // pred_check_branch
    %13 = sbr.rel (0) target = $region9
  $region8: #{mnist_generator_forward.9} parent=0 // pred_region
    _
  $region9: #{mnist_generator_forward.9} parent=0 // pred_fallthru
    _
  %v15 = vld [vmem:[%s0] sm:$0xf]
  %v16 = vld [vmem:[%s1] sm:$0xff]
  %v17 = vld [vmem:[%s1 + $0x8] sm:$0xff]
  %v18 = vld [vmem:[%s1 + $0x10] sm:$0xff]
  %v19 = vld [vmem:[%s1 + $0x18] sm:$0xff]
  %v20 = vld [vmem:[%s1 + $0x20] sm:$0xff]
  %v21 = vld [vmem:[%s1 + $0x28] sm:$0xff]
  %v22 = vld [vmem:[%s1 + $0x30] sm:$0xff]
  %v23 = vld [vmem:[%s1 + $0x38] sm:$0xff]
  %v24 = vld [vmem:[%s1 + $0x40] sm:$0xff]
  %v25 = vld [vmem:[%s1 + $0x48] sm:$0xff]
  %v26 = vld [vmem:[%s1 + $0x50] sm:$0xff]
  %v27 = vld [vmem:[%s1 + $0x58] sm:$0xff]
  %v28 = vld [vmem:[%s1 + $0x60] sm:$0xff]
  %v29 = vld [vmem:[%s1 + $0x68] sm:$0xff]
  %v30 = vld [vmem:[%s1 + $0x70] sm:$0xff]
  %v31 = vld [vmem:[%s1 + $0x78] sm:$0xff]
  %v32 = vld [vmem:[%s1 + $0x80] sm:$0xff]
  %v33 = vld [vmem:[%s1 + $0x88] sm:$0xff]
  %v34 = vld [vmem:[%s1 + $0x90] sm:$0xff]
  %v35 = vld [vmem:[%s1 + $0x98] sm:$0xff]
  %v36 = vld [vmem:[%s1 + $0xa0] sm:$0xff]
  %v37 = vld [vmem:[%s1 + $0xa8] sm:$0xff]
  %v38 = vld [vmem:[%s1 + $0xb0] sm:$0xff]
  %v39 = vld [vmem:[%s1 + $0xb8] sm:$0xff]
  %v40 = vld [vmem:[%s1 + $0xc0] sm:$0xff]
  %v41 = vld [vmem:[%s1 + $0xc8] sm:$0xff]
  %v42 = vld [vmem:[%s1 + $0xd0] sm:$0xff]
  %v43 = vld [vmem:[%s1 + $0xd8] sm:$0xff]
  %v44 = vld [vmem:[%s1 + $0xe0] sm:$0xff]
  %v45 = vld [vmem:[%s1 + $0xe8] sm:$0xff]
  %v46 = vld [vmem:[%s1 + $0xf0] sm:$0xff]
  %v47 = vld [vmem:[%s1 + $0xf8] sm:$0xff]
  %v48 = vld [vmem:[%s1 + $0x100] sm:$0xff]
  %v49 = vld [vmem:[%s1 + $0x108] sm:$0xff]
  %v50 = vld [vmem:[%s1 + $0x110] sm:$0xff]
  %v51 = vld [vmem:[%s1 + $0x118] sm:$0xff]
  %v52 = vld [vmem:[%s1 + $0x120] sm:$0xff]
  %v53 = vld [vmem:[%s1 + $0x128] sm:$0xff]
  %v54 = vld [vmem:[%s1 + $0x130] sm:$0xff]
  %v55 = vld [vmem:[%s1 + $0x138] sm:$0xff]
  %v56 = vld [vmem:[%s1 + $0x140] sm:$0xff]
  %v57 = vld [vmem:[%s1 + $0x148] sm:$0xff]
  %v58 = vld [vmem:[%s1 + $0x150] sm:$0xff]
  %v59 = vld [vmem:[%s1 + $0x158] sm:$0xff]
  %v60 = vld [vmem:[%s1 + $0x160] sm:$0xff]
  %v61 = vld [vmem:[%s1 + $0x168] sm:$0xff]
  %v62 = vld [vmem:[%s1 + $0x170] sm:$0xff]
  %v63 = vld [vmem:[%s1 + $0x178] sm:$0xff]
  %v64 = vld [vmem:[%s1 + $0x180] sm:$0xff]
  %v65 = vld [vmem:[%s1 + $0x188] sm:$0xff]
  %v66 = vld [vmem:[%s1 + $0x190] sm:$0xff]
  %v67 = vld [vmem:[%s1 + $0x198] sm:$0xff]
  %v68 = vld [vmem:[%s1 + $0x1a0] sm:$0xff]
  %v69 = vld [vmem:[%s1 + $0x1a8] sm:$0xff]
  %v70 = vld [vmem:[%s1 + $0x1b0] sm:$0xff]
  %v71 = vld [vmem:[%s1 + $0x1b8] sm:$0xff]
  %v72 = vld [vmem:[%s1 + $0x1c0] sm:$0xff]
  %v73 = vld [vmem:[%s1 + $0x1c8] sm:$0xff]
  %v74 = vld [vmem:[%s1 + $0x1d0] sm:$0xff]
  %v75 = vld [vmem:[%s1 + $0x1d8] sm:$0xff]
  %v76 = vld [vmem:[%s1 + $0x1e0] sm:$0xff]
  %v77 = vld [vmem:[%s1 + $0x1e8] sm:$0xff]
  %v78 = vld [vmem:[%s1 + $0x1f0] sm:$0xff]
  %v79 = vld [vmem:[%s1 + $0x1f8] sm:$0xff]
  %v144 = vunpack.c.l.b16 %v16
  %v145 = vunpack.c.h.b16 %v16
  %v146 = vunpack.c.l.b16 %v17
  %v147 = vunpack.c.h.b16 %v17
  %v148 = vunpack.c.l.b16 %v18
  %v149 = vunpack.c.h.b16 %v18
  %v150 = vunpack.c.l.b16 %v19
  %v151 = vunpack.c.h.b16 %v19
  %v152 = vunpack.c.l.b16 %v20
  %v153 = vunpack.c.h.b16 %v20
  %v154 = vunpack.c.l.b16 %v21
  %v155 = vunpack.c.h.b16 %v21
  %v156 = vunpack.c.l.b16 %v22
  %v157 = vunpack.c.h.b16 %v22
  %v158 = vunpack.c.l.b16 %v23
  %v159 = vunpack.c.h.b16 %v23
  %v160 = vunpack.c.l.b16 %v24
  %v161 = vunpack.c.h.b16 %v24
  %v162 = vunpack.c.l.b16 %v25
  %v163 = vunpack.c.h.b16 %v25
  %v164 = vunpack.c.l.b16 %v26
  %v165 = vunpack.c.h.b16 %v26
  %v166 = vunpack.c.l.b16 %v27
  %v167 = vunpack.c.h.b16 %v27
  %v168 = vunpack.c.l.b16 %v28
  %v169 = vunpack.c.h.b16 %v28
  %v170 = vunpack.c.l.b16 %v29
  %v171 = vunpack.c.h.b16 %v29
  %v172 = vunpack.c.l.b16 %v30
  %v173 = vunpack.c.h.b16 %v30
  %v174 = vunpack.c.l.b16 %v31
  %v175 = vunpack.c.h.b16 %v31
  %v176 = vunpack.c.l.b16 %v32
  %v177 = vunpack.c.h.b16 %v32
  %v178 = vunpack.c.l.b16 %v33
  %v179 = vunpack.c.h.b16 %v33
  %v180 = vunpack.c.l.b16 %v34
  %v181 = vunpack.c.h.b16 %v34
  %v182 = vunpack.c.l.b16 %v35
  %v183 = vunpack.c.h.b16 %v35
  %v184 = vunpack.c.l.b16 %v36
  %v185 = vunpack.c.h.b16 %v36
  %v186 = vunpack.c.l.b16 %v37
  %v187 = vunpack.c.h.b16 %v37
  %v188 = vunpack.c.l.b16 %v38
  %v189 = vunpack.c.h.b16 %v38
  %v190 = vunpack.c.l.b16 %v39
  %v191 = vunpack.c.h.b16 %v39
  %v192 = vunpack.c.l.b16 %v40
  %v193 = vunpack.c.h.b16 %v40
  %v194 = vunpack.c.l.b16 %v41
  %v195 = vunpack.c.h.b16 %v41
  %v196 = vunpack.c.l.b16 %v42
  %v197 = vunpack.c.h.b16 %v42
  %v198 = vunpack.c.l.b16 %v43
  %v199 = vunpack.c.h.b16 %v43
  %v200 = vunpack.c.l.b16 %v44
  %v201 = vunpack.c.h.b16 %v44
  %v202 = vunpack.c.l.b16 %v45
  %v203 = vunpack.c.h.b16 %v45
  %v204 = vunpack.c.l.b16 %v46
  %v205 = vunpack.c.h.b16 %v46
  %v206 = vunpack.c.l.b16 %v47
  %v207 = vunpack.c.h.b16 %v47
  %v208 = vunpack.c.l.b16 %v48
  %v209 = vunpack.c.h.b16 %v48
  %v210 = vunpack.c.l.b16 %v49
  %v211 = vunpack.c.h.b16 %v49
  %v212 = vunpack.c.l.b16 %v50
  %v213 = vunpack.c.h.b16 %v50
  %v214 = vunpack.c.l.b16 %v51
  %v215 = vunpack.c.h.b16 %v51
  %v216 = vunpack.c.l.b16 %v52
  %v217 = vunpack.c.h.b16 %v52
  %v218 = vunpack.c.l.b16 %v53
  %v219 = vunpack.c.h.b16 %v53
  %v220 = vunpack.c.l.b16 %v54
  %v221 = vunpack.c.h.b16 %v54
  %v222 = vunpack.c.l.b16 %v55
  %v223 = vunpack.c.h.b16 %v55
  %v224 = vunpack.c.l.b16 %v56
  %v225 = vunpack.c.h.b16 %v56
  %v226 = vunpack.c.l.b16 %v57
  %v227 = vunpack.c.h.b16 %v57
  %v228 = vunpack.c.l.b16 %v58
  %v229 = vunpack.c.h.b16 %v58
  %v230 = vunpack.c.l.b16 %v59
  %v231 = vunpack.c.h.b16 %v59
  %v232 = vunpack.c.l.b16 %v60
  %v233 = vunpack.c.h.b16 %v60
  %v234 = vunpack.c.l.b16 %v61
  %v235 = vunpack.c.h.b16 %v61
  %v236 = vunpack.c.l.b16 %v62
  %v237 = vunpack.c.h.b16 %v62
  %v238 = vunpack.c.l.b16 %v63
  %v239 = vunpack.c.h.b16 %v63
  %v240 = vunpack.c.l.b16 %v64
  %v241 = vunpack.c.h.b16 %v64
  %v242 = vunpack.c.l.b16 %v65
  %v243 = vunpack.c.h.b16 %v65
  %v244 = vunpack.c.l.b16 %v66
  %v245 = vunpack.c.h.b16 %v66
  %v246 = vunpack.c.l.b16 %v67
  %v247 = vunpack.c.h.b16 %v67
  %v248 = vunpack.c.l.b16 %v68
  %v249 = vunpack.c.h.b16 %v68
  %v250 = vunpack.c.l.b16 %v69
  %v251 = vunpack.c.h.b16 %v69
  %v252 = vunpack.c.l.b16 %v70
  %v253 = vunpack.c.h.b16 %v70
  %v254 = vunpack.c.l.b16 %v71
  %v255 = vunpack.c.h.b16 %v71
  %v256 = vunpack.c.l.b16 %v72
  %v257 = vunpack.c.h.b16 %v72
  %v258 = vunpack.c.l.b16 %v73
  %v259 = vunpack.c.h.b16 %v73
  %v260 = vunpack.c.l.b16 %v74
  %v261 = vunpack.c.h.b16 %v74
  %v262 = vunpack.c.l.b16 %v75
  %v263 = vunpack.c.h.b16 %v75
  %v264 = vunpack.c.l.b16 %v76
  %v265 = vunpack.c.h.b16 %v76
  %v266 = vunpack.c.l.b16 %v77
  %v267 = vunpack.c.h.b16 %v77
  %v268 = vunpack.c.l.b16 %v78
  %v269 = vunpack.c.h.b16 %v78
  %v270 = vunpack.c.l.b16 %v79
  %v271 = vunpack.c.h.b16 %v79
  %v272 = vpack.c.b16 %v176, %v144
  %v273 = vpack.c.b16 %v177, %v145
  %v274 = vpack.c.b16 %v178, %v146
  %v275 = vpack.c.b16 %v179, %v147
  %v276 = vpack.c.b16 %v180, %v148
  %v277 = vpack.c.b16 %v181, %v149
  %v278 = vpack.c.b16 %v182, %v150
  %v279 = vpack.c.b16 %v183, %v151
  %v280 = vpack.c.b16 %v184, %v152
  %v281 = vpack.c.b16 %v185, %v153
  %v282 = vpack.c.b16 %v186, %v154
  %v283 = vpack.c.b16 %v187, %v155
  %v284 = vpack.c.b16 %v188, %v156
  %v285 = vpack.c.b16 %v189, %v157
  %v286 = vpack.c.b16 %v190, %v158
  %v287 = vpack.c.b16 %v191, %v159
  %v288 = vpack.c.b16 %v192, %v160
  %v289 = vpack.c.b16 %v193, %v161
  %v290 = vpack.c.b16 %v194, %v162
  %v291 = vpack.c.b16 %v195, %v163
  %v292 = vpack.c.b16 %v196, %v164
  %v293 = vpack.c.b16 %v197, %v165
  %v294 = vpack.c.b16 %v198, %v166
  %v295 = vpack.c.b16 %v199, %v167
  %v296 = vpack.c.b16 %v200, %v168
  %v297 = vpack.c.b16 %v201, %v169
  %v298 = vpack.c.b16 %v202, %v170
  %v299 = vpack.c.b16 %v203, %v171
  %v300 = vpack.c.b16 %v204, %v172
  %v301 = vpack.c.b16 %v205, %v173
  %v302 = vpack.c.b16 %v206, %v174
  %v303 = vpack.c.b16 %v207, %v175
  %v304 = vpack.c.b16 %v240, %v208
  %v305 = vpack.c.b16 %v241, %v209
  %v306 = vpack.c.b16 %v242, %v210
  %v307 = vpack.c.b16 %v243, %v211
  %v308 = vpack.c.b16 %v244, %v212
  %v309 = vpack.c.b16 %v245, %v213
  %v310 = vpack.c.b16 %v246, %v214
  %v311 = vpack.c.b16 %v247, %v215
  %v312 = vpack.c.b16 %v248, %v216
  %v313 = vpack.c.b16 %v249, %v217
  %v314 = vpack.c.b16 %v250, %v218
  %v315 = vpack.c.b16 %v251, %v219
  %v316 = vpack.c.b16 %v252, %v220
  %v317 = vpack.c.b16 %v253, %v221
  %v318 = vpack.c.b16 %v254, %v222
  %v319 = vpack.c.b16 %v255, %v223
  %v320 = vpack.c.b16 %v256, %v224
  %v321 = vpack.c.b16 %v257, %v225
  %v322 = vpack.c.b16 %v258, %v226
  %v323 = vpack.c.b16 %v259, %v227
  %v324 = vpack.c.b16 %v260, %v228
  %v325 = vpack.c.b16 %v261, %v229
  %v326 = vpack.c.b16 %v262, %v230
  %v327 = vpack.c.b16 %v263, %v231
  %v328 = vpack.c.b16 %v264, %v232
  %v329 = vpack.c.b16 %v265, %v233
  %v330 = vpack.c.b16 %v266, %v234
  %v331 = vpack.c.b16 %v267, %v235
  %v332 = vpack.c.b16 %v268, %v236
  %v333 = vpack.c.b16 %v269, %v237
  %v334 = vpack.c.b16 %v270, %v238
  %v335 = vpack.c.b16 %v271, %v239
  %vm400 = vcmask 261120
  %v402 = vsel %vm400, %v15, 0
  %404 = vmatprep.subr.bf16.mxu0 %v273
  %405 = vmatpush1.bf16.msra.mxu0 %v272
  %406 = vmatprep.subr.bf16.mxu0 %v305
  %407 = vmatpush1.bf16.msra.mxu0 %v304
  %408 = vmatprep.subr.bf16.mxu0 0
  %409 = vmatpush1.bf16.msra.mxu0 0
  %410 = vmatprep.subr.bf16.mxu0 0
  %411 = vmatpush1.bf16.msra.mxu0 0
  %412 = vmatprep.subr.bf16.mxu0 0
  %413 = vmatpush1.bf16.msra.mxu0 0
  %414 = vmatprep.subr.bf16.mxu0 0
  %415 = vmatpush1.bf16.msra.mxu0 0
  %416 = vmatprep.subr.bf16.mxu0 0
  %417 = vmatpush1.bf16.msra.mxu0 0
  %418 = vmatprep.subr.bf16.mxu0 0
  %419 = vmatpush1.bf16.msra.mxu0 0
  %420 = vmatprep.subr.bf16.mxu0 0
  %421 = vmatpush1.bf16.msra.mxu0 0
  %422 = vmatprep.subr.bf16.mxu0 0
  %423 = vmatpush1.bf16.msra.mxu0 0
  %424 = vmatprep.subr.bf16.mxu0 0
  %425 = vmatpush1.bf16.msra.mxu0 0
  %426 = vmatprep.subr.bf16.mxu0 0
  %427 = vmatpush1.bf16.msra.mxu0 0
  %428 = vmatprep.subr.bf16.mxu0 0
  %429 = vmatpush1.bf16.msra.mxu0 0
  %430 = vmatprep.subr.bf16.mxu0 0
  %431 = vmatpush1.bf16.msra.mxu0 0
  %432 = vmatprep.subr.bf16.mxu0 0
  %433 = vmatpush1.bf16.msra.mxu0 0
  %434 = vmatprep.subr.bf16.mxu0 0
  %435 = vmatpush1.bf16.msra.mxu0 0
  %436 = vmatprep.mubr.bf16.mxu0 0
  %437 = vmatmul.mubr.bf16.gmra.mrb[0].mxu0 %v402
  %v438 = vpop.f32.mrb[0].mxu0
  %v439 = vadd.f32 0.0, %v438
  %v440 = vpop.f32.mrb[0].mxu0
  %v441 = vadd.f32 0.0, %v440
  %v442 = vpop.f32.mrb[0].mxu0
  %v443 = vpop.f32.mrb[0].mxu0
  %444 = vdwg.mxu0
  %445 = vmatprep.subr.bf16.mxu0 %v275
  %446 = vmatpush1.bf16.msra.mxu0 %v274
  %447 = vmatprep.subr.bf16.mxu0 %v307
  %448 = vmatpush1.bf16.msra.mxu0 %v306
  %449 = vmatprep.subr.bf16.mxu0 0
  %450 = vmatpush1.bf16.msra.mxu0 0
  %451 = vmatprep.subr.bf16.mxu0 0
  %452 = vmatpush1.bf16.msra.mxu0 0
  %453 = vmatprep.subr.bf16.mxu0 0
  %454 = vmatpush1.bf16.msra.mxu0 0
  %455 = vmatprep.subr.bf16.mxu0 0
  %456 = vmatpush1.bf16.msra.mxu0 0
  %457 = vmatprep.subr.bf16.mxu0 0
  %458 = vmatpush1.bf16.msra.mxu0 0
  %459 = vmatprep.subr.bf16.mxu0 0
  %460 = vmatpush1.bf16.msra.mxu0 0
  %461 = vmatprep.subr.bf16.mxu0 0
  %462 = vmatpush1.bf16.msra.mxu0 0
  %463 = vmatprep.subr.bf16.mxu0 0
  %464 = vmatpush1.bf16.msra.mxu0 0
  %465 = vmatprep.subr.bf16.mxu0 0
  %466 = vmatpush1.bf16.msra.mxu0 0
  %467 = vmatprep.subr.bf16.mxu0 0
  %468 = vmatpush1.bf16.msra.mxu0 0
  %469 = vmatprep.subr.bf16.mxu0 0
  %470 = vmatpush1.bf16.msra.mxu0 0
  %471 = vmatprep.subr.bf16.mxu0 0
  %472 = vmatpush1.bf16.msra.mxu0 0
  %473 = vmatprep.subr.bf16.mxu0 0
  %474 = vmatpush1.bf16.msra.mxu0 0
  %475 = vmatprep.subr.bf16.mxu0 0
  %476 = vmatpush1.bf16.msra.mxu0 0
  %477 = vmatprep.mubr.bf16.mxu0 0
  %478 = vmatmul.mubr.bf16.gmra.mrb[0].mxu0 %v402
  %v479 = vpop.f32.mrb[0].mxu0
  %v480 = vadd.f32 0.0, %v479
  %v481 = vpop.f32.mrb[0].mxu0
  %v482 = vadd.f32 0.0, %v481
  %v483 = vpop.f32.mrb[0].mxu0
  %v484 = vpop.f32.mrb[0].mxu0
  %485 = vdwg.mxu0
  %486 = vmatprep.subr.bf16.mxu0 %v277
  %487 = vmatpush1.bf16.msra.mxu0 %v276
  %488 = vmatprep.subr.bf16.mxu0 %v309
  %489 = vmatpush1.bf16.msra.mxu0 %v308
  %490 = vmatprep.subr.bf16.mxu0 0
  %491 = vmatpush1.bf16.msra.mxu0 0
  %492 = vmatprep.subr.bf16.mxu0 0
  %493 = vmatpush1.bf16.msra.mxu0 0
  %494 = vmatprep.subr.bf16.mxu0 0
  %495 = vmatpush1.bf16.msra.mxu0 0
  %496 = vmatprep.subr.bf16.mxu0 0
  %497 = vmatpush1.bf16.msra.mxu0 0
  %498 = vmatprep.subr.bf16.mxu0 0
  %499 = vmatpush1.bf16.msra.mxu0 0
  %500 = vmatprep.subr.bf16.mxu0 0
  %501 = vmatpush1.bf16.msra.mxu0 0
  %502 = vmatprep.subr.bf16.mxu0 0
  %503 = vmatpush1.bf16.msra.mxu0 0
  %504 = vmatprep.subr.bf16.mxu0 0
  %505 = vmatpush1.bf16.msra.mxu0 0
  %506 = vmatprep.subr.bf16.mxu0 0
  %507 = vmatpush1.bf16.msra.mxu0 0
  %508 = vmatprep.subr.bf16.mxu0 0
  %509 = vmatpush1.bf16.msra.mxu0 0
  %510 = vmatprep.subr.bf16.mxu0 0
  %511 = vmatpush1.bf16.msra.mxu0 0
  %512 = vmatprep.subr.bf16.mxu0 0
  %513 = vmatpush1.bf16.msra.mxu0 0
  %514 = vmatprep.subr.bf16.mxu0 0
  %515 = vmatpush1.bf16.msra.mxu0 0
  %516 = vmatprep.subr.bf16.mxu0 0
  %517 = vmatpush1.bf16.msra.mxu0 0
  %518 = vmatprep.mubr.bf16.mxu0 0
  %519 = vmatmul.mubr.bf16.gmra.mrb[0].mxu0 %v402
  %v520 = vpop.f32.mrb[0].mxu0
  %v521 = vadd.f32 0.0, %v520
  %v522 = vpop.f32.mrb[0].mxu0
  %v523 = vadd.f32 0.0, %v522
  %v524 = vpop.f32.mrb[0].mxu0
  %v525 = vpop.f32.mrb[0].mxu0
  %526 = vdwg.mxu0
  %527 = vmatprep.subr.bf16.mxu0 %v279
  %528 = vmatpush1.bf16.msra.mxu0 %v278
  %529 = vmatprep.subr.bf16.mxu0 %v311
  %530 = vmatpush1.bf16.msra.mxu0 %v310
  %531 = vmatprep.subr.bf16.mxu0 0
  %532 = vmatpush1.bf16.msra.mxu0 0
  %533 = vmatprep.subr.bf16.mxu0 0
  %534 = vmatpush1.bf16.msra.mxu0 0
  %535 = vmatprep.subr.bf16.mxu0 0
  %536 = vmatpush1.bf16.msra.mxu0 0
  %537 = vmatprep.subr.bf16.mxu0 0
  %538 = vmatpush1.bf16.msra.mxu0 0
  %539 = vmatprep.subr.bf16.mxu0 0
  %540 = vmatpush1.bf16.msra.mxu0 0
  %541 = vmatprep.subr.bf16.mxu0 0
  %542 = vmatpush1.bf16.msra.mxu0 0
  %543 = vmatprep.subr.bf16.mxu0 0
  %544 = vmatpush1.bf16.msra.mxu0 0
  %545 = vmatprep.subr.bf16.mxu0 0
  %546 = vmatpush1.bf16.msra.mxu0 0
  %547 = vmatprep.subr.bf16.mxu0 0
  %548 = vmatpush1.bf16.msra.mxu0 0
  %549 = vmatprep.subr.bf16.mxu0 0
  %550 = vmatpush1.bf16.msra.mxu0 0
  %551 = vmatprep.subr.bf16.mxu0 0
  %552 = vmatpush1.bf16.msra.mxu0 0
  %553 = vmatprep.subr.bf16.mxu0 0
  %554 = vmatpush1.bf16.msra.mxu0 0
  %555 = vmatprep.subr.bf16.mxu0 0
  %556 = vmatpush1.bf16.msra.mxu0 0
  %557 = vmatprep.subr.bf16.mxu0 0
  %558 = vmatpush1.bf16.msra.mxu0 0
  %559 = vmatprep.mubr.bf16.mxu0 0
  %560 = vmatmul.mubr.bf16.gmra.mrb[0].mxu0 %v402
  %v561 = vpop.f32.mrb[0].mxu0
  %v562 = vadd.f32 0.0, %v561
  %v563 = vpop.f32.mrb[0].mxu0
  %v564 = vadd.f32 0.0, %v563
  %v565 = vpop.f32.mrb[0].mxu0
  %v566 = vpop.f32.mrb[0].mxu0
  %567 = vdwg.mxu0
  %568 = vmatprep.subr.bf16.mxu0 %v281
  %569 = vmatpush1.bf16.msra.mxu0 %v280
  %570 = vmatprep.subr.bf16.mxu0 %v313
  %571 = vmatpush1.bf16.msra.mxu0 %v312
  %572 = vmatprep.subr.bf16.mxu0 0
  %573 = vmatpush1.bf16.msra.mxu0 0
  %574 = vmatprep.subr.bf16.mxu0 0
  %575 = vmatpush1.bf16.msra.mxu0 0
  %576 = vmatprep.subr.bf16.mxu0 0
  %577 = vmatpush1.bf16.msra.mxu0 0
  %578 = vmatprep.subr.bf16.mxu0 0
  %579 = vmatpush1.bf16.msra.mxu0 0
  %580 = vmatprep.subr.bf16.mxu0 0
  %581 = vmatpush1.bf16.msra.mxu0 0
  %582 = vmatprep.subr.bf16.mxu0 0
  %583 = vmatpush1.bf16.msra.mxu0 0
  %584 = vmatprep.subr.bf16.mxu0 0
  %585 = vmatpush1.bf16.msra.mxu0 0
  %586 = vmatprep.subr.bf16.mxu0 0
  %587 = vmatpush1.bf16.msra.mxu0 0
  %588 = vmatprep.subr.bf16.mxu0 0
  %589 = vmatpush1.bf16.msra.mxu0 0
  %590 = vmatprep.subr.bf16.mxu0 0
  %591 = vmatpush1.bf16.msra.mxu0 0
  %592 = vmatprep.subr.bf16.mxu0 0
  %593 = vmatpush1.bf16.msra.mxu0 0
  %594 = vmatprep.subr.bf16.mxu0 0
  %595 = vmatpush1.bf16.msra.mxu0 0
  %596 = vmatprep.subr.bf16.mxu0 0
  %597 = vmatpush1.bf16.msra.mxu0 0
  %598 = vmatprep.subr.bf16.mxu0 0
  %599 = vmatpush1.bf16.msra.mxu0 0
  %600 = vmatprep.mubr.bf16.mxu0 0
  %601 = vmatmul.mubr.bf16.gmra.mrb[0].mxu0 %v402
  %v602 = vpop.f32.mrb[0].mxu0
  %v603 = vadd.f32 0.0, %v602
  %v604 = vpop.f32.mrb[0].mxu0
  %v605 = vadd.f32 0.0, %v604
  %v606 = vpop.f32.mrb[0].mxu0
  %v607 = vpop.f32.mrb[0].mxu0
  %608 = vdwg.mxu0
  %609 = vmatprep.subr.bf16.mxu0 %v283
  %610 = vmatpush1.bf16.msra.mxu0 %v282
  %611 = vmatprep.subr.bf16.mxu0 %v315
  %612 = vmatpush1.bf16.msra.mxu0 %v314
  %613 = vmatprep.subr.bf16.mxu0 0
  %614 = vmatpush1.bf16.msra.mxu0 0
  %615 = vmatprep.subr.bf16.mxu0 0
  %616 = vmatpush1.bf16.msra.mxu0 0
  %617 = vmatprep.subr.bf16.mxu0 0
  %618 = vmatpush1.bf16.msra.mxu0 0
  %619 = vmatprep.subr.bf16.mxu0 0
  %620 = vmatpush1.bf16.msra.mxu0 0
  %621 = vmatprep.subr.bf16.mxu0 0
  %622 = vmatpush1.bf16.msra.mxu0 0
  %623 = vmatprep.subr.bf16.mxu0 0
  %624 = vmatpush1.bf16.msra.mxu0 0
  %625 = vmatprep.subr.bf16.mxu0 0
  %626 = vmatpush1.bf16.msra.mxu0 0
  %627 = vmatprep.subr.bf16.mxu0 0
  %628 = vmatpush1.bf16.msra.mxu0 0
  %629 = vmatprep.subr.bf16.mxu0 0
  %630 = vmatpush1.bf16.msra.mxu0 0
  %631 = vmatprep.subr.bf16.mxu0 0
  %632 = vmatpush1.bf16.msra.mxu0 0
  %633 = vmatprep.subr.bf16.mxu0 0
  %634 = vmatpush1.bf16.msra.mxu0 0
  %635 = vmatprep.subr.bf16.mxu0 0
  %636 = vmatpush1.bf16.msra.mxu0 0
  %637 = vmatprep.subr.bf16.mxu0 0
  %638 = vmatpush1.bf16.msra.mxu0 0
  %639 = vmatprep.subr.bf16.mxu0 0
  %640 = vmatpush1.bf16.msra.mxu0 0
  %641 = vmatprep.mubr.bf16.mxu0 0
  %642 = vmatmul.mubr.bf16.gmra.mrb[0].mxu0 %v402
  %v643 = vpop.f32.mrb[0].mxu0
  %v644 = vadd.f32 0.0, %v643
  %v645 = vpop.f32.mrb[0].mxu0
  %v646 = vadd.f32 0.0, %v645
  %v647 = vpop.f32.mrb[0].mxu0
  %v648 = vpop.f32.mrb[0].mxu0
  %649 = vdwg.mxu0
  %650 = vmatprep.subr.bf16.mxu0 %v285
  %651 = vmatpush1.bf16.msra.mxu0 %v284
  %652 = vmatprep.subr.bf16.mxu0 %v317
  %653 = vmatpush1.bf16.msra.mxu0 %v316
  %654 = vmatprep.subr.bf16.mxu0 0
  %655 = vmatpush1.bf16.msra.mxu0 0
  %656 = vmatprep.subr.bf16.mxu0 0
  %657 = vmatpush1.bf16.msra.mxu0 0
  %658 = vmatprep.subr.bf16.mxu0 0
  %659 = vmatpush1.bf16.msra.mxu0 0
  %660 = vmatprep.subr.bf16.mxu0 0
  %661 = vmatpush1.bf16.msra.mxu0 0
  %662 = vmatprep.subr.bf16.mxu0 0
  %663 = vmatpush1.bf16.msra.mxu0 0
  %664 = vmatprep.subr.bf16.mxu0 0
  %665 = vmatpush1.bf16.msra.mxu0 0
  %666 = vmatprep.subr.bf16.mxu0 0
  %667 = vmatpush1.bf16.msra.mxu0 0
  %668 = vmatprep.subr.bf16.mxu0 0
  %669 = vmatpush1.bf16.msra.mxu0 0
  %670 = vmatprep.subr.bf16.mxu0 0
  %671 = vmatpush1.bf16.msra.mxu0 0
  %672 = vmatprep.subr.bf16.mxu0 0
  %673 = vmatpush1.bf16.msra.mxu0 0
  %674 = vmatprep.subr.bf16.mxu0 0
  %675 = vmatpush1.bf16.msra.mxu0 0
  %676 = vmatprep.subr.bf16.mxu0 0
  %677 = vmatpush1.bf16.msra.mxu0 0
  %678 = vmatprep.subr.bf16.mxu0 0
  %679 = vmatpush1.bf16.msra.mxu0 0
  %680 = vmatprep.subr.bf16.mxu0 0
  %681 = vmatpush1.bf16.msra.mxu0 0
  %682 = vmatprep.mubr.bf16.mxu0 0
  %683 = vmatmul.mubr.bf16.gmra.mrb[0].mxu0 %v402
  %v684 = vpop.f32.mrb[0].mxu0
  %v685 = vadd.f32 0.0, %v684
  %v686 = vpop.f32.mrb[0].mxu0
  %v687 = vadd.f32 0.0, %v686
  %v688 = vpop.f32.mrb[0].mxu0
  %v689 = vpop.f32.mrb[0].mxu0
  %690 = vdwg.mxu0
  %691 = vmatprep.subr.bf16.mxu0 %v287
  %692 = vmatpush1.bf16.msra.mxu0 %v286
  %693 = vmatprep.subr.bf16.mxu0 %v319
  %694 = vmatpush1.bf16.msra.mxu0 %v318
  %695 = vmatprep.subr.bf16.mxu0 0
  %696 = vmatpush1.bf16.msra.mxu0 0
  %697 = vmatprep.subr.bf16.mxu0 0
  %698 = vmatpush1.bf16.msra.mxu0 0
  %699 = vmatprep.subr.bf16.mxu0 0
  %700 = vmatpush1.bf16.msra.mxu0 0
  %701 = vmatprep.subr.bf16.mxu0 0
  %702 = vmatpush1.bf16.msra.mxu0 0
  %703 = vmatprep.subr.bf16.mxu0 0
  %704 = vmatpush1.bf16.msra.mxu0 0
  %705 = vmatprep.subr.bf16.mxu0 0
  %706 = vmatpush1.bf16.msra.mxu0 0
  %707 = vmatprep.subr.bf16.mxu0 0
  %708 = vmatpush1.bf16.msra.mxu0 0
  %709 = vmatprep.subr.bf16.mxu0 0
  %710 = vmatpush1.bf16.msra.mxu0 0
  %711 = vmatprep.subr.bf16.mxu0 0
  %712 = vmatpush1.bf16.msra.mxu0 0
  %713 = vmatprep.subr.bf16.mxu0 0
  %714 = vmatpush1.bf16.msra.mxu0 0
  %715 = vmatprep.subr.bf16.mxu0 0
  %716 = vmatpush1.bf16.msra.mxu0 0
  %717 = vmatprep.subr.bf16.mxu0 0
  %718 = vmatpush1.bf16.msra.mxu0 0
  %719 = vmatprep.subr.bf16.mxu0 0
  %720 = vmatpush1.bf16.msra.mxu0 0
  %721 = vmatprep.subr.bf16.mxu0 0
  %722 = vmatpush1.bf16.msra.mxu0 0
  %723 = vmatprep.mubr.bf16.mxu0 0
  %724 = vmatmul.mubr.bf16.gmra.mrb[0].mxu0 %v402
  %v725 = vpop.f32.mrb[0].mxu0
  %v726 = vadd.f32 0.0, %v725
  %v727 = vpop.f32.mrb[0].mxu0
  %v728 = vadd.f32 0.0, %v727
  %v729 = vpop.f32.mrb[0].mxu0
  %v730 = vpop.f32.mrb[0].mxu0
  %731 = vdwg.mxu0
  %732 = vmatprep.subr.bf16.mxu0 %v289
  %733 = vmatpush1.bf16.msra.mxu0 %v288
  %734 = vmatprep.subr.bf16.mxu0 %v321
  %735 = vmatpush1.bf16.msra.mxu0 %v320
  %736 = vmatprep.subr.bf16.mxu0 0
  %737 = vmatpush1.bf16.msra.mxu0 0
  %738 = vmatprep.subr.bf16.mxu0 0
  %739 = vmatpush1.bf16.msra.mxu0 0
  %740 = vmatprep.subr.bf16.mxu0 0
  %741 = vmatpush1.bf16.msra.mxu0 0
  %742 = vmatprep.subr.bf16.mxu0 0
  %743 = vmatpush1.bf16.msra.mxu0 0
  %744 = vmatprep.subr.bf16.mxu0 0
  %745 = vmatpush1.bf16.msra.mxu0 0
  %746 = vmatprep.subr.bf16.mxu0 0
  %747 = vmatpush1.bf16.msra.mxu0 0
  %748 = vmatprep.subr.bf16.mxu0 0
  %749 = vmatpush1.bf16.msra.mxu0 0
  %750 = vmatprep.subr.bf16.mxu0 0
  %751 = vmatpush1.bf16.msra.mxu0 0
  %752 = vmatprep.subr.bf16.mxu0 0
  %753 = vmatpush1.bf16.msra.mxu0 0
  %754 = vmatprep.subr.bf16.mxu0 0
  %755 = vmatpush1.bf16.msra.mxu0 0
  %756 = vmatprep.subr.bf16.mxu0 0
  %757 = vmatpush1.bf16.msra.mxu0 0
  %758 = vmatprep.subr.bf16.mxu0 0
  %759 = vmatpush1.bf16.msra.mxu0 0
  %760 = vmatprep.subr.bf16.mxu0 0
  %761 = vmatpush1.bf16.msra.mxu0 0
  %762 = vmatprep.subr.bf16.mxu0 0
  %763 = vmatpush1.bf16.msra.mxu0 0
  %764 = vmatprep.mubr.bf16.mxu0 0
  %765 = vmatmul.mubr.bf16.gmra.mrb[0].mxu0 %v402
  %v766 = vpop.f32.mrb[0].mxu0
  %v767 = vadd.f32 0.0, %v766
  %v768 = vpop.f32.mrb[0].mxu0
  %v769 = vadd.f32 0.0, %v768
  %v770 = vpop.f32.mrb[0].mxu0
  %v771 = vpop.f32.mrb[0].mxu0
  %772 = vdwg.mxu0
  %773 = vmatprep.subr.bf16.mxu0 %v291
  %774 = vmatpush1.bf16.msra.mxu0 %v290
  %775 = vmatprep.subr.bf16.mxu0 %v323
  %776 = vmatpush1.bf16.msra.mxu0 %v322
  %777 = vmatprep.subr.bf16.mxu0 0
  %778 = vmatpush1.bf16.msra.mxu0 0
  %779 = vmatprep.subr.bf16.mxu0 0
  %780 = vmatpush1.bf16.msra.mxu0 0
  %781 = vmatprep.subr.bf16.mxu0 0
  %782 = vmatpush1.bf16.msra.mxu0 0
  %783 = vmatprep.subr.bf16.mxu0 0
  %784 = vmatpush1.bf16.msra.mxu0 0
  %785 = vmatprep.subr.bf16.mxu0 0
  %786 = vmatpush1.bf16.msra.mxu0 0
  %787 = vmatprep.subr.bf16.mxu0 0
  %788 = vmatpush1.bf16.msra.mxu0 0
  %789 = vmatprep.subr.bf16.mxu0 0
  %790 = vmatpush1.bf16.msra.mxu0 0
  %791 = vmatprep.subr.bf16.mxu0 0
  %792 = vmatpush1.bf16.msra.mxu0 0
  %793 = vmatprep.subr.bf16.mxu0 0
  %794 = vmatpush1.bf16.msra.mxu0 0
  %795 = vmatprep.subr.bf16.mxu0 0
  %796 = vmatpush1.bf16.msra.mxu0 0
  %797 = vmatprep.subr.bf16.mxu0 0
  %798 = vmatpush1.bf16.msra.mxu0 0
  %799 = vmatprep.subr.bf16.mxu0 0
  %800 = vmatpush1.bf16.msra.mxu0 0
  %801 = vmatprep.subr.bf16.mxu0 0
  %802 = vmatpush1.bf16.msra.mxu0 0
  %803 = vmatprep.subr.bf16.mxu0 0
  %804 = vmatpush1.bf16.msra.mxu0 0
  %805 = vmatprep.mubr.bf16.mxu0 0
  %806 = vmatmul.mubr.bf16.gmra.mrb[0].mxu0 %v402
  %v807 = vpop.f32.mrb[0].mxu0
  %v808 = vadd.f32 0.0, %v807
  %v809 = vpop.f32.mrb[0].mxu0
  %v810 = vadd.f32 0.0, %v809
  %v811 = vpop.f32.mrb[0].mxu0
  %v812 = vpop.f32.mrb[0].mxu0
  %813 = vdwg.mxu0
  %814 = vmatprep.subr.bf16.mxu0 %v293
  %815 = vmatpush1.bf16.msra.mxu0 %v292
  %816 = vmatprep.subr.bf16.mxu0 %v325
  %817 = vmatpush1.bf16.msra.mxu0 %v324
  %818 = vmatprep.subr.bf16.mxu0 0
  %819 = vmatpush1.bf16.msra.mxu0 0
  %820 = vmatprep.subr.bf16.mxu0 0
  %821 = vmatpush1.bf16.msra.mxu0 0
  %822 = vmatprep.subr.bf16.mxu0 0
  %823 = vmatpush1.bf16.msra.mxu0 0
  %824 = vmatprep.subr.bf16.mxu0 0
  %825 = vmatpush1.bf16.msra.mxu0 0
  %826 = vmatprep.subr.bf16.mxu0 0
  %827 = vmatpush1.bf16.msra.mxu0 0
  %828 = vmatprep.subr.bf16.mxu0 0
  %829 = vmatpush1.bf16.msra.mxu0 0
  %830 = vmatprep.subr.bf16.mxu0 0
  %831 = vmatpush1.bf16.msra.mxu0 0
  %832 = vmatprep.subr.bf16.mxu0 0
  %833 = vmatpush1.bf16.msra.mxu0 0
  %834 = vmatprep.subr.bf16.mxu0 0
  %835 = vmatpush1.bf16.msra.mxu0 0
  %836 = vmatprep.subr.bf16.mxu0 0
  %837 = vmatpush1.bf16.msra.mxu0 0
  %838 = vmatprep.subr.bf16.mxu0 0
  %839 = vmatpush1.bf16.msra.mxu0 0
  %840 = vmatprep.subr.bf16.mxu0 0
  %841 = vmatpush1.bf16.msra.mxu0 0
  %842 = vmatprep.subr.bf16.mxu0 0
  %843 = vmatpush1.bf16.msra.mxu0 0
  %844 = vmatprep.subr.bf16.mxu0 0
  %845 = vmatpush1.bf16.msra.mxu0 0
  %846 = vmatprep.mubr.bf16.mxu0 0
  %847 = vmatmul.mubr.bf16.gmra.mrb[0].mxu0 %v402
  %v848 = vpop.f32.mrb[0].mxu0
  %v849 = vadd.f32 0.0, %v848
  %v850 = vpop.f32.mrb[0].mxu0
  %v851 = vadd.f32 0.0, %v850
  %v852 = vpop.f32.mrb[0].mxu0
  %v853 = vpop.f32.mrb[0].mxu0
  %854 = vdwg.mxu0
  %855 = vmatprep.subr.bf16.mxu0 %v295
  %856 = vmatpush1.bf16.msra.mxu0 %v294
  %857 = vmatprep.subr.bf16.mxu0 %v327
  %858 = vmatpush1.bf16.msra.mxu0 %v326
  %859 = vmatprep.subr.bf16.mxu0 0
  %860 = vmatpush1.bf16.msra.mxu0 0
  %861 = vmatprep.subr.bf16.mxu0 0
  %862 = vmatpush1.bf16.msra.mxu0 0
  %863 = vmatprep.subr.bf16.mxu0 0
  %864 = vmatpush1.bf16.msra.mxu0 0
  %865 = vmatprep.subr.bf16.mxu0 0
  %866 = vmatpush1.bf16.msra.mxu0 0
  %867 = vmatprep.subr.bf16.mxu0 0
  %868 = vmatpush1.bf16.msra.mxu0 0
  %869 = vmatprep.subr.bf16.mxu0 0
  %870 = vmatpush1.bf16.msra.mxu0 0
  %871 = vmatprep.subr.bf16.mxu0 0
  %872 = vmatpush1.bf16.msra.mxu0 0
  %873 = vmatprep.subr.bf16.mxu0 0
  %874 = vmatpush1.bf16.msra.mxu0 0
  %875 = vmatprep.subr.bf16.mxu0 0
  %876 = vmatpush1.bf16.msra.mxu0 0
  %877 = vmatprep.subr.bf16.mxu0 0
  %878 = vmatpush1.bf16.msra.mxu0 0
  %879 = vmatprep.subr.bf16.mxu0 0
  %880 = vmatpush1.bf16.msra.mxu0 0
  %881 = vmatprep.subr.bf16.mxu0 0
  %882 = vmatpush1.bf16.msra.mxu0 0
  %883 = vmatprep.subr.bf16.mxu0 0
  %884 = vmatpush1.bf16.msra.mxu0 0
  %885 = vmatprep.subr.bf16.mxu0 0
  %886 = vmatpush1.bf16.msra.mxu0 0
  %887 = vmatprep.mubr.bf16.mxu0 0
  %888 = vmatmul.mubr.bf16.gmra.mrb[0].mxu0 %v402
  %v889 = vpop.f32.mrb[0].mxu0
  %v890 = vadd.f32 0.0, %v889
  %v891 = vpop.f32.mrb[0].mxu0
  %v892 = vadd.f32 0.0, %v891
  %v893 = vpop.f32.mrb[0].mxu0
  %v894 = vpop.f32.mrb[0].mxu0
  %895 = vdwg.mxu0
  %896 = vmatprep.subr.bf16.mxu0 %v297
  %897 = vmatpush1.bf16.msra.mxu0 %v296
  %898 = vmatprep.subr.bf16.mxu0 %v329
  %899 = vmatpush1.bf16.msra.mxu0 %v328
  %900 = vmatprep.subr.bf16.mxu0 0
  %901 = vmatpush1.bf16.msra.mxu0 0
  %902 = vmatprep.subr.bf16.mxu0 0
  %903 = vmatpush1.bf16.msra.mxu0 0
  %904 = vmatprep.subr.bf16.mxu0 0
  %905 = vmatpush1.bf16.msra.mxu0 0
  %906 = vmatprep.subr.bf16.mxu0 0
  %907 = vmatpush1.bf16.msra.mxu0 0
  %908 = vmatprep.subr.bf16.mxu0 0
  %909 = vmatpush1.bf16.msra.mxu0 0
  %910 = vmatprep.subr.bf16.mxu0 0
  %911 = vmatpush1.bf16.msra.mxu0 0
  %912 = vmatprep.subr.bf16.mxu0 0
  %913 = vmatpush1.bf16.msra.mxu0 0
  %914 = vmatprep.subr.bf16.mxu0 0
  %915 = vmatpush1.bf16.msra.mxu0 0
  %916 = vmatprep.subr.bf16.mxu0 0
  %917 = vmatpush1.bf16.msra.mxu0 0
  %918 = vmatprep.subr.bf16.mxu0 0
  %919 = vmatpush1.bf16.msra.mxu0 0
  %920 = vmatprep.subr.bf16.mxu0 0
  %921 = vmatpush1.bf16.msra.mxu0 0
  %922 = vmatprep.subr.bf16.mxu0 0
  %923 = vmatpush1.bf16.msra.mxu0 0
  %924 = vmatprep.subr.bf16.mxu0 0
  %925 = vmatpush1.bf16.msra.mxu0 0
  %926 = vmatprep.subr.bf16.mxu0 0
  %927 = vmatpush1.bf16.msra.mxu0 0
  %928 = vmatprep.mubr.bf16.mxu0 0
  %929 = vmatmul.mubr.bf16.gmra.mrb[0].mxu0 %v402
  %v930 = vpop.f32.mrb[0].mxu0
  %v931 = vadd.f32 0.0, %v930
  %v932 = vpop.f32.mrb[0].mxu0
  %v933 = vadd.f32 0.0, %v932
  %v934 = vpop.f32.mrb[0].mxu0
  %v935 = vpop.f32.mrb[0].mxu0
  %936 = vdwg.mxu0
  %937 = vmatprep.subr.bf16.mxu0 %v299
  %938 = vmatpush1.bf16.msra.mxu0 %v298
  %939 = vmatprep.subr.bf16.mxu0 %v331
  %940 = vmatpush1.bf16.msra.mxu0 %v330
  %941 = vmatprep.subr.bf16.mxu0 0
  %942 = vmatpush1.bf16.msra.mxu0 0
  %943 = vmatprep.subr.bf16.mxu0 0
  %944 = vmatpush1.bf16.msra.mxu0 0
  %945 = vmatprep.subr.bf16.mxu0 0
  %946 = vmatpush1.bf16.msra.mxu0 0
  %947 = vmatprep.subr.bf16.mxu0 0
  %948 = vmatpush1.bf16.msra.mxu0 0
  %949 = vmatprep.subr.bf16.mxu0 0
  %950 = vmatpush1.bf16.msra.mxu0 0
  %951 = vmatprep.subr.bf16.mxu0 0
  %952 = vmatpush1.bf16.msra.mxu0 0
  %953 = vmatprep.subr.bf16.mxu0 0
  %954 = vmatpush1.bf16.msra.mxu0 0
  %955 = vmatprep.subr.bf16.mxu0 0
  %956 = vmatpush1.bf16.msra.mxu0 0
  %957 = vmatprep.subr.bf16.mxu0 0
  %958 = vmatpush1.bf16.msra.mxu0 0
  %959 = vmatprep.subr.bf16.mxu0 0
  %960 = vmatpush1.bf16.msra.mxu0 0
  %961 = vmatprep.subr.bf16.mxu0 0
  %962 = vmatpush1.bf16.msra.mxu0 0
  %963 = vmatprep.subr.bf16.mxu0 0
  %964 = vmatpush1.bf16.msra.mxu0 0
  %965 = vmatprep.subr.bf16.mxu0 0
  %966 = vmatpush1.bf16.msra.mxu0 0
  %967 = vmatprep.subr.bf16.mxu0 0
  %968 = vmatpush1.bf16.msra.mxu0 0
  %969 = vmatprep.mubr.bf16.mxu0 0
  %970 = vmatmul.mubr.bf16.gmra.mrb[0].mxu0 %v402
  %v971 = vpop.f32.mrb[0].mxu0
  %v972 = vadd.f32 0.0, %v971
  %v973 = vpop.f32.mrb[0].mxu0
  %v974 = vadd.f32 0.0, %v973
  %v975 = vpop.f32.mrb[0].mxu0
  %v976 = vpop.f32.mrb[0].mxu0
  %977 = vdwg.mxu0
  %978 = vmatprep.subr.bf16.mxu0 %v301
  %979 = vmatpush1.bf16.msra.mxu0 %v300
  %980 = vmatprep.subr.bf16.mxu0 %v333
  %981 = vmatpush1.bf16.msra.mxu0 %v332
  %982 = vmatprep.subr.bf16.mxu0 0
  %983 = vmatpush1.bf16.msra.mxu0 0
  %984 = vmatprep.subr.bf16.mxu0 0
  %985 = vmatpush1.bf16.msra.mxu0 0
  %986 = vmatprep.subr.bf16.mxu0 0
  %987 = vmatpush1.bf16.msra.mxu0 0
  %988 = vmatprep.subr.bf16.mxu0 0
  %989 = vmatpush1.bf16.msra.mxu0 0
  %990 = vmatprep.subr.bf16.mxu0 0
  %991 = vmatpush1.bf16.msra.mxu0 0
  %992 = vmatprep.subr.bf16.mxu0 0
  %993 = vmatpush1.bf16.msra.mxu0 0
  %994 = vmatprep.subr.bf16.mxu0 0
  %995 = vmatpush1.bf16.msra.mxu0 0
  %996 = vmatprep.subr.bf16.mxu0 0
  %997 = vmatpush1.bf16.msra.mxu0 0
  %998 = vmatprep.subr.bf16.mxu0 0
  %999 = vmatpush1.bf16.msra.mxu0 0
  %1000 = vmatprep.subr.bf16.mxu0 0
  %1001 = vmatpush1.bf16.msra.mxu0 0
  %1002 = vmatprep.subr.bf16.mxu0 0
  %1003 = vmatpush1.bf16.msra.mxu0 0
  %1004 = vmatprep.subr.bf16.mxu0 0
  %1005 = vmatpush1.bf16.msra.mxu0 0
  %1006 = vmatprep.subr.bf16.mxu0 0
  %1007 = vmatpush1.bf16.msra.mxu0 0
  %1008 = vmatprep.subr.bf16.mxu0 0
  %1009 = vmatpush1.bf16.msra.mxu0 0
  %1010 = vmatprep.mubr.bf16.mxu0 0
  %1011 = vmatmul.mubr.bf16.gmra.mrb[0].mxu0 %v402
  %v1012 = vpop.f32.mrb[0].mxu0
  %v1013 = vadd.f32 0.0, %v1012
  %v1014 = vpop.f32.mrb[0].mxu0
  %v1015 = vadd.f32 0.0, %v1014
  %v1016 = vpop.f32.mrb[0].mxu0
  %v1017 = vpop.f32.mrb[0].mxu0
  %1018 = vdwg.mxu0
  %1019 = vmatprep.subr.bf16.mxu0 %v303
  %1020 = vmatpush1.bf16.msra.mxu0 %v302
  %1021 = vmatprep.subr.bf16.mxu0 %v335
  %1022 = vmatpush1.bf16.msra.mxu0 %v334
  %1023 = vmatprep.subr.bf16.mxu0 0
  %1024 = vmatpush1.bf16.msra.mxu0 0
  %1025 = vmatprep.subr.bf16.mxu0 0
  %1026 = vmatpush1.bf16.msra.mxu0 0
  %1027 = vmatprep.subr.bf16.mxu0 0
  %1028 = vmatpush1.bf16.msra.mxu0 0
  %1029 = vmatprep.subr.bf16.mxu0 0
  %1030 = vmatpush1.bf16.msra.mxu0 0
  %1031 = vmatprep.subr.bf16.mxu0 0
  %1032 = vmatpush1.bf16.msra.mxu0 0
  %1033 = vmatprep.subr.bf16.mxu0 0
  %1034 = vmatpush1.bf16.msra.mxu0 0
  %1035 = vmatprep.subr.bf16.mxu0 0
  %1036 = vmatpush1.bf16.msra.mxu0 0
  %1037 = vmatprep.subr.bf16.mxu0 0
  %1038 = vmatpush1.bf16.msra.mxu0 0
  %1039 = vmatprep.subr.bf16.mxu0 0
  %1040 = vmatpush1.bf16.msra.mxu0 0
  %1041 = vmatprep.subr.bf16.mxu0 0
  %1042 = vmatpush1.bf16.msra.mxu0 0
  %1043 = vmatprep.subr.bf16.mxu0 0
  %1044 = vmatpush1.bf16.msra.mxu0 0
  %1045 = vmatprep.subr.bf16.mxu0 0
  %1046 = vmatpush1.bf16.msra.mxu0 0
  %1047 = vmatprep.subr.bf16.mxu0 0
  %1048 = vmatpush1.bf16.msra.mxu0 0
  %1049 = vmatprep.subr.bf16.mxu0 0
  %1050 = vmatpush1.bf16.msra.mxu0 0
  %1051 = vmatprep.mubr.bf16.mxu0 0
  %1052 = vmatmul.mubr.bf16.gmra.mrb[0].mxu0 %v402
  %v1053 = vpop.f32.mrb[0].mxu0
  %v1054 = vadd.f32 0.0, %v1053
  %v1055 = vpop.f32.mrb[0].mxu0
  %v1056 = vadd.f32 0.0, %v1055
  %v1057 = vpop.f32.mrb[0].mxu0
  %v1058 = vpop.f32.mrb[0].mxu0
  %1059 = vdwg.mxu0
  %v1060 = vpack.c.bf16 %v439, %v439
  %v1061 = vpack.c.bf16 %v441, %v441
  %v1062 = vpack.c.bf16 %v480, %v480
  %v1063 = vpack.c.bf16 %v482, %v482
  %v1064 = vpack.c.bf16 %v521, %v521
  %v1065 = vpack.c.bf16 %v523, %v523
  %v1066 = vpack.c.bf16 %v562, %v562
  %v1067 = vpack.c.bf16 %v564, %v564
  %v1068 = vpack.c.bf16 %v603, %v603
  %v1069 = vpack.c.bf16 %v605, %v605
  %v1070 = vpack.c.bf16 %v644, %v644
  %v1071 = vpack.c.bf16 %v646, %v646
  %v1072 = vpack.c.bf16 %v685, %v685
  %v1073 = vpack.c.bf16 %v687, %v687
  %v1074 = vpack.c.bf16 %v726, %v726
  %v1075 = vpack.c.bf16 %v728, %v728
  %v1076 = vpack.c.bf16 %v767, %v767
  %v1077 = vpack.c.bf16 %v769, %v769
  %v1078 = vpack.c.bf16 %v808, %v808
  %v1079 = vpack.c.bf16 %v810, %v810
  %v1080 = vpack.c.bf16 %v849, %v849
  %v1081 = vpack.c.bf16 %v851, %v851
  %v1082 = vpack.c.bf16 %v890, %v890
  %v1083 = vpack.c.bf16 %v892, %v892
  %v1084 = vpack.c.bf16 %v931, %v931
  %v1085 = vpack.c.bf16 %v933, %v933
  %v1086 = vpack.c.bf16 %v972, %v972
  %v1087 = vpack.c.bf16 %v974, %v974
  %v1088 = vpack.c.bf16 %v1013, %v1013
  %v1089 = vpack.c.bf16 %v1015, %v1015
  %v1090 = vpack.c.bf16 %v1054, %v1054
  %v1091 = vpack.c.bf16 %v1056, %v1056
  %v1124 = vunpack.c.l.b16 %v1060
  %v1125 = vunpack.c.l.b16 %v1061
  %v1126 = vunpack.c.l.b16 %v1062
  %v1127 = vunpack.c.l.b16 %v1063
  %v1128 = vunpack.c.l.b16 %v1064
  %v1129 = vunpack.c.l.b16 %v1065
  %v1130 = vunpack.c.l.b16 %v1066
  %v1131 = vunpack.c.l.b16 %v1067
  %v1132 = vunpack.c.l.b16 %v1068
  %v1133 = vunpack.c.l.b16 %v1069
  %v1134 = vunpack.c.l.b16 %v1070
  %v1135 = vunpack.c.l.b16 %v1071
  %v1136 = vunpack.c.l.b16 %v1072
  %v1137 = vunpack.c.l.b16 %v1073
  %v1138 = vunpack.c.l.b16 %v1074
  %v1139 = vunpack.c.l.b16 %v1075
  %v1140 = vunpack.c.l.b16 %v1076
  %v1141 = vunpack.c.l.b16 %v1077
  %v1142 = vunpack.c.l.b16 %v1078
  %v1143 = vunpack.c.l.b16 %v1079
  %v1144 = vunpack.c.l.b16 %v1080
  %v1145 = vunpack.c.l.b16 %v1081
  %v1146 = vunpack.c.l.b16 %v1082
  %v1147 = vunpack.c.l.b16 %v1083
  %v1148 = vunpack.c.l.b16 %v1084
  %v1149 = vunpack.c.l.b16 %v1085
  %v1150 = vunpack.c.l.b16 %v1086
  %v1151 = vunpack.c.l.b16 %v1087
  %v1152 = vunpack.c.l.b16 %v1088
  %v1153 = vunpack.c.l.b16 %v1089
  %v1154 = vunpack.c.l.b16 %v1090
  %v1155 = vunpack.c.l.b16 %v1091
  %v1156 = vpack.c.b16 %v1125, %v1124
  %v1157 = vpack.c.b16 %v1127, %v1126
  %v1158 = vpack.c.b16 %v1129, %v1128
  %v1159 = vpack.c.b16 %v1131, %v1130
  %v1160 = vpack.c.b16 %v1133, %v1132
  %v1161 = vpack.c.b16 %v1135, %v1134
  %v1162 = vpack.c.b16 %v1137, %v1136
  %v1163 = vpack.c.b16 %v1139, %v1138
  %v1164 = vpack.c.b16 %v1141, %v1140
  %v1165 = vpack.c.b16 %v1143, %v1142
  %v1166 = vpack.c.b16 %v1145, %v1144
  %v1167 = vpack.c.b16 %v1147, %v1146
  %v1168 = vpack.c.b16 %v1149, %v1148
  %v1169 = vpack.c.b16 %v1151, %v1150
  %v1170 = vpack.c.b16 %v1153, %v1152
  %v1171 = vpack.c.b16 %v1155, %v1154
  %1188 = vst [vmem:[%s2] sm:$0xff] %v1156
  %1189 = vst [vmem:[%s2 + $0x8] sm:$0xff] %v1157
  %1190 = vst [vmem:[%s2 + $0x10] sm:$0xff] %v1158
  %1191 = vst [vmem:[%s2 + $0x18] sm:$0xff] %v1159
  %1192 = vst [vmem:[%s2 + $0x20] sm:$0xff] %v1160
  %1193 = vst [vmem:[%s2 + $0x28] sm:$0xff] %v1161
  %1194 = vst [vmem:[%s2 + $0x30] sm:$0xff] %v1162
  %1195 = vst [vmem:[%s2 + $0x38] sm:$0xff] %v1163
  %1196 = vst [vmem:[%s2 + $0x40] sm:$0xff] %v1164
  %1197 = vst [vmem:[%s2 + $0x48] sm:$0xff] %v1165
  %1198 = vst [vmem:[%s2 + $0x50] sm:$0xff] %v1166
  %1199 = vst [vmem:[%s2 + $0x58] sm:$0xff] %v1167
  %1200 = vst [vmem:[%s2 + $0x60] sm:$0xff] %v1168
  %1201 = vst [vmem:[%s2 + $0x68] sm:$0xff] %v1169
  %1202 = vst [vmem:[%s2 + $0x70] sm:$0xff] %v1170
  %1203 = vst [vmem:[%s2 + $0x78] sm:$0xff] %v1171
  %v1204 = vrot.slane %v439, 4
  %v1205 = vadd.f32 %v439, %v1204
  %v1206 = vrot.slane %v1205, 2
  %v1207 = vadd.f32 %v1205, %v1206
  %v1208 = vrot.slane %v1207, 1
  %v1209 = vadd.f32 %v1207, %v1208
  %v1210 = vrot.slane %v441, 4
  %v1211 = vadd.f32 %v441, %v1210
  %v1212 = vrot.slane %v1211, 2
  %v1213 = vadd.f32 %v1211, %v1212
  %v1214 = vrot.slane %v1213, 1
  %v1215 = vadd.f32 %v1213, %v1214
  %v1216 = vrot.slane %v480, 4
  %v1217 = vadd.f32 %v480, %v1216
  %v1218 = vrot.slane %v1217, 2
  %v1219 = vadd.f32 %v1217, %v1218
  %v1220 = vrot.slane %v1219, 1
  %v1221 = vadd.f32 %v1219, %v1220
  %v1222 = vrot.slane %v482, 4
  %v1223 = vadd.f32 %v482, %v1222
  %v1224 = vrot.slane %v1223, 2
  %v1225 = vadd.f32 %v1223, %v1224
  %v1226 = vrot.slane %v1225, 1
  %v1227 = vadd.f32 %v1225, %v1226
  %v1228 = vrot.slane %v521, 4
  %v1229 = vadd.f32 %v521, %v1228
  %v1230 = vrot.slane %v1229, 2
  %v1231 = vadd.f32 %v1229, %v1230
  %v1232 = vrot.slane %v1231, 1
  %v1233 = vadd.f32 %v1231, %v1232
  %v1234 = vrot.slane %v523, 4
  %v1235 = vadd.f32 %v523, %v1234
  %v1236 = vrot.slane %v1235, 2
  %v1237 = vadd.f32 %v1235, %v1236
  %v1238 = vrot.slane %v1237, 1
  %v1239 = vadd.f32 %v1237, %v1238
  %v1240 = vrot.slane %v562, 4
  %v1241 = vadd.f32 %v562, %v1240
  %v1242 = vrot.slane %v1241, 2
  %v1243 = vadd.f32 %v1241, %v1242
  %v1244 = vrot.slane %v1243, 1
  %v1245 = vadd.f32 %v1243, %v1244
  %v1246 = vrot.slane %v564, 4
  %v1247 = vadd.f32 %v564, %v1246
  %v1248 = vrot.slane %v1247, 2
  %v1249 = vadd.f32 %v1247, %v1248
  %v1250 = vrot.slane %v1249, 1
  %v1251 = vadd.f32 %v1249, %v1250
  %v1252 = vrot.slane %v603, 4
  %v1253 = vadd.f32 %v603, %v1252
  %v1254 = vrot.slane %v1253, 2
  %v1255 = vadd.f32 %v1253, %v1254
  %v1256 = vrot.slane %v1255, 1
  %v1257 = vadd.f32 %v1255, %v1256
  %v1258 = vrot.slane %v605, 4
  %v1259 = vadd.f32 %v605, %v1258
  %v1260 = vrot.slane %v1259, 2
  %v1261 = vadd.f32 %v1259, %v1260
  %v1262 = vrot.slane %v1261, 1
  %v1263 = vadd.f32 %v1261, %v1262
  %v1264 = vrot.slane %v644, 4
  %v1265 = vadd.f32 %v644, %v1264
  %v1266 = vrot.slane %v1265, 2
  %v1267 = vadd.f32 %v1265, %v1266
  %v1268 = vrot.slane %v1267, 1
  %v1269 = vadd.f32 %v1267, %v1268
  %v1270 = vrot.slane %v646, 4
  %v1271 = vadd.f32 %v646, %v1270
  %v1272 = vrot.slane %v1271, 2
  %v1273 = vadd.f32 %v1271, %v1272
  %v1274 = vrot.slane %v1273, 1
  %v1275 = vadd.f32 %v1273, %v1274
  %v1276 = vrot.slane %v685, 4
  %v1277 = vadd.f32 %v685, %v1276
  %v1278 = vrot.slane %v1277, 2
  %v1279 = vadd.f32 %v1277, %v1278
  %v1280 = vrot.slane %v1279, 1
  %v1281 = vadd.f32 %v1279, %v1280
  %v1282 = vrot.slane %v687, 4
  %v1283 = vadd.f32 %v687, %v1282
  %v1284 = vrot.slane %v1283, 2
  %v1285 = vadd.f32 %v1283, %v1284
  %v1286 = vrot.slane %v1285, 1
  %v1287 = vadd.f32 %v1285, %v1286
  %v1288 = vrot.slane %v726, 4
  %v1289 = vadd.f32 %v726, %v1288
  %v1290 = vrot.slane %v1289, 2
  %v1291 = vadd.f32 %v1289, %v1290
  %v1292 = vrot.slane %v1291, 1
  %v1293 = vadd.f32 %v1291, %v1292
  %v1294 = vrot.slane %v728, 4
  %v1295 = vadd.f32 %v728, %v1294
  %v1296 = vrot.slane %v1295, 2
  %v1297 = vadd.f32 %v1295, %v1296
  %v1298 = vrot.slane %v1297, 1
  %v1299 = vadd.f32 %v1297, %v1298
  %v1300 = vrot.slane %v767, 4
  %v1301 = vadd.f32 %v767, %v1300
  %v1302 = vrot.slane %v1301, 2
  %v1303 = vadd.f32 %v1301, %v1302
  %v1304 = vrot.slane %v1303, 1
  %v1305 = vadd.f32 %v1303, %v1304
  %v1306 = vrot.slane %v769, 4
  %v1307 = vadd.f32 %v769, %v1306
  %v1308 = vrot.slane %v1307, 2
  %v1309 = vadd.f32 %v1307, %v1308
  %v1310 = vrot.slane %v1309, 1
  %v1311 = vadd.f32 %v1309, %v1310
  %v1312 = vrot.slane %v808, 4
  %v1313 = vadd.f32 %v808, %v1312
  %v1314 = vrot.slane %v1313, 2
  %v1315 = vadd.f32 %v1313, %v1314
  %v1316 = vrot.slane %v1315, 1
  %v1317 = vadd.f32 %v1315, %v1316
  %v1318 = vrot.slane %v810, 4
  %v1319 = vadd.f32 %v810, %v1318
  %v1320 = vrot.slane %v1319, 2
  %v1321 = vadd.f32 %v1319, %v1320
  %v1322 = vrot.slane %v1321, 1
  %v1323 = vadd.f32 %v1321, %v1322
  %v1324 = vrot.slane %v849, 4
  %v1325 = vadd.f32 %v849, %v1324
  %v1326 = vrot.slane %v1325, 2
  %v1327 = vadd.f32 %v1325, %v1326
  %v1328 = vrot.slane %v1327, 1
  %v1329 = vadd.f32 %v1327, %v1328
  %v1330 = vrot.slane %v851, 4
  %v1331 = vadd.f32 %v851, %v1330
  %v1332 = vrot.slane %v1331, 2
  %v1333 = vadd.f32 %v1331, %v1332
  %v1334 = vrot.slane %v1333, 1
  %v1335 = vadd.f32 %v1333, %v1334
  %v1336 = vrot.slane %v890, 4
  %v1337 = vadd.f32 %v890, %v1336
  %v1338 = vrot.slane %v1337, 2
  %v1339 = vadd.f32 %v1337, %v1338
  %v1340 = vrot.slane %v1339, 1
  %v1341 = vadd.f32 %v1339, %v1340
  %v1342 = vrot.slane %v892, 4
  %v1343 = vadd.f32 %v892, %v1342
  %v1344 = vrot.slane %v1343, 2
  %v1345 = vadd.f32 %v1343, %v1344
  %v1346 = vrot.slane %v1345, 1
  %v1347 = vadd.f32 %v1345, %v1346
  %v1348 = vrot.slane %v931, 4
  %v1349 = vadd.f32 %v931, %v1348
  %v1350 = vrot.slane %v1349, 2
  %v1351 = vadd.f32 %v1349, %v1350
  %v1352 = vrot.slane %v1351, 1
  %v1353 = vadd.f32 %v1351, %v1352
  %v1354 = vrot.slane %v933, 4
  %v1355 = vadd.f32 %v933, %v1354
  %v1356 = vrot.slane %v1355, 2
  %v1357 = vadd.f32 %v1355, %v1356
  %v1358 = vrot.slane %v1357, 1
  %v1359 = vadd.f32 %v1357, %v1358
  %v1360 = vrot.slane %v972, 4
  %v1361 = vadd.f32 %v972, %v1360
  %v1362 = vrot.slane %v1361, 2
  %v1363 = vadd.f32 %v1361, %v1362
  %v1364 = vrot.slane %v1363, 1
  %v1365 = vadd.f32 %v1363, %v1364
  %v1366 = vrot.slane %v974, 4
  %v1367 = vadd.f32 %v974, %v1366
  %v1368 = vrot.slane %v1367, 2
  %v1369 = vadd.f32 %v1367, %v1368
  %v1370 = vrot.slane %v1369, 1
  %v1371 = vadd.f32 %v1369, %v1370
  %v1372 = vrot.slane %v1013, 4
  %v1373 = vadd.f32 %v1013, %v1372
  %v1374 = vrot.slane %v1373, 2
  %v1375 = vadd.f32 %v1373, %v1374
  %v1376 = vrot.slane %v1375, 1
  %v1377 = vadd.f32 %v1375, %v1376
  %v1378 = vrot.slane %v1015, 4
  %v1379 = vadd.f32 %v1015, %v1378
  %v1380 = vrot.slane %v1379, 2
  %v1381 = vadd.f32 %v1379, %v1380
  %v1382 = vrot.slane %v1381, 1
  %v1383 = vadd.f32 %v1381, %v1382
  %v1384 = vrot.slane %v1054, 4
  %v1385 = vadd.f32 %v1054, %v1384
  %v1386 = vrot.slane %v1385, 2
  %v1387 = vadd.f32 %v1385, %v1386
  %v1388 = vrot.slane %v1387, 1
  %v1389 = vadd.f32 %v1387, %v1388
  %v1390 = vrot.slane %v1056, 4
  %v1391 = vadd.f32 %v1056, %v1390
  %v1392 = vrot.slane %v1391, 2
  %v1393 = vadd.f32 %v1391, %v1392
  %v1394 = vrot.slane %v1393, 1
  %v1395 = vadd.f32 %v1393, %v1394
  %v1428 = vcombine.low %v1209, %v1215
  %v1429 = vcombine.low %v1221, %v1227
  %v1430 = vcombine.low %v1233, %v1239
  %v1431 = vcombine.low %v1245, %v1251
  %v1433 = vunpack.c.l.s4 1966171168
  %v1434 = vunpack.c.0.s8 %v1433
  %v1435 = vlaneseq
  %v1436 = vshrl.u32 %v1435, 7
  %v1437 = vsub.s32 %v1434, %v1436
  %v1438 = vrot.slane %v1428, %v1437
  %v1440 = vunpack.c.l.s4 1966171168
  %v1441 = vunpack.c.0.s8 %v1440
  %v1442 = vlaneseq
  %v1443 = vshrl.u32 %v1442, 7
  %v1444 = vsub.s32 %v1441, %v1443
  %v1445 = vrot.slane %v1429, %v1444
  %v1447 = vunpack.c.l.s4 1966171168
  %v1448 = vunpack.c.0.s8 %v1447
  %v1449 = vlaneseq
  %v1450 = vshrl.u32 %v1449, 7
  %v1451 = vsub.s32 %v1448, %v1450
  %v1452 = vrot.slane %v1430, %v1451
  %v1454 = vunpack.c.l.s4 1966171168
  %v1455 = vunpack.c.0.s8 %v1454
  %v1456 = vlaneseq
  %v1457 = vshrl.u32 %v1456, 7
  %v1458 = vsub.s32 %v1455, %v1457
  %v1459 = vrot.slane %v1431, %v1458
  %v1460 = vcombine.low %v1438, %v1445
  %v1461 = vcombine.low %v1452, %v1459
  %v1463 = vunpack.c.l.s4 1966171168
  %v1464 = vunpack.c.0.s8 %v1463
  %v1465 = vlaneseq
  %v1466 = vshrl.u32 %v1465, 7
  %v1467 = vsub.s32 %v1464, %v1466
  %v1468 = vrot.slane %v1460, %v1467
  %v1470 = vunpack.c.l.s4 1966171168
  %v1471 = vunpack.c.0.s8 %v1470
  %v1472 = vlaneseq
  %v1473 = vshrl.u32 %v1472, 7
  %v1474 = vsub.s32 %v1471, %v1473
  %v1475 = vrot.slane %v1461, %v1474
  %v1476 = vcombine.low %v1468, %v1475
  %v1477 = vcombine.low %v1257, %v1263
  %v1478 = vcombine.low %v1269, %v1275
  %v1479 = vcombine.low %v1281, %v1287
  %v1480 = vcombine.low %v1293, %v1299
  %v1482 = vunpack.c.l.s4 1966171168
  %v1483 = vunpack.c.0.s8 %v1482
  %v1484 = vlaneseq
  %v1485 = vshrl.u32 %v1484, 7
  %v1486 = vsub.s32 %v1483, %v1485
  %v1487 = vrot.slane %v1477, %v1486
  %v1489 = vunpack.c.l.s4 1966171168
  %v1490 = vunpack.c.0.s8 %v1489
  %v1491 = vlaneseq
  %v1492 = vshrl.u32 %v1491, 7
  %v1493 = vsub.s32 %v1490, %v1492
  %v1494 = vrot.slane %v1478, %v1493
  %v1496 = vunpack.c.l.s4 1966171168
  %v1497 = vunpack.c.0.s8 %v1496
  %v1498 = vlaneseq
  %v1499 = vshrl.u32 %v1498, 7
  %v1500 = vsub.s32 %v1497, %v1499
  %v1501 = vrot.slane %v1479, %v1500
  %v1503 = vunpack.c.l.s4 1966171168
  %v1504 = vunpack.c.0.s8 %v1503
  %v1505 = vlaneseq
  %v1506 = vshrl.u32 %v1505, 7
  %v1507 = vsub.s32 %v1504, %v1506
  %v1508 = vrot.slane %v1480, %v1507
  %v1509 = vcombine.low %v1487, %v1494
  %v1510 = vcombine.low %v1501, %v1508
  %v1512 = vunpack.c.l.s4 1966171168
  %v1513 = vunpack.c.0.s8 %v1512
  %v1514 = vlaneseq
  %v1515 = vshrl.u32 %v1514, 7
  %v1516 = vsub.s32 %v1513, %v1515
  %v1517 = vrot.slane %v1509, %v1516
  %v1519 = vunpack.c.l.s4 1966171168
  %v1520 = vunpack.c.0.s8 %v1519
  %v1521 = vlaneseq
  %v1522 = vshrl.u32 %v1521, 7
  %v1523 = vsub.s32 %v1520, %v1522
  %v1524 = vrot.slane %v1510, %v1523
  %v1525 = vcombine.low %v1517, %v1524
  %v1526 = vcombine.low %v1305, %v1311
  %v1527 = vcombine.low %v1317, %v1323
  %v1528 = vcombine.low %v1329, %v1335
  %v1529 = vcombine.low %v1341, %v1347
  %v1531 = vunpack.c.l.s4 1966171168
  %v1532 = vunpack.c.0.s8 %v1531
  %v1533 = vlaneseq
  %v1534 = vshrl.u32 %v1533, 7
  %v1535 = vsub.s32 %v1532, %v1534
  %v1536 = vrot.slane %v1526, %v1535
  %v1538 = vunpack.c.l.s4 1966171168
  %v1539 = vunpack.c.0.s8 %v1538
  %v1540 = vlaneseq
  %v1541 = vshrl.u32 %v1540, 7
  %v1542 = vsub.s32 %v1539, %v1541
  %v1543 = vrot.slane %v1527, %v1542
  %v1545 = vunpack.c.l.s4 1966171168
  %v1546 = vunpack.c.0.s8 %v1545
  %v1547 = vlaneseq
  %v1548 = vshrl.u32 %v1547, 7
  %v1549 = vsub.s32 %v1546, %v1548
  %v1550 = vrot.slane %v1528, %v1549
  %v1552 = vunpack.c.l.s4 1966171168
  %v1553 = vunpack.c.0.s8 %v1552
  %v1554 = vlaneseq
  %v1555 = vshrl.u32 %v1554, 7
  %v1556 = vsub.s32 %v1553, %v1555
  %v1557 = vrot.slane %v1529, %v1556
  %v1558 = vcombine.low %v1536, %v1543
  %v1559 = vcombine.low %v1550, %v1557
  %v1561 = vunpack.c.l.s4 1966171168
  %v1562 = vunpack.c.0.s8 %v1561
  %v1563 = vlaneseq
  %v1564 = vshrl.u32 %v1563, 7
  %v1565 = vsub.s32 %v1562, %v1564
  %v1566 = vrot.slane %v1558, %v1565
  %v1568 = vunpack.c.l.s4 1966171168
  %v1569 = vunpack.c.0.s8 %v1568
  %v1570 = vlaneseq
  %v1571 = vshrl.u32 %v1570, 7
  %v1572 = vsub.s32 %v1569, %v1571
  %v1573 = vrot.slane %v1559, %v1572
  %v1574 = vcombine.low %v1566, %v1573
  %v1575 = vcombine.low %v1353, %v1359
  %v1576 = vcombine.low %v1365, %v1371
  %v1577 = vcombine.low %v1377, %v1383
  %v1578 = vcombine.low %v1389, %v1395
  %v1580 = vunpack.c.l.s4 1966171168
  %v1581 = vunpack.c.0.s8 %v1580
  %v1582 = vlaneseq
  %v1583 = vshrl.u32 %v1582, 7
  %v1584 = vsub.s32 %v1581, %v1583
  %v1585 = vrot.slane %v1575, %v1584
  %v1587 = vunpack.c.l.s4 1966171168
  %v1588 = vunpack.c.0.s8 %v1587
  %v1589 = vlaneseq
  %v1590 = vshrl.u32 %v1589, 7
  %v1591 = vsub.s32 %v1588, %v1590
  %v1592 = vrot.slane %v1576, %v1591
  %v1594 = vunpack.c.l.s4 1966171168
  %v1595 = vunpack.c.0.s8 %v1594
  %v1596 = vlaneseq
  %v1597 = vshrl.u32 %v1596, 7
  %v1598 = vsub.s32 %v1595, %v1597
  %v1599 = vrot.slane %v1577, %v1598
  %v1601 = vunpack.c.l.s4 1966171168
  %v1602 = vunpack.c.0.s8 %v1601
  %v1603 = vlaneseq
  %v1604 = vshrl.u32 %v1603, 7
  %v1605 = vsub.s32 %v1602, %v1604
  %v1606 = vrot.slane %v1578, %v1605
  %v1607 = vcombine.low %v1585, %v1592
  %v1608 = vcombine.low %v1599, %v1606
  %v1610 = vunpack.c.l.s4 1966171168
  %v1611 = vunpack.c.0.s8 %v1610
  %v1612 = vlaneseq
  %v1613 = vshrl.u32 %v1612, 7
  %v1614 = vsub.s32 %v1611, %v1613
  %v1615 = vrot.slane %v1607, %v1614
  %v1617 = vunpack.c.l.s4 1966171168
  %v1618 = vunpack.c.0.s8 %v1617
  %v1619 = vlaneseq
  %v1620 = vshrl.u32 %v1619, 7
  %v1621 = vsub.s32 %v1618, %v1620
  %v1622 = vrot.slane %v1608, %v1621
  %v1623 = vcombine.low %v1615, %v1622
  %1628 = vst [vmem:[%s3] sm:$0xff] %v1476
  %1629 = vst [vmem:[%s3 + $0x8] sm:$0xff] %v1525
  %1630 = vst [vmem:[%s3 + $0x10] sm:$0xff] %v1574
  %1631 = vst [vmem:[%s3 + $0x18] sm:$0xff] %v1623
  %v1632 = vmul.f32 %v439, %v439
  %v1633 = vmul.f32 %v441, %v441
  %v1634 = vmul.f32 %v480, %v480
  %v1635 = vmul.f32 %v482, %v482
  %v1636 = vmul.f32 %v521, %v521
  %v1637 = vmul.f32 %v523, %v523
  %v1638 = vmul.f32 %v562, %v562
  %v1639 = vmul.f32 %v564, %v564
  %v1640 = vmul.f32 %v603, %v603
  %v1641 = vmul.f32 %v605, %v605
  %v1642 = vmul.f32 %v644, %v644
  %v1643 = vmul.f32 %v646, %v646
  %v1644 = vmul.f32 %v685, %v685
  %v1645 = vmul.f32 %v687, %v687
  %v1646 = vmul.f32 %v726, %v726
  %v1647 = vmul.f32 %v728, %v728
  %v1648 = vmul.f32 %v767, %v767
  %v1649 = vmul.f32 %v769, %v769
  %v1650 = vmul.f32 %v808, %v808
  %v1651 = vmul.f32 %v810, %v810
  %v1652 = vmul.f32 %v849, %v849
  %v1653 = vmul.f32 %v851, %v851
  %v1654 = vmul.f32 %v890, %v890
  %v1655 = vmul.f32 %v892, %v892
  %v1656 = vmul.f32 %v931, %v931
  %v1657 = vmul.f32 %v933, %v933
  %v1658 = vmul.f32 %v972, %v972
  %v1659 = vmul.f32 %v974, %v974
  %v1660 = vmul.f32 %v1013, %v1013
  %v1661 = vmul.f32 %v1015, %v1015
  %v1662 = vmul.f32 %v1054, %v1054
  %v1663 = vmul.f32 %v1056, %v1056
  %v1664 = vrot.slane %v1632, 4
  %v1665 = vadd.f32 %v1632, %v1664
  %v1666 = vrot.slane %v1665, 2
  %v1667 = vadd.f32 %v1665, %v1666
  %v1668 = vrot.slane %v1667, 1
  %v1669 = vadd.f32 %v1667, %v1668
  %v1670 = vrot.slane %v1633, 4
  %v1671 = vadd.f32 %v1633, %v1670
  %v1672 = vrot.slane %v1671, 2
  %v1673 = vadd.f32 %v1671, %v1672
  %v1674 = vrot.slane %v1673, 1
  %v1675 = vadd.f32 %v1673, %v1674
  %v1676 = vrot.slane %v1634, 4
  %v1677 = vadd.f32 %v1634, %v1676
  %v1678 = vrot.slane %v1677, 2
  %v1679 = vadd.f32 %v1677, %v1678
  %v1680 = vrot.slane %v1679, 1
  %v1681 = vadd.f32 %v1679, %v1680
  %v1682 = vrot.slane %v1635, 4
  %v1683 = vadd.f32 %v1635, %v1682
  %v1684 = vrot.slane %v1683, 2
  %v1685 = vadd.f32 %v1683, %v1684
  %v1686 = vrot.slane %v1685, 1
  %v1687 = vadd.f32 %v1685, %v1686
  %v1688 = vrot.slane %v1636, 4
  %v1689 = vadd.f32 %v1636, %v1688
  %v1690 = vrot.slane %v1689, 2
  %v1691 = vadd.f32 %v1689, %v1690
  %v1692 = vrot.slane %v1691, 1
  %v1693 = vadd.f32 %v1691, %v1692
  %v1694 = vrot.slane %v1637, 4
  %v1695 = vadd.f32 %v1637, %v1694
  %v1696 = vrot.slane %v1695, 2
  %v1697 = vadd.f32 %v1695, %v1696
  %v1698 = vrot.slane %v1697, 1
  %v1699 = vadd.f32 %v1697, %v1698
  %v1700 = vrot.slane %v1638, 4
  %v1701 = vadd.f32 %v1638, %v1700
  %v1702 = vrot.slane %v1701, 2
  %v1703 = vadd.f32 %v1701, %v1702
  %v1704 = vrot.slane %v1703, 1
  %v1705 = vadd.f32 %v1703, %v1704
  %v1706 = vrot.slane %v1639, 4
  %v1707 = vadd.f32 %v1639, %v1706
  %v1708 = vrot.slane %v1707, 2
  %v1709 = vadd.f32 %v1707, %v1708
  %v1710 = vrot.slane %v1709, 1
  %v1711 = vadd.f32 %v1709, %v1710
  %v1712 = vrot.slane %v1640, 4
  %v1713 = vadd.f32 %v1640, %v1712
  %v1714 = vrot.slane %v1713, 2
  %v1715 = vadd.f32 %v1713, %v1714
  %v1716 = vrot.slane %v1715, 1
  %v1717 = vadd.f32 %v1715, %v1716
  %v1718 = vrot.slane %v1641, 4
  %v1719 = vadd.f32 %v1641, %v1718
  %v1720 = vrot.slane %v1719, 2
  %v1721 = vadd.f32 %v1719, %v1720
  %v1722 = vrot.slane %v1721, 1
  %v1723 = vadd.f32 %v1721, %v1722
  %v1724 = vrot.slane %v1642, 4
  %v1725 = vadd.f32 %v1642, %v1724
  %v1726 = vrot.slane %v1725, 2
  %v1727 = vadd.f32 %v1725, %v1726
  %v1728 = vrot.slane %v1727, 1
  %v1729 = vadd.f32 %v1727, %v1728
  %v1730 = vrot.slane %v1643, 4
  %v1731 = vadd.f32 %v1643, %v1730
  %v1732 = vrot.slane %v1731, 2
  %v1733 = vadd.f32 %v1731, %v1732
  %v1734 = vrot.slane %v1733, 1
  %v1735 = vadd.f32 %v1733, %v1734
  %v1736 = vrot.slane %v1644, 4
  %v1737 = vadd.f32 %v1644, %v1736
  %v1738 = vrot.slane %v1737, 2
  %v1739 = vadd.f32 %v1737, %v1738
  %v1740 = vrot.slane %v1739, 1
  %v1741 = vadd.f32 %v1739, %v1740
  %v1742 = vrot.slane %v1645, 4
  %v1743 = vadd.f32 %v1645, %v1742
  %v1744 = vrot.slane %v1743, 2
  %v1745 = vadd.f32 %v1743, %v1744
  %v1746 = vrot.slane %v1745, 1
  %v1747 = vadd.f32 %v1745, %v1746
  %v1748 = vrot.slane %v1646, 4
  %v1749 = vadd.f32 %v1646, %v1748
  %v1750 = vrot.slane %v1749, 2
  %v1751 = vadd.f32 %v1749, %v1750
  %v1752 = vrot.slane %v1751, 1
  %v1753 = vadd.f32 %v1751, %v1752
  %v1754 = vrot.slane %v1647, 4
  %v1755 = vadd.f32 %v1647, %v1754
  %v1756 = vrot.slane %v1755, 2
  %v1757 = vadd.f32 %v1755, %v1756
  %v1758 = vrot.slane %v1757, 1
  %v1759 = vadd.f32 %v1757, %v1758
  %v1760 = vrot.slane %v1648, 4
  %v1761 = vadd.f32 %v1648, %v1760
  %v1762 = vrot.slane %v1761, 2
  %v1763 = vadd.f32 %v1761, %v1762
  %v1764 = vrot.slane %v1763, 1
  %v1765 = vadd.f32 %v1763, %v1764
  %v1766 = vrot.slane %v1649, 4
  %v1767 = vadd.f32 %v1649, %v1766
  %v1768 = vrot.slane %v1767, 2
  %v1769 = vadd.f32 %v1767, %v1768
  %v1770 = vrot.slane %v1769, 1
  %v1771 = vadd.f32 %v1769, %v1770
  %v1772 = vrot.slane %v1650, 4
  %v1773 = vadd.f32 %v1650, %v1772
  %v1774 = vrot.slane %v1773, 2
  %v1775 = vadd.f32 %v1773, %v1774
  %v1776 = vrot.slane %v1775, 1
  %v1777 = vadd.f32 %v1775, %v1776
  %v1778 = vrot.slane %v1651, 4
  %v1779 = vadd.f32 %v1651, %v1778
  %v1780 = vrot.slane %v1779, 2
  %v1781 = vadd.f32 %v1779, %v1780
  %v1782 = vrot.slane %v1781, 1
  %v1783 = vadd.f32 %v1781, %v1782
  %v1784 = vrot.slane %v1652, 4
  %v1785 = vadd.f32 %v1652, %v1784
  %v1786 = vrot.slane %v1785, 2
  %v1787 = vadd.f32 %v1785, %v1786
  %v1788 = vrot.slane %v1787, 1
  %v1789 = vadd.f32 %v1787, %v1788
  %v1790 = vrot.slane %v1653, 4
  %v1791 = vadd.f32 %v1653, %v1790
  %v1792 = vrot.slane %v1791, 2
  %v1793 = vadd.f32 %v1791, %v1792
  %v1794 = vrot.slane %v1793, 1
  %v1795 = vadd.f32 %v1793, %v1794
  %v1796 = vrot.slane %v1654, 4
  %v1797 = vadd.f32 %v1654, %v1796
  %v1798 = vrot.slane %v1797, 2
  %v1799 = vadd.f32 %v1797, %v1798
  %v1800 = vrot.slane %v1799, 1
  %v1801 = vadd.f32 %v1799, %v1800
  %v1802 = vrot.slane %v1655, 4
  %v1803 = vadd.f32 %v1655, %v1802
  %v1804 = vrot.slane %v1803, 2
  %v1805 = vadd.f32 %v1803, %v1804
  %v1806 = vrot.slane %v1805, 1
  %v1807 = vadd.f32 %v1805, %v1806
  %v1808 = vrot.slane %v1656, 4
  %v1809 = vadd.f32 %v1656, %v1808
  %v1810 = vrot.slane %v1809, 2
  %v1811 = vadd.f32 %v1809, %v1810
  %v1812 = vrot.slane %v1811, 1
  %v1813 = vadd.f32 %v1811, %v1812
  %v1814 = vrot.slane %v1657, 4
  %v1815 = vadd.f32 %v1657, %v1814
  %v1816 = vrot.slane %v1815, 2
  %v1817 = vadd.f32 %v1815, %v1816
  %v1818 = vrot.slane %v1817, 1
  %v1819 = vadd.f32 %v1817, %v1818
  %v1820 = vrot.slane %v1658, 4
  %v1821 = vadd.f32 %v1658, %v1820
  %v1822 = vrot.slane %v1821, 2
  %v1823 = vadd.f32 %v1821, %v1822
  %v1824 = vrot.slane %v1823, 1
  %v1825 = vadd.f32 %v1823, %v1824
  %v1826 = vrot.slane %v1659, 4
  %v1827 = vadd.f32 %v1659, %v1826
  %v1828 = vrot.slane %v1827, 2
  %v1829 = vadd.f32 %v1827, %v1828
  %v1830 = vrot.slane %v1829, 1
  %v1831 = vadd.f32 %v1829, %v1830
  %v1832 = vrot.slane %v1660, 4
  %v1833 = vadd.f32 %v1660, %v1832
  %v1834 = vrot.slane %v1833, 2
  %v1835 = vadd.f32 %v1833, %v1834
  %v1836 = vrot.slane %v1835, 1
  %v1837 = vadd.f32 %v1835, %v1836
  %v1838 = vrot.slane %v1661, 4
  %v1839 = vadd.f32 %v1661, %v1838
  %v1840 = vrot.slane %v1839, 2
  %v1841 = vadd.f32 %v1839, %v1840
  %v1842 = vrot.slane %v1841, 1
  %v1843 = vadd.f32 %v1841, %v1842
  %v1844 = vrot.slane %v1662, 4
  %v1845 = vadd.f32 %v1662, %v1844
  %v1846 = vrot.slane %v1845, 2
  %v1847 = vadd.f32 %v1845, %v1846
  %v1848 = vrot.slane %v1847, 1
  %v1849 = vadd.f32 %v1847, %v1848
  %v1850 = vrot.slane %v1663, 4
  %v1851 = vadd.f32 %v1663, %v1850
  %v1852 = vrot.slane %v1851, 2
  %v1853 = vadd.f32 %v1851, %v1852
  %v1854 = vrot.slane %v1853, 1
  %v1855 = vadd.f32 %v1853, %v1854
  %v1888 = vcombine.low %v1669, %v1675
  %v1889 = vcombine.low %v1681, %v1687
  %v1890 = vcombine.low %v1693, %v1699
  %v1891 = vcombine.low %v1705, %v1711
  %v1893 = vunpack.c.l.s4 1966171168
  %v1894 = vunpack.c.0.s8 %v1893
  %v1895 = vlaneseq
  %v1896 = vshrl.u32 %v1895, 7
  %v1897 = vsub.s32 %v1894, %v1896
  %v1898 = vrot.slane %v1888, %v1897
  %v1900 = vunpack.c.l.s4 1966171168
  %v1901 = vunpack.c.0.s8 %v1900
  %v1902 = vlaneseq
  %v1903 = vshrl.u32 %v1902, 7
  %v1904 = vsub.s32 %v1901, %v1903
  %v1905 = vrot.slane %v1889, %v1904
  %v1907 = vunpack.c.l.s4 1966171168
  %v1908 = vunpack.c.0.s8 %v1907
  %v1909 = vlaneseq
  %v1910 = vshrl.u32 %v1909, 7
  %v1911 = vsub.s32 %v1908, %v1910
  %v1912 = vrot.slane %v1890, %v1911
  %v1914 = vunpack.c.l.s4 1966171168
  %v1915 = vunpack.c.0.s8 %v1914
  %v1916 = vlaneseq
  %v1917 = vshrl.u32 %v1916, 7
  %v1918 = vsub.s32 %v1915, %v1917
  %v1919 = vrot.slane %v1891, %v1918
  %v1920 = vcombine.low %v1898, %v1905
  %v1921 = vcombine.low %v1912, %v1919
  %v1923 = vunpack.c.l.s4 1966171168
  %v1924 = vunpack.c.0.s8 %v1923
  %v1925 = vlaneseq
  %v1926 = vshrl.u32 %v1925, 7
  %v1927 = vsub.s32 %v1924, %v1926
  %v1928 = vrot.slane %v1920, %v1927
  %v1930 = vunpack.c.l.s4 1966171168
  %v1931 = vunpack.c.0.s8 %v1930
  %v1932 = vlaneseq
  %v1933 = vshrl.u32 %v1932, 7
  %v1934 = vsub.s32 %v1931, %v1933
  %v1935 = vrot.slane %v1921, %v1934
  %v1936 = vcombine.low %v1928, %v1935
  %v1937 = vcombine.low %v1717, %v1723
  %v1938 = vcombine.low %v1729, %v1735
  %v1939 = vcombine.low %v1741, %v1747
  %v1940 = vcombine.low %v1753, %v1759
  %v1942 = vunpack.c.l.s4 1966171168
  %v1943 = vunpack.c.0.s8 %v1942
  %v1944 = vlaneseq
  %v1945 = vshrl.u32 %v1944, 7
  %v1946 = vsub.s32 %v1943, %v1945
  %v1947 = vrot.slane %v1937, %v1946
  %v1949 = vunpack.c.l.s4 1966171168
  %v1950 = vunpack.c.0.s8 %v1949
  %v1951 = vlaneseq
  %v1952 = vshrl.u32 %v1951, 7
  %v1953 = vsub.s32 %v1950, %v1952
  %v1954 = vrot.slane %v1938, %v1953
  %v1956 = vunpack.c.l.s4 1966171168
  %v1957 = vunpack.c.0.s8 %v1956
  %v1958 = vlaneseq
  %v1959 = vshrl.u32 %v1958, 7
  %v1960 = vsub.s32 %v1957, %v1959
  %v1961 = vrot.slane %v1939, %v1960
  %v1963 = vunpack.c.l.s4 1966171168
  %v1964 = vunpack.c.0.s8 %v1963
  %v1965 = vlaneseq
  %v1966 = vshrl.u32 %v1965, 7
  %v1967 = vsub.s32 %v1964, %v1966
  %v1968 = vrot.slane %v1940, %v1967
  %v1969 = vcombine.low %v1947, %v1954
  %v1970 = vcombine.low %v1961, %v1968
  %v1972 = vunpack.c.l.s4 1966171168
  %v1973 = vunpack.c.0.s8 %v1972
  %v1974 = vlaneseq
  %v1975 = vshrl.u32 %v1974, 7
  %v1976 = vsub.s32 %v1973, %v1975
  %v1977 = vrot.slane %v1969, %v1976
  %v1979 = vunpack.c.l.s4 1966171168
  %v1980 = vunpack.c.0.s8 %v1979
  %v1981 = vlaneseq
  %v1982 = vshrl.u32 %v1981, 7
  %v1983 = vsub.s32 %v1980, %v1982
  %v1984 = vrot.slane %v1970, %v1983
  %v1985 = vcombine.low %v1977, %v1984
  %v1986 = vcombine.low %v1765, %v1771
  %v1987 = vcombine.low %v1777, %v1783
  %v1988 = vcombine.low %v1789, %v1795
  %v1989 = vcombine.low %v1801, %v1807
  %v1991 = vunpack.c.l.s4 1966171168
  %v1992 = vunpack.c.0.s8 %v1991
  %v1993 = vlaneseq
  %v1994 = vshrl.u32 %v1993, 7
  %v1995 = vsub.s32 %v1992, %v1994
  %v1996 = vrot.slane %v1986, %v1995
  %v1998 = vunpack.c.l.s4 1966171168
  %v1999 = vunpack.c.0.s8 %v1998
  %v2000 = vlaneseq
  %v2001 = vshrl.u32 %v2000, 7
  %v2002 = vsub.s32 %v1999, %v2001
  %v2003 = vrot.slane %v1987, %v2002
  %v2005 = vunpack.c.l.s4 1966171168
  %v2006 = vunpack.c.0.s8 %v2005
  %v2007 = vlaneseq
  %v2008 = vshrl.u32 %v2007, 7
  %v2009 = vsub.s32 %v2006, %v2008
  %v2010 = vrot.slane %v1988, %v2009
  %v2012 = vunpack.c.l.s4 1966171168
  %v2013 = vunpack.c.0.s8 %v2012
  %v2014 = vlaneseq
  %v2015 = vshrl.u32 %v2014, 7
  %v2016 = vsub.s32 %v2013, %v2015
  %v2017 = vrot.slane %v1989, %v2016
  %v2018 = vcombine.low %v1996, %v2003
  %v2019 = vcombine.low %v2010, %v2017
  %v2021 = vunpack.c.l.s4 1966171168
  %v2022 = vunpack.c.0.s8 %v2021
  %v2023 = vlaneseq
  %v2024 = vshrl.u32 %v2023, 7
  %v2025 = vsub.s32 %v2022, %v2024
  %v2026 = vrot.slane %v2018, %v2025
  %v2028 = vunpack.c.l.s4 1966171168
  %v2029 = vunpack.c.0.s8 %v2028
  %v2030 = vlaneseq
  %v2031 = vshrl.u32 %v2030, 7
  %v2032 = vsub.s32 %v2029, %v2031
  %v2033 = vrot.slane %v2019, %v2032
  %v2034 = vcombine.low %v2026, %v2033
  %v2035 = vcombine.low %v1813, %v1819
  %v2036 = vcombine.low %v1825, %v1831
  %v2037 = vcombine.low %v1837, %v1843
  %v2038 = vcombine.low %v1849, %v1855
  %v2040 = vunpack.c.l.s4 1966171168
  %v2041 = vunpack.c.0.s8 %v2040
  %v2042 = vlaneseq
  %v2043 = vshrl.u32 %v2042, 7
  %v2044 = vsub.s32 %v2041, %v2043
  %v2045 = vrot.slane %v2035, %v2044
  %v2047 = vunpack.c.l.s4 1966171168
  %v2048 = vunpack.c.0.s8 %v2047
  %v2049 = vlaneseq
  %v2050 = vshrl.u32 %v2049, 7
  %v2051 = vsub.s32 %v2048, %v2050
  %v2052 = vrot.slane %v2036, %v2051
  %v2054 = vunpack.c.l.s4 1966171168
  %v2055 = vunpack.c.0.s8 %v2054
  %v2056 = vlaneseq
  %v2057 = vshrl.u32 %v2056, 7
  %v2058 = vsub.s32 %v2055, %v2057
  %v2059 = vrot.slane %v2037, %v2058
  %v2061 = vunpack.c.l.s4 1966171168
  %v2062 = vunpack.c.0.s8 %v2061
  %v2063 = vlaneseq
  %v2064 = vshrl.u32 %v2063, 7
  %v2065 = vsub.s32 %v2062, %v2064
  %v2066 = vrot.slane %v2038, %v2065
  %v2067 = vcombine.low %v2045, %v2052
  %v2068 = vcombine.low %v2059, %v2066
  %v2070 = vunpack.c.l.s4 1966171168
  %v2071 = vunpack.c.0.s8 %v2070
  %v2072 = vlaneseq
  %v2073 = vshrl.u32 %v2072, 7
  %v2074 = vsub.s32 %v2071, %v2073
  %v2075 = vrot.slane %v2067, %v2074
  %v2077 = vunpack.c.l.s4 1966171168
  %v2078 = vunpack.c.0.s8 %v2077
  %v2079 = vlaneseq
  %v2080 = vshrl.u32 %v2079, 7
  %v2081 = vsub.s32 %v2078, %v2080
  %v2082 = vrot.slane %v2068, %v2081
  %v2083 = vcombine.low %v2075, %v2082
  %2088 = vst [vmem:[%s4] sm:$0xff] %v1936
  %2089 = vst [vmem:[%s4 + $0x8] sm:$0xff] %v1985
  %2090 = vst [vmem:[%s4 + $0x10] sm:$0xff] %v2034
  %2091 = vst [vmem:[%s4 + $0x18] sm:$0xff] %v2083
  // Predicated region
  $region10: #{mnist_generator_forward.9} parent=0 // pred_check
    _
  $region11: #{mnist_generator_forward.9} parent=0 // pred_check_branch
    %2093 = sbr.rel (0) target = $region13
  $region12: #{mnist_generator_forward.9} parent=0 // pred_region
    _
  $region13: #{mnist_generator_forward.9} parent=0 // pred_fallthru
    _
  // Predicated region
  $region14: #{mnist_generator_forward.9} parent=0 // pred_check
    _
  $region15: #{mnist_generator_forward.9} parent=0 // pred_check_branch
    %2095 = sbr.rel (0) target = $region17
  $region16: #{mnist_generator_forward.9} parent=0 // pred_region
    _
  $region17: #{mnist_generator_forward.9} parent=0 // pred_fallthru
    _
  // Predicated region
  $region18: #{mnist_generator_forward.9} parent=0 // pred_check
    _
  $region19: #{mnist_generator_forward.9} parent=0 // pred_check_branch
    %2097 = sbr.rel (0) target = $region21
  $region20: #{mnist_generator_forward.9} parent=0 // pred_region
    _
  $region21: #{mnist_generator_forward.9} parent=0 // pred_fallthru
    _
  // Predicated region
  $region22: #{mnist_generator_forward.9} parent=0 // pred_check
    _
  $region23: #{mnist_generator_forward.9} parent=0 // pred_check_branch
    %2099 = sbr.rel (0) target = $region25
  $region24: #{mnist_generator_forward.9} parent=0 // pred_region
    _
  $region25: #{mnist_generator_forward.9} parent=0 // pred_fallthru
    _
  // Predicated region
  $region26: #{mnist_generator_forward.9} parent=0 // pred_check
    _
  $region27: #{mnist_generator_forward.9} parent=0 // pred_check_branch
    %2101 = sbr.rel (0) target = $region29
  $region28: #{mnist_generator_forward.9} parent=0 // pred_region
    _
  $region29: #{mnist_generator_forward.9} parent=0 // pred_fallthru
    _
  // Predicated region
  $region30: #{mnist_generator_forward.9} parent=0 // pred_check
    _
  $region31: #{mnist_generator_forward.9} parent=0 // pred_check_branch
    %2103 = sbr.rel (0) target = $region33
  $region32: #{mnist_generator_forward.9} parent=0 // pred_region
    _
  $region33: #{mnist_generator_forward.9} parent=0 // pred_fallthru
    _

// kernel: mnist_generator_forward.10
$region0: #{mnist_generator_forward.10}
  #allocation0 [shape = 'u32[]', space=smem, size = 0x4, offset = 0x4, fixed_abs, tag = 'smem constant byte address 0x4 - core index']
  #allocation1 [shape = 'u32[144,128]{1,0:T(1,128)}', space=vmem, size = 0x12000, scoped, tag = 'internal scratch']
  %s0 = inlined_call_operand.vmem [shape: bf16[8,4096], index: 0, kind: input, shape index: {}]
  %s1 = inlined_call_operand.vmem [shape: f32[1,4096], index: 1, kind: input, shape index: {}]
  %s2 = inlined_call_operand.vmem [shape: f32[1,4096], index: 2, kind: input, shape index: {}]
  %s3 = inlined_call_operand.vmem [shape: bf16[8,4096], index: 3, kind: output, shape index: {}]
  %s4 = sld [smem:[#allocation0]]
  $region22: #{mnist_generator_forward.10} parent=0
    _
  %s6 = ssub.s32 1, %s4
  %s7 = scalar_select 0, %s6, %s4
  // Predicated region
  $region2: #{mnist_generator_forward.10} parent=0 // pred_check
    _
  $region3: #{mnist_generator_forward.10} parent=0 // pred_check_branch
    %9 = sbr.rel (0) target = $region5
  $region4: #{mnist_generator_forward.10} parent=0 // pred_region
    _
  $region5: #{mnist_generator_forward.10} parent=0 // pred_fallthru
    _
  // Predicated region
  $region6: #{mnist_generator_forward.10} parent=0 // pred_check
    _
  $region7: #{mnist_generator_forward.10} parent=0 // pred_check_branch
    %11 = sbr.rel (0) target = $region9
  $region8: #{mnist_generator_forward.10} parent=0 // pred_region
    _
  $region9: #{mnist_generator_forward.10} parent=0 // pred_fallthru
    _
  // Predicated region
  $region10: #{mnist_generator_forward.10} parent=0 // pred_check
    _
  $region11: #{mnist_generator_forward.10} parent=0 // pred_check_branch
    %13 = sbr.rel (0) target = $region13
  $region12: #{mnist_generator_forward.10} parent=0 // pred_region
    _
  $region13: #{mnist_generator_forward.10} parent=0 // pred_fallthru
    _
  %v14 = vld [vmem:[%s0] sm:$0xff]
  %v15 = vld [vmem:[%s0 + $0x8] sm:$0xff]
  %v16 = vld [vmem:[%s0 + $0x10] sm:$0xff]
  %v17 = vld [vmem:[%s0 + $0x18] sm:$0xff]
  %v18 = vld [vmem:[%s0 + $0x20] sm:$0xff]
  %v19 = vld [vmem:[%s0 + $0x28] sm:$0xff]
  %v20 = vld [vmem:[%s0 + $0x30] sm:$0xff]
  %v21 = vld [vmem:[%s0 + $0x38] sm:$0xff]
  %v22 = vld [vmem:[%s0 + $0x40] sm:$0xff]
  %v23 = vld [vmem:[%s0 + $0x48] sm:$0xff]
  %v24 = vld [vmem:[%s0 + $0x50] sm:$0xff]
  %v25 = vld [vmem:[%s0 + $0x58] sm:$0xff]
  %v26 = vld [vmem:[%s0 + $0x60] sm:$0xff]
  %v27 = vld [vmem:[%s0 + $0x68] sm:$0xff]
  %v28 = vld [vmem:[%s0 + $0x70] sm:$0xff]
  %v29 = vld [vmem:[%s0 + $0x78] sm:$0xff]
  %v30 = vunpack.c.l.bf16 %v14
  %v31 = vunpack.c.h.bf16 %v14
  %v32 = vunpack.c.l.bf16 %v15
  %v33 = vunpack.c.h.bf16 %v15
  %v34 = vunpack.c.l.bf16 %v16
  %v35 = vunpack.c.h.bf16 %v16
  %v36 = vunpack.c.l.bf16 %v17
  %v37 = vunpack.c.h.bf16 %v17
  %v38 = vunpack.c.l.bf16 %v18
  %v39 = vunpack.c.h.bf16 %v18
  %v40 = vunpack.c.l.bf16 %v19
  %v41 = vunpack.c.h.bf16 %v19
  %v42 = vunpack.c.l.bf16 %v20
  %v43 = vunpack.c.h.bf16 %v20
  %v44 = vunpack.c.l.bf16 %v21
  %v45 = vunpack.c.h.bf16 %v21
  %v46 = vunpack.c.l.bf16 %v22
  %v47 = vunpack.c.h.bf16 %v22
  %v48 = vunpack.c.l.bf16 %v23
  %v49 = vunpack.c.h.bf16 %v23
  %v50 = vunpack.c.l.bf16 %v24
  %v51 = vunpack.c.h.bf16 %v24
  %v52 = vunpack.c.l.bf16 %v25
  %v53 = vunpack.c.h.bf16 %v25
  %v54 = vunpack.c.l.bf16 %v26
  %v55 = vunpack.c.h.bf16 %v26
  %v56 = vunpack.c.l.bf16 %v27
  %v57 = vunpack.c.h.bf16 %v27
  %v58 = vunpack.c.l.bf16 %v28
  %v59 = vunpack.c.h.bf16 %v28
  %v60 = vunpack.c.l.bf16 %v29
  %v61 = vunpack.c.h.bf16 %v29
  %v62 = vld [vmem:[%s1] sm:$0xff]
  %v63 = vld [vmem:[%s1 + $0x8] sm:$0xff]
  %v64 = vld [vmem:[%s1 + $0x10] sm:$0xff]
  %v65 = vld [vmem:[%s1 + $0x18] sm:$0xff]
  %v70 = vlaneseq
  %v71 = vshrl.u32 %v70, 7
  %v72 = vsub.s32 0, %v71
  %v73 = vrot.slane %v62, %v72
  %v74 = vlaneseq
  %v75 = vshrl.u32 %v74, 7
  %v76 = vsub.s32 1, %v75
  %v77 = vrot.slane %v62, %v76
  %v78 = vlaneseq
  %v79 = vshrl.u32 %v78, 7
  %v80 = vsub.s32 2, %v79
  %v81 = vrot.slane %v62, %v80
  %v82 = vlaneseq
  %v83 = vshrl.u32 %v82, 7
  %v84 = vsub.s32 3, %v83
  %v85 = vrot.slane %v62, %v84
  %v86 = vlaneseq
  %v87 = vshrl.u32 %v86, 7
  %v88 = vsub.s32 4, %v87
  %v89 = vrot.slane %v62, %v88
  %v90 = vlaneseq
  %v91 = vshrl.u32 %v90, 7
  %v92 = vsub.s32 5, %v91
  %v93 = vrot.slane %v62, %v92
  %v94 = vlaneseq
  %v95 = vshrl.u32 %v94, 7
  %v96 = vsub.s32 6, %v95
  %v97 = vrot.slane %v62, %v96
  %v98 = vlaneseq
  %v99 = vshrl.u32 %v98, 7
  %v100 = vsub.s32 7, %v99
  %v101 = vrot.slane %v62, %v100
  %v102 = vlaneseq
  %v103 = vshrl.u32 %v102, 7
  %v104 = vsub.s32 0, %v103
  %v105 = vrot.slane %v63, %v104
  %v106 = vlaneseq
  %v107 = vshrl.u32 %v106, 7
  %v108 = vsub.s32 1, %v107
  %v109 = vrot.slane %v63, %v108
  %v110 = vlaneseq
  %v111 = vshrl.u32 %v110, 7
  %v112 = vsub.s32 2, %v111
  %v113 = vrot.slane %v63, %v112
  %v114 = vlaneseq
  %v115 = vshrl.u32 %v114, 7
  %v116 = vsub.s32 3, %v115
  %v117 = vrot.slane %v63, %v116
  %v118 = vlaneseq
  %v119 = vshrl.u32 %v118, 7
  %v120 = vsub.s32 4, %v119
  %v121 = vrot.slane %v63, %v120
  %v122 = vlaneseq
  %v123 = vshrl.u32 %v122, 7
  %v124 = vsub.s32 5, %v123
  %v125 = vrot.slane %v63, %v124
  %v126 = vlaneseq
  %v127 = vshrl.u32 %v126, 7
  %v128 = vsub.s32 6, %v127
  %v129 = vrot.slane %v63, %v128
  %v130 = vlaneseq
  %v131 = vshrl.u32 %v130, 7
  %v132 = vsub.s32 7, %v131
  %v133 = vrot.slane %v63, %v132
  %v134 = vlaneseq
  %v135 = vshrl.u32 %v134, 7
  %v136 = vsub.s32 0, %v135
  %v137 = vrot.slane %v64, %v136
  %v138 = vlaneseq
  %v139 = vshrl.u32 %v138, 7
  %v140 = vsub.s32 1, %v139
  %v141 = vrot.slane %v64, %v140
  %v142 = vlaneseq
  %v143 = vshrl.u32 %v142, 7
  %v144 = vsub.s32 2, %v143
  %v145 = vrot.slane %v64, %v144
  %v146 = vlaneseq
  %v147 = vshrl.u32 %v146, 7
  %v148 = vsub.s32 3, %v147
  %v149 = vrot.slane %v64, %v148
  %v150 = vlaneseq
  %v151 = vshrl.u32 %v150, 7
  %v152 = vsub.s32 4, %v151
  %v153 = vrot.slane %v64, %v152
  %v154 = vlaneseq
  %v155 = vshrl.u32 %v154, 7
  %v156 = vsub.s32 5, %v155
  %v157 = vrot.slane %v64, %v156
  %v158 = vlaneseq
  %v159 = vshrl.u32 %v158, 7
  %v160 = vsub.s32 6, %v159
  %v161 = vrot.slane %v64, %v160
  %v162 = vlaneseq
  %v163 = vshrl.u32 %v162, 7
  %v164 = vsub.s32 7, %v163
  %v165 = vrot.slane %v64, %v164
  %v166 = vlaneseq
  %v167 = vshrl.u32 %v166, 7
  %v168 = vsub.s32 0, %v167
  %v169 = vrot.slane %v65, %v168
  %v170 = vlaneseq
  %v171 = vshrl.u32 %v170, 7
  %v172 = vsub.s32 1, %v171
  %v173 = vrot.slane %v65, %v172
  %v174 = vlaneseq
  %v175 = vshrl.u32 %v174, 7
  %v176 = vsub.s32 2, %v175
  %v177 = vrot.slane %v65, %v176
  %v178 = vlaneseq
  %v179 = vshrl.u32 %v178, 7
  %v180 = vsub.s32 3, %v179
  %v181 = vrot.slane %v65, %v180
  %v182 = vlaneseq
  %v183 = vshrl.u32 %v182, 7
  %v184 = vsub.s32 4, %v183
  %v185 = vrot.slane %v65, %v184
  %v186 = vlaneseq
  %v187 = vshrl.u32 %v186, 7
  %v188 = vsub.s32 5, %v187
  %v189 = vrot.slane %v65, %v188
  %v190 = vlaneseq
  %v191 = vshrl.u32 %v190, 7
  %v192 = vsub.s32 6, %v191
  %v193 = vrot.slane %v65, %v192
  %v194 = vlaneseq
  %v195 = vshrl.u32 %v194, 7
  %v196 = vsub.s32 7, %v195
  %v197 = vrot.slane %v65, %v196
  %v230 = vmul.f32 %v30, %v73
  %v231 = vmul.f32 %v31, %v77
  %v232 = vmul.f32 %v32, %v81
  %v233 = vmul.f32 %v33, %v85
  %v234 = vmul.f32 %v34, %v89
  %v235 = vmul.f32 %v35, %v93
  %v236 = vmul.f32 %v36, %v97
  %v237 = vmul.f32 %v37, %v101
  %v238 = vmul.f32 %v38, %v105
  %v239 = vmul.f32 %v39, %v109
  %v240 = vmul.f32 %v40, %v113
  %v241 = vmul.f32 %v41, %v117
  %v242 = vmul.f32 %v42, %v121
  %v243 = vmul.f32 %v43, %v125
  %v244 = vmul.f32 %v44, %v129
  %v245 = vmul.f32 %v45, %v133
  %v246 = vmul.f32 %v46, %v137
  %v247 = vmul.f32 %v47, %v141
  %v248 = vmul.f32 %v48, %v145
  %v249 = vmul.f32 %v49, %v149
  %v250 = vmul.f32 %v50, %v153
  %v251 = vmul.f32 %v51, %v157
  %v252 = vmul.f32 %v52, %v161
  %v253 = vmul.f32 %v53, %v165
  %v254 = vmul.f32 %v54, %v169
  %v255 = vmul.f32 %v55, %v173
  %v256 = vmul.f32 %v56, %v177
  %v257 = vmul.f32 %v57, %v181
  %v258 = vmul.f32 %v58, %v185
  %v259 = vmul.f32 %v59, %v189
  %v260 = vmul.f32 %v60, %v193
  %v261 = vmul.f32 %v61, %v197
  %v262 = vld [vmem:[%s2] sm:$0xff]
  %v263 = vld [vmem:[%s2 + $0x8] sm:$0xff]
  %v264 = vld [vmem:[%s2 + $0x10] sm:$0xff]
  %v265 = vld [vmem:[%s2 + $0x18] sm:$0xff]
  %v270 = vlaneseq
  %v271 = vshrl.u32 %v270, 7
  %v272 = vsub.s32 0, %v271
  %v273 = vrot.slane %v262, %v272
  %v274 = vlaneseq
  %v275 = vshrl.u32 %v274, 7
  %v276 = vsub.s32 1, %v275
  %v277 = vrot.slane %v262, %v276
  %v278 = vlaneseq
  %v279 = vshrl.u32 %v278, 7
  %v280 = vsub.s32 2, %v279
  %v281 = vrot.slane %v262, %v280
  %v282 = vlaneseq
  %v283 = vshrl.u32 %v282, 7
  %v284 = vsub.s32 3, %v283
  %v285 = vrot.slane %v262, %v284
  %v286 = vlaneseq
  %v287 = vshrl.u32 %v286, 7
  %v288 = vsub.s32 4, %v287
  %v289 = vrot.slane %v262, %v288
  %v290 = vlaneseq
  %v291 = vshrl.u32 %v290, 7
  %v292 = vsub.s32 5, %v291
  %v293 = vrot.slane %v262, %v292
  %v294 = vlaneseq
  %v295 = vshrl.u32 %v294, 7
  %v296 = vsub.s32 6, %v295
  %v297 = vrot.slane %v262, %v296
  %v298 = vlaneseq
  %v299 = vshrl.u32 %v298, 7
  %v300 = vsub.s32 7, %v299
  %v301 = vrot.slane %v262, %v300
  %v302 = vlaneseq
  %v303 = vshrl.u32 %v302, 7
  %v304 = vsub.s32 0, %v303
  %v305 = vrot.slane %v263, %v304
  %v306 = vlaneseq
  %v307 = vshrl.u32 %v306, 7
  %v308 = vsub.s32 1, %v307
  %v309 = vrot.slane %v263, %v308
  %v310 = vlaneseq
  %v311 = vshrl.u32 %v310, 7
  %v312 = vsub.s32 2, %v311
  %v313 = vrot.slane %v263, %v312
  %v314 = vlaneseq
  %v315 = vshrl.u32 %v314, 7
  %v316 = vsub.s32 3, %v315
  %v317 = vrot.slane %v263, %v316
  %v318 = vlaneseq
  %v319 = vshrl.u32 %v318, 7
  %v320 = vsub.s32 4, %v319
  %v321 = vrot.slane %v263, %v320
  %v322 = vlaneseq
  %v323 = vshrl.u32 %v322, 7
  %v324 = vsub.s32 5, %v323
  %v325 = vrot.slane %v263, %v324
  %v326 = vlaneseq
  %v327 = vshrl.u32 %v326, 7
  %v328 = vsub.s32 6, %v327
  %v329 = vrot.slane %v263, %v328
  %v330 = vlaneseq
  %v331 = vshrl.u32 %v330, 7
  %v332 = vsub.s32 7, %v331
  %v333 = vrot.slane %v263, %v332
  %v334 = vlaneseq
  %v335 = vshrl.u32 %v334, 7
  %v336 = vsub.s32 0, %v335
  %v337 = vrot.slane %v264, %v336
  %v338 = vlaneseq
  %v339 = vshrl.u32 %v338, 7
  %v340 = vsub.s32 1, %v339
  %v341 = vrot.slane %v264, %v340
  %v342 = vlaneseq
  %v343 = vshrl.u32 %v342, 7
  %v344 = vsub.s32 2, %v343
  %v345 = vrot.slane %v264, %v344
  %v346 = vlaneseq
  %v347 = vshrl.u32 %v346, 7
  %v348 = vsub.s32 3, %v347
  %v349 = vrot.slane %v264, %v348
  %v350 = vlaneseq
  %v351 = vshrl.u32 %v350, 7
  %v352 = vsub.s32 4, %v351
  %v353 = vrot.slane %v264, %v352
  %v354 = vlaneseq
  %v355 = vshrl.u32 %v354, 7
  %v356 = vsub.s32 5, %v355
  %v357 = vrot.slane %v264, %v356
  %v358 = vlaneseq
  %v359 = vshrl.u32 %v358, 7
  %v360 = vsub.s32 6, %v359
  %v361 = vrot.slane %v264, %v360
  %v362 = vlaneseq
  %v363 = vshrl.u32 %v362, 7
  %v364 = vsub.s32 7, %v363
  %v365 = vrot.slane %v264, %v364
  %v366 = vlaneseq
  %v367 = vshrl.u32 %v366, 7
  %v368 = vsub.s32 0, %v367
  %v369 = vrot.slane %v265, %v368
  %v370 = vlaneseq
  %v371 = vshrl.u32 %v370, 7
  %v372 = vsub.s32 1, %v371
  %v373 = vrot.slane %v265, %v372
  %v374 = vlaneseq
  %v375 = vshrl.u32 %v374, 7
  %v376 = vsub.s32 2, %v375
  %v377 = vrot.slane %v265, %v376
  %v378 = vlaneseq
  %v379 = vshrl.u32 %v378, 7
  %v380 = vsub.s32 3, %v379
  %v381 = vrot.slane %v265, %v380
  %v382 = vlaneseq
  %v383 = vshrl.u32 %v382, 7
  %v384 = vsub.s32 4, %v383
  %v385 = vrot.slane %v265, %v384
  %v386 = vlaneseq
  %v387 = vshrl.u32 %v386, 7
  %v388 = vsub.s32 5, %v387
  %v389 = vrot.slane %v265, %v388
  %v390 = vlaneseq
  %v391 = vshrl.u32 %v390, 7
  %v392 = vsub.s32 6, %v391
  %v393 = vrot.slane %v265, %v392
  %v394 = vlaneseq
  %v395 = vshrl.u32 %v394, 7
  %v396 = vsub.s32 7, %v395
  %v397 = vrot.slane %v265, %v396
  %v430 = vadd.f32 %v230, %v273
  %v431 = vadd.f32 %v231, %v277
  %v432 = vadd.f32 %v232, %v281
  %v433 = vadd.f32 %v233, %v285
  %v434 = vadd.f32 %v234, %v289
  %v435 = vadd.f32 %v235, %v293
  %v436 = vadd.f32 %v236, %v297
  %v437 = vadd.f32 %v237, %v301
  %v438 = vadd.f32 %v238, %v305
  %v439 = vadd.f32 %v239, %v309
  %v440 = vadd.f32 %v240, %v313
  %v441 = vadd.f32 %v241, %v317
  %v442 = vadd.f32 %v242, %v321
  %v443 = vadd.f32 %v243, %v325
  %v444 = vadd.f32 %v244, %v329
  %v445 = vadd.f32 %v245, %v333
  %v446 = vadd.f32 %v246, %v337
  %v447 = vadd.f32 %v247, %v341
  %v448 = vadd.f32 %v248, %v345
  %v449 = vadd.f32 %v249, %v349
  %v450 = vadd.f32 %v250, %v353
  %v451 = vadd.f32 %v251, %v357
  %v452 = vadd.f32 %v252, %v361
  %v453 = vadd.f32 %v253, %v365
  %v454 = vadd.f32 %v254, %v369
  %v455 = vadd.f32 %v255, %v373
  %v456 = vadd.f32 %v256, %v377
  %v457 = vadd.f32 %v257, %v381
  %v458 = vadd.f32 %v258, %v385
  %v459 = vadd.f32 %v259, %v389
  %v460 = vadd.f32 %v260, %v393
  %v461 = vadd.f32 %v261, %v397
  %v462 = vmax.f32 %v430, 0.0
  %v463 = vmax.f32 %v431, 0.0
  %v464 = vmax.f32 %v432, 0.0
  %v465 = vmax.f32 %v433, 0.0
  %v466 = vmax.f32 %v434, 0.0
  %v467 = vmax.f32 %v435, 0.0
  %v468 = vmax.f32 %v436, 0.0
  %v469 = vmax.f32 %v437, 0.0
  %v470 = vmax.f32 %v438, 0.0
  %v471 = vmax.f32 %v439, 0.0
  %v472 = vmax.f32 %v440, 0.0
  %v473 = vmax.f32 %v441, 0.0
  %v474 = vmax.f32 %v442, 0.0
  %v475 = vmax.f32 %v443, 0.0
  %v476 = vmax.f32 %v444, 0.0
  %v477 = vmax.f32 %v445, 0.0
  %v478 = vmax.f32 %v446, 0.0
  %v479 = vmax.f32 %v447, 0.0
  %v480 = vmax.f32 %v448, 0.0
  %v481 = vmax.f32 %v449, 0.0
  %v482 = vmax.f32 %v450, 0.0
  %v483 = vmax.f32 %v451, 0.0
  %v484 = vmax.f32 %v452, 0.0
  %v485 = vmax.f32 %v453, 0.0
  %v486 = vmax.f32 %v454, 0.0
  %v487 = vmax.f32 %v455, 0.0
  %v488 = vmax.f32 %v456, 0.0
  %v489 = vmax.f32 %v457, 0.0
  %v490 = vmax.f32 %v458, 0.0
  %v491 = vmax.f32 %v459, 0.0
  %v492 = vmax.f32 %v460, 0.0
  %v493 = vmax.f32 %v461, 0.0
  %v494 = vpack.c.bf16 %v462, %v462
  %v495 = vpack.c.bf16 %v463, %v463
  %v496 = vpack.c.bf16 %v464, %v464
  %v497 = vpack.c.bf16 %v465, %v465
  %v498 = vpack.c.bf16 %v466, %v466
  %v499 = vpack.c.bf16 %v467, %v467
  %v500 = vpack.c.bf16 %v468, %v468
  %v501 = vpack.c.bf16 %v469, %v469
  %v502 = vpack.c.bf16 %v470, %v470
  %v503 = vpack.c.bf16 %v471, %v471
  %v504 = vpack.c.bf16 %v472, %v472
  %v505 = vpack.c.bf16 %v473, %v473
  %v506 = vpack.c.bf16 %v474, %v474
  %v507 = vpack.c.bf16 %v475, %v475
  %v508 = vpack.c.bf16 %v476, %v476
  %v509 = vpack.c.bf16 %v477, %v477
  %v510 = vpack.c.bf16 %v478, %v478
  %v511 = vpack.c.bf16 %v479, %v479
  %v512 = vpack.c.bf16 %v480, %v480
  %v513 = vpack.c.bf16 %v481, %v481
  %v514 = vpack.c.bf16 %v482, %v482
  %v515 = vpack.c.bf16 %v483, %v483
  %v516 = vpack.c.bf16 %v484, %v484
  %v517 = vpack.c.bf16 %v485, %v485
  %v518 = vpack.c.bf16 %v486, %v486
  %v519 = vpack.c.bf16 %v487, %v487
  %v520 = vpack.c.bf16 %v488, %v488
  %v521 = vpack.c.bf16 %v489, %v489
  %v522 = vpack.c.bf16 %v490, %v490
  %v523 = vpack.c.bf16 %v491, %v491
  %v524 = vpack.c.bf16 %v492, %v492
  %v525 = vpack.c.bf16 %v493, %v493
  %v558 = vunpack.c.l.b16 %v494
  %v559 = vunpack.c.l.b16 %v495
  %v560 = vunpack.c.l.b16 %v496
  %v561 = vunpack.c.l.b16 %v497
  %v562 = vunpack.c.l.b16 %v498
  %v563 = vunpack.c.l.b16 %v499
  %v564 = vunpack.c.l.b16 %v500
  %v565 = vunpack.c.l.b16 %v501
  %v566 = vunpack.c.l.b16 %v502
  %v567 = vunpack.c.l.b16 %v503
  %v568 = vunpack.c.l.b16 %v504
  %v569 = vunpack.c.l.b16 %v505
  %v570 = vunpack.c.l.b16 %v506
  %v571 = vunpack.c.l.b16 %v507
  %v572 = vunpack.c.l.b16 %v508
  %v573 = vunpack.c.l.b16 %v509
  %v574 = vunpack.c.l.b16 %v510
  %v575 = vunpack.c.l.b16 %v511
  %v576 = vunpack.c.l.b16 %v512
  %v577 = vunpack.c.l.b16 %v513
  %v578 = vunpack.c.l.b16 %v514
  %v579 = vunpack.c.l.b16 %v515
  %v580 = vunpack.c.l.b16 %v516
  %v581 = vunpack.c.l.b16 %v517
  %v582 = vunpack.c.l.b16 %v518
  %v583 = vunpack.c.l.b16 %v519
  %v584 = vunpack.c.l.b16 %v520
  %v585 = vunpack.c.l.b16 %v521
  %v586 = vunpack.c.l.b16 %v522
  %v587 = vunpack.c.l.b16 %v523
  %v588 = vunpack.c.l.b16 %v524
  %v589 = vunpack.c.l.b16 %v525
  %v590 = vpack.c.b16 %v559, %v558
  %v591 = vpack.c.b16 %v561, %v560
  %v592 = vpack.c.b16 %v563, %v562
  %v593 = vpack.c.b16 %v565, %v564
  %v594 = vpack.c.b16 %v567, %v566
  %v595 = vpack.c.b16 %v569, %v568
  %v596 = vpack.c.b16 %v571, %v570
  %v597 = vpack.c.b16 %v573, %v572
  %v598 = vpack.c.b16 %v575, %v574
  %v599 = vpack.c.b16 %v577, %v576
  %v600 = vpack.c.b16 %v579, %v578
  %v601 = vpack.c.b16 %v581, %v580
  %v602 = vpack.c.b16 %v583, %v582
  %v603 = vpack.c.b16 %v585, %v584
  %v604 = vpack.c.b16 %v587, %v586
  %v605 = vpack.c.b16 %v589, %v588
  %622 = vst [vmem:[%s3] sm:$0xff] %v590
  %623 = vst [vmem:[%s3 + $0x8] sm:$0xff] %v591
  %624 = vst [vmem:[%s3 + $0x10] sm:$0xff] %v592
  %625 = vst [vmem:[%s3 + $0x18] sm:$0xff] %v593
  %626 = vst [vmem:[%s3 + $0x20] sm:$0xff] %v594
  %627 = vst [vmem:[%s3 + $0x28] sm:$0xff] %v595
  %628 = vst [vmem:[%s3 + $0x30] sm:$0xff] %v596
  %629 = vst [vmem:[%s3 + $0x38] sm:$0xff] %v597
  %630 = vst [vmem:[%s3 + $0x40] sm:$0xff] %v598
  %631 = vst [vmem:[%s3 + $0x48] sm:$0xff] %v599
  %632 = vst [vmem:[%s3 + $0x50] sm:$0xff] %v600
  %633 = vst [vmem:[%s3 + $0x58] sm:$0xff] %v601
  %634 = vst [vmem:[%s3 + $0x60] sm:$0xff] %v602
  %635 = vst [vmem:[%s3 + $0x68] sm:$0xff] %v603
  %636 = vst [vmem:[%s3 + $0x70] sm:$0xff] %v604
  %637 = vst [vmem:[%s3 + $0x78] sm:$0xff] %v605
  // Predicated region
  $region14: #{mnist_generator_forward.10} parent=0 // pred_check
    _
  $region15: #{mnist_generator_forward.10} parent=0 // pred_check_branch
    %639 = sbr.rel (0) target = $region17
  $region16: #{mnist_generator_forward.10} parent=0 // pred_region
    _
  $region17: #{mnist_generator_forward.10} parent=0 // pred_fallthru
    _
  // Predicated region
  $region18: #{mnist_generator_forward.10} parent=0 // pred_check
    _
  $region19: #{mnist_generator_forward.10} parent=0 // pred_check_branch
    %641 = sbr.rel (0) target = $region21
  $region20: #{mnist_generator_forward.10} parent=0 // pred_region
    _
  $region21: #{mnist_generator_forward.10} parent=0 // pred_fallthru
    _

// kernel: tile.43
$region0: #{tile.43}
  #allocation0 [shape = 's32[1]{0}', space=sflag, size = 0x4, scoped, tag = 'scoped memory for tile.43']
  %s0 = inlined_call_operand.vmem [shape: f32[112], index: 0, kind: input, shape index: {}]
  %s1 = inlined_call_operand.vmem [shape: f32[4,112], index: 1, kind: output, shape index: {}]
  // Predicated region
  $region2: #{tile.43} parent=0 // pred_check
    _
  $region3: #{tile.43} parent=0 // pred_check_branch
    %3 = sbr.rel (0) target = $region5
  $region4: #{tile.43} parent=0 // pred_region
    _
  $region5: #{tile.43} parent=0 // pred_fallthru
    _
  %v4 = vld [vmem:[%s0] ss:$0 sm:$0xff]
  %5 = vst [vmem:[%s1] sm:$0xf] %v4

// kernel: tile.44
$region0: #{tile.44}
  %s0 = inlined_call_operand.vmem [shape: f32[4,112], index: 0, kind: input, shape index: {}]
  %s1 = inlined_call_operand.vmem [shape: f32[448], index: 1, kind: output, shape index: {}]
  $region1: #{tile.44} parent=0
    #allocation0 [shape = 'u8[4096]{0}', space=vmem, size = 0x1000, scoped, tag = 'scoped mem for output reshape']
    #allocation1 [shape = 'u8[4096]{0}', space=vmem, size = 0x1000, scoped, tag = 'scoped mem for input reshape']
    %s3 = sshllo.u32 0, 4
    %v4 = vld [vmem:[%s0] sm:%s3]
    %5 = vst [vmem:[#allocation1] sm:%s3] %v4
    %v6 = vld [vmem:[#allocation1] sm:$0x1]
    %vm7 = vcmask 916480
    %8 = vst.msk [vmem:[#allocation0] sm:$0x1] %vm7, %v6
    %s9 = scalar_lea.vmem [#allocation1], 1
    %v10 = vld [vmem:[%s9] sm:$0x1]
    %s11 = scalar_lea.vmem [#allocation1], 1
    %v12 = vld [vmem:[%s11] sm:$0x1]
    %vm13 = vcmask 130048
    %v14 = vsel %vm13, %v12, %v10
    %15 = vrot.lane.b32.xlu0 %v14, 112
    %v16 = vpop.permute.xlu0 %15
    %vm17 = vcmask 785408
    %s18 = scalar_lea.vmem [#allocation0], 1
    %19 = vst.msk [vmem:[%s18] sm:$0x1] %vm17, %v16
    %vm20 = vcmask 1048448
    %21 = vst.msk [vmem:[#allocation0] sm:$0x1] %vm20, %v16
    %s22 = scalar_lea.vmem [#allocation1], 2
    %v23 = vld [vmem:[%s22] sm:$0x1]
    %s24 = scalar_lea.vmem [#allocation1], 2
    %v25 = vld [vmem:[%s24] sm:$0x1]
    %vm26 = vcmask 261120
    %v27 = vsel %vm26, %v25, %v23
    %28 = vrot.lane.b32.xlu0 %v27, 96
    %v29 = vpop.permute.xlu0 %28
    %vm30 = vcmask 654336
    %s31 = scalar_lea.vmem [#allocation0], 2
    %32 = vst.msk [vmem:[%s31] sm:$0x1] %vm30, %v29
    %vm33 = vcmask 1048320
    %s34 = scalar_lea.vmem [#allocation0], 1
    %35 = vst.msk [vmem:[%s34] sm:$0x1] %vm33, %v29
    %s36 = scalar_lea.vmem [#allocation1], 3
    %v37 = vld [vmem:[%s36] sm:$0x1]
    %s38 = scalar_lea.vmem [#allocation1], 3
    %v39 = vld [vmem:[%s38] sm:$0x1]
    %vm40 = vcmask 392192
    %v41 = vsel %vm40, %v39, %v37
    %42 = vrot.lane.b32.xlu0 %v41, 80
    %v43 = vpop.permute.xlu0 %42
    %vm44 = vcmask 523264
    %s45 = scalar_lea.vmem [#allocation0], 3
    %46 = vst.msk [vmem:[%s45] sm:$0x1] %vm44, %v43
    %vm47 = vcmask 1048192
    %s48 = scalar_lea.vmem [#allocation0], 2
    %49 = vst.msk [vmem:[%s48] sm:$0x1] %vm47, %v43
    %s51 = sshllo.u32 0, 4
    %v53 = vld [vmem:[#allocation0] sm:%s51]
    %s54 = sshllo.u32 0, 4
    %55 = vst [vmem:[%s1] sm:%s54] %v53

// kernel: mnist_generator_forward.12
$region0: #{mnist_generator_forward.12}
  #allocation0 [shape = 'u32[]', space=smem, size = 0x4, offset = 0x4, fixed_abs, tag = 'smem constant byte address 0x4 - core index']
  #allocation1 [shape = 'u32[144,128]{1,0:T(1,128)}', space=vmem, size = 0x12000, scoped, tag = 'internal scratch']
  %s0 = inlined_call_operand.vmem [shape: bf16[64,512], index: 0, kind: input, shape index: {}]
  %s1 = inlined_call_operand.vmem [shape: f32[1,512], index: 1, kind: input, shape index: {}]
  %s2 = inlined_call_operand.vmem [shape: f32[1,512], index: 2, kind: input, shape index: {}]
  %s3 = inlined_call_operand.vmem [shape: bf16[64,512], index: 3, kind: output, shape index: {}]
  %s4 = sld [smem:[#allocation0]]
  $region45: #{mnist_generator_forward.12} parent=0
    _
  %s6 = ssub.s32 1, %s4
  %s7 = scalar_select 0, %s6, %s4
  loop: start=0, step=1, limit=4
  $region2: #{mnist_generator_forward.12} parent=0 // loop_pre_header
    _
  $region3: #{mnist_generator_forward.12} parent=0 // loop_header
    %s9 = sphi 0, %s13
    %p10 = scmp.ge.s32.totalorder %s9, 4
    %s19 = sphi 0, %s21
    %s22 = sphi 0, %s19
    %s23 = sphi 0, %s22
    %s39 = sphi 0, %s23
    %s43 = sphi 0, %s43
    %s45 = sphi 0, %s43
    %s46 = sphi 0, %s45
    %s60 = sphi 0, %s46
    %s64 = sphi 0, %s64
    %s66 = sphi 0, %s64
    %s67 = sphi 0, %s66
    %s81 = sphi 0, %s67
    %s87 = sphi 0, %s89
    %s90 = sphi 0, %s87
    %s91 = sphi 0, %s90
    %s107 = sphi 0, %s91
  $region4: #{mnist_generator_forward.12} parent=0 // loop_header_branch
    %12 = sbr.rel (%p10) target = $region8
  $region5: #{mnist_generator_forward.12} parent=0 // loop_body
    %s14 = ssub.s32 %s9, 1
    %s15 = ssub.s32 %s9, 2
    %s16 = sadd.s32 %s9, 1
    %s17 = ssub.s32 %s9, %s16
    %p18 = scmp.eq.s32.totalorder %s17, 0
    %s20 = sadd.s32 %s19, 1
    %s21 = scalar_select %p18, %s19, %s20
    %p24 = pneg %p18
    %p25 = scmp.eq.s32.totalorder %s9, 1
    %p26 = por %p24, %p25
    %p27 = scmp.ne.s32.totalorder %s19, %s22
    %p28 = scmp.eq.s32.totalorder %s9, 0
    %p29 = por %p27, %p28
    %p30 = scmp.ne.s32.totalorder %s19, %s22
    %p31 = scmp.eq.s32.totalorder %s14, 1
    %p32 = por %p30, %p31
    %p33 = scmp.ne.s32.totalorder %s22, %s23
    %p34 = scmp.eq.s32.totalorder %s14, 0
    %p35 = por %p33, %p34
    %p36 = scmp.ne.s32.totalorder %s22, %s23
    %p37 = scmp.eq.s32.totalorder %s15, 1
    %p38 = por %p36, %p37
    %p40 = scmp.ne.s32.totalorder %s23, %s39
    %p41 = scmp.eq.s32.totalorder %s15, 0
    %p42 = por %p40, %p41
    %s44 = sadd.s32 %s43, 1
    %p47 = scmp.eq.s32.totalorder %s9, 1
    %p48 = scmp.ne.s32.totalorder %s43, %s45
    %p49 = scmp.eq.s32.totalorder %s9, 0
    %p50 = por %p48, %p49
    %p51 = scmp.ne.s32.totalorder %s43, %s45
    %p52 = scmp.eq.s32.totalorder %s14, 1
    %p53 = por %p51, %p52
    %p54 = scmp.ne.s32.totalorder %s45, %s46
    %p55 = scmp.eq.s32.totalorder %s14, 0
    %p56 = por %p54, %p55
    %p57 = scmp.ne.s32.totalorder %s45, %s46
    %p58 = scmp.eq.s32.totalorder %s15, 1
    %p59 = por %p57, %p58
    %p61 = scmp.ne.s32.totalorder %s46, %s60
    %p62 = scmp.eq.s32.totalorder %s15, 0
    %p63 = por %p61, %p62
    %s65 = sadd.s32 %s64, 1
    %p68 = scmp.eq.s32.totalorder %s9, 1
    %p69 = scmp.ne.s32.totalorder %s64, %s66
    %p70 = scmp.eq.s32.totalorder %s9, 0
    %p71 = por %p69, %p70
    %p72 = scmp.ne.s32.totalorder %s64, %s66
    %p73 = scmp.eq.s32.totalorder %s14, 1
    %p74 = por %p72, %p73
    %p75 = scmp.ne.s32.totalorder %s66, %s67
    %p76 = scmp.eq.s32.totalorder %s14, 0
    %p77 = por %p75, %p76
    %p78 = scmp.ne.s32.totalorder %s66, %s67
    %p79 = scmp.eq.s32.totalorder %s15, 1
    %p80 = por %p78, %p79
    %p82 = scmp.ne.s32.totalorder %s67, %s81
    %p83 = scmp.eq.s32.totalorder %s15, 0
    %p84 = por %p82, %p83
    %s85 = ssub.s32 %s9, %s16
    %p86 = scmp.eq.s32.totalorder %s85, 0
    %s88 = sadd.s32 %s87, 1
    %s89 = scalar_select %p86, %s87, %s88
    %p92 = pneg %p86
    %p93 = scmp.eq.s32.totalorder %s9, 1
    %p94 = por %p92, %p93
    %p95 = scmp.ne.s32.totalorder %s87, %s90
    %p96 = scmp.eq.s32.totalorder %s9, 0
    %p97 = por %p95, %p96
    %p98 = scmp.ne.s32.totalorder %s87, %s90
    %p99 = scmp.eq.s32.totalorder %s14, 1
    %p100 = por %p98, %p99
    %p101 = scmp.ne.s32.totalorder %s90, %s91
    %p102 = scmp.eq.s32.totalorder %s14, 0
    %p103 = por %p101, %p102
    %p104 = scmp.ne.s32.totalorder %s90, %s91
    %p105 = scmp.eq.s32.totalorder %s15, 1
    %p106 = por %p104, %p105
    %p108 = scmp.ne.s32.totalorder %s91, %s107
    %p109 = scmp.eq.s32.totalorder %s15, 0
    %p110 = por %p108, %p109
    %p111 = scmp.le.s32.totalorder 1, %s9
    %p112 = scmp.lt.s32.totalorder %s9, 3
    %p113 = pnand %p111, %p112
    %p114 = pneg %p113
    // Predicated region
    $region9: #{mnist_generator_forward.12} parent=5 // pred_check
      _
    $region10: #{mnist_generator_forward.12} parent=5 // pred_check_branch
      %116 = sbr.rel (%p113) target = $region12
    $region11: #{mnist_generator_forward.12} parent=5 // pred_region
      %s117 = ssub.s32 %s9, 1
      // Predicated region
      $region13: #{mnist_generator_forward.12} parent=11 // pred_check
        %p118 = pneg %p56
      $region14: #{mnist_generator_forward.12} parent=11 // pred_check_branch
        %120 = sbr.rel (%p118) target = $region16
      $region15: #{mnist_generator_forward.12} parent=11 // pred_region
        _
      $region16: #{mnist_generator_forward.12} parent=11 // pred_fallthru
        _
      // Predicated region
      $region17: #{mnist_generator_forward.12} parent=11 // pred_check
        %p121 = pneg %p77
      $region18: #{mnist_generator_forward.12} parent=11 // pred_check_branch
        %123 = sbr.rel (%p121) target = $region20
      $region19: #{mnist_generator_forward.12} parent=11 // pred_region
        _
      $region20: #{mnist_generator_forward.12} parent=11 // pred_fallthru
        _
    $region12: #{mnist_generator_forward.12} parent=5 // pred_fallthru
      _
    %p124 = scmp.lt.s32.totalorder %s9, 2
    // Predicated region
    $region21: #{mnist_generator_forward.12} parent=5 // pred_check
      %p125 = pneg %p124
    $region22: #{mnist_generator_forward.12} parent=5 // pred_check_branch
      %127 = sbr.rel (%p125) target = $region24
    $region23: #{mnist_generator_forward.12} parent=5 // pred_region
      // Predicated region
      $region25: #{mnist_generator_forward.12} parent=23 // pred_check
        %p128 = pneg %p29
      $region26: #{mnist_generator_forward.12} parent=23 // pred_check_branch
        %130 = sbr.rel (%p128) target = $region28
      $region27: #{mnist_generator_forward.12} parent=23 // pred_region
        %s131 = smul.u32 4, %s9
        %p132 = scmp.lt.s32.totalorder %s131, 7
        %s133 = scalar_select %p132, %s131, 7
        %s134 = smul.addr %s133, 4
        %s135 = smul.addr %s134, 4
        %s136 = scalar_lea.vmem %s0, %s135
        %s137 = smul.u32 4, %s9
      $region28: #{mnist_generator_forward.12} parent=23 // pred_fallthru
        _
    $region24: #{mnist_generator_forward.12} parent=5 // pred_fallthru
      _
    %p138 = scmp.le.s32.totalorder 1, %s9
    %p139 = scmp.lt.s32.totalorder %s9, 3
    %p140 = pnand %p138, %p139
    %p141 = pneg %p140
    // Predicated region
    $region29: #{mnist_generator_forward.12} parent=5 // pred_check
      _
    $region30: #{mnist_generator_forward.12} parent=5 // pred_check_branch
      %143 = sbr.rel (%p140) target = $region32
    $region31: #{mnist_generator_forward.12} parent=5 // pred_region
      %s144 = ssub.s32 %s9, 1
      %s145 = smul.u32 4, %s14
      %p146 = scmp.lt.s32.totalorder %s145, 7
      %s147 = scalar_select %p146, %s145, 7
      %s148 = smul.addr %s147, 4
      %s149 = smul.addr %s148, 4
      %s150 = scalar_lea.vmem %s0, %s149
      %p151 = pneg %p35
      %p152 = pneg %p32
      %p153 = pneg %p56
      %p154 = pneg %p53
      %p155 = pneg %p77
      %p156 = pneg %p74
      %p157 = pneg %p103
      %p158 = pneg %p100
      %s159 = smul.u32 4, %s14
      %p160 = scmp.lt.s32.totalorder %s159, 7
      %s161 = scalar_select %p160, %s159, 7
      %s162 = smul.addr %s161, 4
      %s163 = smul.addr %s162, 4
      %s164 = scalar_lea.vmem %s3, %s163
      %s165 = smul.u32 4, %s14
      %p166 = scmp.lt.s32.totalorder %s165, 7
      %s167 = scalar_select %p166, %s165, 7
      %s168 = smul.addr %s167, 4
      %s169 = smul.addr %s168, 4
      %s170 = scalar_lea.vmem %s0, %s169
      %s171 = smul.u32 4, %s14
      %s172 = smul.u32 4, %s14
      %p173 = scmp.lt.s32.totalorder %s172, 7
      %s174 = scalar_select %p173, %s172, 7
      %s175 = smul.addr %s174, 4
      %s176 = smul.addr %s175, 4
      %s177 = scalar_lea.vmem %s3, %s176
      %s178 = smul.u32 4, %s14
      %v179 = vld [vmem:[%s170] sm:$0xff]
      %v180 = vld [vmem:[%s170 + $0x8] sm:$0xff]
      %v181 = vld [vmem:[%s170 + $0x10] sm:$0xff]
      %v182 = vld [vmem:[%s170 + $0x18] sm:$0xff]
      %v183 = vld [vmem:[%s170 + $0x20] sm:$0xff]
      %v184 = vld [vmem:[%s170 + $0x28] sm:$0xff]
      %v185 = vld [vmem:[%s170 + $0x30] sm:$0xff]
      %v186 = vld [vmem:[%s170 + $0x38] sm:$0xff]
      %v187 = vunpack.c.l.bf16 %v179
      %v188 = vunpack.c.h.bf16 %v179
      %v189 = vunpack.c.l.bf16 %v180
      %v190 = vunpack.c.h.bf16 %v180
      %v191 = vunpack.c.l.bf16 %v181
      %v192 = vunpack.c.h.bf16 %v181
      %v193 = vunpack.c.l.bf16 %v182
      %v194 = vunpack.c.h.bf16 %v182
      %v195 = vunpack.c.l.bf16 %v183
      %v196 = vunpack.c.h.bf16 %v183
      %v197 = vunpack.c.l.bf16 %v184
      %v198 = vunpack.c.h.bf16 %v184
      %v199 = vunpack.c.l.bf16 %v185
      %v200 = vunpack.c.h.bf16 %v185
      %v201 = vunpack.c.l.bf16 %v186
      %v202 = vunpack.c.h.bf16 %v186
      %v203 = vld [vmem:[%s1] sm:$0xf]
      %v205 = vlaneseq
      %v206 = vshrl.u32 %v205, 7
      %v207 = vsub.s32 0, %v206
      %v208 = vrot.slane %v203, %v207
      %v209 = vlaneseq
      %v210 = vshrl.u32 %v209, 7
      %v211 = vsub.s32 1, %v210
      %v212 = vrot.slane %v203, %v211
      %v213 = vlaneseq
      %v214 = vshrl.u32 %v213, 7
      %v215 = vsub.s32 2, %v214
      %v216 = vrot.slane %v203, %v215
      %v217 = vlaneseq
      %v218 = vshrl.u32 %v217, 7
      %v219 = vsub.s32 3, %v218
      %v220 = vrot.slane %v203, %v219
      %v225 = vmul.f32 %v187, %v208
      %v226 = vmul.f32 %v188, %v212
      %v227 = vmul.f32 %v189, %v216
      %v228 = vmul.f32 %v190, %v220
      %v229 = vmul.f32 %v191, %v208
      %v230 = vmul.f32 %v192, %v212
      %v231 = vmul.f32 %v193, %v216
      %v232 = vmul.f32 %v194, %v220
      %v233 = vmul.f32 %v195, %v208
      %v234 = vmul.f32 %v196, %v212
      %v235 = vmul.f32 %v197, %v216
      %v236 = vmul.f32 %v198, %v220
      %v237 = vmul.f32 %v199, %v208
      %v238 = vmul.f32 %v200, %v212
      %v239 = vmul.f32 %v201, %v216
      %v240 = vmul.f32 %v202, %v220
      %v241 = vld [vmem:[%s2] sm:$0xf]
      %v243 = vlaneseq
      %v244 = vshrl.u32 %v243, 7
      %v245 = vsub.s32 0, %v244
      %v246 = vrot.slane %v241, %v245
      %v247 = vlaneseq
      %v248 = vshrl.u32 %v247, 7
      %v249 = vsub.s32 1, %v248
      %v250 = vrot.slane %v241, %v249
      %v251 = vlaneseq
      %v252 = vshrl.u32 %v251, 7
      %v253 = vsub.s32 2, %v252
      %v254 = vrot.slane %v241, %v253
      %v255 = vlaneseq
      %v256 = vshrl.u32 %v255, 7
      %v257 = vsub.s32 3, %v256
      %v258 = vrot.slane %v241, %v257
      %v263 = vadd.f32 %v225, %v246
      %v264 = vadd.f32 %v226, %v250
      %v265 = vadd.f32 %v227, %v254
      %v266 = vadd.f32 %v228, %v258
      %v267 = vadd.f32 %v229, %v246
      %v268 = vadd.f32 %v230, %v250
      %v269 = vadd.f32 %v231, %v254
      %v270 = vadd.f32 %v232, %v258
      %v271 = vadd.f32 %v233, %v246
      %v272 = vadd.f32 %v234, %v250
      %v273 = vadd.f32 %v235, %v254
      %v274 = vadd.f32 %v236, %v258
      %v275 = vadd.f32 %v237, %v246
      %v276 = vadd.f32 %v238, %v250
      %v277 = vadd.f32 %v239, %v254
      %v278 = vadd.f32 %v240, %v258
      %v279 = vmax.f32 %v263, 0.0
      %v280 = vmax.f32 %v264, 0.0
      %v281 = vmax.f32 %v265, 0.0
      %v282 = vmax.f32 %v266, 0.0
      %v283 = vmax.f32 %v267, 0.0
      %v284 = vmax.f32 %v268, 0.0
      %v285 = vmax.f32 %v269, 0.0
      %v286 = vmax.f32 %v270, 0.0
      %v287 = vmax.f32 %v271, 0.0
      %v288 = vmax.f32 %v272, 0.0
      %v289 = vmax.f32 %v273, 0.0
      %v290 = vmax.f32 %v274, 0.0
      %v291 = vmax.f32 %v275, 0.0
      %v292 = vmax.f32 %v276, 0.0
      %v293 = vmax.f32 %v277, 0.0
      %v294 = vmax.f32 %v278, 0.0
      %v295 = vpack.c.bf16 %v283, %v279
      %v296 = vpack.c.bf16 %v284, %v280
      %v297 = vpack.c.bf16 %v285, %v281
      %v298 = vpack.c.bf16 %v286, %v282
      %v299 = vpack.c.bf16 %v291, %v287
      %v300 = vpack.c.bf16 %v292, %v288
      %v301 = vpack.c.bf16 %v293, %v289
      %v302 = vpack.c.bf16 %v294, %v290
      %v311 = vunpack.c.l.b16 %v295
      %v312 = vunpack.c.l.b16 %v296
      %v313 = vunpack.c.l.b16 %v297
      %v314 = vunpack.c.l.b16 %v298
      %v315 = vunpack.c.h.b16 %v295
      %v316 = vunpack.c.h.b16 %v296
      %v317 = vunpack.c.h.b16 %v297
      %v318 = vunpack.c.h.b16 %v298
      %v319 = vunpack.c.l.b16 %v299
      %v320 = vunpack.c.l.b16 %v300
      %v321 = vunpack.c.l.b16 %v301
      %v322 = vunpack.c.l.b16 %v302
      %v323 = vunpack.c.h.b16 %v299
      %v324 = vunpack.c.h.b16 %v300
      %v325 = vunpack.c.h.b16 %v301
      %v326 = vunpack.c.h.b16 %v302
      %v327 = vpack.c.b16 %v312, %v311
      %v328 = vpack.c.b16 %v314, %v313
      %v329 = vpack.c.b16 %v316, %v315
      %v330 = vpack.c.b16 %v318, %v317
      %v331 = vpack.c.b16 %v320, %v319
      %v332 = vpack.c.b16 %v322, %v321
      %v333 = vpack.c.b16 %v324, %v323
      %v334 = vpack.c.b16 %v326, %v325
      %343 = vst [vmem:[%s177] sm:$0xff] %v327
      %344 = vst [vmem:[%s177 + $0x8] sm:$0xff] %v328
      %345 = vst [vmem:[%s177 + $0x10] sm:$0xff] %v329
      %346 = vst [vmem:[%s177 + $0x18] sm:$0xff] %v330
      %347 = vst [vmem:[%s177 + $0x20] sm:$0xff] %v331
      %348 = vst [vmem:[%s177 + $0x28] sm:$0xff] %v332
      %349 = vst [vmem:[%s177 + $0x30] sm:$0xff] %v333
      %350 = vst [vmem:[%s177 + $0x38] sm:$0xff] %v334
      %s351 = smul.u32 4, %s14
      %p352 = scmp.lt.s32.totalorder %s351, 7
      %s353 = scalar_select %p352, %s351, 7
      %s354 = smul.addr %s353, 4
      %s355 = smul.addr %s354, 4
      %s356 = scalar_lea.vmem %s3, %s355
      // Predicated region
      $region33: #{mnist_generator_forward.12} parent=31 // pred_check
        %p357 = pneg %p100
      $region34: #{mnist_generator_forward.12} parent=31 // pred_check_branch
        %359 = sbr.rel (%p357) target = $region36
      $region35: #{mnist_generator_forward.12} parent=31 // pred_region
        %s360 = smul.u32 4, %s14
      $region36: #{mnist_generator_forward.12} parent=31 // pred_fallthru
        _
    $region32: #{mnist_generator_forward.12} parent=5 // pred_fallthru
      _
    %p361 = scmp.le.s32.totalorder 2, %s9
    // Predicated region
    $region37: #{mnist_generator_forward.12} parent=5 // pred_check
      %p362 = pneg %p361
    $region38: #{mnist_generator_forward.12} parent=5 // pred_check_branch
      %364 = sbr.rel (%p362) target = $region40
    $region39: #{mnist_generator_forward.12} parent=5 // pred_region
      %s365 = ssub.s32 %s9, 2
      // Predicated region
      $region41: #{mnist_generator_forward.12} parent=39 // pred_check
        %p366 = pneg %p106
      $region42: #{mnist_generator_forward.12} parent=39 // pred_check_branch
        %368 = sbr.rel (%p366) target = $region44
      $region43: #{mnist_generator_forward.12} parent=39 // pred_region
        %s369 = smul.u32 4, %s15
        %p370 = scmp.lt.s32.totalorder %s369, 7
        %s371 = scalar_select %p370, %s369, 7
        %s372 = smul.addr %s371, 4
        %s373 = smul.addr %s372, 4
        %s374 = scalar_lea.vmem %s3, %s373
      $region44: #{mnist_generator_forward.12} parent=39 // pred_fallthru
        _
    $region40: #{mnist_generator_forward.12} parent=5 // pred_fallthru
      _
  $region6: #{mnist_generator_forward.12} parent=0 // loop_footer
    %s13 = sadd.s32 1, %s9
  $region7: #{mnist_generator_forward.12} parent=0 // loop_footer_branch
    %8 = sbr.rel target = $region3
  $region8: #{mnist_generator_forward.12} parent=0 // loop_exit
    _

// kernel: mnist_generator_forward.11
$region0: #{mnist_generator_forward.11}
  #allocation0 [shape = 'u32[]', space=smem, size = 0x4, offset = 0x4, fixed_abs, tag = 'smem constant byte address 0x4 - core index']
  #allocation1 [shape = 'u32[144,128]{1,0:T(1,128)}', space=vmem, size = 0x12000, scoped, tag = 'internal scratch']
  %s0 = inlined_call_operand.vmem [shape: bf16[64,896], index: 0, kind: input, shape index: {}]
  %s1 = inlined_call_operand.vmem [shape: bf16[896,512], index: 1, kind: input, shape index: {}]
  %s2 = inlined_call_operand.vmem [shape: bf16[64,512], index: 2, kind: output, shape index: {0}]
  %s3 = inlined_call_operand.vmem [shape: f32[2,1,512], index: 3, kind: output, shape index: {1}]
  %s4 = inlined_call_operand.vmem [shape: f32[2,1,512], index: 4, kind: output, shape index: {2}]
  %5 = xla_tuple %s2, %s3, %s4
  %s6 = sld [smem:[#allocation0]]
  $region57: #{mnist_generator_forward.11} parent=0
    _
  %s8 = ssub.s32 1, %s6
  %s9 = scalar_select 0, %s8, %s6
  loop: start=0, step=1, limit=4
  $region2: #{mnist_generator_forward.11} parent=0 // loop_pre_header
    _
  $region3: #{mnist_generator_forward.11} parent=0 // loop_header
    %s11 = sphi 0, %s15
    %p12 = scmp.ge.s32.totalorder %s11, 4
    %s21 = sphi 0, %s23
    %s24 = sphi 0, %s21
    %s25 = sphi 0, %s24
    %s41 = sphi 0, %s25
    %s45 = sphi 0, %s45
    %s47 = sphi 0, %s45
    %s48 = sphi 0, %s47
    %s62 = sphi 0, %s48
    %s68 = sphi 0, %s70
    %s71 = sphi 0, %s68
    %s72 = sphi 0, %s71
    %s88 = sphi 0, %s72
    %s94 = sphi 0, %s96
    %s97 = sphi 0, %s94
    %s98 = sphi 0, %s97
    %s114 = sphi 0, %s98
    %s120 = sphi 0, %s122
    %s123 = sphi 0, %s120
    %s124 = sphi 0, %s123
    %s140 = sphi 0, %s124
  $region4: #{mnist_generator_forward.11} parent=0 // loop_header_branch
    %14 = sbr.rel (%p12) target = $region8
  $region5: #{mnist_generator_forward.11} parent=0 // loop_body
    %s16 = ssub.s32 %s11, 1
    %s17 = ssub.s32 %s11, 2
    %s18 = sadd.s32 %s11, 1
    %s19 = ssub.s32 %s11, %s18
    %p20 = scmp.eq.s32.totalorder %s19, 0
    %s22 = sadd.s32 %s21, 1
    %s23 = scalar_select %p20, %s21, %s22
    %p26 = pneg %p20
    %p27 = scmp.eq.s32.totalorder %s11, 1
    %p28 = por %p26, %p27
    %p29 = scmp.ne.s32.totalorder %s21, %s24
    %p30 = scmp.eq.s32.totalorder %s11, 0
    %p31 = por %p29, %p30
    %p32 = scmp.ne.s32.totalorder %s21, %s24
    %p33 = scmp.eq.s32.totalorder %s16, 1
    %p34 = por %p32, %p33
    %p35 = scmp.ne.s32.totalorder %s24, %s25
    %p36 = scmp.eq.s32.totalorder %s16, 0
    %p37 = por %p35, %p36
    %p38 = scmp.ne.s32.totalorder %s24, %s25
    %p39 = scmp.eq.s32.totalorder %s17, 1
    %p40 = por %p38, %p39
    %p42 = scmp.ne.s32.totalorder %s25, %s41
    %p43 = scmp.eq.s32.totalorder %s17, 0
    %p44 = por %p42, %p43
    %s46 = sadd.s32 %s45, 1
    %p49 = scmp.eq.s32.totalorder %s11, 1
    %p50 = scmp.ne.s32.totalorder %s45, %s47
    %p51 = scmp.eq.s32.totalorder %s11, 0
    %p52 = por %p50, %p51
    %p53 = scmp.ne.s32.totalorder %s45, %s47
    %p54 = scmp.eq.s32.totalorder %s16, 1
    %p55 = por %p53, %p54
    %p56 = scmp.ne.s32.totalorder %s47, %s48
    %p57 = scmp.eq.s32.totalorder %s16, 0
    %p58 = por %p56, %p57
    %p59 = scmp.ne.s32.totalorder %s47, %s48
    %p60 = scmp.eq.s32.totalorder %s17, 1
    %p61 = por %p59, %p60
    %p63 = scmp.ne.s32.totalorder %s48, %s62
    %p64 = scmp.eq.s32.totalorder %s17, 0
    %p65 = por %p63, %p64
    %s66 = ssub.s32 %s11, %s18
    %p67 = scmp.eq.s32.totalorder %s66, 0
    %s69 = sadd.s32 %s68, 1
    %s70 = scalar_select %p67, %s68, %s69
    %p73 = pneg %p67
    %p74 = scmp.eq.s32.totalorder %s11, 1
    %p75 = por %p73, %p74
    %p76 = scmp.ne.s32.totalorder %s68, %s71
    %p77 = scmp.eq.s32.totalorder %s11, 0
    %p78 = por %p76, %p77
    %p79 = scmp.ne.s32.totalorder %s68, %s71
    %p80 = scmp.eq.s32.totalorder %s16, 1
    %p81 = por %p79, %p80
    %p82 = scmp.ne.s32.totalorder %s71, %s72
    %p83 = scmp.eq.s32.totalorder %s16, 0
    %p84 = por %p82, %p83
    %p85 = scmp.ne.s32.totalorder %s71, %s72
    %p86 = scmp.eq.s32.totalorder %s17, 1
    %p87 = por %p85, %p86
    %p89 = scmp.ne.s32.totalorder %s72, %s88
    %p90 = scmp.eq.s32.totalorder %s17, 0
    %p91 = por %p89, %p90
    %s92 = ssub.s32 %s11, %s18
    %p93 = scmp.eq.s32.totalorder %s92, 0
    %s95 = sadd.s32 %s94, 1
    %s96 = scalar_select %p93, %s94, %s95
    %p99 = pneg %p93
    %p100 = scmp.eq.s32.totalorder %s11, 1
    %p101 = por %p99, %p100
    %p102 = scmp.ne.s32.totalorder %s94, %s97
    %p103 = scmp.eq.s32.totalorder %s11, 0
    %p104 = por %p102, %p103
    %p105 = scmp.ne.s32.totalorder %s94, %s97
    %p106 = scmp.eq.s32.totalorder %s16, 1
    %p107 = por %p105, %p106
    %p108 = scmp.ne.s32.totalorder %s97, %s98
    %p109 = scmp.eq.s32.totalorder %s16, 0
    %p110 = por %p108, %p109
    %p111 = scmp.ne.s32.totalorder %s97, %s98
    %p112 = scmp.eq.s32.totalorder %s17, 1
    %p113 = por %p111, %p112
    %p115 = scmp.ne.s32.totalorder %s98, %s114
    %p116 = scmp.eq.s32.totalorder %s17, 0
    %p117 = por %p115, %p116
    %s118 = ssub.s32 %s11, %s18
    %p119 = scmp.eq.s32.totalorder %s118, 0
    %s121 = sadd.s32 %s120, 1
    %s122 = scalar_select %p119, %s120, %s121
    %p125 = pneg %p119
    %p126 = scmp.eq.s32.totalorder %s11, 1
    %p127 = por %p125, %p126
    %p128 = scmp.ne.s32.totalorder %s120, %s123
    %p129 = scmp.eq.s32.totalorder %s11, 0
    %p130 = por %p128, %p129
    %p131 = scmp.ne.s32.totalorder %s120, %s123
    %p132 = scmp.eq.s32.totalorder %s16, 1
    %p133 = por %p131, %p132
    %p134 = scmp.ne.s32.totalorder %s123, %s124
    %p135 = scmp.eq.s32.totalorder %s16, 0
    %p136 = por %p134, %p135
    %p137 = scmp.ne.s32.totalorder %s123, %s124
    %p138 = scmp.eq.s32.totalorder %s17, 1
    %p139 = por %p137, %p138
    %p141 = scmp.ne.s32.totalorder %s124, %s140
    %p142 = scmp.eq.s32.totalorder %s17, 0
    %p143 = por %p141, %p142
    %p144 = scmp.le.s32.totalorder 1, %s11
    %p145 = scmp.lt.s32.totalorder %s11, 3
    %p146 = pnand %p144, %p145
    %p147 = pneg %p146
    // Predicated region
    $region9: #{mnist_generator_forward.11} parent=5 // pred_check
      _
    $region10: #{mnist_generator_forward.11} parent=5 // pred_check_branch
      %149 = sbr.rel (%p146) target = $region12
    $region11: #{mnist_generator_forward.11} parent=5 // pred_region
      %s150 = ssub.s32 %s11, 1
      // Predicated region
      $region13: #{mnist_generator_forward.11} parent=11 // pred_check
        %p151 = pneg %p58
      $region14: #{mnist_generator_forward.11} parent=11 // pred_check_branch
        %153 = sbr.rel (%p151) target = $region16
      $region15: #{mnist_generator_forward.11} parent=11 // pred_region
        _
      $region16: #{mnist_generator_forward.11} parent=11 // pred_fallthru
        _
    $region12: #{mnist_generator_forward.11} parent=5 // pred_fallthru
      _
    %p154 = scmp.lt.s32.totalorder %s11, 2
    // Predicated region
    $region17: #{mnist_generator_forward.11} parent=5 // pred_check
      %p155 = pneg %p154
    $region18: #{mnist_generator_forward.11} parent=5 // pred_check_branch
      %157 = sbr.rel (%p155) target = $region20
    $region19: #{mnist_generator_forward.11} parent=5 // pred_region
      // Predicated region
      $region21: #{mnist_generator_forward.11} parent=19 // pred_check
        %p158 = pneg %p31
      $region22: #{mnist_generator_forward.11} parent=19 // pred_check_branch
        %160 = sbr.rel (%p158) target = $region24
      $region23: #{mnist_generator_forward.11} parent=19 // pred_region
        %s161 = smul.u32 4, %s11
        %p162 = scmp.lt.s32.totalorder %s161, 7
        %s163 = scalar_select %p162, %s161, 7
        %s164 = smul.addr %s163, 7
        %s165 = smul.addr %s164, 4
        %s166 = scalar_lea.vmem %s0, %s165
        %s167 = smul.u32 4, %s11
      $region24: #{mnist_generator_forward.11} parent=19 // pred_fallthru
        _
    $region20: #{mnist_generator_forward.11} parent=5 // pred_fallthru
      _
    %p168 = scmp.le.s32.totalorder 1, %s11
    %p169 = scmp.lt.s32.totalorder %s11, 3
    %p170 = pnand %p168, %p169
    %p171 = pneg %p170
    // Predicated region
    $region25: #{mnist_generator_forward.11} parent=5 // pred_check
      _
    $region26: #{mnist_generator_forward.11} parent=5 // pred_check_branch
      %173 = sbr.rel (%p170) target = $region28
    $region27: #{mnist_generator_forward.11} parent=5 // pred_region
      %s174 = ssub.s32 %s11, 1
      %s175 = smul.u32 4, %s16
      %p176 = scmp.lt.s32.totalorder %s175, 7
      %s177 = scalar_select %p176, %s175, 7
      %s178 = smul.addr %s177, 7
      %s179 = smul.addr %s178, 4
      %s180 = scalar_lea.vmem %s0, %s179
      %p181 = pneg %p37
      %p182 = pneg %p34
      %p183 = pneg %p58
      %p184 = pneg %p55
      %p185 = pneg %p84
      %p186 = pneg %p81
      %s187 = smul.u32 4, %s16
      %p188 = scmp.lt.s32.totalorder %s187, 7
      %s189 = scalar_select %p188, %s187, 7
      %s190 = smul.addr %s189, 4
      %s191 = smul.addr %s190, 4
      %s192 = scalar_lea.vmem %s2, %s191
      %p193 = pneg %p110
      %p194 = pneg %p107
      %p195 = scmp.lt.s32.totalorder %s16, 1
      %s196 = scalar_select %p195, %s16, 1
      %s197 = smul.addr %s196, 4
      %s198 = scalar_lea.vmem %s3, %s197
      %p199 = pneg %p136
      %p200 = pneg %p133
      %p201 = scmp.lt.s32.totalorder %s16, 1
      %s202 = scalar_select %p201, %s16, 1
      %s203 = smul.addr %s202, 4
      %s204 = scalar_lea.vmem %s4, %s203
      %s205 = smul.u32 4, %s16
      %p206 = scmp.lt.s32.totalorder %s205, 7
      %s207 = scalar_select %p206, %s205, 7
      %s208 = smul.addr %s207, 7
      %s209 = smul.addr %s208, 4
      %s210 = scalar_lea.vmem %s0, %s209
      %s211 = smul.u32 4, %s16
      %s212 = smul.u32 4, %s16
      %p213 = scmp.lt.s32.totalorder %s212, 7
      %s214 = scalar_select %p213, %s212, 7
      %s215 = smul.addr %s214, 4
      %s216 = smul.addr %s215, 4
      %s217 = scalar_lea.vmem %s2, %s216
      %s218 = smul.u32 4, %s16
      %p219 = scmp.lt.s32.totalorder %s16, 1
      %s220 = scalar_select %p219, %s16, 1
      %s221 = smul.addr %s220, 4
      %s222 = scalar_lea.vmem %s3, %s221
      %p223 = scmp.lt.s32.totalorder %s16, 1
      %s224 = scalar_select %p223, %s16, 1
      %s225 = smul.addr %s224, 4
      %s226 = scalar_lea.vmem %s4, %s225
      %v228 = vld [vmem:[%s210] sm:$0xff]
      %v229 = vld [vmem:[%s210 + $0x8] sm:$0xff]
      %v230 = vld [vmem:[%s210 + $0x10] sm:$0xff]
      %v231 = vld [vmem:[%s210 + $0x18] sm:$0xf]
      %v232 = vld [vmem:[%s210 + $0x1c] sm:$0xff]
      %v233 = vld [vmem:[%s210 + $0x24] sm:$0xff]
      %v234 = vld [vmem:[%s210 + $0x2c] sm:$0xff]
      %v235 = vld [vmem:[%s210 + $0x34] sm:$0xf]
      %v236 = vld [vmem:[%s210 + $0x38] sm:$0xff]
      %v237 = vld [vmem:[%s210 + $0x40] sm:$0xff]
      %v238 = vld [vmem:[%s210 + $0x48] sm:$0xff]
      %v239 = vld [vmem:[%s210 + $0x50] sm:$0xf]
      %v240 = vld [vmem:[%s210 + $0x54] sm:$0xff]
      %v241 = vld [vmem:[%s210 + $0x5c] sm:$0xff]
      %v242 = vld [vmem:[%s210 + $0x64] sm:$0xff]
      %v243 = vld [vmem:[%s210 + $0x6c] sm:$0xf]
      %v244 = vld [vmem:[%s1] sm:$0xff]
      %v245 = vld [vmem:[%s1 + $0x8] sm:$0xff]
      %v246 = vld [vmem:[%s1 + $0x10] sm:$0xff]
      %v247 = vld [vmem:[%s1 + $0x18] sm:$0xff]
      %v248 = vld [vmem:[%s1 + $0x20] sm:$0xff]
      %v249 = vld [vmem:[%s1 + $0x28] sm:$0xff]
      %v250 = vld [vmem:[%s1 + $0x30] sm:$0xff]
      %v251 = vld [vmem:[%s1 + $0x38] sm:$0xff]
      %v252 = vld [vmem:[%s1 + $0x40] sm:$0xff]
      %v253 = vld [vmem:[%s1 + $0x48] sm:$0xff]
      %v254 = vld [vmem:[%s1 + $0x50] sm:$0xff]
      %v255 = vld [vmem:[%s1 + $0x58] sm:$0xff]
      %v256 = vld [vmem:[%s1 + $0x60] sm:$0xff]
      %v257 = vld [vmem:[%s1 + $0x68] sm:$0xff]
      %v258 = vld [vmem:[%s1 + $0x70] sm:$0xff]
      %v259 = vld [vmem:[%s1 + $0x78] sm:$0xff]
      %v260 = vld [vmem:[%s1 + $0x80] sm:$0xff]
      %v261 = vld [vmem:[%s1 + $0x88] sm:$0xff]
      %v262 = vld [vmem:[%s1 + $0x90] sm:$0xff]
      %v263 = vld [vmem:[%s1 + $0x98] sm:$0xff]
      %v264 = vld [vmem:[%s1 + $0xa0] sm:$0xff]
      %v265 = vld [vmem:[%s1 + $0xa8] sm:$0xff]
      %v266 = vld [vmem:[%s1 + $0xb0] sm:$0xff]
      %v267 = vld [vmem:[%s1 + $0xb8] sm:$0xff]
      %v268 = vld [vmem:[%s1 + $0xc0] sm:$0xff]
      %v269 = vld [vmem:[%s1 + $0xc8] sm:$0xff]
      %v270 = vld [vmem:[%s1 + $0xd0] sm:$0xff]
      %v271 = vld [vmem:[%s1 + $0xd8] sm:$0xff]
      %v272 = vld [vmem:[%s1 + $0xe0] sm:$0xff]
      %v273 = vld [vmem:[%s1 + $0xe8] sm:$0xff]
      %v274 = vld [vmem:[%s1 + $0xf0] sm:$0xff]
      %v275 = vld [vmem:[%s1 + $0xf8] sm:$0xff]
      %v276 = vld [vmem:[%s1 + $0x100] sm:$0xff]
      %v277 = vld [vmem:[%s1 + $0x108] sm:$0xff]
      %v278 = vld [vmem:[%s1 + $0x110] sm:$0xff]
      %v279 = vld [vmem:[%s1 + $0x118] sm:$0xff]
      %v280 = vld [vmem:[%s1 + $0x120] sm:$0xff]
      %v281 = vld [vmem:[%s1 + $0x128] sm:$0xff]
      %v282 = vld [vmem:[%s1 + $0x130] sm:$0xff]
      %v283 = vld [vmem:[%s1 + $0x138] sm:$0xff]
      %v284 = vld [vmem:[%s1 + $0x140] sm:$0xff]
      %v285 = vld [vmem:[%s1 + $0x148] sm:$0xff]
      %v286 = vld [vmem:[%s1 + $0x150] sm:$0xff]
      %v287 = vld [vmem:[%s1 + $0x158] sm:$0xff]
      %v288 = vld [vmem:[%s1 + $0x160] sm:$0xff]
      %v289 = vld [vmem:[%s1 + $0x168] sm:$0xff]
      %v290 = vld [vmem:[%s1 + $0x170] sm:$0xff]
      %v291 = vld [vmem:[%s1 + $0x178] sm:$0xff]
      %v292 = vld [vmem:[%s1 + $0x180] sm:$0xff]
      %v293 = vld [vmem:[%s1 + $0x188] sm:$0xff]
      %v294 = vld [vmem:[%s1 + $0x190] sm:$0xff]
      %v295 = vld [vmem:[%s1 + $0x198] sm:$0xff]
      %v296 = vld [vmem:[%s1 + $0x1a0] sm:$0xff]
      %v297 = vld [vmem:[%s1 + $0x1a8] sm:$0xff]
      %v298 = vld [vmem:[%s1 + $0x1b0] sm:$0xff]
      %v299 = vld [vmem:[%s1 + $0x1b8] sm:$0xff]
      %v300 = vld [vmem:[%s1 + $0x1c0] sm:$0xff]
      %v301 = vld [vmem:[%s1 + $0x1c8] sm:$0xff]
      %v302 = vld [vmem:[%s1 + $0x1d0] sm:$0xff]
      %v303 = vld [vmem:[%s1 + $0x1d8] sm:$0xff]
      %v304 = vld [vmem:[%s1 + $0x1e0] sm:$0xff]
      %v305 = vld [vmem:[%s1 + $0x1e8] sm:$0xff]
      %v306 = vld [vmem:[%s1 + $0x1f0] sm:$0xff]
      %v307 = vld [vmem:[%s1 + $0x1f8] sm:$0xff]
      %v308 = vld [vmem:[%s1 + $0x200] sm:$0xff]
      %v309 = vld [vmem:[%s1 + $0x208] sm:$0xff]
      %v310 = vld [vmem:[%s1 + $0x210] sm:$0xff]
      %v311 = vld [vmem:[%s1 + $0x218] sm:$0xff]
      %v312 = vld [vmem:[%s1 + $0x220] sm:$0xff]
      %v313 = vld [vmem:[%s1 + $0x228] sm:$0xff]
      %v314 = vld [vmem:[%s1 + $0x230] sm:$0xff]
      %v315 = vld [vmem:[%s1 + $0x238] sm:$0xff]
      %v316 = vld [vmem:[%s1 + $0x240] sm:$0xff]
      %v317 = vld [vmem:[%s1 + $0x248] sm:$0xff]
      %v318 = vld [vmem:[%s1 + $0x250] sm:$0xff]
      %v319 = vld [vmem:[%s1 + $0x258] sm:$0xff]
      %v320 = vld [vmem:[%s1 + $0x260] sm:$0xff]
      %v321 = vld [vmem:[%s1 + $0x268] sm:$0xff]
      %v322 = vld [vmem:[%s1 + $0x270] sm:$0xff]
      %v323 = vld [vmem:[%s1 + $0x278] sm:$0xff]
      %v324 = vld [vmem:[%s1 + $0x280] sm:$0xff]
      %v325 = vld [vmem:[%s1 + $0x288] sm:$0xff]
      %v326 = vld [vmem:[%s1 + $0x290] sm:$0xff]
      %v327 = vld [vmem:[%s1 + $0x298] sm:$0xff]
      %v328 = vld [vmem:[%s1 + $0x2a0] sm:$0xff]
      %v329 = vld [vmem:[%s1 + $0x2a8] sm:$0xff]
      %v330 = vld [vmem:[%s1 + $0x2b0] sm:$0xff]
      %v331 = vld [vmem:[%s1 + $0x2b8] sm:$0xff]
      %v332 = vld [vmem:[%s1 + $0x2c0] sm:$0xff]
      %v333 = vld [vmem:[%s1 + $0x2c8] sm:$0xff]
      %v334 = vld [vmem:[%s1 + $0x2d0] sm:$0xff]
      %v335 = vld [vmem:[%s1 + $0x2d8] sm:$0xff]
      %v336 = vld [vmem:[%s1 + $0x2e0] sm:$0xff]
      %v337 = vld [vmem:[%s1 + $0x2e8] sm:$0xff]
      %v338 = vld [vmem:[%s1 + $0x2f0] sm:$0xff]
      %v339 = vld [vmem:[%s1 + $0x2f8] sm:$0xff]
      %v340 = vld [vmem:[%s1 + $0x300] sm:$0xff]
      %v341 = vld [vmem:[%s1 + $0x308] sm:$0xff]
      %v342 = vld [vmem:[%s1 + $0x310] sm:$0xff]
      %v343 = vld [vmem:[%s1 + $0x318] sm:$0xff]
      %v344 = vld [vmem:[%s1 + $0x320] sm:$0xff]
      %v345 = vld [vmem:[%s1 + $0x328] sm:$0xff]
      %v346 = vld [vmem:[%s1 + $0x330] sm:$0xff]
      %v347 = vld [vmem:[%s1 + $0x338] sm:$0xff]
      %v348 = vld [vmem:[%s1 + $0x340] sm:$0xff]
      %v349 = vld [vmem:[%s1 + $0x348] sm:$0xff]
      %v350 = vld [vmem:[%s1 + $0x350] sm:$0xff]
      %v351 = vld [vmem:[%s1 + $0x358] sm:$0xff]
      %v352 = vld [vmem:[%s1 + $0x360] sm:$0xff]
      %v353 = vld [vmem:[%s1 + $0x368] sm:$0xff]
      %v354 = vld [vmem:[%s1 + $0x370] sm:$0xff]
      %v355 = vld [vmem:[%s1 + $0x378] sm:$0xff]
      %v356 = vld [vmem:[%s1 + $0x380] sm:$0xff]
      %v357 = vld [vmem:[%s1 + $0x388] sm:$0xff]
      %v358 = vld [vmem:[%s1 + $0x390] sm:$0xff]
      %v359 = vld [vmem:[%s1 + $0x398] sm:$0xff]
      %v360 = vld [vmem:[%s1 + $0x3a0] sm:$0xff]
      %v361 = vld [vmem:[%s1 + $0x3a8] sm:$0xff]
      %v362 = vld [vmem:[%s1 + $0x3b0] sm:$0xff]
      %v363 = vld [vmem:[%s1 + $0x3b8] sm:$0xff]
      %v364 = vld [vmem:[%s1 + $0x3c0] sm:$0xff]
      %v365 = vld [vmem:[%s1 + $0x3c8] sm:$0xff]
      %v366 = vld [vmem:[%s1 + $0x3d0] sm:$0xff]
      %v367 = vld [vmem:[%s1 + $0x3d8] sm:$0xff]
      %v368 = vld [vmem:[%s1 + $0x3e0] sm:$0xff]
      %v369 = vld [vmem:[%s1 + $0x3e8] sm:$0xff]
      %v370 = vld [vmem:[%s1 + $0x3f0] sm:$0xff]
      %v371 = vld [vmem:[%s1 + $0x3f8] sm:$0xff]
      %v372 = vld [vmem:[%s1 + $0x400] sm:$0xff]
      %v373 = vld [vmem:[%s1 + $0x408] sm:$0xff]
      %v374 = vld [vmem:[%s1 + $0x410] sm:$0xff]
      %v375 = vld [vmem:[%s1 + $0x418] sm:$0xff]
      %v376 = vld [vmem:[%s1 + $0x420] sm:$0xff]
      %v377 = vld [vmem:[%s1 + $0x428] sm:$0xff]
      %v378 = vld [vmem:[%s1 + $0x430] sm:$0xff]
      %v379 = vld [vmem:[%s1 + $0x438] sm:$0xff]
      %v380 = vld [vmem:[%s1 + $0x440] sm:$0xff]
      %v381 = vld [vmem:[%s1 + $0x448] sm:$0xff]
      %v382 = vld [vmem:[%s1 + $0x450] sm:$0xff]
      %v383 = vld [vmem:[%s1 + $0x458] sm:$0xff]
      %v384 = vld [vmem:[%s1 + $0x460] sm:$0xff]
      %v385 = vld [vmem:[%s1 + $0x468] sm:$0xff]
      %v386 = vld [vmem:[%s1 + $0x470] sm:$0xff]
      %v387 = vld [vmem:[%s1 + $0x478] sm:$0xff]
      %v388 = vld [vmem:[%s1 + $0x480] sm:$0xff]
      %v389 = vld [vmem:[%s1 + $0x488] sm:$0xff]
      %v390 = vld [vmem:[%s1 + $0x490] sm:$0xff]
      %v391 = vld [vmem:[%s1 + $0x498] sm:$0xff]
      %v392 = vld [vmem:[%s1 + $0x4a0] sm:$0xff]
      %v393 = vld [vmem:[%s1 + $0x4a8] sm:$0xff]
      %v394 = vld [vmem:[%s1 + $0x4b0] sm:$0xff]
      %v395 = vld [vmem:[%s1 + $0x4b8] sm:$0xff]
      %v396 = vld [vmem:[%s1 + $0x4c0] sm:$0xff]
      %v397 = vld [vmem:[%s1 + $0x4c8] sm:$0xff]
      %v398 = vld [vmem:[%s1 + $0x4d0] sm:$0xff]
      %v399 = vld [vmem:[%s1 + $0x4d8] sm:$0xff]
      %v400 = vld [vmem:[%s1 + $0x4e0] sm:$0xff]
      %v401 = vld [vmem:[%s1 + $0x4e8] sm:$0xff]
      %v402 = vld [vmem:[%s1 + $0x4f0] sm:$0xff]
      %v403 = vld [vmem:[%s1 + $0x4f8] sm:$0xff]
      %v404 = vld [vmem:[%s1 + $0x500] sm:$0xff]
      %v405 = vld [vmem:[%s1 + $0x508] sm:$0xff]
      %v406 = vld [vmem:[%s1 + $0x510] sm:$0xff]
      %v407 = vld [vmem:[%s1 + $0x518] sm:$0xff]
      %v408 = vld [vmem:[%s1 + $0x520] sm:$0xff]
      %v409 = vld [vmem:[%s1 + $0x528] sm:$0xff]
      %v410 = vld [vmem:[%s1 + $0x530] sm:$0xff]
      %v411 = vld [vmem:[%s1 + $0x538] sm:$0xff]
      %v412 = vld [vmem:[%s1 + $0x540] sm:$0xff]
      %v413 = vld [vmem:[%s1 + $0x548] sm:$0xff]
      %v414 = vld [vmem:[%s1 + $0x550] sm:$0xff]
      %v415 = vld [vmem:[%s1 + $0x558] sm:$0xff]
      %v416 = vld [vmem:[%s1 + $0x560] sm:$0xff]
      %v417 = vld [vmem:[%s1 + $0x568] sm:$0xff]
      %v418 = vld [vmem:[%s1 + $0x570] sm:$0xff]
      %v419 = vld [vmem:[%s1 + $0x578] sm:$0xff]
      %v420 = vld [vmem:[%s1 + $0x580] sm:$0xff]
      %v421 = vld [vmem:[%s1 + $0x588] sm:$0xff]
      %v422 = vld [vmem:[%s1 + $0x590] sm:$0xff]
      %v423 = vld [vmem:[%s1 + $0x598] sm:$0xff]
      %v424 = vld [vmem:[%s1 + $0x5a0] sm:$0xff]
      %v425 = vld [vmem:[%s1 + $0x5a8] sm:$0xff]
      %v426 = vld [vmem:[%s1 + $0x5b0] sm:$0xff]
      %v427 = vld [vmem:[%s1 + $0x5b8] sm:$0xff]
      %v428 = vld [vmem:[%s1 + $0x5c0] sm:$0xff]
      %v429 = vld [vmem:[%s1 + $0x5c8] sm:$0xff]
      %v430 = vld [vmem:[%s1 + $0x5d0] sm:$0xff]
      %v431 = vld [vmem:[%s1 + $0x5d8] sm:$0xff]
      %v432 = vld [vmem:[%s1 + $0x5e0] sm:$0xff]
      %v433 = vld [vmem:[%s1 + $0x5e8] sm:$0xff]
      %v434 = vld [vmem:[%s1 + $0x5f0] sm:$0xff]
      %v435 = vld [vmem:[%s1 + $0x5f8] sm:$0xff]
      %v436 = vld [vmem:[%s1 + $0x600] sm:$0xff]
      %v437 = vld [vmem:[%s1 + $0x608] sm:$0xff]
      %v438 = vld [vmem:[%s1 + $0x610] sm:$0xff]
      %v439 = vld [vmem:[%s1 + $0x618] sm:$0xff]
      %v440 = vld [vmem:[%s1 + $0x620] sm:$0xff]
      %v441 = vld [vmem:[%s1 + $0x628] sm:$0xff]
      %v442 = vld [vmem:[%s1 + $0x630] sm:$0xff]
      %v443 = vld [vmem:[%s1 + $0x638] sm:$0xff]
      %v444 = vld [vmem:[%s1 + $0x640] sm:$0xff]
      %v445 = vld [vmem:[%s1 + $0x648] sm:$0xff]
      %v446 = vld [vmem:[%s1 + $0x650] sm:$0xff]
      %v447 = vld [vmem:[%s1 + $0x658] sm:$0xff]
      %v448 = vld [vmem:[%s1 + $0x660] sm:$0xff]
      %v449 = vld [vmem:[%s1 + $0x668] sm:$0xff]
      %v450 = vld [vmem:[%s1 + $0x670] sm:$0xff]
      %v451 = vld [vmem:[%s1 + $0x678] sm:$0xff]
      %v452 = vld [vmem:[%s1 + $0x680] sm:$0xff]
      %v453 = vld [vmem:[%s1 + $0x688] sm:$0xff]
      %v454 = vld [vmem:[%s1 + $0x690] sm:$0xff]
      %v455 = vld [vmem:[%s1 + $0x698] sm:$0xff]
      %v456 = vld [vmem:[%s1 + $0x6a0] sm:$0xff]
      %v457 = vld [vmem:[%s1 + $0x6a8] sm:$0xff]
      %v458 = vld [vmem:[%s1 + $0x6b0] sm:$0xff]
      %v459 = vld [vmem:[%s1 + $0x6b8] sm:$0xff]
      %v460 = vld [vmem:[%s1 + $0x6c0] sm:$0xff]
      %v461 = vld [vmem:[%s1 + $0x6c8] sm:$0xff]
      %v462 = vld [vmem:[%s1 + $0x6d0] sm:$0xff]
      %v463 = vld [vmem:[%s1 + $0x6d8] sm:$0xff]
      %v464 = vld [vmem:[%s1 + $0x6e0] sm:$0xff]
      %v465 = vld [vmem:[%s1 + $0x6e8] sm:$0xff]
      %v466 = vld [vmem:[%s1 + $0x6f0] sm:$0xff]
      %v467 = vld [vmem:[%s1 + $0x6f8] sm:$0xff]
      %v484 = vunpack.c.l.b16 %v228
      %v485 = vunpack.c.h.b16 %v228
      %v486 = vunpack.c.l.b16 %v229
      %v487 = vunpack.c.h.b16 %v229
      %v488 = vunpack.c.l.b16 %v230
      %v489 = vunpack.c.h.b16 %v230
      %v490 = vunpack.c.l.b16 %v231
      %v491 = vunpack.c.l.b16 %v232
      %v492 = vunpack.c.h.b16 %v232
      %v493 = vunpack.c.l.b16 %v233
      %v494 = vunpack.c.h.b16 %v233
      %v495 = vunpack.c.l.b16 %v234
      %v496 = vunpack.c.h.b16 %v234
      %v497 = vunpack.c.l.b16 %v235
      %v498 = vunpack.c.l.b16 %v236
      %v499 = vunpack.c.h.b16 %v236
      %v500 = vunpack.c.l.b16 %v237
      %v501 = vunpack.c.h.b16 %v237
      %v502 = vunpack.c.l.b16 %v238
      %v503 = vunpack.c.h.b16 %v238
      %v504 = vunpack.c.l.b16 %v239
      %v505 = vunpack.c.l.b16 %v240
      %v506 = vunpack.c.h.b16 %v240
      %v507 = vunpack.c.l.b16 %v241
      %v508 = vunpack.c.h.b16 %v241
      %v509 = vunpack.c.l.b16 %v242
      %v510 = vunpack.c.h.b16 %v242
      %v511 = vunpack.c.l.b16 %v243
      %v512 = vpack.c.b16 %v491, %v484
      %v513 = vpack.c.b16 %v492, %v485
      %v514 = vpack.c.b16 %v493, %v486
      %v515 = vpack.c.b16 %v494, %v487
      %v516 = vpack.c.b16 %v495, %v488
      %v517 = vpack.c.b16 %v496, %v489
      %v518 = vpack.c.b16 %v497, %v490
      %v519 = vpack.c.b16 %v505, %v498
      %v520 = vpack.c.b16 %v506, %v499
      %v521 = vpack.c.b16 %v507, %v500
      %v522 = vpack.c.b16 %v508, %v501
      %v523 = vpack.c.b16 %v509, %v502
      %v524 = vpack.c.b16 %v510, %v503
      %v525 = vpack.c.b16 %v511, %v504
      %v764 = vunpack.c.l.b16 %v244
      %v765 = vunpack.c.h.b16 %v244
      %v766 = vunpack.c.l.b16 %v245
      %v767 = vunpack.c.h.b16 %v245
      %v768 = vunpack.c.l.b16 %v246
      %v769 = vunpack.c.h.b16 %v246
      %v770 = vunpack.c.l.b16 %v247
      %v771 = vunpack.c.h.b16 %v247
      %v772 = vunpack.c.l.b16 %v248
      %v773 = vunpack.c.h.b16 %v248
      %v774 = vunpack.c.l.b16 %v249
      %v775 = vunpack.c.h.b16 %v249
      %v776 = vunpack.c.l.b16 %v250
      %v777 = vunpack.c.h.b16 %v250
      %v778 = vunpack.c.l.b16 %v251
      %v779 = vunpack.c.h.b16 %v251
      %v780 = vunpack.c.l.b16 %v252
      %v781 = vunpack.c.h.b16 %v252
      %v782 = vunpack.c.l.b16 %v253
      %v783 = vunpack.c.h.b16 %v253
      %v784 = vunpack.c.l.b16 %v254
      %v785 = vunpack.c.h.b16 %v254
      %v786 = vunpack.c.l.b16 %v255
      %v787 = vunpack.c.h.b16 %v255
      %v788 = vunpack.c.l.b16 %v256
      %v789 = vunpack.c.h.b16 %v256
      %v790 = vunpack.c.l.b16 %v257
      %v791 = vunpack.c.h.b16 %v257
      %v792 = vunpack.c.l.b16 %v258
      %v793 = vunpack.c.h.b16 %v258
      %v794 = vunpack.c.l.b16 %v259
      %v795 = vunpack.c.h.b16 %v259
      %v796 = vunpack.c.l.b16 %v260
      %v797 = vunpack.c.h.b16 %v260
      %v798 = vunpack.c.l.b16 %v261
      %v799 = vunpack.c.h.b16 %v261
      %v800 = vunpack.c.l.b16 %v262
      %v801 = vunpack.c.h.b16 %v262
      %v802 = vunpack.c.l.b16 %v263
      %v803 = vunpack.c.h.b16 %v263
      %v804 = vunpack.c.l.b16 %v264
      %v805 = vunpack.c.h.b16 %v264
      %v806 = vunpack.c.l.b16 %v265
      %v807 = vunpack.c.h.b16 %v265
      %v808 = vunpack.c.l.b16 %v266
      %v809 = vunpack.c.h.b16 %v266
      %v810 = vunpack.c.l.b16 %v267
      %v811 = vunpack.c.h.b16 %v267
      %v812 = vunpack.c.l.b16 %v268
      %v813 = vunpack.c.h.b16 %v268
      %v814 = vunpack.c.l.b16 %v269
      %v815 = vunpack.c.h.b16 %v269
      %v816 = vunpack.c.l.b16 %v270
      %v817 = vunpack.c.h.b16 %v270
      %v818 = vunpack.c.l.b16 %v271
      %v819 = vunpack.c.h.b16 %v271
      %v820 = vunpack.c.l.b16 %v272
      %v821 = vunpack.c.h.b16 %v272
      %v822 = vunpack.c.l.b16 %v273
      %v823 = vunpack.c.h.b16 %v273
      %v824 = vunpack.c.l.b16 %v274
      %v825 = vunpack.c.h.b16 %v274
      %v826 = vunpack.c.l.b16 %v275
      %v827 = vunpack.c.h.b16 %v275
      %v828 = vunpack.c.l.b16 %v276
      %v829 = vunpack.c.h.b16 %v276
      %v830 = vunpack.c.l.b16 %v277
      %v831 = vunpack.c.h.b16 %v277
      %v832 = vunpack.c.l.b16 %v278
      %v833 = vunpack.c.h.b16 %v278
      %v834 = vunpack.c.l.b16 %v279
      %v835 = vunpack.c.h.b16 %v279
      %v836 = vunpack.c.l.b16 %v280
      %v837 = vunpack.c.h.b16 %v280
      %v838 = vunpack.c.l.b16 %v281
      %v839 = vunpack.c.h.b16 %v281
      %v840 = vunpack.c.l.b16 %v282
      %v841 = vunpack.c.h.b16 %v282
      %v842 = vunpack.c.l.b16 %v283
      %v843 = vunpack.c.h.b16 %v283
      %v844 = vunpack.c.l.b16 %v284
      %v845 = vunpack.c.h.b16 %v284
      %v846 = vunpack.c.l.b16 %v285
      %v847 = vunpack.c.h.b16 %v285
      %v848 = vunpack.c.l.b16 %v286
      %v849 = vunpack.c.h.b16 %v286
      %v850 = vunpack.c.l.b16 %v287
      %v851 = vunpack.c.h.b16 %v287
      %v852 = vunpack.c.l.b16 %v288
      %v853 = vunpack.c.h.b16 %v288
      %v854 = vunpack.c.l.b16 %v289
      %v855 = vunpack.c.h.b16 %v289
      %v856 = vunpack.c.l.b16 %v290
      %v857 = vunpack.c.h.b16 %v290
      %v858 = vunpack.c.l.b16 %v291
      %v859 = vunpack.c.h.b16 %v291
      %v860 = vunpack.c.l.b16 %v292
      %v861 = vunpack.c.h.b16 %v292
      %v862 = vunpack.c.l.b16 %v293
      %v863 = vunpack.c.h.b16 %v293
      %v864 = vunpack.c.l.b16 %v294
      %v865 = vunpack.c.h.b16 %v294
      %v866 = vunpack.c.l.b16 %v295
      %v867 = vunpack.c.h.b16 %v295
      %v868 = vunpack.c.l.b16 %v296
      %v869 = vunpack.c.h.b16 %v296
      %v870 = vunpack.c.l.b16 %v297
      %v871 = vunpack.c.h.b16 %v297
      %v872 = vunpack.c.l.b16 %v298
      %v873 = vunpack.c.h.b16 %v298
      %v874 = vunpack.c.l.b16 %v299
      %v875 = vunpack.c.h.b16 %v299
      %v876 = vunpack.c.l.b16 %v300
      %v877 = vunpack.c.h.b16 %v300
      %v878 = vunpack.c.l.b16 %v301
      %v879 = vunpack.c.h.b16 %v301
      %v880 = vunpack.c.l.b16 %v302
      %v881 = vunpack.c.h.b16 %v302
      %v882 = vunpack.c.l.b16 %v303
      %v883 = vunpack.c.h.b16 %v303
      %v884 = vunpack.c.l.b16 %v304
      %v885 = vunpack.c.h.b16 %v304
      %v886 = vunpack.c.l.b16 %v305
      %v887 = vunpack.c.h.b16 %v305
      %v888 = vunpack.c.l.b16 %v306
      %v889 = vunpack.c.h.b16 %v306
      %v890 = vunpack.c.l.b16 %v307
      %v891 = vunpack.c.h.b16 %v307
      %v892 = vunpack.c.l.b16 %v308
      %v893 = vunpack.c.h.b16 %v308
      %v894 = vunpack.c.l.b16 %v309
      %v895 = vunpack.c.h.b16 %v309
      %v896 = vunpack.c.l.b16 %v310
      %v897 = vunpack.c.h.b16 %v310
      %v898 = vunpack.c.l.b16 %v311
      %v899 = vunpack.c.h.b16 %v311
      %v900 = vunpack.c.l.b16 %v312
      %v901 = vunpack.c.h.b16 %v312
      %v902 = vunpack.c.l.b16 %v313
      %v903 = vunpack.c.h.b16 %v313
      %v904 = vunpack.c.l.b16 %v314
      %v905 = vunpack.c.h.b16 %v314
      %v906 = vunpack.c.l.b16 %v315
      %v907 = vunpack.c.h.b16 %v315
      %v908 = vunpack.c.l.b16 %v316
      %v909 = vunpack.c.h.b16 %v316
      %v910 = vunpack.c.l.b16 %v317
      %v911 = vunpack.c.h.b16 %v317
      %v912 = vunpack.c.l.b16 %v318
      %v913 = vunpack.c.h.b16 %v318
      %v914 = vunpack.c.l.b16 %v319
      %v915 = vunpack.c.h.b16 %v319
      %v916 = vunpack.c.l.b16 %v320
      %v917 = vunpack.c.h.b16 %v320
      %v918 = vunpack.c.l.b16 %v321
      %v919 = vunpack.c.h.b16 %v321
      %v920 = vunpack.c.l.b16 %v322
      %v921 = vunpack.c.h.b16 %v322
      %v922 = vunpack.c.l.b16 %v323
      %v923 = vunpack.c.h.b16 %v323
      %v924 = vunpack.c.l.b16 %v324
      %v925 = vunpack.c.h.b16 %v324
      %v926 = vunpack.c.l.b16 %v325
      %v927 = vunpack.c.h.b16 %v325
      %v928 = vunpack.c.l.b16 %v326
      %v929 = vunpack.c.h.b16 %v326
      %v930 = vunpack.c.l.b16 %v327
      %v931 = vunpack.c.h.b16 %v327
      %v932 = vunpack.c.l.b16 %v328
      %v933 = vunpack.c.h.b16 %v328
      %v934 = vunpack.c.l.b16 %v329
      %v935 = vunpack.c.h.b16 %v329
      %v936 = vunpack.c.l.b16 %v330
      %v937 = vunpack.c.h.b16 %v330
      %v938 = vunpack.c.l.b16 %v331
      %v939 = vunpack.c.h.b16 %v331
      %v940 = vunpack.c.l.b16 %v332
      %v941 = vunpack.c.h.b16 %v332
      %v942 = vunpack.c.l.b16 %v333
      %v943 = vunpack.c.h.b16 %v333
      %v944 = vunpack.c.l.b16 %v334
      %v945 = vunpack.c.h.b16 %v334
      %v946 = vunpack.c.l.b16 %v335
      %v947 = vunpack.c.h.b16 %v335
      %v948 = vunpack.c.l.b16 %v336
      %v949 = vunpack.c.h.b16 %v336
      %v950 = vunpack.c.l.b16 %v337
      %v951 = vunpack.c.h.b16 %v337
      %v952 = vunpack.c.l.b16 %v338
      %v953 = vunpack.c.h.b16 %v338
      %v954 = vunpack.c.l.b16 %v339
      %v955 = vunpack.c.h.b16 %v339
      %v956 = vunpack.c.l.b16 %v340
      %v957 = vunpack.c.h.b16 %v340
      %v958 = vunpack.c.l.b16 %v341
      %v959 = vunpack.c.h.b16 %v341
      %v960 = vunpack.c.l.b16 %v342
      %v961 = vunpack.c.h.b16 %v342
      %v962 = vunpack.c.l.b16 %v343
      %v963 = vunpack.c.h.b16 %v343
      %v964 = vunpack.c.l.b16 %v344
      %v965 = vunpack.c.h.b16 %v344
      %v966 = vunpack.c.l.b16 %v345
      %v967 = vunpack.c.h.b16 %v345
      %v968 = vunpack.c.l.b16 %v346
      %v969 = vunpack.c.h.b16 %v346
      %v970 = vunpack.c.l.b16 %v347
      %v971 = vunpack.c.h.b16 %v347
      %v972 = vunpack.c.l.b16 %v348
      %v973 = vunpack.c.h.b16 %v348
      %v974 = vunpack.c.l.b16 %v349
      %v975 = vunpack.c.h.b16 %v349
      %v976 = vunpack.c.l.b16 %v350
      %v977 = vunpack.c.h.b16 %v350
      %v978 = vunpack.c.l.b16 %v351
      %v979 = vunpack.c.h.b16 %v351
      %v980 = vunpack.c.l.b16 %v352
      %v981 = vunpack.c.h.b16 %v352
      %v982 = vunpack.c.l.b16 %v353
      %v983 = vunpack.c.h.b16 %v353
      %v984 = vunpack.c.l.b16 %v354
      %v985 = vunpack.c.h.b16 %v354
      %v986 = vunpack.c.l.b16 %v355
      %v987 = vunpack.c.h.b16 %v355
      %v988 = vunpack.c.l.b16 %v356
      %v989 = vunpack.c.h.b16 %v356
      %v990 = vunpack.c.l.b16 %v357
      %v991 = vunpack.c.h.b16 %v357
      %v992 = vunpack.c.l.b16 %v358
      %v993 = vunpack.c.h.b16 %v358
      %v994 = vunpack.c.l.b16 %v359
      %v995 = vunpack.c.h.b16 %v359
      %v996 = vunpack.c.l.b16 %v360
      %v997 = vunpack.c.h.b16 %v360
      %v998 = vunpack.c.l.b16 %v361
      %v999 = vunpack.c.h.b16 %v361
      %v1000 = vunpack.c.l.b16 %v362
      %v1001 = vunpack.c.h.b16 %v362
      %v1002 = vunpack.c.l.b16 %v363
      %v1003 = vunpack.c.h.b16 %v363
      %v1004 = vunpack.c.l.b16 %v364
      %v1005 = vunpack.c.h.b16 %v364
      %v1006 = vunpack.c.l.b16 %v365
      %v1007 = vunpack.c.h.b16 %v365
      %v1008 = vunpack.c.l.b16 %v366
      %v1009 = vunpack.c.h.b16 %v366
      %v1010 = vunpack.c.l.b16 %v367
      %v1011 = vunpack.c.h.b16 %v367
      %v1012 = vunpack.c.l.b16 %v368
      %v1013 = vunpack.c.h.b16 %v368
      %v1014 = vunpack.c.l.b16 %v369
      %v1015 = vunpack.c.h.b16 %v369
      %v1016 = vunpack.c.l.b16 %v370
      %v1017 = vunpack.c.h.b16 %v370
      %v1018 = vunpack.c.l.b16 %v371
      %v1019 = vunpack.c.h.b16 %v371
      %v1020 = vunpack.c.l.b16 %v372
      %v1021 = vunpack.c.h.b16 %v372
      %v1022 = vunpack.c.l.b16 %v373
      %v1023 = vunpack.c.h.b16 %v373
      %v1024 = vunpack.c.l.b16 %v374
      %v1025 = vunpack.c.h.b16 %v374
      %v1026 = vunpack.c.l.b16 %v375
      %v1027 = vunpack.c.h.b16 %v375
      %v1028 = vunpack.c.l.b16 %v376
      %v1029 = vunpack.c.h.b16 %v376
      %v1030 = vunpack.c.l.b16 %v377
      %v1031 = vunpack.c.h.b16 %v377
      %v1032 = vunpack.c.l.b16 %v378
      %v1033 = vunpack.c.h.b16 %v378
      %v1034 = vunpack.c.l.b16 %v379
      %v1035 = vunpack.c.h.b16 %v379
      %v1036 = vunpack.c.l.b16 %v380
      %v1037 = vunpack.c.h.b16 %v380
      %v1038 = vunpack.c.l.b16 %v381
      %v1039 = vunpack.c.h.b16 %v381
      %v1040 = vunpack.c.l.b16 %v382
      %v1041 = vunpack.c.h.b16 %v382
      %v1042 = vunpack.c.l.b16 %v383
      %v1043 = vunpack.c.h.b16 %v383
      %v1044 = vunpack.c.l.b16 %v384
      %v1045 = vunpack.c.h.b16 %v384
      %v1046 = vunpack.c.l.b16 %v385
      %v1047 = vunpack.c.h.b16 %v385
      %v1048 = vunpack.c.l.b16 %v386
      %v1049 = vunpack.c.h.b16 %v386
      %v1050 = vunpack.c.l.b16 %v387
      %v1051 = vunpack.c.h.b16 %v387
      %v1052 = vunpack.c.l.b16 %v388
      %v1053 = vunpack.c.h.b16 %v388
      %v1054 = vunpack.c.l.b16 %v389
      %v1055 = vunpack.c.h.b16 %v389
      %v1056 = vunpack.c.l.b16 %v390
      %v1057 = vunpack.c.h.b16 %v390
      %v1058 = vunpack.c.l.b16 %v391
      %v1059 = vunpack.c.h.b16 %v391
      %v1060 = vunpack.c.l.b16 %v392
      %v1061 = vunpack.c.h.b16 %v392
      %v1062 = vunpack.c.l.b16 %v393
      %v1063 = vunpack.c.h.b16 %v393
      %v1064 = vunpack.c.l.b16 %v394
      %v1065 = vunpack.c.h.b16 %v394
      %v1066 = vunpack.c.l.b16 %v395
      %v1067 = vunpack.c.h.b16 %v395
      %v1068 = vunpack.c.l.b16 %v396
      %v1069 = vunpack.c.h.b16 %v396
      %v1070 = vunpack.c.l.b16 %v397
      %v1071 = vunpack.c.h.b16 %v397
      %v1072 = vunpack.c.l.b16 %v398
      %v1073 = vunpack.c.h.b16 %v398
      %v1074 = vunpack.c.l.b16 %v399
      %v1075 = vunpack.c.h.b16 %v399
      %v1076 = vunpack.c.l.b16 %v400
      %v1077 = vunpack.c.h.b16 %v400
      %v1078 = vunpack.c.l.b16 %v401
      %v1079 = vunpack.c.h.b16 %v401
      %v1080 = vunpack.c.l.b16 %v402
      %v1081 = vunpack.c.h.b16 %v402
      %v1082 = vunpack.c.l.b16 %v403
      %v1083 = vunpack.c.h.b16 %v403
      %v1084 = vunpack.c.l.b16 %v404
      %v1085 = vunpack.c.h.b16 %v404
      %v1086 = vunpack.c.l.b16 %v405
      %v1087 = vunpack.c.h.b16 %v405
      %v1088 = vunpack.c.l.b16 %v406
      %v1089 = vunpack.c.h.b16 %v406
      %v1090 = vunpack.c.l.b16 %v407
      %v1091 = vunpack.c.h.b16 %v407
      %v1092 = vunpack.c.l.b16 %v408
      %v1093 = vunpack.c.h.b16 %v408
      %v1094 = vunpack.c.l.b16 %v409
      %v1095 = vunpack.c.h.b16 %v409
      %v1096 = vunpack.c.l.b16 %v410
      %v1097 = vunpack.c.h.b16 %v410
      %v1098 = vunpack.c.l.b16 %v411
      %v1099 = vunpack.c.h.b16 %v411
      %v1100 = vunpack.c.l.b16 %v412
      %v1101 = vunpack.c.h.b16 %v412
      %v1102 = vunpack.c.l.b16 %v413
      %v1103 = vunpack.c.h.b16 %v413
      %v1104 = vunpack.c.l.b16 %v414
      %v1105 = vunpack.c.h.b16 %v414
      %v1106 = vunpack.c.l.b16 %v415
      %v1107 = vunpack.c.h.b16 %v415
      %v1108 = vunpack.c.l.b16 %v416
      %v1109 = vunpack.c.h.b16 %v416
      %v1110 = vunpack.c.l.b16 %v417
      %v1111 = vunpack.c.h.b16 %v417
      %v1112 = vunpack.c.l.b16 %v418
      %v1113 = vunpack.c.h.b16 %v418
      %v1114 = vunpack.c.l.b16 %v419
      %v1115 = vunpack.c.h.b16 %v419
      %v1116 = vunpack.c.l.b16 %v420
      %v1117 = vunpack.c.h.b16 %v420
      %v1118 = vunpack.c.l.b16 %v421
      %v1119 = vunpack.c.h.b16 %v421
      %v1120 = vunpack.c.l.b16 %v422
      %v1121 = vunpack.c.h.b16 %v422
      %v1122 = vunpack.c.l.b16 %v423
      %v1123 = vunpack.c.h.b16 %v423
      %v1124 = vunpack.c.l.b16 %v424
      %v1125 = vunpack.c.h.b16 %v424
      %v1126 = vunpack.c.l.b16 %v425
      %v1127 = vunpack.c.h.b16 %v425
      %v1128 = vunpack.c.l.b16 %v426
      %v1129 = vunpack.c.h.b16 %v426
      %v1130 = vunpack.c.l.b16 %v427
      %v1131 = vunpack.c.h.b16 %v427
      %v1132 = vunpack.c.l.b16 %v428
      %v1133 = vunpack.c.h.b16 %v428
      %v1134 = vunpack.c.l.b16 %v429
      %v1135 = vunpack.c.h.b16 %v429
      %v1136 = vunpack.c.l.b16 %v430
      %v1137 = vunpack.c.h.b16 %v430
      %v1138 = vunpack.c.l.b16 %v431
      %v1139 = vunpack.c.h.b16 %v431
      %v1140 = vunpack.c.l.b16 %v432
      %v1141 = vunpack.c.h.b16 %v432
      %v1142 = vunpack.c.l.b16 %v433
      %v1143 = vunpack.c.h.b16 %v433
      %v1144 = vunpack.c.l.b16 %v434
      %v1145 = vunpack.c.h.b16 %v434
      %v1146 = vunpack.c.l.b16 %v435
      %v1147 = vunpack.c.h.b16 %v435
      %v1148 = vunpack.c.l.b16 %v436
      %v1149 = vunpack.c.h.b16 %v436
      %v1150 = vunpack.c.l.b16 %v437
      %v1151 = vunpack.c.h.b16 %v437
      %v1152 = vunpack.c.l.b16 %v438
      %v1153 = vunpack.c.h.b16 %v438
      %v1154 = vunpack.c.l.b16 %v439
      %v1155 = vunpack.c.h.b16 %v439
      %v1156 = vunpack.c.l.b16 %v440
      %v1157 = vunpack.c.h.b16 %v440
      %v1158 = vunpack.c.l.b16 %v441
      %v1159 = vunpack.c.h.b16 %v441
      %v1160 = vunpack.c.l.b16 %v442
      %v1161 = vunpack.c.h.b16 %v442
      %v1162 = vunpack.c.l.b16 %v443
      %v1163 = vunpack.c.h.b16 %v443
      %v1164 = vunpack.c.l.b16 %v444
      %v1165 = vunpack.c.h.b16 %v444
      %v1166 = vunpack.c.l.b16 %v445
      %v1167 = vunpack.c.h.b16 %v445
      %v1168 = vunpack.c.l.b16 %v446
      %v1169 = vunpack.c.h.b16 %v446
      %v1170 = vunpack.c.l.b16 %v447
      %v1171 = vunpack.c.h.b16 %v447
      %v1172 = vunpack.c.l.b16 %v448
      %v1173 = vunpack.c.h.b16 %v448
      %v1174 = vunpack.c.l.b16 %v449
      %v1175 = vunpack.c.h.b16 %v449
      %v1176 = vunpack.c.l.b16 %v450
      %v1177 = vunpack.c.h.b16 %v450
      %v1178 = vunpack.c.l.b16 %v451
      %v1179 = vunpack.c.h.b16 %v451
      %v1180 = vunpack.c.l.b16 %v452
      %v1181 = vunpack.c.h.b16 %v452
      %v1182 = vunpack.c.l.b16 %v453
      %v1183 = vunpack.c.h.b16 %v453
      %v1184 = vunpack.c.l.b16 %v454
      %v1185 = vunpack.c.h.b16 %v454
      %v1186 = vunpack.c.l.b16 %v455
      %v1187 = vunpack.c.h.b16 %v455
      %v1188 = vunpack.c.l.b16 %v456
      %v1189 = vunpack.c.h.b16 %v456
      %v1190 = vunpack.c.l.b16 %v457
      %v1191 = vunpack.c.h.b16 %v457
      %v1192 = vunpack.c.l.b16 %v458
      %v1193 = vunpack.c.h.b16 %v458
      %v1194 = vunpack.c.l.b16 %v459
      %v1195 = vunpack.c.h.b16 %v459
      %v1196 = vunpack.c.l.b16 %v460
      %v1197 = vunpack.c.h.b16 %v460
      %v1198 = vunpack.c.l.b16 %v461
      %v1199 = vunpack.c.h.b16 %v461
      %v1200 = vunpack.c.l.b16 %v462
      %v1201 = vunpack.c.h.b16 %v462
      %v1202 = vunpack.c.l.b16 %v463
      %v1203 = vunpack.c.h.b16 %v463
      %v1204 = vunpack.c.l.b16 %v464
      %v1205 = vunpack.c.h.b16 %v464
      %v1206 = vunpack.c.l.b16 %v465
      %v1207 = vunpack.c.h.b16 %v465
      %v1208 = vunpack.c.l.b16 %v466
      %v1209 = vunpack.c.h.b16 %v466
      %v1210 = vunpack.c.l.b16 %v467
      %v1211 = vunpack.c.h.b16 %v467
      %v1212 = vpack.c.b16 %v768, %v764
      %v1213 = vpack.c.b16 %v769, %v765
      %v1214 = vpack.c.b16 %v770, %v766
      %v1215 = vpack.c.b16 %v771, %v767
      %v1216 = vpack.c.b16 %v776, %v772
      %v1217 = vpack.c.b16 %v777, %v773
      %v1218 = vpack.c.b16 %v778, %v774
      %v1219 = vpack.c.b16 %v779, %v775
      %v1220 = vpack.c.b16 %v784, %v780
      %v1221 = vpack.c.b16 %v785, %v781
      %v1222 = vpack.c.b16 %v786, %v782
      %v1223 = vpack.c.b16 %v787, %v783
      %v1224 = vpack.c.b16 %v792, %v788
      %v1225 = vpack.c.b16 %v793, %v789
      %v1226 = vpack.c.b16 %v794, %v790
      %v1227 = vpack.c.b16 %v795, %v791
      %v1228 = vpack.c.b16 %v800, %v796
      %v1229 = vpack.c.b16 %v801, %v797
      %v1230 = vpack.c.b16 %v802, %v798
      %v1231 = vpack.c.b16 %v803, %v799
      %v1232 = vpack.c.b16 %v808, %v804
      %v1233 = vpack.c.b16 %v809, %v805
      %v1234 = vpack.c.b16 %v810, %v806
      %v1235 = vpack.c.b16 %v811, %v807
      %v1236 = vpack.c.b16 %v816, %v812
      %v1237 = vpack.c.b16 %v817, %v813
      %v1238 = vpack.c.b16 %v818, %v814
      %v1239 = vpack.c.b16 %v819, %v815
      %v1240 = vpack.c.b16 %v824, %v820
      %v1241 = vpack.c.b16 %v825, %v821
      %v1242 = vpack.c.b16 %v826, %v822
      %v1243 = vpack.c.b16 %v827, %v823
      %v1244 = vpack.c.b16 %v832, %v828
      %v1245 = vpack.c.b16 %v833, %v829
      %v1246 = vpack.c.b16 %v834, %v830
      %v1247 = vpack.c.b16 %v835, %v831
      %v1248 = vpack.c.b16 %v840, %v836
      %v1249 = vpack.c.b16 %v841, %v837
      %v1250 = vpack.c.b16 %v842, %v838
      %v1251 = vpack.c.b16 %v843, %v839
      %v1252 = vpack.c.b16 %v848, %v844
      %v1253 = vpack.c.b16 %v849, %v845
      %v1254 = vpack.c.b16 %v850, %v846
      %v1255 = vpack.c.b16 %v851, %v847
      %v1256 = vpack.c.b16 %v856, %v852
      %v1257 = vpack.c.b16 %v857, %v853
      %v1258 = vpack.c.b16 %v858, %v854
      %v1259 = vpack.c.b16 %v859, %v855
      %v1260 = vpack.c.b16 %v864, %v860
      %v1261 = vpack.c.b16 %v865, %v861
      %v1262 = vpack.c.b16 %v866, %v862
      %v1263 = vpack.c.b16 %v867, %v863
      %v1264 = vpack.c.b16 %v872, %v868
      %v1265 = vpack.c.b16 %v873, %v869
      %v1266 = vpack.c.b16 %v874, %v870
      %v1267 = vpack.c.b16 %v875, %v871
      %v1268 = vpack.c.b16 %v880, %v876
      %v1269 = vpack.c.b16 %v881, %v877
      %v1270 = vpack.c.b16 %v882, %v878
      %v1271 = vpack.c.b16 %v883, %v879
      %v1272 = vpack.c.b16 %v888, %v884
      %v1273 = vpack.c.b16 %v889, %v885
      %v1274 = vpack.c.b16 %v890, %v886
      %v1275 = vpack.c.b16 %v891, %v887
      %v1276 = vpack.c.b16 %v896, %v892
      %v1277 = vpack.c.b16 %v897, %v893
      %v1278 = vpack.c.b16 %v898, %v894
      %v1279 = vpack.c.b16 %v899, %v895
      %v1280 = vpack.c.b16 %v904, %v900
      %v1281 = vpack.c.b16 %v905, %v901
      %v1282 = vpack.c.b16 %v906, %v902
      %v1283 = vpack.c.b16 %v907, %v903
      %v1284 = vpack.c.b16 %v912, %v908
      %v1285 = vpack.c.b16 %v913, %v909
      %v1286 = vpack.c.b16 %v914, %v910
      %v1287 = vpack.c.b16 %v915, %v911
      %v1288 = vpack.c.b16 %v920, %v916
      %v1289 = vpack.c.b16 %v921, %v917
      %v1290 = vpack.c.b16 %v922, %v918
      %v1291 = vpack.c.b16 %v923, %v919
      %v1292 = vpack.c.b16 %v928, %v924
      %v1293 = vpack.c.b16 %v929, %v925
      %v1294 = vpack.c.b16 %v930, %v926
      %v1295 = vpack.c.b16 %v931, %v927
      %v1296 = vpack.c.b16 %v936, %v932
      %v1297 = vpack.c.b16 %v937, %v933
      %v1298 = vpack.c.b16 %v938, %v934
      %v1299 = vpack.c.b16 %v939, %v935
      %v1300 = vpack.c.b16 %v944, %v940
      %v1301 = vpack.c.b16 %v945, %v941
      %v1302 = vpack.c.b16 %v946, %v942
      %v1303 = vpack.c.b16 %v947, %v943
      %v1304 = vpack.c.b16 %v952, %v948
      %v1305 = vpack.c.b16 %v953, %v949
      %v1306 = vpack.c.b16 %v954, %v950
      %v1307 = vpack.c.b16 %v955, %v951
      %v1308 = vpack.c.b16 %v960, %v956
      %v1309 = vpack.c.b16 %v961, %v957
      %v1310 = vpack.c.b16 %v962, %v958
      %v1311 = vpack.c.b16 %v963, %v959
      %v1312 = vpack.c.b16 %v968, %v964
      %v1313 = vpack.c.b16 %v969, %v965
      %v1314 = vpack.c.b16 %v970, %v966
      %v1315 = vpack.c.b16 %v971, %v967
      %v1316 = vpack.c.b16 %v976, %v972
      %v1317 = vpack.c.b16 %v977, %v973
      %v1318 = vpack.c.b16 %v978, %v974
      %v1319 = vpack.c.b16 %v979, %v975
      %v1320 = vpack.c.b16 %v984, %v980
      %v1321 = vpack.c.b16 %v985, %v981
      %v1322 = vpack.c.b16 %v986, %v982
      %v1323 = vpack.c.b16 %v987, %v983
      %v1324 = vpack.c.b16 %v992, %v988
      %v1325 = vpack.c.b16 %v993, %v989
      %v1326 = vpack.c.b16 %v994, %v990
      %v1327 = vpack.c.b16 %v995, %v991
      %v1328 = vpack.c.b16 %v1000, %v996
      %v1329 = vpack.c.b16 %v1001, %v997
      %v1330 = vpack.c.b16 %v1002, %v998
      %v1331 = vpack.c.b16 %v1003, %v999
      %v1332 = vpack.c.b16 %v1008, %v1004
      %v1333 = vpack.c.b16 %v1009, %v1005
      %v1334 = vpack.c.b16 %v1010, %v1006
      %v1335 = vpack.c.b16 %v1011, %v1007
      %v1336 = vpack.c.b16 %v1016, %v1012
      %v1337 = vpack.c.b16 %v1017, %v1013
      %v1338 = vpack.c.b16 %v1018, %v1014
      %v1339 = vpack.c.b16 %v1019, %v1015
      %v1340 = vpack.c.b16 %v1024, %v1020
      %v1341 = vpack.c.b16 %v1025, %v1021
      %v1342 = vpack.c.b16 %v1026, %v1022
      %v1343 = vpack.c.b16 %v1027, %v1023
      %v1344 = vpack.c.b16 %v1032, %v1028
      %v1345 = vpack.c.b16 %v1033, %v1029
      %v1346 = vpack.c.b16 %v1034, %v1030
      %v1347 = vpack.c.b16 %v1035, %v1031
      %v1348 = vpack.c.b16 %v1040, %v1036
      %v1349 = vpack.c.b16 %v1041, %v1037
      %v1350 = vpack.c.b16 %v1042, %v1038
      %v1351 = vpack.c.b16 %v1043, %v1039
      %v1352 = vpack.c.b16 %v1048, %v1044
      %v1353 = vpack.c.b16 %v1049, %v1045
      %v1354 = vpack.c.b16 %v1050, %v1046
      %v1355 = vpack.c.b16 %v1051, %v1047
      %v1356 = vpack.c.b16 %v1056, %v1052
      %v1357 = vpack.c.b16 %v1057, %v1053
      %v1358 = vpack.c.b16 %v1058, %v1054
      %v1359 = vpack.c.b16 %v1059, %v1055
      %v1360 = vpack.c.b16 %v1064, %v1060
      %v1361 = vpack.c.b16 %v1065, %v1061
      %v1362 = vpack.c.b16 %v1066, %v1062
      %v1363 = vpack.c.b16 %v1067, %v1063
      %v1364 = vpack.c.b16 %v1072, %v1068
      %v1365 = vpack.c.b16 %v1073, %v1069
      %v1366 = vpack.c.b16 %v1074, %v1070
      %v1367 = vpack.c.b16 %v1075, %v1071
      %v1368 = vpack.c.b16 %v1080, %v1076
      %v1369 = vpack.c.b16 %v1081, %v1077
      %v1370 = vpack.c.b16 %v1082, %v1078
      %v1371 = vpack.c.b16 %v1083, %v1079
      %v1372 = vpack.c.b16 %v1088, %v1084
      %v1373 = vpack.c.b16 %v1089, %v1085
      %v1374 = vpack.c.b16 %v1090, %v1086
      %v1375 = vpack.c.b16 %v1091, %v1087
      %v1376 = vpack.c.b16 %v1096, %v1092
      %v1377 = vpack.c.b16 %v1097, %v1093
      %v1378 = vpack.c.b16 %v1098, %v1094
      %v1379 = vpack.c.b16 %v1099, %v1095
      %v1380 = vpack.c.b16 %v1104, %v1100
      %v1381 = vpack.c.b16 %v1105, %v1101
      %v1382 = vpack.c.b16 %v1106, %v1102
      %v1383 = vpack.c.b16 %v1107, %v1103
      %v1384 = vpack.c.b16 %v1112, %v1108
      %v1385 = vpack.c.b16 %v1113, %v1109
      %v1386 = vpack.c.b16 %v1114, %v1110
      %v1387 = vpack.c.b16 %v1115, %v1111
      %v1388 = vpack.c.b16 %v1120, %v1116
      %v1389 = vpack.c.b16 %v1121, %v1117
      %v1390 = vpack.c.b16 %v1122, %v1118
      %v1391 = vpack.c.b16 %v1123, %v1119
      %v1392 = vpack.c.b16 %v1128, %v1124
      %v1393 = vpack.c.b16 %v1129, %v1125
      %v1394 = vpack.c.b16 %v1130, %v1126
      %v1395 = vpack.c.b16 %v1131, %v1127
      %v1396 = vpack.c.b16 %v1136, %v1132
      %v1397 = vpack.c.b16 %v1137, %v1133
      %v1398 = vpack.c.b16 %v1138, %v1134
      %v1399 = vpack.c.b16 %v1139, %v1135
      %v1400 = vpack.c.b16 %v1144, %v1140
      %v1401 = vpack.c.b16 %v1145, %v1141
      %v1402 = vpack.c.b16 %v1146, %v1142
      %v1403 = vpack.c.b16 %v1147, %v1143
      %v1404 = vpack.c.b16 %v1152, %v1148
      %v1405 = vpack.c.b16 %v1153, %v1149
      %v1406 = vpack.c.b16 %v1154, %v1150
      %v1407 = vpack.c.b16 %v1155, %v1151
      %v1408 = vpack.c.b16 %v1160, %v1156
      %v1409 = vpack.c.b16 %v1161, %v1157
      %v1410 = vpack.c.b16 %v1162, %v1158
      %v1411 = vpack.c.b16 %v1163, %v1159
      %v1412 = vpack.c.b16 %v1168, %v1164
      %v1413 = vpack.c.b16 %v1169, %v1165
      %v1414 = vpack.c.b16 %v1170, %v1166
      %v1415 = vpack.c.b16 %v1171, %v1167
      %v1416 = vpack.c.b16 %v1176, %v1172
      %v1417 = vpack.c.b16 %v1177, %v1173
      %v1418 = vpack.c.b16 %v1178, %v1174
      %v1419 = vpack.c.b16 %v1179, %v1175
      %v1420 = vpack.c.b16 %v1184, %v1180
      %v1421 = vpack.c.b16 %v1185, %v1181
      %v1422 = vpack.c.b16 %v1186, %v1182
      %v1423 = vpack.c.b16 %v1187, %v1183
      %v1424 = vpack.c.b16 %v1192, %v1188
      %v1425 = vpack.c.b16 %v1193, %v1189
      %v1426 = vpack.c.b16 %v1194, %v1190
      %v1427 = vpack.c.b16 %v1195, %v1191
      %v1428 = vpack.c.b16 %v1200, %v1196
      %v1429 = vpack.c.b16 %v1201, %v1197
      %v1430 = vpack.c.b16 %v1202, %v1198
      %v1431 = vpack.c.b16 %v1203, %v1199
      %v1432 = vpack.c.b16 %v1208, %v1204
      %v1433 = vpack.c.b16 %v1209, %v1205
      %v1434 = vpack.c.b16 %v1210, %v1206
      %v1435 = vpack.c.b16 %v1211, %v1207
      %1660 = vmatprep.subr.bf16.mxu0 %v1213
      %1661 = vmatpush1.bf16.msra.mxu0 %v1212
      %1662 = vmatprep.subr.bf16.mxu0 %v1217
      %1663 = vmatpush1.bf16.msra.mxu0 %v1216
      %1664 = vmatprep.subr.bf16.mxu0 %v1221
      %1665 = vmatpush1.bf16.msra.mxu0 %v1220
      %1666 = vmatprep.subr.bf16.mxu0 %v1225
      %1667 = vmatpush1.bf16.msra.mxu0 %v1224
      %1668 = vmatprep.subr.bf16.mxu0 %v1229
      %1669 = vmatpush1.bf16.msra.mxu0 %v1228
      %1670 = vmatprep.subr.bf16.mxu0 %v1233
      %1671 = vmatpush1.bf16.msra.mxu0 %v1232
      %1672 = vmatprep.subr.bf16.mxu0 %v1237
      %1673 = vmatpush1.bf16.msra.mxu0 %v1236
      %1674 = vmatprep.subr.bf16.mxu0 %v1241
      %1675 = vmatpush1.bf16.msra.mxu0 %v1240
      %1676 = vmatprep.subr.bf16.mxu0 %v1245
      %1677 = vmatpush1.bf16.msra.mxu0 %v1244
      %1678 = vmatprep.subr.bf16.mxu0 %v1249
      %1679 = vmatpush1.bf16.msra.mxu0 %v1248
      %1680 = vmatprep.subr.bf16.mxu0 %v1253
      %1681 = vmatpush1.bf16.msra.mxu0 %v1252
      %1682 = vmatprep.subr.bf16.mxu0 %v1257
      %1683 = vmatpush1.bf16.msra.mxu0 %v1256
      %1684 = vmatprep.subr.bf16.mxu0 %v1261
      %1685 = vmatpush1.bf16.msra.mxu0 %v1260
      %1686 = vmatprep.subr.bf16.mxu0 %v1265
      %1687 = vmatpush1.bf16.msra.mxu0 %v1264
      %1688 = vmatprep.subr.bf16.mxu0 %v1269
      %1689 = vmatpush1.bf16.msra.mxu0 %v1268
      %1690 = vmatprep.subr.bf16.mxu0 %v1273
      %1691 = vmatpush1.bf16.msra.mxu0 %v1272
      %1692 = vmatprep.mubr.bf16.mxu0 %v513
      %1693 = vmatmul.mubr.bf16.gmra.mrb[0].mxu0 %v512
      %v1694 = vpop.f32.mrb[0].mxu0
      %v1695 = vadd.f32 0.0, %v1694
      %v1696 = vpop.f32.mrb[0].mxu0
      %v1697 = vadd.f32 0.0, %v1696
      %v1698 = vpop.f32.mrb[0].mxu0
      %v1699 = vadd.f32 0.0, %v1698
      %v1700 = vpop.f32.mrb[0].mxu0
      %v1701 = vadd.f32 0.0, %v1700
      %1702 = vmatprep.mubr.bf16.mxu0 %v520
      %1703 = vmatmul.mubr.bf16.gmra.mrb[0].mxu0 %v519
      %v1704 = vpop.f32.mrb[0].mxu0
      %v1705 = vadd.f32 0.0, %v1704
      %v1706 = vpop.f32.mrb[0].mxu0
      %v1707 = vadd.f32 0.0, %v1706
      %v1708 = vpop.f32.mrb[0].mxu0
      %v1709 = vadd.f32 0.0, %v1708
      %v1710 = vpop.f32.mrb[0].mxu0
      %v1711 = vadd.f32 0.0, %v1710
      %1712 = vdwg.mxu0
      %1713 = vmatprep.subr.bf16.mxu0 %v1277
      %1714 = vmatpush1.bf16.msra.mxu0 %v1276
      %1715 = vmatprep.subr.bf16.mxu0 %v1281
      %1716 = vmatpush1.bf16.msra.mxu0 %v1280
      %1717 = vmatprep.subr.bf16.mxu0 %v1285
      %1718 = vmatpush1.bf16.msra.mxu0 %v1284
      %1719 = vmatprep.subr.bf16.mxu0 %v1289
      %1720 = vmatpush1.bf16.msra.mxu0 %v1288
      %1721 = vmatprep.subr.bf16.mxu0 %v1293
      %1722 = vmatpush1.bf16.msra.mxu0 %v1292
      %1723 = vmatprep.subr.bf16.mxu0 %v1297
      %1724 = vmatpush1.bf16.msra.mxu0 %v1296
      %1725 = vmatprep.subr.bf16.mxu0 %v1301
      %1726 = vmatpush1.bf16.msra.mxu0 %v1300
      %1727 = vmatprep.subr.bf16.mxu0 %v1305
      %1728 = vmatpush1.bf16.msra.mxu0 %v1304
      %1729 = vmatprep.subr.bf16.mxu0 %v1309
      %1730 = vmatpush1.bf16.msra.mxu0 %v1308
      %1731 = vmatprep.subr.bf16.mxu0 %v1313
      %1732 = vmatpush1.bf16.msra.mxu0 %v1312
      %1733 = vmatprep.subr.bf16.mxu0 %v1317
      %1734 = vmatpush1.bf16.msra.mxu0 %v1316
      %1735 = vmatprep.subr.bf16.mxu0 %v1321
      %1736 = vmatpush1.bf16.msra.mxu0 %v1320
      %1737 = vmatprep.subr.bf16.mxu0 %v1325
      %1738 = vmatpush1.bf16.msra.mxu0 %v1324
      %1739 = vmatprep.subr.bf16.mxu0 %v1329
      %1740 = vmatpush1.bf16.msra.mxu0 %v1328
      %1741 = vmatprep.subr.bf16.mxu0 %v1333
      %1742 = vmatpush1.bf16.msra.mxu0 %v1332
      %1743 = vmatprep.subr.bf16.mxu0 %v1337
      %1744 = vmatpush1.bf16.msra.mxu0 %v1336
      %1745 = vmatprep.mubr.bf16.mxu0 %v515
      %1746 = vmatmul.mubr.bf16.gmra.mrb[0].mxu0 %v514
      %v1747 = vpop.f32.mrb[0].mxu0
      %v1748 = vadd.f32 %v1695, %v1747
      %v1749 = vpop.f32.mrb[0].mxu0
      %v1750 = vadd.f32 %v1697, %v1749
      %v1751 = vpop.f32.mrb[0].mxu0
      %v1752 = vadd.f32 %v1699, %v1751
      %v1753 = vpop.f32.mrb[0].mxu0
      %v1754 = vadd.f32 %v1701, %v1753
      %1755 = vmatprep.mubr.bf16.mxu0 %v522
      %1756 = vmatmul.mubr.bf16.gmra.mrb[0].mxu0 %v521
      %v1757 = vpop.f32.mrb[0].mxu0
      %v1758 = vadd.f32 %v1705, %v1757
      %v1759 = vpop.f32.mrb[0].mxu0
      %v1760 = vadd.f32 %v1707, %v1759
      %v1761 = vpop.f32.mrb[0].mxu0
      %v1762 = vadd.f32 %v1709, %v1761
      %v1763 = vpop.f32.mrb[0].mxu0
      %v1764 = vadd.f32 %v1711, %v1763
      %1765 = vdwg.mxu0
      %1766 = vmatprep.subr.bf16.mxu0 %v1341
      %1767 = vmatpush1.bf16.msra.mxu0 %v1340
      %1768 = vmatprep.subr.bf16.mxu0 %v1345
      %1769 = vmatpush1.bf16.msra.mxu0 %v1344
      %1770 = vmatprep.subr.bf16.mxu0 %v1349
      %1771 = vmatpush1.bf16.msra.mxu0 %v1348
      %1772 = vmatprep.subr.bf16.mxu0 %v1353
      %1773 = vmatpush1.bf16.msra.mxu0 %v1352
      %1774 = vmatprep.subr.bf16.mxu0 %v1357
      %1775 = vmatpush1.bf16.msra.mxu0 %v1356
      %1776 = vmatprep.subr.bf16.mxu0 %v1361
      %1777 = vmatpush1.bf16.msra.mxu0 %v1360
      %1778 = vmatprep.subr.bf16.mxu0 %v1365
      %1779 = vmatpush1.bf16.msra.mxu0 %v1364
      %1780 = vmatprep.subr.bf16.mxu0 %v1369
      %1781 = vmatpush1.bf16.msra.mxu0 %v1368
      %1782 = vmatprep.subr.bf16.mxu0 %v1373
      %1783 = vmatpush1.bf16.msra.mxu0 %v1372
      %1784 = vmatprep.subr.bf16.mxu0 %v1377
      %1785 = vmatpush1.bf16.msra.mxu0 %v1376
      %1786 = vmatprep.subr.bf16.mxu0 %v1381
      %1787 = vmatpush1.bf16.msra.mxu0 %v1380
      %1788 = vmatprep.subr.bf16.mxu0 %v1385
      %1789 = vmatpush1.bf16.msra.mxu0 %v1384
      %1790 = vmatprep.subr.bf16.mxu0 %v1389
      %1791 = vmatpush1.bf16.msra.mxu0 %v1388
      %1792 = vmatprep.subr.bf16.mxu0 %v1393
      %1793 = vmatpush1.bf16.msra.mxu0 %v1392
      %1794 = vmatprep.subr.bf16.mxu0 %v1397
      %1795 = vmatpush1.bf16.msra.mxu0 %v1396
      %1796 = vmatprep.subr.bf16.mxu0 %v1401
      %1797 = vmatpush1.bf16.msra.mxu0 %v1400
      %1798 = vmatprep.mubr.bf16.mxu0 %v517
      %1799 = vmatmul.mubr.bf16.gmra.mrb[0].mxu0 %v516
      %v1800 = vpop.f32.mrb[0].mxu0
      %v1801 = vadd.f32 %v1748, %v1800
      %v1802 = vpop.f32.mrb[0].mxu0
      %v1803 = vadd.f32 %v1750, %v1802
      %v1804 = vpop.f32.mrb[0].mxu0
      %v1805 = vadd.f32 %v1752, %v1804
      %v1806 = vpop.f32.mrb[0].mxu0
      %v1807 = vadd.f32 %v1754, %v1806
      %1808 = vmatprep.mubr.bf16.mxu0 %v524
      %1809 = vmatmul.mubr.bf16.gmra.mrb[0].mxu0 %v523
      %v1810 = vpop.f32.mrb[0].mxu0
      %v1811 = vadd.f32 %v1758, %v1810
      %v1812 = vpop.f32.mrb[0].mxu0
      %v1813 = vadd.f32 %v1760, %v1812
      %v1814 = vpop.f32.mrb[0].mxu0
      %v1815 = vadd.f32 %v1762, %v1814
      %v1816 = vpop.f32.mrb[0].mxu0
      %v1817 = vadd.f32 %v1764, %v1816
      %1818 = vdwg.mxu0
      %1819 = vmatprep.subr.bf16.mxu0 %v1405
      %1820 = vmatpush1.bf16.msra.mxu0 %v1404
      %1821 = vmatprep.subr.bf16.mxu0 %v1409
      %1822 = vmatpush1.bf16.msra.mxu0 %v1408
      %1823 = vmatprep.subr.bf16.mxu0 %v1413
      %1824 = vmatpush1.bf16.msra.mxu0 %v1412
      %1825 = vmatprep.subr.bf16.mxu0 %v1417
      %1826 = vmatpush1.bf16.msra.mxu0 %v1416
      %1827 = vmatprep.subr.bf16.mxu0 %v1421
      %1828 = vmatpush1.bf16.msra.mxu0 %v1420
      %1829 = vmatprep.subr.bf16.mxu0 %v1425
      %1830 = vmatpush1.bf16.msra.mxu0 %v1424
      %1831 = vmatprep.subr.bf16.mxu0 %v1429
      %1832 = vmatpush1.bf16.msra.mxu0 %v1428
      %1833 = vmatprep.subr.bf16.mxu0 %v1433
      %1834 = vmatpush1.bf16.msra.mxu0 %v1432
      %1835 = vmatprep.subr.bf16.mxu0 0
      %1836 = vmatpush1.bf16.msra.mxu0 0
      %1837 = vmatprep.subr.bf16.mxu0 0
      %1838 = vmatpush1.bf16.msra.mxu0 0
      %1839 = vmatprep.subr.bf16.mxu0 0
      %1840 = vmatpush1.bf16.msra.mxu0 0
      %1841 = vmatprep.subr.bf16.mxu0 0
      %1842 = vmatpush1.bf16.msra.mxu0 0
      %1843 = vmatprep.subr.bf16.mxu0 0
      %1844 = vmatpush1.bf16.msra.mxu0 0
      %1845 = vmatprep.subr.bf16.mxu0 0
      %1846 = vmatpush1.bf16.msra.mxu0 0
      %1847 = vmatprep.subr.bf16.mxu0 0
      %1848 = vmatpush1.bf16.msra.mxu0 0
      %1849 = vmatprep.subr.bf16.mxu0 0
      %1850 = vmatpush1.bf16.msra.mxu0 0
      %1851 = vmatprep.mubr.bf16.mxu0 0
      %1852 = vmatmul.mubr.bf16.gmra.mrb[0].mxu0 %v518
      %v1853 = vpop.f32.mrb[0].mxu0
      %v1854 = vadd.f32 %v1801, %v1853
      %v1855 = vpop.f32.mrb[0].mxu0
      %v1856 = vadd.f32 %v1803, %v1855
      %v1857 = vpop.f32.mrb[0].mxu0
      %v1858 = vadd.f32 %v1805, %v1857
      %v1859 = vpop.f32.mrb[0].mxu0
      %v1860 = vadd.f32 %v1807, %v1859
      %1861 = vmatprep.mubr.bf16.mxu0 0
      %1862 = vmatmul.mubr.bf16.gmra.mrb[0].mxu0 %v525
      %v1863 = vpop.f32.mrb[0].mxu0
      %v1864 = vadd.f32 %v1811, %v1863
      %v1865 = vpop.f32.mrb[0].mxu0
      %v1866 = vadd.f32 %v1813, %v1865
      %v1867 = vpop.f32.mrb[0].mxu0
      %v1868 = vadd.f32 %v1815, %v1867
      %v1869 = vpop.f32.mrb[0].mxu0
      %v1870 = vadd.f32 %v1817, %v1869
      %1871 = vdwg.mxu0
      %1872 = vmatprep.subr.bf16.mxu0 %v1215
      %1873 = vmatpush1.bf16.msra.mxu0 %v1214
      %1874 = vmatprep.subr.bf16.mxu0 %v1219
      %1875 = vmatpush1.bf16.msra.mxu0 %v1218
      %1876 = vmatprep.subr.bf16.mxu0 %v1223
      %1877 = vmatpush1.bf16.msra.mxu0 %v1222
      %1878 = vmatprep.subr.bf16.mxu0 %v1227
      %1879 = vmatpush1.bf16.msra.mxu0 %v1226
      %1880 = vmatprep.subr.bf16.mxu0 %v1231
      %1881 = vmatpush1.bf16.msra.mxu0 %v1230
      %1882 = vmatprep.subr.bf16.mxu0 %v1235
      %1883 = vmatpush1.bf16.msra.mxu0 %v1234
      %1884 = vmatprep.subr.bf16.mxu0 %v1239
      %1885 = vmatpush1.bf16.msra.mxu0 %v1238
      %1886 = vmatprep.subr.bf16.mxu0 %v1243
      %1887 = vmatpush1.bf16.msra.mxu0 %v1242
      %1888 = vmatprep.subr.bf16.mxu0 %v1247
      %1889 = vmatpush1.bf16.msra.mxu0 %v1246
      %1890 = vmatprep.subr.bf16.mxu0 %v1251
      %1891 = vmatpush1.bf16.msra.mxu0 %v1250
      %1892 = vmatprep.subr.bf16.mxu0 %v1255
      %1893 = vmatpush1.bf16.msra.mxu0 %v1254
      %1894 = vmatprep.subr.bf16.mxu0 %v1259
      %1895 = vmatpush1.bf16.msra.mxu0 %v1258
      %1896 = vmatprep.subr.bf16.mxu0 %v1263
      %1897 = vmatpush1.bf16.msra.mxu0 %v1262
      %1898 = vmatprep.subr.bf16.mxu0 %v1267
      %1899 = vmatpush1.bf16.msra.mxu0 %v1266
      %1900 = vmatprep.subr.bf16.mxu0 %v1271
      %1901 = vmatpush1.bf16.msra.mxu0 %v1270
      %1902 = vmatprep.subr.bf16.mxu0 %v1275
      %1903 = vmatpush1.bf16.msra.mxu0 %v1274
      %1904 = vmatprep.mubr.bf16.mxu0 %v513
      %1905 = vmatmul.mubr.bf16.gmra.mrb[0].mxu0 %v512
      %v1906 = vpop.f32.mrb[0].mxu0
      %v1907 = vadd.f32 0.0, %v1906
      %v1908 = vpop.f32.mrb[0].mxu0
      %v1909 = vadd.f32 0.0, %v1908
      %v1910 = vpop.f32.mrb[0].mxu0
      %v1911 = vadd.f32 0.0, %v1910
      %v1912 = vpop.f32.mrb[0].mxu0
      %v1913 = vadd.f32 0.0, %v1912
      %1914 = vmatprep.mubr.bf16.mxu0 %v520
      %1915 = vmatmul.mubr.bf16.gmra.mrb[0].mxu0 %v519
      %v1916 = vpop.f32.mrb[0].mxu0
      %v1917 = vadd.f32 0.0, %v1916
      %v1918 = vpop.f32.mrb[0].mxu0
      %v1919 = vadd.f32 0.0, %v1918
      %v1920 = vpop.f32.mrb[0].mxu0
      %v1921 = vadd.f32 0.0, %v1920
      %v1922 = vpop.f32.mrb[0].mxu0
      %v1923 = vadd.f32 0.0, %v1922
      %1924 = vdwg.mxu0
      %1925 = vmatprep.subr.bf16.mxu0 %v1279
      %1926 = vmatpush1.bf16.msra.mxu0 %v1278
      %1927 = vmatprep.subr.bf16.mxu0 %v1283
      %1928 = vmatpush1.bf16.msra.mxu0 %v1282
      %1929 = vmatprep.subr.bf16.mxu0 %v1287
      %1930 = vmatpush1.bf16.msra.mxu0 %v1286
      %1931 = vmatprep.subr.bf16.mxu0 %v1291
      %1932 = vmatpush1.bf16.msra.mxu0 %v1290
      %1933 = vmatprep.subr.bf16.mxu0 %v1295
      %1934 = vmatpush1.bf16.msra.mxu0 %v1294
      %1935 = vmatprep.subr.bf16.mxu0 %v1299
      %1936 = vmatpush1.bf16.msra.mxu0 %v1298
      %1937 = vmatprep.subr.bf16.mxu0 %v1303
      %1938 = vmatpush1.bf16.msra.mxu0 %v1302
      %1939 = vmatprep.subr.bf16.mxu0 %v1307
      %1940 = vmatpush1.bf16.msra.mxu0 %v1306
      %1941 = vmatprep.subr.bf16.mxu0 %v1311
      %1942 = vmatpush1.bf16.msra.mxu0 %v1310
      %1943 = vmatprep.subr.bf16.mxu0 %v1315
      %1944 = vmatpush1.bf16.msra.mxu0 %v1314
      %1945 = vmatprep.subr.bf16.mxu0 %v1319
      %1946 = vmatpush1.bf16.msra.mxu0 %v1318
      %1947 = vmatprep.subr.bf16.mxu0 %v1323
      %1948 = vmatpush1.bf16.msra.mxu0 %v1322
      %1949 = vmatprep.subr.bf16.mxu0 %v1327
      %1950 = vmatpush1.bf16.msra.mxu0 %v1326
      %1951 = vmatprep.subr.bf16.mxu0 %v1331
      %1952 = vmatpush1.bf16.msra.mxu0 %v1330
      %1953 = vmatprep.subr.bf16.mxu0 %v1335
      %1954 = vmatpush1.bf16.msra.mxu0 %v1334
      %1955 = vmatprep.subr.bf16.mxu0 %v1339
      %1956 = vmatpush1.bf16.msra.mxu0 %v1338
      %1957 = vmatprep.mubr.bf16.mxu0 %v515
      %1958 = vmatmul.mubr.bf16.gmra.mrb[0].mxu0 %v514
      %v1959 = vpop.f32.mrb[0].mxu0
      %v1960 = vadd.f32 %v1907, %v1959
      %v1961 = vpop.f32.mrb[0].mxu0
      %v1962 = vadd.f32 %v1909, %v1961
      %v1963 = vpop.f32.mrb[0].mxu0
      %v1964 = vadd.f32 %v1911, %v1963
      %v1965 = vpop.f32.mrb[0].mxu0
      %v1966 = vadd.f32 %v1913, %v1965
      %1967 = vmatprep.mubr.bf16.mxu0 %v522
      %1968 = vmatmul.mubr.bf16.gmra.mrb[0].mxu0 %v521
      %v1969 = vpop.f32.mrb[0].mxu0
      %v1970 = vadd.f32 %v1917, %v1969
      %v1971 = vpop.f32.mrb[0].mxu0
      %v1972 = vadd.f32 %v1919, %v1971
      %v1973 = vpop.f32.mrb[0].mxu0
      %v1974 = vadd.f32 %v1921, %v1973
      %v1975 = vpop.f32.mrb[0].mxu0
      %v1976 = vadd.f32 %v1923, %v1975
      %1977 = vdwg.mxu0
      %1978 = vmatprep.subr.bf16.mxu0 %v1343
      %1979 = vmatpush1.bf16.msra.mxu0 %v1342
      %1980 = vmatprep.subr.bf16.mxu0 %v1347
      %1981 = vmatpush1.bf16.msra.mxu0 %v1346
      %1982 = vmatprep.subr.bf16.mxu0 %v1351
      %1983 = vmatpush1.bf16.msra.mxu0 %v1350
      %1984 = vmatprep.subr.bf16.mxu0 %v1355
      %1985 = vmatpush1.bf16.msra.mxu0 %v1354
      %1986 = vmatprep.subr.bf16.mxu0 %v1359
      %1987 = vmatpush1.bf16.msra.mxu0 %v1358
      %1988 = vmatprep.subr.bf16.mxu0 %v1363
      %1989 = vmatpush1.bf16.msra.mxu0 %v1362
      %1990 = vmatprep.subr.bf16.mxu0 %v1367
      %1991 = vmatpush1.bf16.msra.mxu0 %v1366
      %1992 = vmatprep.subr.bf16.mxu0 %v1371
      %1993 = vmatpush1.bf16.msra.mxu0 %v1370
      %1994 = vmatprep.subr.bf16.mxu0 %v1375
      %1995 = vmatpush1.bf16.msra.mxu0 %v1374
      %1996 = vmatprep.subr.bf16.mxu0 %v1379
      %1997 = vmatpush1.bf16.msra.mxu0 %v1378
      %1998 = vmatprep.subr.bf16.mxu0 %v1383
      %1999 = vmatpush1.bf16.msra.mxu0 %v1382
      %2000 = vmatprep.subr.bf16.mxu0 %v1387
      %2001 = vmatpush1.bf16.msra.mxu0 %v1386
      %2002 = vmatprep.subr.bf16.mxu0 %v1391
      %2003 = vmatpush1.bf16.msra.mxu0 %v1390
      %2004 = vmatprep.subr.bf16.mxu0 %v1395
      %2005 = vmatpush1.bf16.msra.mxu0 %v1394
      %2006 = vmatprep.subr.bf16.mxu0 %v1399
      %2007 = vmatpush1.bf16.msra.mxu0 %v1398
      %2008 = vmatprep.subr.bf16.mxu0 %v1403
      %2009 = vmatpush1.bf16.msra.mxu0 %v1402
      %2010 = vmatprep.mubr.bf16.mxu0 %v517
      %2011 = vmatmul.mubr.bf16.gmra.mrb[0].mxu0 %v516
      %v2012 = vpop.f32.mrb[0].mxu0
      %v2013 = vadd.f32 %v1960, %v2012
      %v2014 = vpop.f32.mrb[0].mxu0
      %v2015 = vadd.f32 %v1962, %v2014
      %v2016 = vpop.f32.mrb[0].mxu0
      %v2017 = vadd.f32 %v1964, %v2016
      %v2018 = vpop.f32.mrb[0].mxu0
      %v2019 = vadd.f32 %v1966, %v2018
      %2020 = vmatprep.mubr.bf16.mxu0 %v524
      %2021 = vmatmul.mubr.bf16.gmra.mrb[0].mxu0 %v523
      %v2022 = vpop.f32.mrb[0].mxu0
      %v2023 = vadd.f32 %v1970, %v2022
      %v2024 = vpop.f32.mrb[0].mxu0
      %v2025 = vadd.f32 %v1972, %v2024
      %v2026 = vpop.f32.mrb[0].mxu0
      %v2027 = vadd.f32 %v1974, %v2026
      %v2028 = vpop.f32.mrb[0].mxu0
      %v2029 = vadd.f32 %v1976, %v2028
      %2030 = vdwg.mxu0
      %2031 = vmatprep.subr.bf16.mxu0 %v1407
      %2032 = vmatpush1.bf16.msra.mxu0 %v1406
      %2033 = vmatprep.subr.bf16.mxu0 %v1411
      %2034 = vmatpush1.bf16.msra.mxu0 %v1410
      %2035 = vmatprep.subr.bf16.mxu0 %v1415
      %2036 = vmatpush1.bf16.msra.mxu0 %v1414
      %2037 = vmatprep.subr.bf16.mxu0 %v1419
      %2038 = vmatpush1.bf16.msra.mxu0 %v1418
      %2039 = vmatprep.subr.bf16.mxu0 %v1423
      %2040 = vmatpush1.bf16.msra.mxu0 %v1422
      %2041 = vmatprep.subr.bf16.mxu0 %v1427
      %2042 = vmatpush1.bf16.msra.mxu0 %v1426
      %2043 = vmatprep.subr.bf16.mxu0 %v1431
      %2044 = vmatpush1.bf16.msra.mxu0 %v1430
      %2045 = vmatprep.subr.bf16.mxu0 %v1435
      %2046 = vmatpush1.bf16.msra.mxu0 %v1434
      %2047 = vmatprep.subr.bf16.mxu0 0
      %2048 = vmatpush1.bf16.msra.mxu0 0
      %2049 = vmatprep.subr.bf16.mxu0 0
      %2050 = vmatpush1.bf16.msra.mxu0 0
      %2051 = vmatprep.subr.bf16.mxu0 0
      %2052 = vmatpush1.bf16.msra.mxu0 0
      %2053 = vmatprep.subr.bf16.mxu0 0
      %2054 = vmatpush1.bf16.msra.mxu0 0
      %2055 = vmatprep.subr.bf16.mxu0 0
      %2056 = vmatpush1.bf16.msra.mxu0 0
      %2057 = vmatprep.subr.bf16.mxu0 0
      %2058 = vmatpush1.bf16.msra.mxu0 0
      %2059 = vmatprep.subr.bf16.mxu0 0
      %2060 = vmatpush1.bf16.msra.mxu0 0
      %2061 = vmatprep.subr.bf16.mxu0 0
      %2062 = vmatpush1.bf16.msra.mxu0 0
      %2063 = vmatprep.mubr.bf16.mxu0 0
      %2064 = vmatmul.mubr.bf16.gmra.mrb[0].mxu0 %v518
      %v2065 = vpop.f32.mrb[0].mxu0
      %v2066 = vadd.f32 %v2013, %v2065
      %v2067 = vpop.f32.mrb[0].mxu0
      %v2068 = vadd.f32 %v2015, %v2067
      %v2069 = vpop.f32.mrb[0].mxu0
      %v2070 = vadd.f32 %v2017, %v2069
      %v2071 = vpop.f32.mrb[0].mxu0
      %v2072 = vadd.f32 %v2019, %v2071
      %2073 = vmatprep.mubr.bf16.mxu0 0
      %2074 = vmatmul.mubr.bf16.gmra.mrb[0].mxu0 %v525
      %v2075 = vpop.f32.mrb[0].mxu0
      %v2076 = vadd.f32 %v2023, %v2075
      %v2077 = vpop.f32.mrb[0].mxu0
      %v2078 = vadd.f32 %v2025, %v2077
      %v2079 = vpop.f32.mrb[0].mxu0
      %v2080 = vadd.f32 %v2027, %v2079
      %v2081 = vpop.f32.mrb[0].mxu0
      %v2082 = vadd.f32 %v2029, %v2081
      %2083 = vdwg.mxu0
      %v2084 = vpack.c.bf16 %v1858, %v1854
      %v2085 = vpack.c.bf16 %v1860, %v1856
      %v2086 = vpack.c.bf16 %v2070, %v2066
      %v2087 = vpack.c.bf16 %v2072, %v2068
      %v2088 = vpack.c.bf16 %v1868, %v1864
      %v2089 = vpack.c.bf16 %v1870, %v1866
      %v2090 = vpack.c.bf16 %v2080, %v2076
      %v2091 = vpack.c.bf16 %v2082, %v2078
      %v2100 = vunpack.c.l.b16 %v2084
      %v2101 = vunpack.c.l.b16 %v2085
      %v2102 = vunpack.c.l.b16 %v2086
      %v2103 = vunpack.c.l.b16 %v2087
      %v2104 = vunpack.c.h.b16 %v2084
      %v2105 = vunpack.c.h.b16 %v2085
      %v2106 = vunpack.c.h.b16 %v2086
      %v2107 = vunpack.c.h.b16 %v2087
      %v2108 = vunpack.c.l.b16 %v2088
      %v2109 = vunpack.c.l.b16 %v2089
      %v2110 = vunpack.c.l.b16 %v2090
      %v2111 = vunpack.c.l.b16 %v2091
      %v2112 = vunpack.c.h.b16 %v2088
      %v2113 = vunpack.c.h.b16 %v2089
      %v2114 = vunpack.c.h.b16 %v2090
      %v2115 = vunpack.c.h.b16 %v2091
      %v2116 = vpack.c.b16 %v2101, %v2100
      %v2117 = vpack.c.b16 %v2103, %v2102
      %v2118 = vpack.c.b16 %v2105, %v2104
      %v2119 = vpack.c.b16 %v2107, %v2106
      %v2120 = vpack.c.b16 %v2109, %v2108
      %v2121 = vpack.c.b16 %v2111, %v2110
      %v2122 = vpack.c.b16 %v2113, %v2112
      %v2123 = vpack.c.b16 %v2115, %v2114
      %2132 = vst [vmem:[%s217] sm:$0xff] %v2116
      %2133 = vst [vmem:[%s217 + $0x8] sm:$0xff] %v2117
      %2134 = vst [vmem:[%s217 + $0x10] sm:$0xff] %v2118
      %2135 = vst [vmem:[%s217 + $0x18] sm:$0xff] %v2119
      %2136 = vst [vmem:[%s217 + $0x20] sm:$0xff] %v2120
      %2137 = vst [vmem:[%s217 + $0x28] sm:$0xff] %v2121
      %2138 = vst [vmem:[%s217 + $0x30] sm:$0xff] %v2122
      %2139 = vst [vmem:[%s217 + $0x38] sm:$0xff] %v2123
      %v2140 = vadd.f32 %v1854, %v1858
      %v2141 = vadd.f32 %v2140, %v1864
      %v2142 = vadd.f32 %v2141, %v1868
      %v2143 = vrot.slane %v2142, 4
      %v2144 = vadd.f32 %v2142, %v2143
      %v2145 = vrot.slane %v2144, 2
      %v2146 = vadd.f32 %v2144, %v2145
      %v2147 = vrot.slane %v2146, 1
      %v2148 = vadd.f32 %v2146, %v2147
      %v2149 = vadd.f32 %v1856, %v1860
      %v2150 = vadd.f32 %v2149, %v1866
      %v2151 = vadd.f32 %v2150, %v1870
      %v2152 = vrot.slane %v2151, 4
      %v2153 = vadd.f32 %v2151, %v2152
      %v2154 = vrot.slane %v2153, 2
      %v2155 = vadd.f32 %v2153, %v2154
      %v2156 = vrot.slane %v2155, 1
      %v2157 = vadd.f32 %v2155, %v2156
      %v2158 = vadd.f32 %v2066, %v2070
      %v2159 = vadd.f32 %v2158, %v2076
      %v2160 = vadd.f32 %v2159, %v2080
      %v2161 = vrot.slane %v2160, 4
      %v2162 = vadd.f32 %v2160, %v2161
      %v2163 = vrot.slane %v2162, 2
      %v2164 = vadd.f32 %v2162, %v2163
      %v2165 = vrot.slane %v2164, 1
      %v2166 = vadd.f32 %v2164, %v2165
      %v2167 = vadd.f32 %v2068, %v2072
      %v2168 = vadd.f32 %v2167, %v2078
      %v2169 = vadd.f32 %v2168, %v2082
      %v2170 = vrot.slane %v2169, 4
      %v2171 = vadd.f32 %v2169, %v2170
      %v2172 = vrot.slane %v2171, 2
      %v2173 = vadd.f32 %v2171, %v2172
      %v2174 = vrot.slane %v2173, 1
      %v2175 = vadd.f32 %v2173, %v2174
      %v2180 = vcombine.low %v2148, %v2157
      %v2181 = vcombine.low %v2166, %v2175
      %v2183 = vunpack.c.l.s4 1966171168
      %v2184 = vunpack.c.0.s8 %v2183
      %v2185 = vlaneseq
      %v2186 = vshrl.u32 %v2185, 7
      %v2187 = vsub.s32 %v2184, %v2186
      %v2188 = vrot.slane %v2180, %v2187
      %v2190 = vunpack.c.l.s4 1966171168
      %v2191 = vunpack.c.0.s8 %v2190
      %v2192 = vlaneseq
      %v2193 = vshrl.u32 %v2192, 7
      %v2194 = vsub.s32 %v2191, %v2193
      %v2195 = vrot.slane %v2181, %v2194
      %v2196 = vcombine.low %v2188, %v2195
      %v2198 = vunpack.c.l.s4 1966171168
      %v2199 = vunpack.c.0.s8 %v2198
      %v2200 = vlaneseq
      %v2201 = vshrl.u32 %v2200, 7
      %v2202 = vsub.s32 %v2199, %v2201
      %v2203 = vrot.slane %v2196, %v2202
      %v2205 = vlaneseq
      %vm2206 = vcmp.ge.s32.totalorder %v2205, 0
      %vm2207 = vcmp.lt.s32.totalorder %v2205, 512
      %vm2208 = vmand %vm2206, %vm2207
      %2209 = vst.msk [vmem:[%s222] sm:$0xf] %vm2208, %v2203
      %v2210 = vmul.f32 %v1854, %v1854
      %v2211 = vmul.f32 %v1856, %v1856
      %v2212 = vmul.f32 %v2066, %v2066
      %v2213 = vmul.f32 %v2068, %v2068
      %v2214 = vmul.f32 %v1858, %v1858
      %v2215 = vmul.f32 %v1860, %v1860
      %v2216 = vmul.f32 %v2070, %v2070
      %v2217 = vmul.f32 %v2072, %v2072
      %v2218 = vmul.f32 %v1864, %v1864
      %v2219 = vmul.f32 %v1866, %v1866
      %v2220 = vmul.f32 %v2076, %v2076
      %v2221 = vmul.f32 %v2078, %v2078
      %v2222 = vmul.f32 %v1868, %v1868
      %v2223 = vmul.f32 %v1870, %v1870
      %v2224 = vmul.f32 %v2080, %v2080
      %v2225 = vmul.f32 %v2082, %v2082
      %v2226 = vadd.f32 %v2210, %v2214
      %v2227 = vadd.f32 %v2226, %v2218
      %v2228 = vadd.f32 %v2227, %v2222
      %v2229 = vrot.slane %v2228, 4
      %v2230 = vadd.f32 %v2228, %v2229
      %v2231 = vrot.slane %v2230, 2
      %v2232 = vadd.f32 %v2230, %v2231
      %v2233 = vrot.slane %v2232, 1
      %v2234 = vadd.f32 %v2232, %v2233
      %v2235 = vadd.f32 %v2211, %v2215
      %v2236 = vadd.f32 %v2235, %v2219
      %v2237 = vadd.f32 %v2236, %v2223
      %v2238 = vrot.slane %v2237, 4
      %v2239 = vadd.f32 %v2237, %v2238
      %v2240 = vrot.slane %v2239, 2
      %v2241 = vadd.f32 %v2239, %v2240
      %v2242 = vrot.slane %v2241, 1
      %v2243 = vadd.f32 %v2241, %v2242
      %v2244 = vadd.f32 %v2212, %v2216
      %v2245 = vadd.f32 %v2244, %v2220
      %v2246 = vadd.f32 %v2245, %v2224
      %v2247 = vrot.slane %v2246, 4
      %v2248 = vadd.f32 %v2246, %v2247
      %v2249 = vrot.slane %v2248, 2
      %v2250 = vadd.f32 %v2248, %v2249
      %v2251 = vrot.slane %v2250, 1
      %v2252 = vadd.f32 %v2250, %v2251
      %v2253 = vadd.f32 %v2213, %v2217
      %v2254 = vadd.f32 %v2253, %v2221
      %v2255 = vadd.f32 %v2254, %v2225
      %v2256 = vrot.slane %v2255, 4
      %v2257 = vadd.f32 %v2255, %v2256
      %v2258 = vrot.slane %v2257, 2
      %v2259 = vadd.f32 %v2257, %v2258
      %v2260 = vrot.slane %v2259, 1
      %v2261 = vadd.f32 %v2259, %v2260
      %v2266 = vcombine.low %v2234, %v2243
      %v2267 = vcombine.low %v2252, %v2261
      %v2269 = vunpack.c.l.s4 1966171168
      %v2270 = vunpack.c.0.s8 %v2269
      %v2271 = vlaneseq
      %v2272 = vshrl.u32 %v2271, 7
      %v2273 = vsub.s32 %v2270, %v2272
      %v2274 = vrot.slane %v2266, %v2273
      %v2276 = vunpack.c.l.s4 1966171168
      %v2277 = vunpack.c.0.s8 %v2276
      %v2278 = vlaneseq
      %v2279 = vshrl.u32 %v2278, 7
      %v2280 = vsub.s32 %v2277, %v2279
      %v2281 = vrot.slane %v2267, %v2280
      %v2282 = vcombine.low %v2274, %v2281
      %v2284 = vunpack.c.l.s4 1966171168
      %v2285 = vunpack.c.0.s8 %v2284
      %v2286 = vlaneseq
      %v2287 = vshrl.u32 %v2286, 7
      %v2288 = vsub.s32 %v2285, %v2287
      %v2289 = vrot.slane %v2282, %v2288
      %2291 = vst.msk [vmem:[%s226] sm:$0xf] %vm2208, %v2289
      %s2292 = smul.u32 4, %s16
      %p2293 = scmp.lt.s32.totalorder %s2292, 7
      %s2294 = scalar_select %p2293, %s2292, 7
      %s2295 = smul.addr %s2294, 4
      %s2296 = smul.addr %s2295, 4
      %s2297 = scalar_lea.vmem %s2, %s2296
      %p2298 = scmp.lt.s32.totalorder %s16, 1
      %s2299 = scalar_select %p2298, %s16, 1
      %s2300 = smul.addr %s2299, 4
      %s2301 = scalar_lea.vmem %s3, %s2300
      %p2302 = scmp.lt.s32.totalorder %s16, 1
      %s2303 = scalar_select %p2302, %s16, 1
      %s2304 = smul.addr %s2303, 4
      %s2305 = scalar_lea.vmem %s4, %s2304
      // Predicated region
      $region29: #{mnist_generator_forward.11} parent=27 // pred_check
        %p2306 = pneg %p81
      $region30: #{mnist_generator_forward.11} parent=27 // pred_check_branch
        %2308 = sbr.rel (%p2306) target = $region32
      $region31: #{mnist_generator_forward.11} parent=27 // pred_region
        %s2309 = smul.u32 4, %s16
      $region32: #{mnist_generator_forward.11} parent=27 // pred_fallthru
        _
      // Predicated region
      $region33: #{mnist_generator_forward.11} parent=27 // pred_check
        %p2310 = pneg %p107
      $region34: #{mnist_generator_forward.11} parent=27 // pred_check_branch
        %2312 = sbr.rel (%p2310) target = $region36
      $region35: #{mnist_generator_forward.11} parent=27 // pred_region
        _
      $region36: #{mnist_generator_forward.11} parent=27 // pred_fallthru
        _
      // Predicated region
      $region37: #{mnist_generator_forward.11} parent=27 // pred_check
        %p2313 = pneg %p133
      $region38: #{mnist_generator_forward.11} parent=27 // pred_check_branch
        %2315 = sbr.rel (%p2313) target = $region40
      $region39: #{mnist_generator_forward.11} parent=27 // pred_region
        _
      $region40: #{mnist_generator_forward.11} parent=27 // pred_fallthru
        _
    $region28: #{mnist_generator_forward.11} parent=5 // pred_fallthru
      _
    %p2316 = scmp.le.s32.totalorder 2, %s11
    // Predicated region
    $region41: #{mnist_generator_forward.11} parent=5 // pred_check
      %p2317 = pneg %p2316
    $region42: #{mnist_generator_forward.11} parent=5 // pred_check_branch
      %2319 = sbr.rel (%p2317) target = $region44
    $region43: #{mnist_generator_forward.11} parent=5 // pred_region
      %s2320 = ssub.s32 %s11, 2
      // Predicated region
      $region45: #{mnist_generator_forward.11} parent=43 // pred_check
        %p2321 = pneg %p87
      $region46: #{mnist_generator_forward.11} parent=43 // pred_check_branch
        %2323 = sbr.rel (%p2321) target = $region48
      $region47: #{mnist_generator_forward.11} parent=43 // pred_region
        %s2324 = smul.u32 4, %s17
        %p2325 = scmp.lt.s32.totalorder %s2324, 7
        %s2326 = scalar_select %p2325, %s2324, 7
        %s2327 = smul.addr %s2326, 4
        %s2328 = smul.addr %s2327, 4
        %s2329 = scalar_lea.vmem %s2, %s2328
      $region48: #{mnist_generator_forward.11} parent=43 // pred_fallthru
        _
      // Predicated region
      $region49: #{mnist_generator_forward.11} parent=43 // pred_check
        %p2330 = pneg %p113
      $region50: #{mnist_generator_forward.11} parent=43 // pred_check_branch
        %2332 = sbr.rel (%p2330) target = $region52
      $region51: #{mnist_generator_forward.11} parent=43 // pred_region
        %p2333 = scmp.lt.s32.totalorder %s17, 1
        %s2334 = scalar_select %p2333, %s17, 1
        %s2335 = smul.addr %s2334, 4
        %s2336 = scalar_lea.vmem %s3, %s2335
      $region52: #{mnist_generator_forward.11} parent=43 // pred_fallthru
        _
      // Predicated region
      $region53: #{mnist_generator_forward.11} parent=43 // pred_check
        %p2337 = pneg %p139
      $region54: #{mnist_generator_forward.11} parent=43 // pred_check_branch
        %2339 = sbr.rel (%p2337) target = $region56
      $region55: #{mnist_generator_forward.11} parent=43 // pred_region
        %p2340 = scmp.lt.s32.totalorder %s17, 1
        %s2341 = scalar_select %p2340, %s17, 1
        %s2342 = smul.addr %s2341, 4
        %s2343 = scalar_lea.vmem %s4, %s2342
      $region56: #{mnist_generator_forward.11} parent=43 // pred_fallthru
        _
    $region44: #{mnist_generator_forward.11} parent=5 // pred_fallthru
      _
  $region6: #{mnist_generator_forward.11} parent=0 // loop_footer
    %s15 = sadd.s32 1, %s11
  $region7: #{mnist_generator_forward.11} parent=0 // loop_footer_branch
    %10 = sbr.rel target = $region3
  $region8: #{mnist_generator_forward.11} parent=0 // loop_exit
    _

// kernel: mnist_generator_forward.13
$region0: #{mnist_generator_forward.13}
  #allocation0 [shape = 'u32[]', space=smem, size = 0x4, offset = 0x4, fixed_abs, tag = 'smem constant byte address 0x4 - core index']
  #allocation1 [shape = 'u32[144,128]{1,0:T(1,128)}', space=vmem, size = 0x12000, scoped, tag = 'internal scratch']
  %s0 = inlined_call_operand.vmem [shape: bf16[256,512], index: 0, kind: input, shape index: {}]
  %s1 = inlined_call_operand.vmem [shape: bf16[512,256], index: 1, kind: input, shape index: {}]
  %s2 = inlined_call_operand.vmem [shape: bf16[256,256], index: 2, kind: output, shape index: {0}]
  %s3 = inlined_call_operand.vmem [shape: f32[2,1,256], index: 3, kind: output, shape index: {1}]
  %s4 = inlined_call_operand.vmem [shape: f32[2,1,256], index: 4, kind: output, shape index: {2}]
  %5 = xla_tuple %s2, %s3, %s4
  %s6 = sld [smem:[#allocation0]]
  $region57: #{mnist_generator_forward.13} parent=0
    _
  %s8 = ssub.s32 1, %s6
  %s9 = scalar_select 0, %s8, %s6
  loop: start=0, step=1, limit=4
  $region2: #{mnist_generator_forward.13} parent=0 // loop_pre_header
    _
  $region3: #{mnist_generator_forward.13} parent=0 // loop_header
    %s11 = sphi 0, %s15
    %p12 = scmp.ge.s32.totalorder %s11, 4
    %s21 = sphi 0, %s23
    %s24 = sphi 0, %s21
    %s25 = sphi 0, %s24
    %s41 = sphi 0, %s25
    %s45 = sphi 0, %s45
    %s47 = sphi 0, %s45
    %s48 = sphi 0, %s47
    %s62 = sphi 0, %s48
    %s68 = sphi 0, %s70
    %s71 = sphi 0, %s68
    %s72 = sphi 0, %s71
    %s88 = sphi 0, %s72
    %s94 = sphi 0, %s96
    %s97 = sphi 0, %s94
    %s98 = sphi 0, %s97
    %s114 = sphi 0, %s98
    %s120 = sphi 0, %s122
    %s123 = sphi 0, %s120
    %s124 = sphi 0, %s123
    %s140 = sphi 0, %s124
  $region4: #{mnist_generator_forward.13} parent=0 // loop_header_branch
    %14 = sbr.rel (%p12) target = $region8
  $region5: #{mnist_generator_forward.13} parent=0 // loop_body
    %s16 = ssub.s32 %s11, 1
    %s17 = ssub.s32 %s11, 2
    %s18 = sadd.s32 %s11, 1
    %s19 = ssub.s32 %s11, %s18
    %p20 = scmp.eq.s32.totalorder %s19, 0
    %s22 = sadd.s32 %s21, 1
    %s23 = scalar_select %p20, %s21, %s22
    %p26 = pneg %p20
    %p27 = scmp.eq.s32.totalorder %s11, 1
    %p28 = por %p26, %p27
    %p29 = scmp.ne.s32.totalorder %s21, %s24
    %p30 = scmp.eq.s32.totalorder %s11, 0
    %p31 = por %p29, %p30
    %p32 = scmp.ne.s32.totalorder %s21, %s24
    %p33 = scmp.eq.s32.totalorder %s16, 1
    %p34 = por %p32, %p33
    %p35 = scmp.ne.s32.totalorder %s24, %s25
    %p36 = scmp.eq.s32.totalorder %s16, 0
    %p37 = por %p35, %p36
    %p38 = scmp.ne.s32.totalorder %s24, %s25
    %p39 = scmp.eq.s32.totalorder %s17, 1
    %p40 = por %p38, %p39
    %p42 = scmp.ne.s32.totalorder %s25, %s41
    %p43 = scmp.eq.s32.totalorder %s17, 0
    %p44 = por %p42, %p43
    %s46 = sadd.s32 %s45, 1
    %p49 = scmp.eq.s32.totalorder %s11, 1
    %p50 = scmp.ne.s32.totalorder %s45, %s47
    %p51 = scmp.eq.s32.totalorder %s11, 0
    %p52 = por %p50, %p51
    %p53 = scmp.ne.s32.totalorder %s45, %s47
    %p54 = scmp.eq.s32.totalorder %s16, 1
    %p55 = por %p53, %p54
    %p56 = scmp.ne.s32.totalorder %s47, %s48
    %p57 = scmp.eq.s32.totalorder %s16, 0
    %p58 = por %p56, %p57
    %p59 = scmp.ne.s32.totalorder %s47, %s48
    %p60 = scmp.eq.s32.totalorder %s17, 1
    %p61 = por %p59, %p60
    %p63 = scmp.ne.s32.totalorder %s48, %s62
    %p64 = scmp.eq.s32.totalorder %s17, 0
    %p65 = por %p63, %p64
    %s66 = ssub.s32 %s11, %s18
    %p67 = scmp.eq.s32.totalorder %s66, 0
    %s69 = sadd.s32 %s68, 1
    %s70 = scalar_select %p67, %s68, %s69
    %p73 = pneg %p67
    %p74 = scmp.eq.s32.totalorder %s11, 1
    %p75 = por %p73, %p74
    %p76 = scmp.ne.s32.totalorder %s68, %s71
    %p77 = scmp.eq.s32.totalorder %s11, 0
    %p78 = por %p76, %p77
    %p79 = scmp.ne.s32.totalorder %s68, %s71
    %p80 = scmp.eq.s32.totalorder %s16, 1
    %p81 = por %p79, %p80
    %p82 = scmp.ne.s32.totalorder %s71, %s72
    %p83 = scmp.eq.s32.totalorder %s16, 0
    %p84 = por %p82, %p83
    %p85 = scmp.ne.s32.totalorder %s71, %s72
    %p86 = scmp.eq.s32.totalorder %s17, 1
    %p87 = por %p85, %p86
    %p89 = scmp.ne.s32.totalorder %s72, %s88
    %p90 = scmp.eq.s32.totalorder %s17, 0
    %p91 = por %p89, %p90
    %s92 = ssub.s32 %s11, %s18
    %p93 = scmp.eq.s32.totalorder %s92, 0
    %s95 = sadd.s32 %s94, 1
    %s96 = scalar_select %p93, %s94, %s95
    %p99 = pneg %p93
    %p100 = scmp.eq.s32.totalorder %s11, 1
    %p101 = por %p99, %p100
    %p102 = scmp.ne.s32.totalorder %s94, %s97
    %p103 = scmp.eq.s32.totalorder %s11, 0
    %p104 = por %p102, %p103
    %p105 = scmp.ne.s32.totalorder %s94, %s97
    %p106 = scmp.eq.s32.totalorder %s16, 1
    %p107 = por %p105, %p106
    %p108 = scmp.ne.s32.totalorder %s97, %s98
    %p109 = scmp.eq.s32.totalorder %s16, 0
    %p110 = por %p108, %p109
    %p111 = scmp.ne.s32.totalorder %s97, %s98
    %p112 = scmp.eq.s32.totalorder %s17, 1
    %p113 = por %p111, %p112
    %p115 = scmp.ne.s32.totalorder %s98, %s114
    %p116 = scmp.eq.s32.totalorder %s17, 0
    %p117 = por %p115, %p116
    %s118 = ssub.s32 %s11, %s18
    %p119 = scmp.eq.s32.totalorder %s118, 0
    %s121 = sadd.s32 %s120, 1
    %s122 = scalar_select %p119, %s120, %s121
    %p125 = pneg %p119
    %p126 = scmp.eq.s32.totalorder %s11, 1
    %p127 = por %p125, %p126
    %p128 = scmp.ne.s32.totalorder %s120, %s123
    %p129 = scmp.eq.s32.totalorder %s11, 0
    %p130 = por %p128, %p129
    %p131 = scmp.ne.s32.totalorder %s120, %s123
    %p132 = scmp.eq.s32.totalorder %s16, 1
    %p133 = por %p131, %p132
    %p134 = scmp.ne.s32.totalorder %s123, %s124
    %p135 = scmp.eq.s32.totalorder %s16, 0
    %p136 = por %p134, %p135
    %p137 = scmp.ne.s32.totalorder %s123, %s124
    %p138 = scmp.eq.s32.totalorder %s17, 1
    %p139 = por %p137, %p138
    %p141 = scmp.ne.s32.totalorder %s124, %s140
    %p142 = scmp.eq.s32.totalorder %s17, 0
    %p143 = por %p141, %p142
    %p144 = scmp.le.s32.totalorder 1, %s11
    %p145 = scmp.lt.s32.totalorder %s11, 3
    %p146 = pnand %p144, %p145
    %p147 = pneg %p146
    // Predicated region
    $region9: #{mnist_generator_forward.13} parent=5 // pred_check
      _
    $region10: #{mnist_generator_forward.13} parent=5 // pred_check_branch
      %149 = sbr.rel (%p146) target = $region12
    $region11: #{mnist_generator_forward.13} parent=5 // pred_region
      %s150 = ssub.s32 %s11, 1
      // Predicated region
      $region13: #{mnist_generator_forward.13} parent=11 // pred_check
        %p151 = pneg %p58
      $region14: #{mnist_generator_forward.13} parent=11 // pred_check_branch
        %153 = sbr.rel (%p151) target = $region16
      $region15: #{mnist_generator_forward.13} parent=11 // pred_region
        _
      $region16: #{mnist_generator_forward.13} parent=11 // pred_fallthru
        _
    $region12: #{mnist_generator_forward.13} parent=5 // pred_fallthru
      _
    %p154 = scmp.lt.s32.totalorder %s11, 2
    // Predicated region
    $region17: #{mnist_generator_forward.13} parent=5 // pred_check
      %p155 = pneg %p154
    $region18: #{mnist_generator_forward.13} parent=5 // pred_check_branch
      %157 = sbr.rel (%p155) target = $region20
    $region19: #{mnist_generator_forward.13} parent=5 // pred_region
      // Predicated region
      $region21: #{mnist_generator_forward.13} parent=19 // pred_check
        %p158 = pneg %p31
      $region22: #{mnist_generator_forward.13} parent=19 // pred_check_branch
        %160 = sbr.rel (%p158) target = $region24
      $region23: #{mnist_generator_forward.13} parent=19 // pred_region
        %s161 = smul.u32 16, %s11
        %p162 = scmp.lt.s32.totalorder %s161, 31
        %s163 = scalar_select %p162, %s161, 31
        %s164 = smul.addr %s163, 4
        %s165 = smul.addr %s164, 4
        %s166 = scalar_lea.vmem %s0, %s165
        %s167 = smul.u32 16, %s11
      $region24: #{mnist_generator_forward.13} parent=19 // pred_fallthru
        _
    $region20: #{mnist_generator_forward.13} parent=5 // pred_fallthru
      _
    %p168 = scmp.le.s32.totalorder 1, %s11
    %p169 = scmp.lt.s32.totalorder %s11, 3
    %p170 = pnand %p168, %p169
    %p171 = pneg %p170
    // Predicated region
    $region25: #{mnist_generator_forward.13} parent=5 // pred_check
      _
    $region26: #{mnist_generator_forward.13} parent=5 // pred_check_branch
      %173 = sbr.rel (%p170) target = $region28
    $region27: #{mnist_generator_forward.13} parent=5 // pred_region
      %s174 = ssub.s32 %s11, 1
      %s175 = smul.u32 16, %s16
      %p176 = scmp.lt.s32.totalorder %s175, 31
      %s177 = scalar_select %p176, %s175, 31
      %s178 = smul.addr %s177, 4
      %s179 = smul.addr %s178, 4
      %s180 = scalar_lea.vmem %s0, %s179
      %p181 = pneg %p37
      %p182 = pneg %p34
      %p183 = pneg %p58
      %p184 = pneg %p55
      %p185 = pneg %p84
      %p186 = pneg %p81
      %s187 = smul.u32 16, %s16
      %p188 = scmp.lt.s32.totalorder %s187, 31
      %s189 = scalar_select %p188, %s187, 31
      %s190 = smul.addr %s189, 2
      %s191 = smul.addr %s190, 4
      %s192 = scalar_lea.vmem %s2, %s191
      %p193 = pneg %p110
      %p194 = pneg %p107
      %p195 = scmp.lt.s32.totalorder %s16, 1
      %s196 = scalar_select %p195, %s16, 1
      %s197 = smul.addr %s196, 2
      %s198 = scalar_lea.vmem %s3, %s197
      %p199 = pneg %p136
      %p200 = pneg %p133
      %p201 = scmp.lt.s32.totalorder %s16, 1
      %s202 = scalar_select %p201, %s16, 1
      %s203 = smul.addr %s202, 2
      %s204 = scalar_lea.vmem %s4, %s203
      %s205 = smul.u32 16, %s16
      %p206 = scmp.lt.s32.totalorder %s205, 31
      %s207 = scalar_select %p206, %s205, 31
      %s208 = smul.addr %s207, 4
      %s209 = smul.addr %s208, 4
      %s210 = scalar_lea.vmem %s0, %s209
      %s211 = smul.u32 16, %s16
      %s212 = smul.u32 16, %s16
      %p213 = scmp.lt.s32.totalorder %s212, 31
      %s214 = scalar_select %p213, %s212, 31
      %s215 = smul.addr %s214, 2
      %s216 = smul.addr %s215, 4
      %s217 = scalar_lea.vmem %s2, %s216
      %s218 = smul.u32 16, %s16
      %p219 = scmp.lt.s32.totalorder %s16, 1
      %s220 = scalar_select %p219, %s16, 1
      %s221 = smul.addr %s220, 2
      %s222 = scalar_lea.vmem %s3, %s221
      %p223 = scmp.lt.s32.totalorder %s16, 1
      %s224 = scalar_select %p223, %s16, 1
      %s225 = smul.addr %s224, 2
      %s226 = scalar_lea.vmem %s4, %s225
      %v227 = vld [vmem:[%s210] sm:$0xff]
      %v228 = vld [vmem:[%s210 + $0x8] sm:$0xff]
      %v229 = vld [vmem:[%s210 + $0x10] sm:$0xff]
      %v230 = vld [vmem:[%s210 + $0x18] sm:$0xff]
      %v231 = vld [vmem:[%s210 + $0x20] sm:$0xff]
      %v232 = vld [vmem:[%s210 + $0x28] sm:$0xff]
      %v233 = vld [vmem:[%s210 + $0x30] sm:$0xff]
      %v234 = vld [vmem:[%s210 + $0x38] sm:$0xff]
      %v235 = vld [vmem:[%s210 + $0x40] sm:$0xff]
      %v236 = vld [vmem:[%s210 + $0x48] sm:$0xff]
      %v237 = vld [vmem:[%s210 + $0x50] sm:$0xff]
      %v238 = vld [vmem:[%s210 + $0x58] sm:$0xff]
      %v239 = vld [vmem:[%s210 + $0x60] sm:$0xff]
      %v240 = vld [vmem:[%s210 + $0x68] sm:$0xff]
      %v241 = vld [vmem:[%s210 + $0x70] sm:$0xff]
      %v242 = vld [vmem:[%s210 + $0x78] sm:$0xff]
      %v243 = vld [vmem:[%s210 + $0x80] sm:$0xff]
      %v244 = vld [vmem:[%s210 + $0x88] sm:$0xff]
      %v245 = vld [vmem:[%s210 + $0x90] sm:$0xff]
      %v246 = vld [vmem:[%s210 + $0x98] sm:$0xff]
      %v247 = vld [vmem:[%s210 + $0xa0] sm:$0xff]
      %v248 = vld [vmem:[%s210 + $0xa8] sm:$0xff]
      %v249 = vld [vmem:[%s210 + $0xb0] sm:$0xff]
      %v250 = vld [vmem:[%s210 + $0xb8] sm:$0xff]
      %v251 = vld [vmem:[%s210 + $0xc0] sm:$0xff]
      %v252 = vld [vmem:[%s210 + $0xc8] sm:$0xff]
      %v253 = vld [vmem:[%s210 + $0xd0] sm:$0xff]
      %v254 = vld [vmem:[%s210 + $0xd8] sm:$0xff]
      %v255 = vld [vmem:[%s210 + $0xe0] sm:$0xff]
      %v256 = vld [vmem:[%s210 + $0xe8] sm:$0xff]
      %v257 = vld [vmem:[%s210 + $0xf0] sm:$0xff]
      %v258 = vld [vmem:[%s210 + $0xf8] sm:$0xff]
      %v259 = vld [vmem:[%s1] sm:$0xff]
      %v260 = vld [vmem:[%s1 + $0x8] sm:$0xff]
      %v261 = vld [vmem:[%s1 + $0x10] sm:$0xff]
      %v262 = vld [vmem:[%s1 + $0x18] sm:$0xff]
      %v263 = vld [vmem:[%s1 + $0x20] sm:$0xff]
      %v264 = vld [vmem:[%s1 + $0x28] sm:$0xff]
      %v265 = vld [vmem:[%s1 + $0x30] sm:$0xff]
      %v266 = vld [vmem:[%s1 + $0x38] sm:$0xff]
      %v267 = vld [vmem:[%s1 + $0x40] sm:$0xff]
      %v268 = vld [vmem:[%s1 + $0x48] sm:$0xff]
      %v269 = vld [vmem:[%s1 + $0x50] sm:$0xff]
      %v270 = vld [vmem:[%s1 + $0x58] sm:$0xff]
      %v271 = vld [vmem:[%s1 + $0x60] sm:$0xff]
      %v272 = vld [vmem:[%s1 + $0x68] sm:$0xff]
      %v273 = vld [vmem:[%s1 + $0x70] sm:$0xff]
      %v274 = vld [vmem:[%s1 + $0x78] sm:$0xff]
      %v275 = vld [vmem:[%s1 + $0x80] sm:$0xff]
      %v276 = vld [vmem:[%s1 + $0x88] sm:$0xff]
      %v277 = vld [vmem:[%s1 + $0x90] sm:$0xff]
      %v278 = vld [vmem:[%s1 + $0x98] sm:$0xff]
      %v279 = vld [vmem:[%s1 + $0xa0] sm:$0xff]
      %v280 = vld [vmem:[%s1 + $0xa8] sm:$0xff]
      %v281 = vld [vmem:[%s1 + $0xb0] sm:$0xff]
      %v282 = vld [vmem:[%s1 + $0xb8] sm:$0xff]
      %v283 = vld [vmem:[%s1 + $0xc0] sm:$0xff]
      %v284 = vld [vmem:[%s1 + $0xc8] sm:$0xff]
      %v285 = vld [vmem:[%s1 + $0xd0] sm:$0xff]
      %v286 = vld [vmem:[%s1 + $0xd8] sm:$0xff]
      %v287 = vld [vmem:[%s1 + $0xe0] sm:$0xff]
      %v288 = vld [vmem:[%s1 + $0xe8] sm:$0xff]
      %v289 = vld [vmem:[%s1 + $0xf0] sm:$0xff]
      %v290 = vld [vmem:[%s1 + $0xf8] sm:$0xff]
      %v291 = vld [vmem:[%s1 + $0x100] sm:$0xff]
      %v292 = vld [vmem:[%s1 + $0x108] sm:$0xff]
      %v293 = vld [vmem:[%s1 + $0x110] sm:$0xff]
      %v294 = vld [vmem:[%s1 + $0x118] sm:$0xff]
      %v295 = vld [vmem:[%s1 + $0x120] sm:$0xff]
      %v296 = vld [vmem:[%s1 + $0x128] sm:$0xff]
      %v297 = vld [vmem:[%s1 + $0x130] sm:$0xff]
      %v298 = vld [vmem:[%s1 + $0x138] sm:$0xff]
      %v299 = vld [vmem:[%s1 + $0x140] sm:$0xff]
      %v300 = vld [vmem:[%s1 + $0x148] sm:$0xff]
      %v301 = vld [vmem:[%s1 + $0x150] sm:$0xff]
      %v302 = vld [vmem:[%s1 + $0x158] sm:$0xff]
      %v303 = vld [vmem:[%s1 + $0x160] sm:$0xff]
      %v304 = vld [vmem:[%s1 + $0x168] sm:$0xff]
      %v305 = vld [vmem:[%s1 + $0x170] sm:$0xff]
      %v306 = vld [vmem:[%s1 + $0x178] sm:$0xff]
      %v307 = vld [vmem:[%s1 + $0x180] sm:$0xff]
      %v308 = vld [vmem:[%s1 + $0x188] sm:$0xff]
      %v309 = vld [vmem:[%s1 + $0x190] sm:$0xff]
      %v310 = vld [vmem:[%s1 + $0x198] sm:$0xff]
      %v311 = vld [vmem:[%s1 + $0x1a0] sm:$0xff]
      %v312 = vld [vmem:[%s1 + $0x1a8] sm:$0xff]
      %v313 = vld [vmem:[%s1 + $0x1b0] sm:$0xff]
      %v314 = vld [vmem:[%s1 + $0x1b8] sm:$0xff]
      %v315 = vld [vmem:[%s1 + $0x1c0] sm:$0xff]
      %v316 = vld [vmem:[%s1 + $0x1c8] sm:$0xff]
      %v317 = vld [vmem:[%s1 + $0x1d0] sm:$0xff]
      %v318 = vld [vmem:[%s1 + $0x1d8] sm:$0xff]
      %v319 = vld [vmem:[%s1 + $0x1e0] sm:$0xff]
      %v320 = vld [vmem:[%s1 + $0x1e8] sm:$0xff]
      %v321 = vld [vmem:[%s1 + $0x1f0] sm:$0xff]
      %v322 = vld [vmem:[%s1 + $0x1f8] sm:$0xff]
      %v355 = vunpack.c.l.b16 %v227
      %v356 = vunpack.c.h.b16 %v227
      %v357 = vunpack.c.l.b16 %v228
      %v358 = vunpack.c.h.b16 %v228
      %v359 = vunpack.c.l.b16 %v229
      %v360 = vunpack.c.h.b16 %v229
      %v361 = vunpack.c.l.b16 %v230
      %v362 = vunpack.c.h.b16 %v230
      %v363 = vunpack.c.l.b16 %v231
      %v364 = vunpack.c.h.b16 %v231
      %v365 = vunpack.c.l.b16 %v232
      %v366 = vunpack.c.h.b16 %v232
      %v367 = vunpack.c.l.b16 %v233
      %v368 = vunpack.c.h.b16 %v233
      %v369 = vunpack.c.l.b16 %v234
      %v370 = vunpack.c.h.b16 %v234
      %v371 = vunpack.c.l.b16 %v235
      %v372 = vunpack.c.h.b16 %v235
      %v373 = vunpack.c.l.b16 %v236
      %v374 = vunpack.c.h.b16 %v236
      %v375 = vunpack.c.l.b16 %v237
      %v376 = vunpack.c.h.b16 %v237
      %v377 = vunpack.c.l.b16 %v238
      %v378 = vunpack.c.h.b16 %v238
      %v379 = vunpack.c.l.b16 %v239
      %v380 = vunpack.c.h.b16 %v239
      %v381 = vunpack.c.l.b16 %v240
      %v382 = vunpack.c.h.b16 %v240
      %v383 = vunpack.c.l.b16 %v241
      %v384 = vunpack.c.h.b16 %v241
      %v385 = vunpack.c.l.b16 %v242
      %v386 = vunpack.c.h.b16 %v242
      %v387 = vunpack.c.l.b16 %v243
      %v388 = vunpack.c.h.b16 %v243
      %v389 = vunpack.c.l.b16 %v244
      %v390 = vunpack.c.h.b16 %v244
      %v391 = vunpack.c.l.b16 %v245
      %v392 = vunpack.c.h.b16 %v245
      %v393 = vunpack.c.l.b16 %v246
      %v394 = vunpack.c.h.b16 %v246
      %v395 = vunpack.c.l.b16 %v247
      %v396 = vunpack.c.h.b16 %v247
      %v397 = vunpack.c.l.b16 %v248
      %v398 = vunpack.c.h.b16 %v248
      %v399 = vunpack.c.l.b16 %v249
      %v400 = vunpack.c.h.b16 %v249
      %v401 = vunpack.c.l.b16 %v250
      %v402 = vunpack.c.h.b16 %v250
      %v403 = vunpack.c.l.b16 %v251
      %v404 = vunpack.c.h.b16 %v251
      %v405 = vunpack.c.l.b16 %v252
      %v406 = vunpack.c.h.b16 %v252
      %v407 = vunpack.c.l.b16 %v253
      %v408 = vunpack.c.h.b16 %v253
      %v409 = vunpack.c.l.b16 %v254
      %v410 = vunpack.c.h.b16 %v254
      %v411 = vunpack.c.l.b16 %v255
      %v412 = vunpack.c.h.b16 %v255
      %v413 = vunpack.c.l.b16 %v256
      %v414 = vunpack.c.h.b16 %v256
      %v415 = vunpack.c.l.b16 %v257
      %v416 = vunpack.c.h.b16 %v257
      %v417 = vunpack.c.l.b16 %v258
      %v418 = vunpack.c.h.b16 %v258
      %v419 = vpack.c.b16 %v359, %v355
      %v420 = vpack.c.b16 %v360, %v356
      %v421 = vpack.c.b16 %v361, %v357
      %v422 = vpack.c.b16 %v362, %v358
      %v423 = vpack.c.b16 %v367, %v363
      %v424 = vpack.c.b16 %v368, %v364
      %v425 = vpack.c.b16 %v369, %v365
      %v426 = vpack.c.b16 %v370, %v366
      %v427 = vpack.c.b16 %v375, %v371
      %v428 = vpack.c.b16 %v376, %v372
      %v429 = vpack.c.b16 %v377, %v373
      %v430 = vpack.c.b16 %v378, %v374
      %v431 = vpack.c.b16 %v383, %v379
      %v432 = vpack.c.b16 %v384, %v380
      %v433 = vpack.c.b16 %v385, %v381
      %v434 = vpack.c.b16 %v386, %v382
      %v435 = vpack.c.b16 %v391, %v387
      %v436 = vpack.c.b16 %v392, %v388
      %v437 = vpack.c.b16 %v393, %v389
      %v438 = vpack.c.b16 %v394, %v390
      %v439 = vpack.c.b16 %v399, %v395
      %v440 = vpack.c.b16 %v400, %v396
      %v441 = vpack.c.b16 %v401, %v397
      %v442 = vpack.c.b16 %v402, %v398
      %v443 = vpack.c.b16 %v407, %v403
      %v444 = vpack.c.b16 %v408, %v404
      %v445 = vpack.c.b16 %v409, %v405
      %v446 = vpack.c.b16 %v410, %v406
      %v447 = vpack.c.b16 %v415, %v411
      %v448 = vpack.c.b16 %v416, %v412
      %v449 = vpack.c.b16 %v417, %v413
      %v450 = vpack.c.b16 %v418, %v414
      %v547 = vunpack.c.l.b16 %v259
      %v548 = vunpack.c.h.b16 %v259
      %v549 = vunpack.c.l.b16 %v260
      %v550 = vunpack.c.h.b16 %v260
      %v551 = vunpack.c.l.b16 %v261
      %v552 = vunpack.c.h.b16 %v261
      %v553 = vunpack.c.l.b16 %v262
      %v554 = vunpack.c.h.b16 %v262
      %v555 = vunpack.c.l.b16 %v263
      %v556 = vunpack.c.h.b16 %v263
      %v557 = vunpack.c.l.b16 %v264
      %v558 = vunpack.c.h.b16 %v264
      %v559 = vunpack.c.l.b16 %v265
      %v560 = vunpack.c.h.b16 %v265
      %v561 = vunpack.c.l.b16 %v266
      %v562 = vunpack.c.h.b16 %v266
      %v563 = vunpack.c.l.b16 %v267
      %v564 = vunpack.c.h.b16 %v267
      %v565 = vunpack.c.l.b16 %v268
      %v566 = vunpack.c.h.b16 %v268
      %v567 = vunpack.c.l.b16 %v269
      %v568 = vunpack.c.h.b16 %v269
      %v569 = vunpack.c.l.b16 %v270
      %v570 = vunpack.c.h.b16 %v270
      %v571 = vunpack.c.l.b16 %v271
      %v572 = vunpack.c.h.b16 %v271
      %v573 = vunpack.c.l.b16 %v272
      %v574 = vunpack.c.h.b16 %v272
      %v575 = vunpack.c.l.b16 %v273
      %v576 = vunpack.c.h.b16 %v273
      %v577 = vunpack.c.l.b16 %v274
      %v578 = vunpack.c.h.b16 %v274
      %v579 = vunpack.c.l.b16 %v275
      %v580 = vunpack.c.h.b16 %v275
      %v581 = vunpack.c.l.b16 %v276
      %v582 = vunpack.c.h.b16 %v276
      %v583 = vunpack.c.l.b16 %v277
      %v584 = vunpack.c.h.b16 %v277
      %v585 = vunpack.c.l.b16 %v278
      %v586 = vunpack.c.h.b16 %v278
      %v587 = vunpack.c.l.b16 %v279
      %v588 = vunpack.c.h.b16 %v279
      %v589 = vunpack.c.l.b16 %v280
      %v590 = vunpack.c.h.b16 %v280
      %v591 = vunpack.c.l.b16 %v281
      %v592 = vunpack.c.h.b16 %v281
      %v593 = vunpack.c.l.b16 %v282
      %v594 = vunpack.c.h.b16 %v282
      %v595 = vunpack.c.l.b16 %v283
      %v596 = vunpack.c.h.b16 %v283
      %v597 = vunpack.c.l.b16 %v284
      %v598 = vunpack.c.h.b16 %v284
      %v599 = vunpack.c.l.b16 %v285
      %v600 = vunpack.c.h.b16 %v285
      %v601 = vunpack.c.l.b16 %v286
      %v602 = vunpack.c.h.b16 %v286
      %v603 = vunpack.c.l.b16 %v287
      %v604 = vunpack.c.h.b16 %v287
      %v605 = vunpack.c.l.b16 %v288
      %v606 = vunpack.c.h.b16 %v288
      %v607 = vunpack.c.l.b16 %v289
      %v608 = vunpack.c.h.b16 %v289
      %v609 = vunpack.c.l.b16 %v290
      %v610 = vunpack.c.h.b16 %v290
      %v611 = vunpack.c.l.b16 %v291
      %v612 = vunpack.c.h.b16 %v291
      %v613 = vunpack.c.l.b16 %v292
      %v614 = vunpack.c.h.b16 %v292
      %v615 = vunpack.c.l.b16 %v293
      %v616 = vunpack.c.h.b16 %v293
      %v617 = vunpack.c.l.b16 %v294
      %v618 = vunpack.c.h.b16 %v294
      %v619 = vunpack.c.l.b16 %v295
      %v620 = vunpack.c.h.b16 %v295
      %v621 = vunpack.c.l.b16 %v296
      %v622 = vunpack.c.h.b16 %v296
      %v623 = vunpack.c.l.b16 %v297
      %v624 = vunpack.c.h.b16 %v297
      %v625 = vunpack.c.l.b16 %v298
      %v626 = vunpack.c.h.b16 %v298
      %v627 = vunpack.c.l.b16 %v299
      %v628 = vunpack.c.h.b16 %v299
      %v629 = vunpack.c.l.b16 %v300
      %v630 = vunpack.c.h.b16 %v300
      %v631 = vunpack.c.l.b16 %v301
      %v632 = vunpack.c.h.b16 %v301
      %v633 = vunpack.c.l.b16 %v302
      %v634 = vunpack.c.h.b16 %v302
      %v635 = vunpack.c.l.b16 %v303
      %v636 = vunpack.c.h.b16 %v303
      %v637 = vunpack.c.l.b16 %v304
      %v638 = vunpack.c.h.b16 %v304
      %v639 = vunpack.c.l.b16 %v305
      %v640 = vunpack.c.h.b16 %v305
      %v641 = vunpack.c.l.b16 %v306
      %v642 = vunpack.c.h.b16 %v306
      %v643 = vunpack.c.l.b16 %v307
      %v644 = vunpack.c.h.b16 %v307
      %v645 = vunpack.c.l.b16 %v308
      %v646 = vunpack.c.h.b16 %v308
      %v647 = vunpack.c.l.b16 %v309
      %v648 = vunpack.c.h.b16 %v309
      %v649 = vunpack.c.l.b16 %v310
      %v650 = vunpack.c.h.b16 %v310
      %v651 = vunpack.c.l.b16 %v311
      %v652 = vunpack.c.h.b16 %v311
      %v653 = vunpack.c.l.b16 %v312
      %v654 = vunpack.c.h.b16 %v312
      %v655 = vunpack.c.l.b16 %v313
      %v656 = vunpack.c.h.b16 %v313
      %v657 = vunpack.c.l.b16 %v314
      %v658 = vunpack.c.h.b16 %v314
      %v659 = vunpack.c.l.b16 %v315
      %v660 = vunpack.c.h.b16 %v315
      %v661 = vunpack.c.l.b16 %v316
      %v662 = vunpack.c.h.b16 %v316
      %v663 = vunpack.c.l.b16 %v317
      %v664 = vunpack.c.h.b16 %v317
      %v665 = vunpack.c.l.b16 %v318
      %v666 = vunpack.c.h.b16 %v318
      %v667 = vunpack.c.l.b16 %v319
      %v668 = vunpack.c.h.b16 %v319
      %v669 = vunpack.c.l.b16 %v320
      %v670 = vunpack.c.h.b16 %v320
      %v671 = vunpack.c.l.b16 %v321
      %v672 = vunpack.c.h.b16 %v321
      %v673 = vunpack.c.l.b16 %v322
      %v674 = vunpack.c.h.b16 %v322
      %v675 = vpack.c.b16 %v549, %v547
      %v676 = vpack.c.b16 %v550, %v548
      %v677 = vpack.c.b16 %v553, %v551
      %v678 = vpack.c.b16 %v554, %v552
      %v679 = vpack.c.b16 %v557, %v555
      %v680 = vpack.c.b16 %v558, %v556
      %v681 = vpack.c.b16 %v561, %v559
      %v682 = vpack.c.b16 %v562, %v560
      %v683 = vpack.c.b16 %v565, %v563
      %v684 = vpack.c.b16 %v566, %v564
      %v685 = vpack.c.b16 %v569, %v567
      %v686 = vpack.c.b16 %v570, %v568
      %v687 = vpack.c.b16 %v573, %v571
      %v688 = vpack.c.b16 %v574, %v572
      %v689 = vpack.c.b16 %v577, %v575
      %v690 = vpack.c.b16 %v578, %v576
      %v691 = vpack.c.b16 %v581, %v579
      %v692 = vpack.c.b16 %v582, %v580
      %v693 = vpack.c.b16 %v585, %v583
      %v694 = vpack.c.b16 %v586, %v584
      %v695 = vpack.c.b16 %v589, %v587
      %v696 = vpack.c.b16 %v590, %v588
      %v697 = vpack.c.b16 %v593, %v591
      %v698 = vpack.c.b16 %v594, %v592
      %v699 = vpack.c.b16 %v597, %v595
      %v700 = vpack.c.b16 %v598, %v596
      %v701 = vpack.c.b16 %v601, %v599
      %v702 = vpack.c.b16 %v602, %v600
      %v703 = vpack.c.b16 %v605, %v603
      %v704 = vpack.c.b16 %v606, %v604
      %v705 = vpack.c.b16 %v609, %v607
      %v706 = vpack.c.b16 %v610, %v608
      %v707 = vpack.c.b16 %v613, %v611
      %v708 = vpack.c.b16 %v614, %v612
      %v709 = vpack.c.b16 %v617, %v615
      %v710 = vpack.c.b16 %v618, %v616
      %v711 = vpack.c.b16 %v621, %v619
      %v712 = vpack.c.b16 %v622, %v620
      %v713 = vpack.c.b16 %v625, %v623
      %v714 = vpack.c.b16 %v626, %v624
      %v715 = vpack.c.b16 %v629, %v627
      %v716 = vpack.c.b16 %v630, %v628
      %v717 = vpack.c.b16 %v633, %v631
      %v718 = vpack.c.b16 %v634, %v632
      %v719 = vpack.c.b16 %v637, %v635
      %v720 = vpack.c.b16 %v638, %v636
      %v721 = vpack.c.b16 %v641, %v639
      %v722 = vpack.c.b16 %v642, %v640
      %v723 = vpack.c.b16 %v645, %v643
      %v724 = vpack.c.b16 %v646, %v644
      %v725 = vpack.c.b16 %v649, %v647
      %v726 = vpack.c.b16 %v650, %v648
      %v727 = vpack.c.b16 %v653, %v651
      %v728 = vpack.c.b16 %v654, %v652
      %v729 = vpack.c.b16 %v657, %v655
      %v730 = vpack.c.b16 %v658, %v656
      %v731 = vpack.c.b16 %v661, %v659
      %v732 = vpack.c.b16 %v662, %v660
      %v733 = vpack.c.b16 %v665, %v663
      %v734 = vpack.c.b16 %v666, %v664
      %v735 = vpack.c.b16 %v669, %v667
      %v736 = vpack.c.b16 %v670, %v668
      %v737 = vpack.c.b16 %v673, %v671
      %v738 = vpack.c.b16 %v674, %v672
      %803 = vmatprep.subr.bf16.mxu0 %v676
      %804 = vmatpush1.bf16.msra.mxu0 %v675
      %805 = vmatprep.subr.bf16.mxu0 %v678
      %806 = vmatpush1.bf16.msra.mxu0 %v677
      %807 = vmatprep.subr.bf16.mxu0 %v680
      %808 = vmatpush1.bf16.msra.mxu0 %v679
      %809 = vmatprep.subr.bf16.mxu0 %v682
      %810 = vmatpush1.bf16.msra.mxu0 %v681
      %811 = vmatprep.subr.bf16.mxu0 %v684
      %812 = vmatpush1.bf16.msra.mxu0 %v683
      %813 = vmatprep.subr.bf16.mxu0 %v686
      %814 = vmatpush1.bf16.msra.mxu0 %v685
      %815 = vmatprep.subr.bf16.mxu0 %v688
      %816 = vmatpush1.bf16.msra.mxu0 %v687
      %817 = vmatprep.subr.bf16.mxu0 %v690
      %818 = vmatpush1.bf16.msra.mxu0 %v689
      %819 = vmatprep.subr.bf16.mxu0 %v692
      %820 = vmatpush1.bf16.msra.mxu0 %v691
      %821 = vmatprep.subr.bf16.mxu0 %v694
      %822 = vmatpush1.bf16.msra.mxu0 %v693
      %823 = vmatprep.subr.bf16.mxu0 %v696
      %824 = vmatpush1.bf16.msra.mxu0 %v695
      %825 = vmatprep.subr.bf16.mxu0 %v698
      %826 = vmatpush1.bf16.msra.mxu0 %v697
      %827 = vmatprep.subr.bf16.mxu0 %v700
      %828 = vmatpush1.bf16.msra.mxu0 %v699
      %829 = vmatprep.subr.bf16.mxu0 %v702
      %830 = vmatpush1.bf16.msra.mxu0 %v701
      %831 = vmatprep.subr.bf16.mxu0 %v704
      %832 = vmatpush1.bf16.msra.mxu0 %v703
      %833 = vmatprep.subr.bf16.mxu0 %v706
      %834 = vmatpush1.bf16.msra.mxu0 %v705
      %835 = vmatprep.mubr.bf16.mxu0 %v420
      %836 = vmatmul.mubr.bf16.gmra.mrb[0].mxu0 %v419
      %v837 = vpop.f32.mrb[0].mxu0
      %v838 = vadd.f32 0.0, %v837
      %v839 = vpop.f32.mrb[0].mxu0
      %v840 = vadd.f32 0.0, %v839
      %v841 = vpop.f32.mrb[0].mxu0
      %v842 = vadd.f32 0.0, %v841
      %v843 = vpop.f32.mrb[0].mxu0
      %v844 = vadd.f32 0.0, %v843
      %845 = vmatprep.mubr.bf16.mxu0 %v424
      %846 = vmatmul.mubr.bf16.gmra.mrb[0].mxu0 %v423
      %v847 = vpop.f32.mrb[0].mxu0
      %v848 = vadd.f32 0.0, %v847
      %v849 = vpop.f32.mrb[0].mxu0
      %v850 = vadd.f32 0.0, %v849
      %v851 = vpop.f32.mrb[0].mxu0
      %v852 = vadd.f32 0.0, %v851
      %v853 = vpop.f32.mrb[0].mxu0
      %v854 = vadd.f32 0.0, %v853
      %855 = vmatprep.mubr.bf16.mxu0 %v428
      %856 = vmatmul.mubr.bf16.gmra.mrb[0].mxu0 %v427
      %v857 = vpop.f32.mrb[0].mxu0
      %v858 = vadd.f32 0.0, %v857
      %v859 = vpop.f32.mrb[0].mxu0
      %v860 = vadd.f32 0.0, %v859
      %v861 = vpop.f32.mrb[0].mxu0
      %v862 = vadd.f32 0.0, %v861
      %v863 = vpop.f32.mrb[0].mxu0
      %v864 = vadd.f32 0.0, %v863
      %865 = vmatprep.mubr.bf16.mxu0 %v432
      %866 = vmatmul.mubr.bf16.gmra.mrb[0].mxu0 %v431
      %v867 = vpop.f32.mrb[0].mxu0
      %v868 = vadd.f32 0.0, %v867
      %v869 = vpop.f32.mrb[0].mxu0
      %v870 = vadd.f32 0.0, %v869
      %v871 = vpop.f32.mrb[0].mxu0
      %v872 = vadd.f32 0.0, %v871
      %v873 = vpop.f32.mrb[0].mxu0
      %v874 = vadd.f32 0.0, %v873
      %875 = vmatprep.mubr.bf16.mxu0 %v436
      %876 = vmatmul.mubr.bf16.gmra.mrb[0].mxu0 %v435
      %v877 = vpop.f32.mrb[0].mxu0
      %v878 = vadd.f32 0.0, %v877
      %v879 = vpop.f32.mrb[0].mxu0
      %v880 = vadd.f32 0.0, %v879
      %v881 = vpop.f32.mrb[0].mxu0
      %v882 = vadd.f32 0.0, %v881
      %v883 = vpop.f32.mrb[0].mxu0
      %v884 = vadd.f32 0.0, %v883
      %885 = vmatprep.mubr.bf16.mxu0 %v440
      %886 = vmatmul.mubr.bf16.gmra.mrb[0].mxu0 %v439
      %v887 = vpop.f32.mrb[0].mxu0
      %v888 = vadd.f32 0.0, %v887
      %v889 = vpop.f32.mrb[0].mxu0
      %v890 = vadd.f32 0.0, %v889
      %v891 = vpop.f32.mrb[0].mxu0
      %v892 = vadd.f32 0.0, %v891
      %v893 = vpop.f32.mrb[0].mxu0
      %v894 = vadd.f32 0.0, %v893
      %895 = vmatprep.mubr.bf16.mxu0 %v444
      %896 = vmatmul.mubr.bf16.gmra.mrb[0].mxu0 %v443
      %v897 = vpop.f32.mrb[0].mxu0
      %v898 = vadd.f32 0.0, %v897
      %v899 = vpop.f32.mrb[0].mxu0
      %v900 = vadd.f32 0.0, %v899
      %v901 = vpop.f32.mrb[0].mxu0
      %v902 = vadd.f32 0.0, %v901
      %v903 = vpop.f32.mrb[0].mxu0
      %v904 = vadd.f32 0.0, %v903
      %905 = vmatprep.mubr.bf16.mxu0 %v448
      %906 = vmatmul.mubr.bf16.gmra.mrb[0].mxu0 %v447
      %v907 = vpop.f32.mrb[0].mxu0
      %v908 = vadd.f32 0.0, %v907
      %v909 = vpop.f32.mrb[0].mxu0
      %v910 = vadd.f32 0.0, %v909
      %v911 = vpop.f32.mrb[0].mxu0
      %v912 = vadd.f32 0.0, %v911
      %v913 = vpop.f32.mrb[0].mxu0
      %v914 = vadd.f32 0.0, %v913
      %915 = vdwg.mxu0
      %916 = vmatprep.subr.bf16.mxu0 %v708
      %917 = vmatpush1.bf16.msra.mxu0 %v707
      %918 = vmatprep.subr.bf16.mxu0 %v710
      %919 = vmatpush1.bf16.msra.mxu0 %v709
      %920 = vmatprep.subr.bf16.mxu0 %v712
      %921 = vmatpush1.bf16.msra.mxu0 %v711
      %922 = vmatprep.subr.bf16.mxu0 %v714
      %923 = vmatpush1.bf16.msra.mxu0 %v713
      %924 = vmatprep.subr.bf16.mxu0 %v716
      %925 = vmatpush1.bf16.msra.mxu0 %v715
      %926 = vmatprep.subr.bf16.mxu0 %v718
      %927 = vmatpush1.bf16.msra.mxu0 %v717
      %928 = vmatprep.subr.bf16.mxu0 %v720
      %929 = vmatpush1.bf16.msra.mxu0 %v719
      %930 = vmatprep.subr.bf16.mxu0 %v722
      %931 = vmatpush1.bf16.msra.mxu0 %v721
      %932 = vmatprep.subr.bf16.mxu0 %v724
      %933 = vmatpush1.bf16.msra.mxu0 %v723
      %934 = vmatprep.subr.bf16.mxu0 %v726
      %935 = vmatpush1.bf16.msra.mxu0 %v725
      %936 = vmatprep.subr.bf16.mxu0 %v728
      %937 = vmatpush1.bf16.msra.mxu0 %v727
      %938 = vmatprep.subr.bf16.mxu0 %v730
      %939 = vmatpush1.bf16.msra.mxu0 %v729
      %940 = vmatprep.subr.bf16.mxu0 %v732
      %941 = vmatpush1.bf16.msra.mxu0 %v731
      %942 = vmatprep.subr.bf16.mxu0 %v734
      %943 = vmatpush1.bf16.msra.mxu0 %v733
      %944 = vmatprep.subr.bf16.mxu0 %v736
      %945 = vmatpush1.bf16.msra.mxu0 %v735
      %946 = vmatprep.subr.bf16.mxu0 %v738
      %947 = vmatpush1.bf16.msra.mxu0 %v737
      %948 = vmatprep.mubr.bf16.mxu0 %v422
      %949 = vmatmul.mubr.bf16.gmra.mrb[0].mxu0 %v421
      %v950 = vpop.f32.mrb[0].mxu0
      %v951 = vadd.f32 %v838, %v950
      %v952 = vpop.f32.mrb[0].mxu0
      %v953 = vadd.f32 %v840, %v952
      %v954 = vpop.f32.mrb[0].mxu0
      %v955 = vadd.f32 %v842, %v954
      %v956 = vpop.f32.mrb[0].mxu0
      %v957 = vadd.f32 %v844, %v956
      %958 = vmatprep.mubr.bf16.mxu0 %v426
      %959 = vmatmul.mubr.bf16.gmra.mrb[0].mxu0 %v425
      %v960 = vpop.f32.mrb[0].mxu0
      %v961 = vadd.f32 %v848, %v960
      %v962 = vpop.f32.mrb[0].mxu0
      %v963 = vadd.f32 %v850, %v962
      %v964 = vpop.f32.mrb[0].mxu0
      %v965 = vadd.f32 %v852, %v964
      %v966 = vpop.f32.mrb[0].mxu0
      %v967 = vadd.f32 %v854, %v966
      %968 = vmatprep.mubr.bf16.mxu0 %v430
      %969 = vmatmul.mubr.bf16.gmra.mrb[0].mxu0 %v429
      %v970 = vpop.f32.mrb[0].mxu0
      %v971 = vadd.f32 %v858, %v970
      %v972 = vpop.f32.mrb[0].mxu0
      %v973 = vadd.f32 %v860, %v972
      %v974 = vpop.f32.mrb[0].mxu0
      %v975 = vadd.f32 %v862, %v974
      %v976 = vpop.f32.mrb[0].mxu0
      %v977 = vadd.f32 %v864, %v976
      %978 = vmatprep.mubr.bf16.mxu0 %v434
      %979 = vmatmul.mubr.bf16.gmra.mrb[0].mxu0 %v433
      %v980 = vpop.f32.mrb[0].mxu0
      %v981 = vadd.f32 %v868, %v980
      %v982 = vpop.f32.mrb[0].mxu0
      %v983 = vadd.f32 %v870, %v982
      %v984 = vpop.f32.mrb[0].mxu0
      %v985 = vadd.f32 %v872, %v984
      %v986 = vpop.f32.mrb[0].mxu0
      %v987 = vadd.f32 %v874, %v986
      %988 = vmatprep.mubr.bf16.mxu0 %v438
      %989 = vmatmul.mubr.bf16.gmra.mrb[0].mxu0 %v437
      %v990 = vpop.f32.mrb[0].mxu0
      %v991 = vadd.f32 %v878, %v990
      %v992 = vpop.f32.mrb[0].mxu0
      %v993 = vadd.f32 %v880, %v992
      %v994 = vpop.f32.mrb[0].mxu0
      %v995 = vadd.f32 %v882, %v994
      %v996 = vpop.f32.mrb[0].mxu0
      %v997 = vadd.f32 %v884, %v996
      %998 = vmatprep.mubr.bf16.mxu0 %v442
      %999 = vmatmul.mubr.bf16.gmra.mrb[0].mxu0 %v441
      %v1000 = vpop.f32.mrb[0].mxu0
      %v1001 = vadd.f32 %v888, %v1000
      %v1002 = vpop.f32.mrb[0].mxu0
      %v1003 = vadd.f32 %v890, %v1002
      %v1004 = vpop.f32.mrb[0].mxu0
      %v1005 = vadd.f32 %v892, %v1004
      %v1006 = vpop.f32.mrb[0].mxu0
      %v1007 = vadd.f32 %v894, %v1006
      %1008 = vmatprep.mubr.bf16.mxu0 %v446
      %1009 = vmatmul.mubr.bf16.gmra.mrb[0].mxu0 %v445
      %v1010 = vpop.f32.mrb[0].mxu0
      %v1011 = vadd.f32 %v898, %v1010
      %v1012 = vpop.f32.mrb[0].mxu0
      %v1013 = vadd.f32 %v900, %v1012
      %v1014 = vpop.f32.mrb[0].mxu0
      %v1015 = vadd.f32 %v902, %v1014
      %v1016 = vpop.f32.mrb[0].mxu0
      %v1017 = vadd.f32 %v904, %v1016
      %1018 = vmatprep.mubr.bf16.mxu0 %v450
      %1019 = vmatmul.mubr.bf16.gmra.mrb[0].mxu0 %v449
      %v1020 = vpop.f32.mrb[0].mxu0
      %v1021 = vadd.f32 %v908, %v1020
      %v1022 = vpop.f32.mrb[0].mxu0
      %v1023 = vadd.f32 %v910, %v1022
      %v1024 = vpop.f32.mrb[0].mxu0
      %v1025 = vadd.f32 %v912, %v1024
      %v1026 = vpop.f32.mrb[0].mxu0
      %v1027 = vadd.f32 %v914, %v1026
      %1028 = vdwg.mxu0
      %v1029 = vpack.c.bf16 %v955, %v951
      %v1030 = vpack.c.bf16 %v957, %v953
      %v1031 = vpack.c.bf16 %v965, %v961
      %v1032 = vpack.c.bf16 %v967, %v963
      %v1033 = vpack.c.bf16 %v975, %v971
      %v1034 = vpack.c.bf16 %v977, %v973
      %v1035 = vpack.c.bf16 %v985, %v981
      %v1036 = vpack.c.bf16 %v987, %v983
      %v1037 = vpack.c.bf16 %v995, %v991
      %v1038 = vpack.c.bf16 %v997, %v993
      %v1039 = vpack.c.bf16 %v1005, %v1001
      %v1040 = vpack.c.bf16 %v1007, %v1003
      %v1041 = vpack.c.bf16 %v1015, %v1011
      %v1042 = vpack.c.bf16 %v1017, %v1013
      %v1043 = vpack.c.bf16 %v1025, %v1021
      %v1044 = vpack.c.bf16 %v1027, %v1023
      %v1061 = vunpack.c.l.b16 %v1029
      %v1062 = vunpack.c.l.b16 %v1030
      %v1063 = vunpack.c.h.b16 %v1029
      %v1064 = vunpack.c.h.b16 %v1030
      %v1065 = vunpack.c.l.b16 %v1031
      %v1066 = vunpack.c.l.b16 %v1032
      %v1067 = vunpack.c.h.b16 %v1031
      %v1068 = vunpack.c.h.b16 %v1032
      %v1069 = vunpack.c.l.b16 %v1033
      %v1070 = vunpack.c.l.b16 %v1034
      %v1071 = vunpack.c.h.b16 %v1033
      %v1072 = vunpack.c.h.b16 %v1034
      %v1073 = vunpack.c.l.b16 %v1035
      %v1074 = vunpack.c.l.b16 %v1036
      %v1075 = vunpack.c.h.b16 %v1035
      %v1076 = vunpack.c.h.b16 %v1036
      %v1077 = vunpack.c.l.b16 %v1037
      %v1078 = vunpack.c.l.b16 %v1038
      %v1079 = vunpack.c.h.b16 %v1037
      %v1080 = vunpack.c.h.b16 %v1038
      %v1081 = vunpack.c.l.b16 %v1039
      %v1082 = vunpack.c.l.b16 %v1040
      %v1083 = vunpack.c.h.b16 %v1039
      %v1084 = vunpack.c.h.b16 %v1040
      %v1085 = vunpack.c.l.b16 %v1041
      %v1086 = vunpack.c.l.b16 %v1042
      %v1087 = vunpack.c.h.b16 %v1041
      %v1088 = vunpack.c.h.b16 %v1042
      %v1089 = vunpack.c.l.b16 %v1043
      %v1090 = vunpack.c.l.b16 %v1044
      %v1091 = vunpack.c.h.b16 %v1043
      %v1092 = vunpack.c.h.b16 %v1044
      %v1093 = vpack.c.b16 %v1062, %v1061
      %v1094 = vpack.c.b16 %v1064, %v1063
      %v1095 = vpack.c.b16 %v1066, %v1065
      %v1096 = vpack.c.b16 %v1068, %v1067
      %v1097 = vpack.c.b16 %v1070, %v1069
      %v1098 = vpack.c.b16 %v1072, %v1071
      %v1099 = vpack.c.b16 %v1074, %v1073
      %v1100 = vpack.c.b16 %v1076, %v1075
      %v1101 = vpack.c.b16 %v1078, %v1077
      %v1102 = vpack.c.b16 %v1080, %v1079
      %v1103 = vpack.c.b16 %v1082, %v1081
      %v1104 = vpack.c.b16 %v1084, %v1083
      %v1105 = vpack.c.b16 %v1086, %v1085
      %v1106 = vpack.c.b16 %v1088, %v1087
      %v1107 = vpack.c.b16 %v1090, %v1089
      %v1108 = vpack.c.b16 %v1092, %v1091
      %1125 = vst [vmem:[%s217] sm:$0xff] %v1093
      %1126 = vst [vmem:[%s217 + $0x8] sm:$0xff] %v1094
      %1127 = vst [vmem:[%s217 + $0x10] sm:$0xff] %v1095
      %1128 = vst [vmem:[%s217 + $0x18] sm:$0xff] %v1096
      %1129 = vst [vmem:[%s217 + $0x20] sm:$0xff] %v1097
      %1130 = vst [vmem:[%s217 + $0x28] sm:$0xff] %v1098
      %1131 = vst [vmem:[%s217 + $0x30] sm:$0xff] %v1099
      %1132 = vst [vmem:[%s217 + $0x38] sm:$0xff] %v1100
      %1133 = vst [vmem:[%s217 + $0x40] sm:$0xff] %v1101
      %1134 = vst [vmem:[%s217 + $0x48] sm:$0xff] %v1102
      %1135 = vst [vmem:[%s217 + $0x50] sm:$0xff] %v1103
      %1136 = vst [vmem:[%s217 + $0x58] sm:$0xff] %v1104
      %1137 = vst [vmem:[%s217 + $0x60] sm:$0xff] %v1105
      %1138 = vst [vmem:[%s217 + $0x68] sm:$0xff] %v1106
      %1139 = vst [vmem:[%s217 + $0x70] sm:$0xff] %v1107
      %1140 = vst [vmem:[%s217 + $0x78] sm:$0xff] %v1108
      %v1141 = vadd.f32 %v951, %v955
      %v1142 = vadd.f32 %v1141, %v961
      %v1143 = vadd.f32 %v1142, %v965
      %v1144 = vadd.f32 %v1143, %v971
      %v1145 = vadd.f32 %v1144, %v975
      %v1146 = vadd.f32 %v1145, %v981
      %v1147 = vadd.f32 %v1146, %v985
      %v1148 = vadd.f32 %v1147, %v991
      %v1149 = vadd.f32 %v1148, %v995
      %v1150 = vadd.f32 %v1149, %v1001
      %v1151 = vadd.f32 %v1150, %v1005
      %v1152 = vadd.f32 %v1151, %v1011
      %v1153 = vadd.f32 %v1152, %v1015
      %v1154 = vadd.f32 %v1153, %v1021
      %v1155 = vadd.f32 %v1154, %v1025
      %v1156 = vrot.slane %v1155, 4
      %v1157 = vadd.f32 %v1155, %v1156
      %v1158 = vrot.slane %v1157, 2
      %v1159 = vadd.f32 %v1157, %v1158
      %v1160 = vrot.slane %v1159, 1
      %v1161 = vadd.f32 %v1159, %v1160
      %v1162 = vadd.f32 %v953, %v957
      %v1163 = vadd.f32 %v1162, %v963
      %v1164 = vadd.f32 %v1163, %v967
      %v1165 = vadd.f32 %v1164, %v973
      %v1166 = vadd.f32 %v1165, %v977
      %v1167 = vadd.f32 %v1166, %v983
      %v1168 = vadd.f32 %v1167, %v987
      %v1169 = vadd.f32 %v1168, %v993
      %v1170 = vadd.f32 %v1169, %v997
      %v1171 = vadd.f32 %v1170, %v1003
      %v1172 = vadd.f32 %v1171, %v1007
      %v1173 = vadd.f32 %v1172, %v1013
      %v1174 = vadd.f32 %v1173, %v1017
      %v1175 = vadd.f32 %v1174, %v1023
      %v1176 = vadd.f32 %v1175, %v1027
      %v1177 = vrot.slane %v1176, 4
      %v1178 = vadd.f32 %v1176, %v1177
      %v1179 = vrot.slane %v1178, 2
      %v1180 = vadd.f32 %v1178, %v1179
      %v1181 = vrot.slane %v1180, 1
      %v1182 = vadd.f32 %v1180, %v1181
      %v1185 = vcombine.low %v1161, %v1182
      %v1187 = vunpack.c.l.s4 1966171168
      %v1188 = vunpack.c.0.s8 %v1187
      %v1189 = vlaneseq
      %v1190 = vshrl.u32 %v1189, 7
      %v1191 = vsub.s32 %v1188, %v1190
      %v1192 = vrot.slane %v1185, %v1191
      %v1194 = vunpack.c.l.s4 1966171168
      %v1195 = vunpack.c.0.s8 %v1194
      %v1196 = vlaneseq
      %v1197 = vshrl.u32 %v1196, 7
      %v1198 = vsub.s32 %v1195, %v1197
      %v1199 = vrot.slane %v1192, %v1198
      %v1201 = vlaneseq
      %vm1202 = vcmp.ge.s32.totalorder %v1201, 0
      %vm1203 = vcmp.lt.s32.totalorder %v1201, 256
      %vm1204 = vmand %vm1202, %vm1203
      %1205 = vst.msk [vmem:[%s222] sm:$0x3] %vm1204, %v1199
      %v1206 = vmul.f32 %v951, %v951
      %v1207 = vmul.f32 %v953, %v953
      %v1208 = vmul.f32 %v955, %v955
      %v1209 = vmul.f32 %v957, %v957
      %v1210 = vmul.f32 %v961, %v961
      %v1211 = vmul.f32 %v963, %v963
      %v1212 = vmul.f32 %v965, %v965
      %v1213 = vmul.f32 %v967, %v967
      %v1214 = vmul.f32 %v971, %v971
      %v1215 = vmul.f32 %v973, %v973
      %v1216 = vmul.f32 %v975, %v975
      %v1217 = vmul.f32 %v977, %v977
      %v1218 = vmul.f32 %v981, %v981
      %v1219 = vmul.f32 %v983, %v983
      %v1220 = vmul.f32 %v985, %v985
      %v1221 = vmul.f32 %v987, %v987
      %v1222 = vmul.f32 %v991, %v991
      %v1223 = vmul.f32 %v993, %v993
      %v1224 = vmul.f32 %v995, %v995
      %v1225 = vmul.f32 %v997, %v997
      %v1226 = vmul.f32 %v1001, %v1001
      %v1227 = vmul.f32 %v1003, %v1003
      %v1228 = vmul.f32 %v1005, %v1005
      %v1229 = vmul.f32 %v1007, %v1007
      %v1230 = vmul.f32 %v1011, %v1011
      %v1231 = vmul.f32 %v1013, %v1013
      %v1232 = vmul.f32 %v1015, %v1015
      %v1233 = vmul.f32 %v1017, %v1017
      %v1234 = vmul.f32 %v1021, %v1021
      %v1235 = vmul.f32 %v1023, %v1023
      %v1236 = vmul.f32 %v1025, %v1025
      %v1237 = vmul.f32 %v1027, %v1027
      %v1238 = vadd.f32 %v1206, %v1208
      %v1239 = vadd.f32 %v1238, %v1210
      %v1240 = vadd.f32 %v1239, %v1212
      %v1241 = vadd.f32 %v1240, %v1214
      %v1242 = vadd.f32 %v1241, %v1216
      %v1243 = vadd.f32 %v1242, %v1218
      %v1244 = vadd.f32 %v1243, %v1220
      %v1245 = vadd.f32 %v1244, %v1222
      %v1246 = vadd.f32 %v1245, %v1224
      %v1247 = vadd.f32 %v1246, %v1226
      %v1248 = vadd.f32 %v1247, %v1228
      %v1249 = vadd.f32 %v1248, %v1230
      %v1250 = vadd.f32 %v1249, %v1232
      %v1251 = vadd.f32 %v1250, %v1234
      %v1252 = vadd.f32 %v1251, %v1236
      %v1253 = vrot.slane %v1252, 4
      %v1254 = vadd.f32 %v1252, %v1253
      %v1255 = vrot.slane %v1254, 2
      %v1256 = vadd.f32 %v1254, %v1255
      %v1257 = vrot.slane %v1256, 1
      %v1258 = vadd.f32 %v1256, %v1257
      %v1259 = vadd.f32 %v1207, %v1209
      %v1260 = vadd.f32 %v1259, %v1211
      %v1261 = vadd.f32 %v1260, %v1213
      %v1262 = vadd.f32 %v1261, %v1215
      %v1263 = vadd.f32 %v1262, %v1217
      %v1264 = vadd.f32 %v1263, %v1219
      %v1265 = vadd.f32 %v1264, %v1221
      %v1266 = vadd.f32 %v1265, %v1223
      %v1267 = vadd.f32 %v1266, %v1225
      %v1268 = vadd.f32 %v1267, %v1227
      %v1269 = vadd.f32 %v1268, %v1229
      %v1270 = vadd.f32 %v1269, %v1231
      %v1271 = vadd.f32 %v1270, %v1233
      %v1272 = vadd.f32 %v1271, %v1235
      %v1273 = vadd.f32 %v1272, %v1237
      %v1274 = vrot.slane %v1273, 4
      %v1275 = vadd.f32 %v1273, %v1274
      %v1276 = vrot.slane %v1275, 2
      %v1277 = vadd.f32 %v1275, %v1276
      %v1278 = vrot.slane %v1277, 1
      %v1279 = vadd.f32 %v1277, %v1278
      %v1282 = vcombine.low %v1258, %v1279
      %v1284 = vunpack.c.l.s4 1966171168
      %v1285 = vunpack.c.0.s8 %v1284
      %v1286 = vlaneseq
      %v1287 = vshrl.u32 %v1286, 7
      %v1288 = vsub.s32 %v1285, %v1287
      %v1289 = vrot.slane %v1282, %v1288
      %v1291 = vunpack.c.l.s4 1966171168
      %v1292 = vunpack.c.0.s8 %v1291
      %v1293 = vlaneseq
      %v1294 = vshrl.u32 %v1293, 7
      %v1295 = vsub.s32 %v1292, %v1294
      %v1296 = vrot.slane %v1289, %v1295
      %1298 = vst.msk [vmem:[%s226] sm:$0x3] %vm1204, %v1296
      %s1299 = smul.u32 16, %s16
      %p1300 = scmp.lt.s32.totalorder %s1299, 31
      %s1301 = scalar_select %p1300, %s1299, 31
      %s1302 = smul.addr %s1301, 2
      %s1303 = smul.addr %s1302, 4
      %s1304 = scalar_lea.vmem %s2, %s1303
      %p1305 = scmp.lt.s32.totalorder %s16, 1
      %s1306 = scalar_select %p1305, %s16, 1
      %s1307 = smul.addr %s1306, 2
      %s1308 = scalar_lea.vmem %s3, %s1307
      %p1309 = scmp.lt.s32.totalorder %s16, 1
      %s1310 = scalar_select %p1309, %s16, 1
      %s1311 = smul.addr %s1310, 2
      %s1312 = scalar_lea.vmem %s4, %s1311
      // Predicated region
      $region29: #{mnist_generator_forward.13} parent=27 // pred_check
        %p1313 = pneg %p81
      $region30: #{mnist_generator_forward.13} parent=27 // pred_check_branch
        %1315 = sbr.rel (%p1313) target = $region32
      $region31: #{mnist_generator_forward.13} parent=27 // pred_region
        %s1316 = smul.u32 16, %s16
      $region32: #{mnist_generator_forward.13} parent=27 // pred_fallthru
        _
      // Predicated region
      $region33: #{mnist_generator_forward.13} parent=27 // pred_check
        %p1317 = pneg %p107
      $region34: #{mnist_generator_forward.13} parent=27 // pred_check_branch
        %1319 = sbr.rel (%p1317) target = $region36
      $region35: #{mnist_generator_forward.13} parent=27 // pred_region
        _
      $region36: #{mnist_generator_forward.13} parent=27 // pred_fallthru
        _
      // Predicated region
      $region37: #{mnist_generator_forward.13} parent=27 // pred_check
        %p1320 = pneg %p133
      $region38: #{mnist_generator_forward.13} parent=27 // pred_check_branch
        %1322 = sbr.rel (%p1320) target = $region40
      $region39: #{mnist_generator_forward.13} parent=27 // pred_region
        _
      $region40: #{mnist_generator_forward.13} parent=27 // pred_fallthru
        _
    $region28: #{mnist_generator_forward.13} parent=5 // pred_fallthru
      _
    %p1323 = scmp.le.s32.totalorder 2, %s11
    // Predicated region
    $region41: #{mnist_generator_forward.13} parent=5 // pred_check
      %p1324 = pneg %p1323
    $region42: #{mnist_generator_forward.13} parent=5 // pred_check_branch
      %1326 = sbr.rel (%p1324) target = $region44
    $region43: #{mnist_generator_forward.13} parent=5 // pred_region
      %s1327 = ssub.s32 %s11, 2
      // Predicated region
      $region45: #{mnist_generator_forward.13} parent=43 // pred_check
        %p1328 = pneg %p87
      $region46: #{mnist_generator_forward.13} parent=43 // pred_check_branch
        %1330 = sbr.rel (%p1328) target = $region48
      $region47: #{mnist_generator_forward.13} parent=43 // pred_region
        %s1331 = smul.u32 16, %s17
        %p1332 = scmp.lt.s32.totalorder %s1331, 31
        %s1333 = scalar_select %p1332, %s1331, 31
        %s1334 = smul.addr %s1333, 2
        %s1335 = smul.addr %s1334, 4
        %s1336 = scalar_lea.vmem %s2, %s1335
      $region48: #{mnist_generator_forward.13} parent=43 // pred_fallthru
        _
      // Predicated region
      $region49: #{mnist_generator_forward.13} parent=43 // pred_check
        %p1337 = pneg %p113
      $region50: #{mnist_generator_forward.13} parent=43 // pred_check_branch
        %1339 = sbr.rel (%p1337) target = $region52
      $region51: #{mnist_generator_forward.13} parent=43 // pred_region
        %p1340 = scmp.lt.s32.totalorder %s17, 1
        %s1341 = scalar_select %p1340, %s17, 1
        %s1342 = smul.addr %s1341, 2
        %s1343 = scalar_lea.vmem %s3, %s1342
      $region52: #{mnist_generator_forward.13} parent=43 // pred_fallthru
        _
      // Predicated region
      $region53: #{mnist_generator_forward.13} parent=43 // pred_check
        %p1344 = pneg %p139
      $region54: #{mnist_generator_forward.13} parent=43 // pred_check_branch
        %1346 = sbr.rel (%p1344) target = $region56
      $region55: #{mnist_generator_forward.13} parent=43 // pred_region
        %p1347 = scmp.lt.s32.totalorder %s17, 1
        %s1348 = scalar_select %p1347, %s17, 1
        %s1349 = smul.addr %s1348, 2
        %s1350 = scalar_lea.vmem %s4, %s1349
      $region56: #{mnist_generator_forward.13} parent=43 // pred_fallthru
        _
    $region44: #{mnist_generator_forward.13} parent=5 // pred_fallthru
      _
  $region6: #{mnist_generator_forward.13} parent=0 // loop_footer
    %s15 = sadd.s32 1, %s11
  $region7: #{mnist_generator_forward.13} parent=0 // loop_footer_branch
    %10 = sbr.rel target = $region3
  $region8: #{mnist_generator_forward.13} parent=0 // loop_exit
    _

// kernel: tile.53
$region0: #{tile.53}
  #allocation0 [shape = 's32[1]{0}', space=sflag, size = 0x4, scoped, tag = 'scoped memory for tile.53']
  %s0 = inlined_call_operand.vmem [shape: f32[56], index: 0, kind: input, shape index: {}]
  %s1 = inlined_call_operand.vmem [shape: f32[4,56], index: 1, kind: output, shape index: {}]
  // Predicated region
  $region2: #{tile.53} parent=0 // pred_check
    _
  $region3: #{tile.53} parent=0 // pred_check_branch
    %3 = sbr.rel (0) target = $region5
  $region4: #{tile.53} parent=0 // pred_region
    _
  $region5: #{tile.53} parent=0 // pred_fallthru
    _
  %v4 = vld [vmem:[%s0] ss:$0 sm:$0xff]
  %5 = vst [vmem:[%s1] sm:$0xf] %v4

// kernel: tile.54
$region0: #{tile.54}
  %s0 = inlined_call_operand.vmem [shape: f32[4,56], index: 0, kind: input, shape index: {}]
  %s1 = inlined_call_operand.vmem [shape: f32[224], index: 1, kind: output, shape index: {}]
  $region1: #{tile.54} parent=0
    #allocation0 [shape = 'u8[4096]{0}', space=vmem, size = 0x1000, scoped, tag = 'scoped mem for output reshape']
    #allocation1 [shape = 'u8[4096]{0}', space=vmem, size = 0x1000, scoped, tag = 'scoped mem for input reshape']
    %s3 = sshllo.u32 0, 4
    %v4 = vld [vmem:[%s0] sm:%s3]
    %5 = vst [vmem:[#allocation1] sm:%s3] %v4
    %v6 = vld [vmem:[#allocation1] sm:$0x1]
    %vm7 = vcmask 457728
    %8 = vst.msk [vmem:[#allocation0] sm:$0x1] %vm7, %v6
    %s9 = scalar_lea.vmem [#allocation1], 2
    %v10 = vld [vmem:[%s9] sm:$0x1]
    %s11 = scalar_lea.vmem [#allocation1], 2
    %v12 = vld [vmem:[%s11] sm:$0x1]
    %vm13 = vcmask 130048
    %v14 = vsel %vm13, %v12, %v10
    %15 = vrot.lane.b32.xlu0 %v14, 112
    %v16 = vpop.permute.xlu0 %15
    %vm17 = vcmask 326656
    %s18 = scalar_lea.vmem [#allocation0], 1
    %19 = vst.msk [vmem:[%s18] sm:$0x1] %vm17, %v16
    %vm20 = vcmask 1048448
    %21 = vst.msk [vmem:[#allocation0] sm:$0x1] %vm20, %v16
    %s22 = scalar_lea.vmem [#allocation1], 1
    %v23 = vld [vmem:[%s22] sm:$0x1]
    %24 = vrot.lane.b32.xlu0 %v23, 56
    %v25 = vpop.permute.xlu0 %24
    %vm26 = vcmask 916928
    %27 = vst.msk [vmem:[#allocation0] sm:$0x1] %vm26, %v25
    %s28 = scalar_lea.vmem [#allocation1], 3
    %v29 = vld [vmem:[%s28] sm:$0x1]
    %30 = vrot.lane.b32.xlu0 %v29, 40
    %v31 = vpop.permute.xlu0 %30
    %vm32 = vcmask 785728
    %s33 = scalar_lea.vmem [#allocation0], 1
    %34 = vst.msk [vmem:[%s33] sm:$0x1] %vm32, %v31
    %s36 = sshllo.u32 0, 2
    %v38 = vld [vmem:[#allocation0] sm:%s36]
    %s39 = sshllo.u32 0, 2
    %40 = vst [vmem:[%s1] sm:%s39] %v38

// kernel: mnist_generator_forward.14
$region0: #{mnist_generator_forward.14}
  #allocation0 [shape = 'u32[]', space=smem, size = 0x4, offset = 0x4, fixed_abs, tag = 'smem constant byte address 0x4 - core index']
  #allocation1 [shape = 'u32[144,128]{1,0:T(1,128)}', space=vmem, size = 0x12000, scoped, tag = 'internal scratch']
  %s0 = inlined_call_operand.vmem [shape: bf16[256,256], index: 0, kind: input, shape index: {}]
  %s1 = inlined_call_operand.vmem [shape: f32[1,256], index: 1, kind: input, shape index: {}]
  %s2 = inlined_call_operand.vmem [shape: f32[1,256], index: 2, kind: input, shape index: {}]
  %s3 = inlined_call_operand.vmem [shape: bf16[256,256], index: 3, kind: output, shape index: {}]
  %s4 = sld [smem:[#allocation0]]
  $region45: #{mnist_generator_forward.14} parent=0
    _
  %s6 = ssub.s32 1, %s4
  %s7 = scalar_select 0, %s6, %s4
  loop: start=0, step=1, limit=4
  $region2: #{mnist_generator_forward.14} parent=0 // loop_pre_header
    _
  $region3: #{mnist_generator_forward.14} parent=0 // loop_header
    %s9 = sphi 0, %s13
    %p10 = scmp.ge.s32.totalorder %s9, 4
    %s19 = sphi 0, %s21
    %s22 = sphi 0, %s19
    %s23 = sphi 0, %s22
    %s39 = sphi 0, %s23
    %s43 = sphi 0, %s43
    %s45 = sphi 0, %s43
    %s46 = sphi 0, %s45
    %s60 = sphi 0, %s46
    %s64 = sphi 0, %s64
    %s66 = sphi 0, %s64
    %s67 = sphi 0, %s66
    %s81 = sphi 0, %s67
    %s87 = sphi 0, %s89
    %s90 = sphi 0, %s87
    %s91 = sphi 0, %s90
    %s107 = sphi 0, %s91
  $region4: #{mnist_generator_forward.14} parent=0 // loop_header_branch
    %12 = sbr.rel (%p10) target = $region8
  $region5: #{mnist_generator_forward.14} parent=0 // loop_body
    %s14 = ssub.s32 %s9, 1
    %s15 = ssub.s32 %s9, 2
    %s16 = sadd.s32 %s9, 1
    %s17 = ssub.s32 %s9, %s16
    %p18 = scmp.eq.s32.totalorder %s17, 0
    %s20 = sadd.s32 %s19, 1
    %s21 = scalar_select %p18, %s19, %s20
    %p24 = pneg %p18
    %p25 = scmp.eq.s32.totalorder %s9, 1
    %p26 = por %p24, %p25
    %p27 = scmp.ne.s32.totalorder %s19, %s22
    %p28 = scmp.eq.s32.totalorder %s9, 0
    %p29 = por %p27, %p28
    %p30 = scmp.ne.s32.totalorder %s19, %s22
    %p31 = scmp.eq.s32.totalorder %s14, 1
    %p32 = por %p30, %p31
    %p33 = scmp.ne.s32.totalorder %s22, %s23
    %p34 = scmp.eq.s32.totalorder %s14, 0
    %p35 = por %p33, %p34
    %p36 = scmp.ne.s32.totalorder %s22, %s23
    %p37 = scmp.eq.s32.totalorder %s15, 1
    %p38 = por %p36, %p37
    %p40 = scmp.ne.s32.totalorder %s23, %s39
    %p41 = scmp.eq.s32.totalorder %s15, 0
    %p42 = por %p40, %p41
    %s44 = sadd.s32 %s43, 1
    %p47 = scmp.eq.s32.totalorder %s9, 1
    %p48 = scmp.ne.s32.totalorder %s43, %s45
    %p49 = scmp.eq.s32.totalorder %s9, 0
    %p50 = por %p48, %p49
    %p51 = scmp.ne.s32.totalorder %s43, %s45
    %p52 = scmp.eq.s32.totalorder %s14, 1
    %p53 = por %p51, %p52
    %p54 = scmp.ne.s32.totalorder %s45, %s46
    %p55 = scmp.eq.s32.totalorder %s14, 0
    %p56 = por %p54, %p55
    %p57 = scmp.ne.s32.totalorder %s45, %s46
    %p58 = scmp.eq.s32.totalorder %s15, 1
    %p59 = por %p57, %p58
    %p61 = scmp.ne.s32.totalorder %s46, %s60
    %p62 = scmp.eq.s32.totalorder %s15, 0
    %p63 = por %p61, %p62
    %s65 = sadd.s32 %s64, 1
    %p68 = scmp.eq.s32.totalorder %s9, 1
    %p69 = scmp.ne.s32.totalorder %s64, %s66
    %p70 = scmp.eq.s32.totalorder %s9, 0
    %p71 = por %p69, %p70
    %p72 = scmp.ne.s32.totalorder %s64, %s66
    %p73 = scmp.eq.s32.totalorder %s14, 1
    %p74 = por %p72, %p73
    %p75 = scmp.ne.s32.totalorder %s66, %s67
    %p76 = scmp.eq.s32.totalorder %s14, 0
    %p77 = por %p75, %p76
    %p78 = scmp.ne.s32.totalorder %s66, %s67
    %p79 = scmp.eq.s32.totalorder %s15, 1
    %p80 = por %p78, %p79
    %p82 = scmp.ne.s32.totalorder %s67, %s81
    %p83 = scmp.eq.s32.totalorder %s15, 0
    %p84 = por %p82, %p83
    %s85 = ssub.s32 %s9, %s16
    %p86 = scmp.eq.s32.totalorder %s85, 0
    %s88 = sadd.s32 %s87, 1
    %s89 = scalar_select %p86, %s87, %s88
    %p92 = pneg %p86
    %p93 = scmp.eq.s32.totalorder %s9, 1
    %p94 = por %p92, %p93
    %p95 = scmp.ne.s32.totalorder %s87, %s90
    %p96 = scmp.eq.s32.totalorder %s9, 0
    %p97 = por %p95, %p96
    %p98 = scmp.ne.s32.totalorder %s87, %s90
    %p99 = scmp.eq.s32.totalorder %s14, 1
    %p100 = por %p98, %p99
    %p101 = scmp.ne.s32.totalorder %s90, %s91
    %p102 = scmp.eq.s32.totalorder %s14, 0
    %p103 = por %p101, %p102
    %p104 = scmp.ne.s32.totalorder %s90, %s91
    %p105 = scmp.eq.s32.totalorder %s15, 1
    %p106 = por %p104, %p105
    %p108 = scmp.ne.s32.totalorder %s91, %s107
    %p109 = scmp.eq.s32.totalorder %s15, 0
    %p110 = por %p108, %p109
    %p111 = scmp.le.s32.totalorder 1, %s9
    %p112 = scmp.lt.s32.totalorder %s9, 3
    %p113 = pnand %p111, %p112
    %p114 = pneg %p113
    // Predicated region
    $region9: #{mnist_generator_forward.14} parent=5 // pred_check
      _
    $region10: #{mnist_generator_forward.14} parent=5 // pred_check_branch
      %116 = sbr.rel (%p113) target = $region12
    $region11: #{mnist_generator_forward.14} parent=5 // pred_region
      %s117 = ssub.s32 %s9, 1
      // Predicated region
      $region13: #{mnist_generator_forward.14} parent=11 // pred_check
        %p118 = pneg %p56
      $region14: #{mnist_generator_forward.14} parent=11 // pred_check_branch
        %120 = sbr.rel (%p118) target = $region16
      $region15: #{mnist_generator_forward.14} parent=11 // pred_region
        _
      $region16: #{mnist_generator_forward.14} parent=11 // pred_fallthru
        _
      // Predicated region
      $region17: #{mnist_generator_forward.14} parent=11 // pred_check
        %p121 = pneg %p77
      $region18: #{mnist_generator_forward.14} parent=11 // pred_check_branch
        %123 = sbr.rel (%p121) target = $region20
      $region19: #{mnist_generator_forward.14} parent=11 // pred_region
        _
      $region20: #{mnist_generator_forward.14} parent=11 // pred_fallthru
        _
    $region12: #{mnist_generator_forward.14} parent=5 // pred_fallthru
      _
    %p124 = scmp.lt.s32.totalorder %s9, 2
    // Predicated region
    $region21: #{mnist_generator_forward.14} parent=5 // pred_check
      %p125 = pneg %p124
    $region22: #{mnist_generator_forward.14} parent=5 // pred_check_branch
      %127 = sbr.rel (%p125) target = $region24
    $region23: #{mnist_generator_forward.14} parent=5 // pred_region
      // Predicated region
      $region25: #{mnist_generator_forward.14} parent=23 // pred_check
        %p128 = pneg %p29
      $region26: #{mnist_generator_forward.14} parent=23 // pred_check_branch
        %130 = sbr.rel (%p128) target = $region28
      $region27: #{mnist_generator_forward.14} parent=23 // pred_region
        %s131 = smul.u32 16, %s9
        %p132 = scmp.lt.s32.totalorder %s131, 31
        %s133 = scalar_select %p132, %s131, 31
        %s134 = smul.addr %s133, 2
        %s135 = smul.addr %s134, 4
        %s136 = scalar_lea.vmem %s0, %s135
        %s137 = smul.u32 16, %s9
      $region28: #{mnist_generator_forward.14} parent=23 // pred_fallthru
        _
    $region24: #{mnist_generator_forward.14} parent=5 // pred_fallthru
      _
    %p138 = scmp.le.s32.totalorder 1, %s9
    %p139 = scmp.lt.s32.totalorder %s9, 3
    %p140 = pnand %p138, %p139
    %p141 = pneg %p140
    // Predicated region
    $region29: #{mnist_generator_forward.14} parent=5 // pred_check
      _
    $region30: #{mnist_generator_forward.14} parent=5 // pred_check_branch
      %143 = sbr.rel (%p140) target = $region32
    $region31: #{mnist_generator_forward.14} parent=5 // pred_region
      %s144 = ssub.s32 %s9, 1
      %s145 = smul.u32 16, %s14
      %p146 = scmp.lt.s32.totalorder %s145, 31
      %s147 = scalar_select %p146, %s145, 31
      %s148 = smul.addr %s147, 2
      %s149 = smul.addr %s148, 4
      %s150 = scalar_lea.vmem %s0, %s149
      %p151 = pneg %p35
      %p152 = pneg %p32
      %p153 = pneg %p56
      %p154 = pneg %p53
      %p155 = pneg %p77
      %p156 = pneg %p74
      %p157 = pneg %p103
      %p158 = pneg %p100
      %s159 = smul.u32 16, %s14
      %p160 = scmp.lt.s32.totalorder %s159, 31
      %s161 = scalar_select %p160, %s159, 31
      %s162 = smul.addr %s161, 2
      %s163 = smul.addr %s162, 4
      %s164 = scalar_lea.vmem %s3, %s163
      %s165 = smul.u32 16, %s14
      %p166 = scmp.lt.s32.totalorder %s165, 31
      %s167 = scalar_select %p166, %s165, 31
      %s168 = smul.addr %s167, 2
      %s169 = smul.addr %s168, 4
      %s170 = scalar_lea.vmem %s0, %s169
      %s171 = smul.u32 16, %s14
      %s172 = smul.u32 16, %s14
      %p173 = scmp.lt.s32.totalorder %s172, 31
      %s174 = scalar_select %p173, %s172, 31
      %s175 = smul.addr %s174, 2
      %s176 = smul.addr %s175, 4
      %s177 = scalar_lea.vmem %s3, %s176
      %s178 = smul.u32 16, %s14
      %v179 = vld [vmem:[%s170] sm:$0xff]
      %v180 = vld [vmem:[%s170 + $0x8] sm:$0xff]
      %v181 = vld [vmem:[%s170 + $0x10] sm:$0xff]
      %v182 = vld [vmem:[%s170 + $0x18] sm:$0xff]
      %v183 = vld [vmem:[%s170 + $0x20] sm:$0xff]
      %v184 = vld [vmem:[%s170 + $0x28] sm:$0xff]
      %v185 = vld [vmem:[%s170 + $0x30] sm:$0xff]
      %v186 = vld [vmem:[%s170 + $0x38] sm:$0xff]
      %v187 = vld [vmem:[%s170 + $0x40] sm:$0xff]
      %v188 = vld [vmem:[%s170 + $0x48] sm:$0xff]
      %v189 = vld [vmem:[%s170 + $0x50] sm:$0xff]
      %v190 = vld [vmem:[%s170 + $0x58] sm:$0xff]
      %v191 = vld [vmem:[%s170 + $0x60] sm:$0xff]
      %v192 = vld [vmem:[%s170 + $0x68] sm:$0xff]
      %v193 = vld [vmem:[%s170 + $0x70] sm:$0xff]
      %v194 = vld [vmem:[%s170 + $0x78] sm:$0xff]
      %v195 = vunpack.c.l.bf16 %v179
      %v196 = vunpack.c.h.bf16 %v179
      %v197 = vunpack.c.l.bf16 %v180
      %v198 = vunpack.c.h.bf16 %v180
      %v199 = vunpack.c.l.bf16 %v181
      %v200 = vunpack.c.h.bf16 %v181
      %v201 = vunpack.c.l.bf16 %v182
      %v202 = vunpack.c.h.bf16 %v182
      %v203 = vunpack.c.l.bf16 %v183
      %v204 = vunpack.c.h.bf16 %v183
      %v205 = vunpack.c.l.bf16 %v184
      %v206 = vunpack.c.h.bf16 %v184
      %v207 = vunpack.c.l.bf16 %v185
      %v208 = vunpack.c.h.bf16 %v185
      %v209 = vunpack.c.l.bf16 %v186
      %v210 = vunpack.c.h.bf16 %v186
      %v211 = vunpack.c.l.bf16 %v187
      %v212 = vunpack.c.h.bf16 %v187
      %v213 = vunpack.c.l.bf16 %v188
      %v214 = vunpack.c.h.bf16 %v188
      %v215 = vunpack.c.l.bf16 %v189
      %v216 = vunpack.c.h.bf16 %v189
      %v217 = vunpack.c.l.bf16 %v190
      %v218 = vunpack.c.h.bf16 %v190
      %v219 = vunpack.c.l.bf16 %v191
      %v220 = vunpack.c.h.bf16 %v191
      %v221 = vunpack.c.l.bf16 %v192
      %v222 = vunpack.c.h.bf16 %v192
      %v223 = vunpack.c.l.bf16 %v193
      %v224 = vunpack.c.h.bf16 %v193
      %v225 = vunpack.c.l.bf16 %v194
      %v226 = vunpack.c.h.bf16 %v194
      %v227 = vld [vmem:[%s1] sm:$0x3]
      %v229 = vlaneseq
      %v230 = vshrl.u32 %v229, 7
      %v231 = vsub.s32 0, %v230
      %v232 = vrot.slane %v227, %v231
      %v233 = vlaneseq
      %v234 = vshrl.u32 %v233, 7
      %v235 = vsub.s32 1, %v234
      %v236 = vrot.slane %v227, %v235
      %v239 = vmul.f32 %v195, %v232
      %v240 = vmul.f32 %v196, %v236
      %v241 = vmul.f32 %v197, %v232
      %v242 = vmul.f32 %v198, %v236
      %v243 = vmul.f32 %v199, %v232
      %v244 = vmul.f32 %v200, %v236
      %v245 = vmul.f32 %v201, %v232
      %v246 = vmul.f32 %v202, %v236
      %v247 = vmul.f32 %v203, %v232
      %v248 = vmul.f32 %v204, %v236
      %v249 = vmul.f32 %v205, %v232
      %v250 = vmul.f32 %v206, %v236
      %v251 = vmul.f32 %v207, %v232
      %v252 = vmul.f32 %v208, %v236
      %v253 = vmul.f32 %v209, %v232
      %v254 = vmul.f32 %v210, %v236
      %v255 = vmul.f32 %v211, %v232
      %v256 = vmul.f32 %v212, %v236
      %v257 = vmul.f32 %v213, %v232
      %v258 = vmul.f32 %v214, %v236
      %v259 = vmul.f32 %v215, %v232
      %v260 = vmul.f32 %v216, %v236
      %v261 = vmul.f32 %v217, %v232
      %v262 = vmul.f32 %v218, %v236
      %v263 = vmul.f32 %v219, %v232
      %v264 = vmul.f32 %v220, %v236
      %v265 = vmul.f32 %v221, %v232
      %v266 = vmul.f32 %v222, %v236
      %v267 = vmul.f32 %v223, %v232
      %v268 = vmul.f32 %v224, %v236
      %v269 = vmul.f32 %v225, %v232
      %v270 = vmul.f32 %v226, %v236
      %v271 = vld [vmem:[%s2] sm:$0x3]
      %v273 = vlaneseq
      %v274 = vshrl.u32 %v273, 7
      %v275 = vsub.s32 0, %v274
      %v276 = vrot.slane %v271, %v275
      %v277 = vlaneseq
      %v278 = vshrl.u32 %v277, 7
      %v279 = vsub.s32 1, %v278
      %v280 = vrot.slane %v271, %v279
      %v283 = vadd.f32 %v239, %v276
      %v284 = vadd.f32 %v240, %v280
      %v285 = vadd.f32 %v241, %v276
      %v286 = vadd.f32 %v242, %v280
      %v287 = vadd.f32 %v243, %v276
      %v288 = vadd.f32 %v244, %v280
      %v289 = vadd.f32 %v245, %v276
      %v290 = vadd.f32 %v246, %v280
      %v291 = vadd.f32 %v247, %v276
      %v292 = vadd.f32 %v248, %v280
      %v293 = vadd.f32 %v249, %v276
      %v294 = vadd.f32 %v250, %v280
      %v295 = vadd.f32 %v251, %v276
      %v296 = vadd.f32 %v252, %v280
      %v297 = vadd.f32 %v253, %v276
      %v298 = vadd.f32 %v254, %v280
      %v299 = vadd.f32 %v255, %v276
      %v300 = vadd.f32 %v256, %v280
      %v301 = vadd.f32 %v257, %v276
      %v302 = vadd.f32 %v258, %v280
      %v303 = vadd.f32 %v259, %v276
      %v304 = vadd.f32 %v260, %v280
      %v305 = vadd.f32 %v261, %v276
      %v306 = vadd.f32 %v262, %v280
      %v307 = vadd.f32 %v263, %v276
      %v308 = vadd.f32 %v264, %v280
      %v309 = vadd.f32 %v265, %v276
      %v310 = vadd.f32 %v266, %v280
      %v311 = vadd.f32 %v267, %v276
      %v312 = vadd.f32 %v268, %v280
      %v313 = vadd.f32 %v269, %v276
      %v314 = vadd.f32 %v270, %v280
      %v315 = vmax.f32 %v283, 0.0
      %v316 = vmax.f32 %v284, 0.0
      %v317 = vmax.f32 %v285, 0.0
      %v318 = vmax.f32 %v286, 0.0
      %v319 = vmax.f32 %v287, 0.0
      %v320 = vmax.f32 %v288, 0.0
      %v321 = vmax.f32 %v289, 0.0
      %v322 = vmax.f32 %v290, 0.0
      %v323 = vmax.f32 %v291, 0.0
      %v324 = vmax.f32 %v292, 0.0
      %v325 = vmax.f32 %v293, 0.0
      %v326 = vmax.f32 %v294, 0.0
      %v327 = vmax.f32 %v295, 0.0
      %v328 = vmax.f32 %v296, 0.0
      %v329 = vmax.f32 %v297, 0.0
      %v330 = vmax.f32 %v298, 0.0
      %v331 = vmax.f32 %v299, 0.0
      %v332 = vmax.f32 %v300, 0.0
      %v333 = vmax.f32 %v301, 0.0
      %v334 = vmax.f32 %v302, 0.0
      %v335 = vmax.f32 %v303, 0.0
      %v336 = vmax.f32 %v304, 0.0
      %v337 = vmax.f32 %v305, 0.0
      %v338 = vmax.f32 %v306, 0.0
      %v339 = vmax.f32 %v307, 0.0
      %v340 = vmax.f32 %v308, 0.0
      %v341 = vmax.f32 %v309, 0.0
      %v342 = vmax.f32 %v310, 0.0
      %v343 = vmax.f32 %v311, 0.0
      %v344 = vmax.f32 %v312, 0.0
      %v345 = vmax.f32 %v313, 0.0
      %v346 = vmax.f32 %v314, 0.0
      %v347 = vpack.c.bf16 %v317, %v315
      %v348 = vpack.c.bf16 %v318, %v316
      %v349 = vpack.c.bf16 %v321, %v319
      %v350 = vpack.c.bf16 %v322, %v320
      %v351 = vpack.c.bf16 %v325, %v323
      %v352 = vpack.c.bf16 %v326, %v324
      %v353 = vpack.c.bf16 %v329, %v327
      %v354 = vpack.c.bf16 %v330, %v328
      %v355 = vpack.c.bf16 %v333, %v331
      %v356 = vpack.c.bf16 %v334, %v332
      %v357 = vpack.c.bf16 %v337, %v335
      %v358 = vpack.c.bf16 %v338, %v336
      %v359 = vpack.c.bf16 %v341, %v339
      %v360 = vpack.c.bf16 %v342, %v340
      %v361 = vpack.c.bf16 %v345, %v343
      %v362 = vpack.c.bf16 %v346, %v344
      %v379 = vunpack.c.l.b16 %v347
      %v380 = vunpack.c.l.b16 %v348
      %v381 = vunpack.c.h.b16 %v347
      %v382 = vunpack.c.h.b16 %v348
      %v383 = vunpack.c.l.b16 %v349
      %v384 = vunpack.c.l.b16 %v350
      %v385 = vunpack.c.h.b16 %v349
      %v386 = vunpack.c.h.b16 %v350
      %v387 = vunpack.c.l.b16 %v351
      %v388 = vunpack.c.l.b16 %v352
      %v389 = vunpack.c.h.b16 %v351
      %v390 = vunpack.c.h.b16 %v352
      %v391 = vunpack.c.l.b16 %v353
      %v392 = vunpack.c.l.b16 %v354
      %v393 = vunpack.c.h.b16 %v353
      %v394 = vunpack.c.h.b16 %v354
      %v395 = vunpack.c.l.b16 %v355
      %v396 = vunpack.c.l.b16 %v356
      %v397 = vunpack.c.h.b16 %v355
      %v398 = vunpack.c.h.b16 %v356
      %v399 = vunpack.c.l.b16 %v357
      %v400 = vunpack.c.l.b16 %v358
      %v401 = vunpack.c.h.b16 %v357
      %v402 = vunpack.c.h.b16 %v358
      %v403 = vunpack.c.l.b16 %v359
      %v404 = vunpack.c.l.b16 %v360
      %v405 = vunpack.c.h.b16 %v359
      %v406 = vunpack.c.h.b16 %v360
      %v407 = vunpack.c.l.b16 %v361
      %v408 = vunpack.c.l.b16 %v362
      %v409 = vunpack.c.h.b16 %v361
      %v410 = vunpack.c.h.b16 %v362
      %v411 = vpack.c.b16 %v380, %v379
      %v412 = vpack.c.b16 %v382, %v381
      %v413 = vpack.c.b16 %v384, %v383
      %v414 = vpack.c.b16 %v386, %v385
      %v415 = vpack.c.b16 %v388, %v387
      %v416 = vpack.c.b16 %v390, %v389
      %v417 = vpack.c.b16 %v392, %v391
      %v418 = vpack.c.b16 %v394, %v393
      %v419 = vpack.c.b16 %v396, %v395
      %v420 = vpack.c.b16 %v398, %v397
      %v421 = vpack.c.b16 %v400, %v399
      %v422 = vpack.c.b16 %v402, %v401
      %v423 = vpack.c.b16 %v404, %v403
      %v424 = vpack.c.b16 %v406, %v405
      %v425 = vpack.c.b16 %v408, %v407
      %v426 = vpack.c.b16 %v410, %v409
      %443 = vst [vmem:[%s177] sm:$0xff] %v411
      %444 = vst [vmem:[%s177 + $0x8] sm:$0xff] %v412
      %445 = vst [vmem:[%s177 + $0x10] sm:$0xff] %v413
      %446 = vst [vmem:[%s177 + $0x18] sm:$0xff] %v414
      %447 = vst [vmem:[%s177 + $0x20] sm:$0xff] %v415
      %448 = vst [vmem:[%s177 + $0x28] sm:$0xff] %v416
      %449 = vst [vmem:[%s177 + $0x30] sm:$0xff] %v417
      %450 = vst [vmem:[%s177 + $0x38] sm:$0xff] %v418
      %451 = vst [vmem:[%s177 + $0x40] sm:$0xff] %v419
      %452 = vst [vmem:[%s177 + $0x48] sm:$0xff] %v420
      %453 = vst [vmem:[%s177 + $0x50] sm:$0xff] %v421
      %454 = vst [vmem:[%s177 + $0x58] sm:$0xff] %v422
      %455 = vst [vmem:[%s177 + $0x60] sm:$0xff] %v423
      %456 = vst [vmem:[%s177 + $0x68] sm:$0xff] %v424
      %457 = vst [vmem:[%s177 + $0x70] sm:$0xff] %v425
      %458 = vst [vmem:[%s177 + $0x78] sm:$0xff] %v426
      %s459 = smul.u32 16, %s14
      %p460 = scmp.lt.s32.totalorder %s459, 31
      %s461 = scalar_select %p460, %s459, 31
      %s462 = smul.addr %s461, 2
      %s463 = smul.addr %s462, 4
      %s464 = scalar_lea.vmem %s3, %s463
      // Predicated region
      $region33: #{mnist_generator_forward.14} parent=31 // pred_check
        %p465 = pneg %p100
      $region34: #{mnist_generator_forward.14} parent=31 // pred_check_branch
        %467 = sbr.rel (%p465) target = $region36
      $region35: #{mnist_generator_forward.14} parent=31 // pred_region
        %s468 = smul.u32 16, %s14
      $region36: #{mnist_generator_forward.14} parent=31 // pred_fallthru
        _
    $region32: #{mnist_generator_forward.14} parent=5 // pred_fallthru
      _
    %p469 = scmp.le.s32.totalorder 2, %s9
    // Predicated region
    $region37: #{mnist_generator_forward.14} parent=5 // pred_check
      %p470 = pneg %p469
    $region38: #{mnist_generator_forward.14} parent=5 // pred_check_branch
      %472 = sbr.rel (%p470) target = $region40
    $region39: #{mnist_generator_forward.14} parent=5 // pred_region
      %s473 = ssub.s32 %s9, 2
      // Predicated region
      $region41: #{mnist_generator_forward.14} parent=39 // pred_check
        %p474 = pneg %p106
      $region42: #{mnist_generator_forward.14} parent=39 // pred_check_branch
        %476 = sbr.rel (%p474) target = $region44
      $region43: #{mnist_generator_forward.14} parent=39 // pred_region
        %s477 = smul.u32 16, %s15
        %p478 = scmp.lt.s32.totalorder %s477, 31
        %s479 = scalar_select %p478, %s477, 31
        %s480 = smul.addr %s479, 2
        %s481 = smul.addr %s480, 4
        %s482 = scalar_lea.vmem %s3, %s481
      $region44: #{mnist_generator_forward.14} parent=39 // pred_fallthru
        _
    $region40: #{mnist_generator_forward.14} parent=5 // pred_fallthru
      _
  $region6: #{mnist_generator_forward.14} parent=0 // loop_footer
    %s13 = sadd.s32 1, %s9
  $region7: #{mnist_generator_forward.14} parent=0 // loop_footer_branch
    %8 = sbr.rel target = $region3
  $region8: #{mnist_generator_forward.14} parent=0 // loop_exit
    _

// kernel: mnist_generator_forward.15
$region0: #{mnist_generator_forward.15}
  #allocation0 [shape = 'u32[]', space=smem, size = 0x4, offset = 0x4, fixed_abs, tag = 'smem constant byte address 0x4 - core index']
  #allocation1 [shape = 'u32[144,128]{1,0:T(1,128)}', space=vmem, size = 0x12000, scoped, tag = 'internal scratch']
  %s0 = inlined_call_operand.vmem [shape: bf16[1280,896], index: 0, kind: input, shape index: {}]
  %s1 = inlined_call_operand.vmem [shape: bf16[896,128], index: 1, kind: input, shape index: {}]
  %s2 = inlined_call_operand.vmem [shape: bf16[1280,128], index: 2, kind: output, shape index: {0}]
  %s3 = inlined_call_operand.vmem [shape: f32[4,1,128], index: 3, kind: output, shape index: {1}]
  %s4 = inlined_call_operand.vmem [shape: f32[4,1,128], index: 4, kind: output, shape index: {2}]
  %5 = xla_tuple %s2, %s3, %s4
  %s6 = sld [smem:[#allocation0]]
  $region57: #{mnist_generator_forward.15} parent=0
    _
  %s8 = ssub.s32 1, %s6
  %s9 = scalar_select 0, %s8, %s6
  loop: start=0, step=1, limit=6
  $region2: #{mnist_generator_forward.15} parent=0 // loop_pre_header
    _
  $region3: #{mnist_generator_forward.15} parent=0 // loop_header
    %s11 = sphi 0, %s15
    %p12 = scmp.ge.s32.totalorder %s11, 6
    %s21 = sphi 0, %s23
    %s24 = sphi 0, %s21
    %s25 = sphi 0, %s24
    %s41 = sphi 0, %s25
    %s45 = sphi 0, %s45
    %s47 = sphi 0, %s45
    %s48 = sphi 0, %s47
    %s62 = sphi 0, %s48
    %s68 = sphi 0, %s70
    %s71 = sphi 0, %s68
    %s72 = sphi 0, %s71
    %s88 = sphi 0, %s72
    %s94 = sphi 0, %s96
    %s97 = sphi 0, %s94
    %s98 = sphi 0, %s97
    %s114 = sphi 0, %s98
    %s120 = sphi 0, %s122
    %s123 = sphi 0, %s120
    %s124 = sphi 0, %s123
    %s140 = sphi 0, %s124
  $region4: #{mnist_generator_forward.15} parent=0 // loop_header_branch
    %14 = sbr.rel (%p12) target = $region8
  $region5: #{mnist_generator_forward.15} parent=0 // loop_body
    %s16 = ssub.s32 %s11, 1
    %s17 = ssub.s32 %s11, 2
    %s18 = sadd.s32 %s11, 1
    %s19 = ssub.s32 %s11, %s18
    %p20 = scmp.eq.s32.totalorder %s19, 0
    %s22 = sadd.s32 %s21, 1
    %s23 = scalar_select %p20, %s21, %s22
    %p26 = pneg %p20
    %p27 = scmp.eq.s32.totalorder %s11, 3
    %p28 = por %p26, %p27
    %p29 = scmp.ne.s32.totalorder %s21, %s24
    %p30 = scmp.eq.s32.totalorder %s11, 0
    %p31 = por %p29, %p30
    %p32 = scmp.ne.s32.totalorder %s21, %s24
    %p33 = scmp.eq.s32.totalorder %s16, 3
    %p34 = por %p32, %p33
    %p35 = scmp.ne.s32.totalorder %s24, %s25
    %p36 = scmp.eq.s32.totalorder %s16, 0
    %p37 = por %p35, %p36
    %p38 = scmp.ne.s32.totalorder %s24, %s25
    %p39 = scmp.eq.s32.totalorder %s17, 3
    %p40 = por %p38, %p39
    %p42 = scmp.ne.s32.totalorder %s25, %s41
    %p43 = scmp.eq.s32.totalorder %s17, 0
    %p44 = por %p42, %p43
    %s46 = sadd.s32 %s45, 1
    %p49 = scmp.eq.s32.totalorder %s11, 3
    %p50 = scmp.ne.s32.totalorder %s45, %s47
    %p51 = scmp.eq.s32.totalorder %s11, 0
    %p52 = por %p50, %p51
    %p53 = scmp.ne.s32.totalorder %s45, %s47
    %p54 = scmp.eq.s32.totalorder %s16, 3
    %p55 = por %p53, %p54
    %p56 = scmp.ne.s32.totalorder %s47, %s48
    %p57 = scmp.eq.s32.totalorder %s16, 0
    %p58 = por %p56, %p57
    %p59 = scmp.ne.s32.totalorder %s47, %s48
    %p60 = scmp.eq.s32.totalorder %s17, 3
    %p61 = por %p59, %p60
    %p63 = scmp.ne.s32.totalorder %s48, %s62
    %p64 = scmp.eq.s32.totalorder %s17, 0
    %p65 = por %p63, %p64
    %s66 = ssub.s32 %s11, %s18
    %p67 = scmp.eq.s32.totalorder %s66, 0
    %s69 = sadd.s32 %s68, 1
    %s70 = scalar_select %p67, %s68, %s69
    %p73 = pneg %p67
    %p74 = scmp.eq.s32.totalorder %s11, 3
    %p75 = por %p73, %p74
    %p76 = scmp.ne.s32.totalorder %s68, %s71
    %p77 = scmp.eq.s32.totalorder %s11, 0
    %p78 = por %p76, %p77
    %p79 = scmp.ne.s32.totalorder %s68, %s71
    %p80 = scmp.eq.s32.totalorder %s16, 3
    %p81 = por %p79, %p80
    %p82 = scmp.ne.s32.totalorder %s71, %s72
    %p83 = scmp.eq.s32.totalorder %s16, 0
    %p84 = por %p82, %p83
    %p85 = scmp.ne.s32.totalorder %s71, %s72
    %p86 = scmp.eq.s32.totalorder %s17, 3
    %p87 = por %p85, %p86
    %p89 = scmp.ne.s32.totalorder %s72, %s88
    %p90 = scmp.eq.s32.totalorder %s17, 0
    %p91 = por %p89, %p90
    %s92 = ssub.s32 %s11, %s18
    %p93 = scmp.eq.s32.totalorder %s92, 0
    %s95 = sadd.s32 %s94, 1
    %s96 = scalar_select %p93, %s94, %s95
    %p99 = pneg %p93
    %p100 = scmp.eq.s32.totalorder %s11, 3
    %p101 = por %p99, %p100
    %p102 = scmp.ne.s32.totalorder %s94, %s97
    %p103 = scmp.eq.s32.totalorder %s11, 0
    %p104 = por %p102, %p103
    %p105 = scmp.ne.s32.totalorder %s94, %s97
    %p106 = scmp.eq.s32.totalorder %s16, 3
    %p107 = por %p105, %p106
    %p108 = scmp.ne.s32.totalorder %s97, %s98
    %p109 = scmp.eq.s32.totalorder %s16, 0
    %p110 = por %p108, %p109
    %p111 = scmp.ne.s32.totalorder %s97, %s98
    %p112 = scmp.eq.s32.totalorder %s17, 3
    %p113 = por %p111, %p112
    %p115 = scmp.ne.s32.totalorder %s98, %s114
    %p116 = scmp.eq.s32.totalorder %s17, 0
    %p117 = por %p115, %p116
    %s118 = ssub.s32 %s11, %s18
    %p119 = scmp.eq.s32.totalorder %s118, 0
    %s121 = sadd.s32 %s120, 1
    %s122 = scalar_select %p119, %s120, %s121
    %p125 = pneg %p119
    %p126 = scmp.eq.s32.totalorder %s11, 3
    %p127 = por %p125, %p126
    %p128 = scmp.ne.s32.totalorder %s120, %s123
    %p129 = scmp.eq.s32.totalorder %s11, 0
    %p130 = por %p128, %p129
    %p131 = scmp.ne.s32.totalorder %s120, %s123
    %p132 = scmp.eq.s32.totalorder %s16, 3
    %p133 = por %p131, %p132
    %p134 = scmp.ne.s32.totalorder %s123, %s124
    %p135 = scmp.eq.s32.totalorder %s16, 0
    %p136 = por %p134, %p135
    %p137 = scmp.ne.s32.totalorder %s123, %s124
    %p138 = scmp.eq.s32.totalorder %s17, 3
    %p139 = por %p137, %p138
    %p141 = scmp.ne.s32.totalorder %s124, %s140
    %p142 = scmp.eq.s32.totalorder %s17, 0
    %p143 = por %p141, %p142
    %p144 = scmp.le.s32.totalorder 1, %s11
    %p145 = scmp.lt.s32.totalorder %s11, 5
    %p146 = pnand %p144, %p145
    %p147 = pneg %p146
    // Predicated region
    $region9: #{mnist_generator_forward.15} parent=5 // pred_check
      _
    $region10: #{mnist_generator_forward.15} parent=5 // pred_check_branch
      %149 = sbr.rel (%p146) target = $region12
    $region11: #{mnist_generator_forward.15} parent=5 // pred_region
      %s150 = ssub.s32 %s11, 1
      // Predicated region
      $region13: #{mnist_generator_forward.15} parent=11 // pred_check
        %p151 = pneg %p58
      $region14: #{mnist_generator_forward.15} parent=11 // pred_check_branch
        %153 = sbr.rel (%p151) target = $region16
      $region15: #{mnist_generator_forward.15} parent=11 // pred_region
        _
      $region16: #{mnist_generator_forward.15} parent=11 // pred_fallthru
        _
    $region12: #{mnist_generator_forward.15} parent=5 // pred_fallthru
      _
    %p154 = scmp.lt.s32.totalorder %s11, 4
    // Predicated region
    $region17: #{mnist_generator_forward.15} parent=5 // pred_check
      %p155 = pneg %p154
    $region18: #{mnist_generator_forward.15} parent=5 // pred_check_branch
      %157 = sbr.rel (%p155) target = $region20
    $region19: #{mnist_generator_forward.15} parent=5 // pred_region
      // Predicated region
      $region21: #{mnist_generator_forward.15} parent=19 // pred_check
        %p158 = pneg %p31
      $region22: #{mnist_generator_forward.15} parent=19 // pred_check_branch
        %160 = sbr.rel (%p158) target = $region24
      $region23: #{mnist_generator_forward.15} parent=19 // pred_region
        %s161 = smul.u32 40, %s11
        %p162 = scmp.lt.s32.totalorder %s161, 159
        %s163 = scalar_select %p162, %s161, 159
        %s164 = smul.addr %s163, 7
        %s165 = smul.addr %s164, 4
        %s166 = scalar_lea.vmem %s0, %s165
        %s167 = smul.u32 40, %s11
      $region24: #{mnist_generator_forward.15} parent=19 // pred_fallthru
        _
    $region20: #{mnist_generator_forward.15} parent=5 // pred_fallthru
      _
    %p168 = scmp.le.s32.totalorder 1, %s11
    %p169 = scmp.lt.s32.totalorder %s11, 5
    %p170 = pnand %p168, %p169
    %p171 = pneg %p170
    // Predicated region
    $region25: #{mnist_generator_forward.15} parent=5 // pred_check
      _
    $region26: #{mnist_generator_forward.15} parent=5 // pred_check_branch
      %173 = sbr.rel (%p170) target = $region28
    $region27: #{mnist_generator_forward.15} parent=5 // pred_region
      %s174 = ssub.s32 %s11, 1
      %s175 = smul.u32 40, %s16
      %p176 = scmp.lt.s32.totalorder %s175, 159
      %s177 = scalar_select %p176, %s175, 159
      %s178 = smul.addr %s177, 7
      %s179 = smul.addr %s178, 4
      %s180 = scalar_lea.vmem %s0, %s179
      %p181 = pneg %p37
      %p182 = pneg %p34
      %p183 = pneg %p58
      %p184 = pneg %p55
      %p185 = pneg %p84
      %p186 = pneg %p81
      %s187 = smul.u32 40, %s16
      %p188 = scmp.lt.s32.totalorder %s187, 159
      %s189 = scalar_select %p188, %s187, 159
      %s190 = smul.addr %s189, 4
      %s191 = scalar_lea.vmem %s2, %s190
      %p192 = pneg %p110
      %p193 = pneg %p107
      %p194 = scmp.lt.s32.totalorder %s16, 3
      %s195 = scalar_select %p194, %s16, 3
      %s196 = scalar_lea.vmem %s3, %s195
      %p197 = pneg %p136
      %p198 = pneg %p133
      %p199 = scmp.lt.s32.totalorder %s16, 3
      %s200 = scalar_select %p199, %s16, 3
      %s201 = scalar_lea.vmem %s4, %s200
      %s202 = smul.u32 40, %s16
      %p203 = scmp.lt.s32.totalorder %s202, 159
      %s204 = scalar_select %p203, %s202, 159
      %s205 = smul.addr %s204, 7
      %s206 = smul.addr %s205, 4
      %s207 = scalar_lea.vmem %s0, %s206
      %s208 = smul.u32 40, %s16
      %s209 = smul.u32 40, %s16
      %p210 = scmp.lt.s32.totalorder %s209, 159
      %s211 = scalar_select %p210, %s209, 159
      %s212 = smul.addr %s211, 4
      %s213 = scalar_lea.vmem %s2, %s212
      %s214 = smul.u32 40, %s16
      %p215 = scmp.lt.s32.totalorder %s16, 3
      %s216 = scalar_select %p215, %s16, 3
      %s217 = scalar_lea.vmem %s3, %s216
      %p218 = scmp.lt.s32.totalorder %s16, 3
      %s219 = scalar_select %p218, %s16, 3
      %s220 = scalar_lea.vmem %s4, %s219
      %v222 = vld [vmem:[%s207] sm:$0xff]
      %v223 = vld [vmem:[%s207 + $0x8] sm:$0xff]
      %v224 = vld [vmem:[%s207 + $0x10] sm:$0xff]
      %v225 = vld [vmem:[%s207 + $0x18] sm:$0xf]
      %v226 = vld [vmem:[%s207 + $0x1c] sm:$0xff]
      %v227 = vld [vmem:[%s207 + $0x24] sm:$0xff]
      %v228 = vld [vmem:[%s207 + $0x2c] sm:$0xff]
      %v229 = vld [vmem:[%s207 + $0x34] sm:$0xf]
      %v230 = vld [vmem:[%s207 + $0x38] sm:$0xff]
      %v231 = vld [vmem:[%s207 + $0x40] sm:$0xff]
      %v232 = vld [vmem:[%s207 + $0x48] sm:$0xff]
      %v233 = vld [vmem:[%s207 + $0x50] sm:$0xf]
      %v234 = vld [vmem:[%s207 + $0x54] sm:$0xff]
      %v235 = vld [vmem:[%s207 + $0x5c] sm:$0xff]
      %v236 = vld [vmem:[%s207 + $0x64] sm:$0xff]
      %v237 = vld [vmem:[%s207 + $0x6c] sm:$0xf]
      %v238 = vld [vmem:[%s207 + $0x70] sm:$0xff]
      %v239 = vld [vmem:[%s207 + $0x78] sm:$0xff]
      %v240 = vld [vmem:[%s207 + $0x80] sm:$0xff]
      %v241 = vld [vmem:[%s207 + $0x88] sm:$0xf]
      %v242 = vld [vmem:[%s207 + $0x8c] sm:$0xff]
      %v243 = vld [vmem:[%s207 + $0x94] sm:$0xff]
      %v244 = vld [vmem:[%s207 + $0x9c] sm:$0xff]
      %v245 = vld [vmem:[%s207 + $0xa4] sm:$0xf]
      %v246 = vld [vmem:[%s207 + $0xa8] sm:$0xff]
      %v247 = vld [vmem:[%s207 + $0xb0] sm:$0xff]
      %v248 = vld [vmem:[%s207 + $0xb8] sm:$0xff]
      %v249 = vld [vmem:[%s207 + $0xc0] sm:$0xf]
      %v250 = vld [vmem:[%s207 + $0xc4] sm:$0xff]
      %v251 = vld [vmem:[%s207 + $0xcc] sm:$0xff]
      %v252 = vld [vmem:[%s207 + $0xd4] sm:$0xff]
      %v253 = vld [vmem:[%s207 + $0xdc] sm:$0xf]
      %v254 = vld [vmem:[%s207 + $0xe0] sm:$0xff]
      %v255 = vld [vmem:[%s207 + $0xe8] sm:$0xff]
      %v256 = vld [vmem:[%s207 + $0xf0] sm:$0xff]
      %v257 = vld [vmem:[%s207 + $0xf8] sm:$0xf]
      %v258 = vld [vmem:[%s207 + $0xfc] sm:$0xff]
      %v259 = vld [vmem:[%s207 + $0x104] sm:$0xff]
      %v260 = vld [vmem:[%s207 + $0x10c] sm:$0xff]
      %v261 = vld [vmem:[%s207 + $0x114] sm:$0xf]
      %v262 = vld [vmem:[%s207 + $0x118] sm:$0xff]
      %v263 = vld [vmem:[%s207 + $0x120] sm:$0xff]
      %v264 = vld [vmem:[%s207 + $0x128] sm:$0xff]
      %v265 = vld [vmem:[%s207 + $0x130] sm:$0xf]
      %v266 = vld [vmem:[%s207 + $0x134] sm:$0xff]
      %v267 = vld [vmem:[%s207 + $0x13c] sm:$0xff]
      %v268 = vld [vmem:[%s207 + $0x144] sm:$0xff]
      %v269 = vld [vmem:[%s207 + $0x14c] sm:$0xf]
      %v270 = vld [vmem:[%s207 + $0x150] sm:$0xff]
      %v271 = vld [vmem:[%s207 + $0x158] sm:$0xff]
      %v272 = vld [vmem:[%s207 + $0x160] sm:$0xff]
      %v273 = vld [vmem:[%s207 + $0x168] sm:$0xf]
      %v274 = vld [vmem:[%s207 + $0x16c] sm:$0xff]
      %v275 = vld [vmem:[%s207 + $0x174] sm:$0xff]
      %v276 = vld [vmem:[%s207 + $0x17c] sm:$0xff]
      %v277 = vld [vmem:[%s207 + $0x184] sm:$0xf]
      %v278 = vld [vmem:[%s207 + $0x188] sm:$0xff]
      %v279 = vld [vmem:[%s207 + $0x190] sm:$0xff]
      %v280 = vld [vmem:[%s207 + $0x198] sm:$0xff]
      %v281 = vld [vmem:[%s207 + $0x1a0] sm:$0xf]
      %v282 = vld [vmem:[%s207 + $0x1a4] sm:$0xff]
      %v283 = vld [vmem:[%s207 + $0x1ac] sm:$0xff]
      %v284 = vld [vmem:[%s207 + $0x1b4] sm:$0xff]
      %v285 = vld [vmem:[%s207 + $0x1bc] sm:$0xf]
      %v286 = vld [vmem:[%s207 + $0x1c0] sm:$0xff]
      %v287 = vld [vmem:[%s207 + $0x1c8] sm:$0xff]
      %v288 = vld [vmem:[%s207 + $0x1d0] sm:$0xff]
      %v289 = vld [vmem:[%s207 + $0x1d8] sm:$0xf]
      %v290 = vld [vmem:[%s207 + $0x1dc] sm:$0xff]
      %v291 = vld [vmem:[%s207 + $0x1e4] sm:$0xff]
      %v292 = vld [vmem:[%s207 + $0x1ec] sm:$0xff]
      %v293 = vld [vmem:[%s207 + $0x1f4] sm:$0xf]
      %v294 = vld [vmem:[%s207 + $0x1f8] sm:$0xff]
      %v295 = vld [vmem:[%s207 + $0x200] sm:$0xff]
      %v296 = vld [vmem:[%s207 + $0x208] sm:$0xff]
      %v297 = vld [vmem:[%s207 + $0x210] sm:$0xf]
      %v298 = vld [vmem:[%s207 + $0x214] sm:$0xff]
      %v299 = vld [vmem:[%s207 + $0x21c] sm:$0xff]
      %v300 = vld [vmem:[%s207 + $0x224] sm:$0xff]
      %v301 = vld [vmem:[%s207 + $0x22c] sm:$0xf]
      %v302 = vld [vmem:[%s207 + $0x230] sm:$0xff]
      %v303 = vld [vmem:[%s207 + $0x238] sm:$0xff]
      %v304 = vld [vmem:[%s207 + $0x240] sm:$0xff]
      %v305 = vld [vmem:[%s207 + $0x248] sm:$0xf]
      %v306 = vld [vmem:[%s207 + $0x24c] sm:$0xff]
      %v307 = vld [vmem:[%s207 + $0x254] sm:$0xff]
      %v308 = vld [vmem:[%s207 + $0x25c] sm:$0xff]
      %v309 = vld [vmem:[%s207 + $0x264] sm:$0xf]
      %v310 = vld [vmem:[%s207 + $0x268] sm:$0xff]
      %v311 = vld [vmem:[%s207 + $0x270] sm:$0xff]
      %v312 = vld [vmem:[%s207 + $0x278] sm:$0xff]
      %v313 = vld [vmem:[%s207 + $0x280] sm:$0xf]
      %v314 = vld [vmem:[%s207 + $0x284] sm:$0xff]
      %v315 = vld [vmem:[%s207 + $0x28c] sm:$0xff]
      %v316 = vld [vmem:[%s207 + $0x294] sm:$0xff]
      %v317 = vld [vmem:[%s207 + $0x29c] sm:$0xf]
      %v318 = vld [vmem:[%s207 + $0x2a0] sm:$0xff]
      %v319 = vld [vmem:[%s207 + $0x2a8] sm:$0xff]
      %v320 = vld [vmem:[%s207 + $0x2b0] sm:$0xff]
      %v321 = vld [vmem:[%s207 + $0x2b8] sm:$0xf]
      %v322 = vld [vmem:[%s207 + $0x2bc] sm:$0xff]
      %v323 = vld [vmem:[%s207 + $0x2c4] sm:$0xff]
      %v324 = vld [vmem:[%s207 + $0x2cc] sm:$0xff]
      %v325 = vld [vmem:[%s207 + $0x2d4] sm:$0xf]
      %v326 = vld [vmem:[%s207 + $0x2d8] sm:$0xff]
      %v327 = vld [vmem:[%s207 + $0x2e0] sm:$0xff]
      %v328 = vld [vmem:[%s207 + $0x2e8] sm:$0xff]
      %v329 = vld [vmem:[%s207 + $0x2f0] sm:$0xf]
      %v330 = vld [vmem:[%s207 + $0x2f4] sm:$0xff]
      %v331 = vld [vmem:[%s207 + $0x2fc] sm:$0xff]
      %v332 = vld [vmem:[%s207 + $0x304] sm:$0xff]
      %v333 = vld [vmem:[%s207 + $0x30c] sm:$0xf]
      %v334 = vld [vmem:[%s207 + $0x310] sm:$0xff]
      %v335 = vld [vmem:[%s207 + $0x318] sm:$0xff]
      %v336 = vld [vmem:[%s207 + $0x320] sm:$0xff]
      %v337 = vld [vmem:[%s207 + $0x328] sm:$0xf]
      %v338 = vld [vmem:[%s207 + $0x32c] sm:$0xff]
      %v339 = vld [vmem:[%s207 + $0x334] sm:$0xff]
      %v340 = vld [vmem:[%s207 + $0x33c] sm:$0xff]
      %v341 = vld [vmem:[%s207 + $0x344] sm:$0xf]
      %v342 = vld [vmem:[%s207 + $0x348] sm:$0xff]
      %v343 = vld [vmem:[%s207 + $0x350] sm:$0xff]
      %v344 = vld [vmem:[%s207 + $0x358] sm:$0xff]
      %v345 = vld [vmem:[%s207 + $0x360] sm:$0xf]
      %v346 = vld [vmem:[%s207 + $0x364] sm:$0xff]
      %v347 = vld [vmem:[%s207 + $0x36c] sm:$0xff]
      %v348 = vld [vmem:[%s207 + $0x374] sm:$0xff]
      %v349 = vld [vmem:[%s207 + $0x37c] sm:$0xf]
      %v350 = vld [vmem:[%s207 + $0x380] sm:$0xff]
      %v351 = vld [vmem:[%s207 + $0x388] sm:$0xff]
      %v352 = vld [vmem:[%s207 + $0x390] sm:$0xff]
      %v353 = vld [vmem:[%s207 + $0x398] sm:$0xf]
      %v354 = vld [vmem:[%s207 + $0x39c] sm:$0xff]
      %v355 = vld [vmem:[%s207 + $0x3a4] sm:$0xff]
      %v356 = vld [vmem:[%s207 + $0x3ac] sm:$0xff]
      %v357 = vld [vmem:[%s207 + $0x3b4] sm:$0xf]
      %v358 = vld [vmem:[%s207 + $0x3b8] sm:$0xff]
      %v359 = vld [vmem:[%s207 + $0x3c0] sm:$0xff]
      %v360 = vld [vmem:[%s207 + $0x3c8] sm:$0xff]
      %v361 = vld [vmem:[%s207 + $0x3d0] sm:$0xf]
      %v362 = vld [vmem:[%s207 + $0x3d4] sm:$0xff]
      %v363 = vld [vmem:[%s207 + $0x3dc] sm:$0xff]
      %v364 = vld [vmem:[%s207 + $0x3e4] sm:$0xff]
      %v365 = vld [vmem:[%s207 + $0x3ec] sm:$0xf]
      %v366 = vld [vmem:[%s207 + $0x3f0] sm:$0xff]
      %v367 = vld [vmem:[%s207 + $0x3f8] sm:$0xff]
      %v368 = vld [vmem:[%s207 + $0x400] sm:$0xff]
      %v369 = vld [vmem:[%s207 + $0x408] sm:$0xf]
      %v370 = vld [vmem:[%s207 + $0x40c] sm:$0xff]
      %v371 = vld [vmem:[%s207 + $0x414] sm:$0xff]
      %v372 = vld [vmem:[%s207 + $0x41c] sm:$0xff]
      %v373 = vld [vmem:[%s207 + $0x424] sm:$0xf]
      %v374 = vld [vmem:[%s207 + $0x428] sm:$0xff]
      %v375 = vld [vmem:[%s207 + $0x430] sm:$0xff]
      %v376 = vld [vmem:[%s207 + $0x438] sm:$0xff]
      %v377 = vld [vmem:[%s207 + $0x440] sm:$0xf]
      %v378 = vld [vmem:[%s207 + $0x444] sm:$0xff]
      %v379 = vld [vmem:[%s207 + $0x44c] sm:$0xff]
      %v380 = vld [vmem:[%s207 + $0x454] sm:$0xff]
      %v381 = vld [vmem:[%s207 + $0x45c] sm:$0xf]
      %v382 = vld [vmem:[%s1] sm:$0xf]
      %v383 = vld [vmem:[%s1 + $0x4] sm:$0xf]
      %v384 = vld [vmem:[%s1 + $0x8] sm:$0xf]
      %v385 = vld [vmem:[%s1 + $0xc] sm:$0xf]
      %v386 = vld [vmem:[%s1 + $0x10] sm:$0xf]
      %v387 = vld [vmem:[%s1 + $0x14] sm:$0xf]
      %v388 = vld [vmem:[%s1 + $0x18] sm:$0xf]
      %v389 = vld [vmem:[%s1 + $0x1c] sm:$0xf]
      %v390 = vld [vmem:[%s1 + $0x20] sm:$0xf]
      %v391 = vld [vmem:[%s1 + $0x24] sm:$0xf]
      %v392 = vld [vmem:[%s1 + $0x28] sm:$0xf]
      %v393 = vld [vmem:[%s1 + $0x2c] sm:$0xf]
      %v394 = vld [vmem:[%s1 + $0x30] sm:$0xf]
      %v395 = vld [vmem:[%s1 + $0x34] sm:$0xf]
      %v396 = vld [vmem:[%s1 + $0x38] sm:$0xf]
      %v397 = vld [vmem:[%s1 + $0x3c] sm:$0xf]
      %v398 = vld [vmem:[%s1 + $0x40] sm:$0xf]
      %v399 = vld [vmem:[%s1 + $0x44] sm:$0xf]
      %v400 = vld [vmem:[%s1 + $0x48] sm:$0xf]
      %v401 = vld [vmem:[%s1 + $0x4c] sm:$0xf]
      %v402 = vld [vmem:[%s1 + $0x50] sm:$0xf]
      %v403 = vld [vmem:[%s1 + $0x54] sm:$0xf]
      %v404 = vld [vmem:[%s1 + $0x58] sm:$0xf]
      %v405 = vld [vmem:[%s1 + $0x5c] sm:$0xf]
      %v406 = vld [vmem:[%s1 + $0x60] sm:$0xf]
      %v407 = vld [vmem:[%s1 + $0x64] sm:$0xf]
      %v408 = vld [vmem:[%s1 + $0x68] sm:$0xf]
      %v409 = vld [vmem:[%s1 + $0x6c] sm:$0xf]
      %v410 = vld [vmem:[%s1 + $0x70] sm:$0xf]
      %v411 = vld [vmem:[%s1 + $0x74] sm:$0xf]
      %v412 = vld [vmem:[%s1 + $0x78] sm:$0xf]
      %v413 = vld [vmem:[%s1 + $0x7c] sm:$0xf]
      %v414 = vld [vmem:[%s1 + $0x80] sm:$0xf]
      %v415 = vld [vmem:[%s1 + $0x84] sm:$0xf]
      %v416 = vld [vmem:[%s1 + $0x88] sm:$0xf]
      %v417 = vld [vmem:[%s1 + $0x8c] sm:$0xf]
      %v418 = vld [vmem:[%s1 + $0x90] sm:$0xf]
      %v419 = vld [vmem:[%s1 + $0x94] sm:$0xf]
      %v420 = vld [vmem:[%s1 + $0x98] sm:$0xf]
      %v421 = vld [vmem:[%s1 + $0x9c] sm:$0xf]
      %v422 = vld [vmem:[%s1 + $0xa0] sm:$0xf]
      %v423 = vld [vmem:[%s1 + $0xa4] sm:$0xf]
      %v424 = vld [vmem:[%s1 + $0xa8] sm:$0xf]
      %v425 = vld [vmem:[%s1 + $0xac] sm:$0xf]
      %v426 = vld [vmem:[%s1 + $0xb0] sm:$0xf]
      %v427 = vld [vmem:[%s1 + $0xb4] sm:$0xf]
      %v428 = vld [vmem:[%s1 + $0xb8] sm:$0xf]
      %v429 = vld [vmem:[%s1 + $0xbc] sm:$0xf]
      %v430 = vld [vmem:[%s1 + $0xc0] sm:$0xf]
      %v431 = vld [vmem:[%s1 + $0xc4] sm:$0xf]
      %v432 = vld [vmem:[%s1 + $0xc8] sm:$0xf]
      %v433 = vld [vmem:[%s1 + $0xcc] sm:$0xf]
      %v434 = vld [vmem:[%s1 + $0xd0] sm:$0xf]
      %v435 = vld [vmem:[%s1 + $0xd4] sm:$0xf]
      %v436 = vld [vmem:[%s1 + $0xd8] sm:$0xf]
      %v437 = vld [vmem:[%s1 + $0xdc] sm:$0xf]
      %v438 = vld [vmem:[%s1 + $0xe0] sm:$0xf]
      %v439 = vld [vmem:[%s1 + $0xe4] sm:$0xf]
      %v440 = vld [vmem:[%s1 + $0xe8] sm:$0xf]
      %v441 = vld [vmem:[%s1 + $0xec] sm:$0xf]
      %v442 = vld [vmem:[%s1 + $0xf0] sm:$0xf]
      %v443 = vld [vmem:[%s1 + $0xf4] sm:$0xf]
      %v444 = vld [vmem:[%s1 + $0xf8] sm:$0xf]
      %v445 = vld [vmem:[%s1 + $0xfc] sm:$0xf]
      %v446 = vld [vmem:[%s1 + $0x100] sm:$0xf]
      %v447 = vld [vmem:[%s1 + $0x104] sm:$0xf]
      %v448 = vld [vmem:[%s1 + $0x108] sm:$0xf]
      %v449 = vld [vmem:[%s1 + $0x10c] sm:$0xf]
      %v450 = vld [vmem:[%s1 + $0x110] sm:$0xf]
      %v451 = vld [vmem:[%s1 + $0x114] sm:$0xf]
      %v452 = vld [vmem:[%s1 + $0x118] sm:$0xf]
      %v453 = vld [vmem:[%s1 + $0x11c] sm:$0xf]
      %v454 = vld [vmem:[%s1 + $0x120] sm:$0xf]
      %v455 = vld [vmem:[%s1 + $0x124] sm:$0xf]
      %v456 = vld [vmem:[%s1 + $0x128] sm:$0xf]
      %v457 = vld [vmem:[%s1 + $0x12c] sm:$0xf]
      %v458 = vld [vmem:[%s1 + $0x130] sm:$0xf]
      %v459 = vld [vmem:[%s1 + $0x134] sm:$0xf]
      %v460 = vld [vmem:[%s1 + $0x138] sm:$0xf]
      %v461 = vld [vmem:[%s1 + $0x13c] sm:$0xf]
      %v462 = vld [vmem:[%s1 + $0x140] sm:$0xf]
      %v463 = vld [vmem:[%s1 + $0x144] sm:$0xf]
      %v464 = vld [vmem:[%s1 + $0x148] sm:$0xf]
      %v465 = vld [vmem:[%s1 + $0x14c] sm:$0xf]
      %v466 = vld [vmem:[%s1 + $0x150] sm:$0xf]
      %v467 = vld [vmem:[%s1 + $0x154] sm:$0xf]
      %v468 = vld [vmem:[%s1 + $0x158] sm:$0xf]
      %v469 = vld [vmem:[%s1 + $0x15c] sm:$0xf]
      %v470 = vld [vmem:[%s1 + $0x160] sm:$0xf]
      %v471 = vld [vmem:[%s1 + $0x164] sm:$0xf]
      %v472 = vld [vmem:[%s1 + $0x168] sm:$0xf]
      %v473 = vld [vmem:[%s1 + $0x16c] sm:$0xf]
      %v474 = vld [vmem:[%s1 + $0x170] sm:$0xf]
      %v475 = vld [vmem:[%s1 + $0x174] sm:$0xf]
      %v476 = vld [vmem:[%s1 + $0x178] sm:$0xf]
      %v477 = vld [vmem:[%s1 + $0x17c] sm:$0xf]
      %v478 = vld [vmem:[%s1 + $0x180] sm:$0xf]
      %v479 = vld [vmem:[%s1 + $0x184] sm:$0xf]
      %v480 = vld [vmem:[%s1 + $0x188] sm:$0xf]
      %v481 = vld [vmem:[%s1 + $0x18c] sm:$0xf]
      %v482 = vld [vmem:[%s1 + $0x190] sm:$0xf]
      %v483 = vld [vmem:[%s1 + $0x194] sm:$0xf]
      %v484 = vld [vmem:[%s1 + $0x198] sm:$0xf]
      %v485 = vld [vmem:[%s1 + $0x19c] sm:$0xf]
      %v486 = vld [vmem:[%s1 + $0x1a0] sm:$0xf]
      %v487 = vld [vmem:[%s1 + $0x1a4] sm:$0xf]
      %v488 = vld [vmem:[%s1 + $0x1a8] sm:$0xf]
      %v489 = vld [vmem:[%s1 + $0x1ac] sm:$0xf]
      %v490 = vld [vmem:[%s1 + $0x1b0] sm:$0xf]
      %v491 = vld [vmem:[%s1 + $0x1b4] sm:$0xf]
      %v492 = vld [vmem:[%s1 + $0x1b8] sm:$0xf]
      %v493 = vld [vmem:[%s1 + $0x1bc] sm:$0xf]
      %v654 = vunpack.c.l.b16 %v222
      %v655 = vunpack.c.h.b16 %v222
      %v656 = vunpack.c.l.b16 %v223
      %v657 = vunpack.c.h.b16 %v223
      %v658 = vunpack.c.l.b16 %v224
      %v659 = vunpack.c.h.b16 %v224
      %v660 = vunpack.c.l.b16 %v225
      %v661 = vunpack.c.l.b16 %v226
      %v662 = vunpack.c.h.b16 %v226
      %v663 = vunpack.c.l.b16 %v227
      %v664 = vunpack.c.h.b16 %v227
      %v665 = vunpack.c.l.b16 %v228
      %v666 = vunpack.c.h.b16 %v228
      %v667 = vunpack.c.l.b16 %v229
      %v668 = vunpack.c.l.b16 %v230
      %v669 = vunpack.c.h.b16 %v230
      %v670 = vunpack.c.l.b16 %v231
      %v671 = vunpack.c.h.b16 %v231
      %v672 = vunpack.c.l.b16 %v232
      %v673 = vunpack.c.h.b16 %v232
      %v674 = vunpack.c.l.b16 %v233
      %v675 = vunpack.c.l.b16 %v234
      %v676 = vunpack.c.h.b16 %v234
      %v677 = vunpack.c.l.b16 %v235
      %v678 = vunpack.c.h.b16 %v235
      %v679 = vunpack.c.l.b16 %v236
      %v680 = vunpack.c.h.b16 %v236
      %v681 = vunpack.c.l.b16 %v237
      %v682 = vunpack.c.l.b16 %v238
      %v683 = vunpack.c.h.b16 %v238
      %v684 = vunpack.c.l.b16 %v239
      %v685 = vunpack.c.h.b16 %v239
      %v686 = vunpack.c.l.b16 %v240
      %v687 = vunpack.c.h.b16 %v240
      %v688 = vunpack.c.l.b16 %v241
      %v689 = vunpack.c.l.b16 %v242
      %v690 = vunpack.c.h.b16 %v242
      %v691 = vunpack.c.l.b16 %v243
      %v692 = vunpack.c.h.b16 %v243
      %v693 = vunpack.c.l.b16 %v244
      %v694 = vunpack.c.h.b16 %v244
      %v695 = vunpack.c.l.b16 %v245
      %v696 = vunpack.c.l.b16 %v246
      %v697 = vunpack.c.h.b16 %v246
      %v698 = vunpack.c.l.b16 %v247
      %v699 = vunpack.c.h.b16 %v247
      %v700 = vunpack.c.l.b16 %v248
      %v701 = vunpack.c.h.b16 %v248
      %v702 = vunpack.c.l.b16 %v249
      %v703 = vunpack.c.l.b16 %v250
      %v704 = vunpack.c.h.b16 %v250
      %v705 = vunpack.c.l.b16 %v251
      %v706 = vunpack.c.h.b16 %v251
      %v707 = vunpack.c.l.b16 %v252
      %v708 = vunpack.c.h.b16 %v252
      %v709 = vunpack.c.l.b16 %v253
      %v710 = vunpack.c.l.b16 %v254
      %v711 = vunpack.c.h.b16 %v254
      %v712 = vunpack.c.l.b16 %v255
      %v713 = vunpack.c.h.b16 %v255
      %v714 = vunpack.c.l.b16 %v256
      %v715 = vunpack.c.h.b16 %v256
      %v716 = vunpack.c.l.b16 %v257
      %v717 = vunpack.c.l.b16 %v258
      %v718 = vunpack.c.h.b16 %v258
      %v719 = vunpack.c.l.b16 %v259
      %v720 = vunpack.c.h.b16 %v259
      %v721 = vunpack.c.l.b16 %v260
      %v722 = vunpack.c.h.b16 %v260
      %v723 = vunpack.c.l.b16 %v261
      %v724 = vunpack.c.l.b16 %v262
      %v725 = vunpack.c.h.b16 %v262
      %v726 = vunpack.c.l.b16 %v263
      %v727 = vunpack.c.h.b16 %v263
      %v728 = vunpack.c.l.b16 %v264
      %v729 = vunpack.c.h.b16 %v264
      %v730 = vunpack.c.l.b16 %v265
      %v731 = vunpack.c.l.b16 %v266
      %v732 = vunpack.c.h.b16 %v266
      %v733 = vunpack.c.l.b16 %v267
      %v734 = vunpack.c.h.b16 %v267
      %v735 = vunpack.c.l.b16 %v268
      %v736 = vunpack.c.h.b16 %v268
      %v737 = vunpack.c.l.b16 %v269
      %v738 = vunpack.c.l.b16 %v270
      %v739 = vunpack.c.h.b16 %v270
      %v740 = vunpack.c.l.b16 %v271
      %v741 = vunpack.c.h.b16 %v271
      %v742 = vunpack.c.l.b16 %v272
      %v743 = vunpack.c.h.b16 %v272
      %v744 = vunpack.c.l.b16 %v273
      %v745 = vunpack.c.l.b16 %v274
      %v746 = vunpack.c.h.b16 %v274
      %v747 = vunpack.c.l.b16 %v275
      %v748 = vunpack.c.h.b16 %v275
      %v749 = vunpack.c.l.b16 %v276
      %v750 = vunpack.c.h.b16 %v276
      %v751 = vunpack.c.l.b16 %v277
      %v752 = vunpack.c.l.b16 %v278
      %v753 = vunpack.c.h.b16 %v278
      %v754 = vunpack.c.l.b16 %v279
      %v755 = vunpack.c.h.b16 %v279
      %v756 = vunpack.c.l.b16 %v280
      %v757 = vunpack.c.h.b16 %v280
      %v758 = vunpack.c.l.b16 %v281
      %v759 = vunpack.c.l.b16 %v282
      %v760 = vunpack.c.h.b16 %v282
      %v761 = vunpack.c.l.b16 %v283
      %v762 = vunpack.c.h.b16 %v283
      %v763 = vunpack.c.l.b16 %v284
      %v764 = vunpack.c.h.b16 %v284
      %v765 = vunpack.c.l.b16 %v285
      %v766 = vunpack.c.l.b16 %v286
      %v767 = vunpack.c.h.b16 %v286
      %v768 = vunpack.c.l.b16 %v287
      %v769 = vunpack.c.h.b16 %v287
      %v770 = vunpack.c.l.b16 %v288
      %v771 = vunpack.c.h.b16 %v288
      %v772 = vunpack.c.l.b16 %v289
      %v773 = vunpack.c.l.b16 %v290
      %v774 = vunpack.c.h.b16 %v290
      %v775 = vunpack.c.l.b16 %v291
      %v776 = vunpack.c.h.b16 %v291
      %v777 = vunpack.c.l.b16 %v292
      %v778 = vunpack.c.h.b16 %v292
      %v779 = vunpack.c.l.b16 %v293
      %v780 = vunpack.c.l.b16 %v294
      %v781 = vunpack.c.h.b16 %v294
      %v782 = vunpack.c.l.b16 %v295
      %v783 = vunpack.c.h.b16 %v295
      %v784 = vunpack.c.l.b16 %v296
      %v785 = vunpack.c.h.b16 %v296
      %v786 = vunpack.c.l.b16 %v297
      %v787 = vunpack.c.l.b16 %v298
      %v788 = vunpack.c.h.b16 %v298
      %v789 = vunpack.c.l.b16 %v299
      %v790 = vunpack.c.h.b16 %v299
      %v791 = vunpack.c.l.b16 %v300
      %v792 = vunpack.c.h.b16 %v300
      %v793 = vunpack.c.l.b16 %v301
      %v794 = vunpack.c.l.b16 %v302
      %v795 = vunpack.c.h.b16 %v302
      %v796 = vunpack.c.l.b16 %v303
      %v797 = vunpack.c.h.b16 %v303
      %v798 = vunpack.c.l.b16 %v304
      %v799 = vunpack.c.h.b16 %v304
      %v800 = vunpack.c.l.b16 %v305
      %v801 = vunpack.c.l.b16 %v306
      %v802 = vunpack.c.h.b16 %v306
      %v803 = vunpack.c.l.b16 %v307
      %v804 = vunpack.c.h.b16 %v307
      %v805 = vunpack.c.l.b16 %v308
      %v806 = vunpack.c.h.b16 %v308
      %v807 = vunpack.c.l.b16 %v309
      %v808 = vunpack.c.l.b16 %v310
      %v809 = vunpack.c.h.b16 %v310
      %v810 = vunpack.c.l.b16 %v311
      %v811 = vunpack.c.h.b16 %v311
      %v812 = vunpack.c.l.b16 %v312
      %v813 = vunpack.c.h.b16 %v312
      %v814 = vunpack.c.l.b16 %v313
      %v815 = vunpack.c.l.b16 %v314
      %v816 = vunpack.c.h.b16 %v314
      %v817 = vunpack.c.l.b16 %v315
      %v818 = vunpack.c.h.b16 %v315
      %v819 = vunpack.c.l.b16 %v316
      %v820 = vunpack.c.h.b16 %v316
      %v821 = vunpack.c.l.b16 %v317
      %v822 = vunpack.c.l.b16 %v318
      %v823 = vunpack.c.h.b16 %v318
      %v824 = vunpack.c.l.b16 %v319
      %v825 = vunpack.c.h.b16 %v319
      %v826 = vunpack.c.l.b16 %v320
      %v827 = vunpack.c.h.b16 %v320
      %v828 = vunpack.c.l.b16 %v321
      %v829 = vunpack.c.l.b16 %v322
      %v830 = vunpack.c.h.b16 %v322
      %v831 = vunpack.c.l.b16 %v323
      %v832 = vunpack.c.h.b16 %v323
      %v833 = vunpack.c.l.b16 %v324
      %v834 = vunpack.c.h.b16 %v324
      %v835 = vunpack.c.l.b16 %v325
      %v836 = vunpack.c.l.b16 %v326
      %v837 = vunpack.c.h.b16 %v326
      %v838 = vunpack.c.l.b16 %v327
      %v839 = vunpack.c.h.b16 %v327
      %v840 = vunpack.c.l.b16 %v328
      %v841 = vunpack.c.h.b16 %v328
      %v842 = vunpack.c.l.b16 %v329
      %v843 = vunpack.c.l.b16 %v330
      %v844 = vunpack.c.h.b16 %v330
      %v845 = vunpack.c.l.b16 %v331
      %v846 = vunpack.c.h.b16 %v331
      %v847 = vunpack.c.l.b16 %v332
      %v848 = vunpack.c.h.b16 %v332
      %v849 = vunpack.c.l.b16 %v333
      %v850 = vunpack.c.l.b16 %v334
      %v851 = vunpack.c.h.b16 %v334
      %v852 = vunpack.c.l.b16 %v335
      %v853 = vunpack.c.h.b16 %v335
      %v854 = vunpack.c.l.b16 %v336
      %v855 = vunpack.c.h.b16 %v336
      %v856 = vunpack.c.l.b16 %v337
      %v857 = vunpack.c.l.b16 %v338
      %v858 = vunpack.c.h.b16 %v338
      %v859 = vunpack.c.l.b16 %v339
      %v860 = vunpack.c.h.b16 %v339
      %v861 = vunpack.c.l.b16 %v340
      %v862 = vunpack.c.h.b16 %v340
      %v863 = vunpack.c.l.b16 %v341
      %v864 = vunpack.c.l.b16 %v342
      %v865 = vunpack.c.h.b16 %v342
      %v866 = vunpack.c.l.b16 %v343
      %v867 = vunpack.c.h.b16 %v343
      %v868 = vunpack.c.l.b16 %v344
      %v869 = vunpack.c.h.b16 %v344
      %v870 = vunpack.c.l.b16 %v345
      %v871 = vunpack.c.l.b16 %v346
      %v872 = vunpack.c.h.b16 %v346
      %v873 = vunpack.c.l.b16 %v347
      %v874 = vunpack.c.h.b16 %v347
      %v875 = vunpack.c.l.b16 %v348
      %v876 = vunpack.c.h.b16 %v348
      %v877 = vunpack.c.l.b16 %v349
      %v878 = vunpack.c.l.b16 %v350
      %v879 = vunpack.c.h.b16 %v350
      %v880 = vunpack.c.l.b16 %v351
      %v881 = vunpack.c.h.b16 %v351
      %v882 = vunpack.c.l.b16 %v352
      %v883 = vunpack.c.h.b16 %v352
      %v884 = vunpack.c.l.b16 %v353
      %v885 = vunpack.c.l.b16 %v354
      %v886 = vunpack.c.h.b16 %v354
      %v887 = vunpack.c.l.b16 %v355
      %v888 = vunpack.c.h.b16 %v355
      %v889 = vunpack.c.l.b16 %v356
      %v890 = vunpack.c.h.b16 %v356
      %v891 = vunpack.c.l.b16 %v357
      %v892 = vunpack.c.l.b16 %v358
      %v893 = vunpack.c.h.b16 %v358
      %v894 = vunpack.c.l.b16 %v359
      %v895 = vunpack.c.h.b16 %v359
      %v896 = vunpack.c.l.b16 %v360
      %v897 = vunpack.c.h.b16 %v360
      %v898 = vunpack.c.l.b16 %v361
      %v899 = vunpack.c.l.b16 %v362
      %v900 = vunpack.c.h.b16 %v362
      %v901 = vunpack.c.l.b16 %v363
      %v902 = vunpack.c.h.b16 %v363
      %v903 = vunpack.c.l.b16 %v364
      %v904 = vunpack.c.h.b16 %v364
      %v905 = vunpack.c.l.b16 %v365
      %v906 = vunpack.c.l.b16 %v366
      %v907 = vunpack.c.h.b16 %v366
      %v908 = vunpack.c.l.b16 %v367
      %v909 = vunpack.c.h.b16 %v367
      %v910 = vunpack.c.l.b16 %v368
      %v911 = vunpack.c.h.b16 %v368
      %v912 = vunpack.c.l.b16 %v369
      %v913 = vunpack.c.l.b16 %v370
      %v914 = vunpack.c.h.b16 %v370
      %v915 = vunpack.c.l.b16 %v371
      %v916 = vunpack.c.h.b16 %v371
      %v917 = vunpack.c.l.b16 %v372
      %v918 = vunpack.c.h.b16 %v372
      %v919 = vunpack.c.l.b16 %v373
      %v920 = vunpack.c.l.b16 %v374
      %v921 = vunpack.c.h.b16 %v374
      %v922 = vunpack.c.l.b16 %v375
      %v923 = vunpack.c.h.b16 %v375
      %v924 = vunpack.c.l.b16 %v376
      %v925 = vunpack.c.h.b16 %v376
      %v926 = vunpack.c.l.b16 %v377
      %v927 = vunpack.c.l.b16 %v378
      %v928 = vunpack.c.h.b16 %v378
      %v929 = vunpack.c.l.b16 %v379
      %v930 = vunpack.c.h.b16 %v379
      %v931 = vunpack.c.l.b16 %v380
      %v932 = vunpack.c.h.b16 %v380
      %v933 = vunpack.c.l.b16 %v381
      %v934 = vpack.c.b16 %v661, %v654
      %v935 = vpack.c.b16 %v662, %v655
      %v936 = vpack.c.b16 %v663, %v656
      %v937 = vpack.c.b16 %v664, %v657
      %v938 = vpack.c.b16 %v665, %v658
      %v939 = vpack.c.b16 %v666, %v659
      %v940 = vpack.c.b16 %v667, %v660
      %v941 = vpack.c.b16 %v675, %v668
      %v942 = vpack.c.b16 %v676, %v669
      %v943 = vpack.c.b16 %v677, %v670
      %v944 = vpack.c.b16 %v678, %v671
      %v945 = vpack.c.b16 %v679, %v672
      %v946 = vpack.c.b16 %v680, %v673
      %v947 = vpack.c.b16 %v681, %v674
      %v948 = vpack.c.b16 %v689, %v682
      %v949 = vpack.c.b16 %v690, %v683
      %v950 = vpack.c.b16 %v691, %v684
      %v951 = vpack.c.b16 %v692, %v685
      %v952 = vpack.c.b16 %v693, %v686
      %v953 = vpack.c.b16 %v694, %v687
      %v954 = vpack.c.b16 %v695, %v688
      %v955 = vpack.c.b16 %v703, %v696
      %v956 = vpack.c.b16 %v704, %v697
      %v957 = vpack.c.b16 %v705, %v698
      %v958 = vpack.c.b16 %v706, %v699
      %v959 = vpack.c.b16 %v707, %v700
      %v960 = vpack.c.b16 %v708, %v701
      %v961 = vpack.c.b16 %v709, %v702
      %v962 = vpack.c.b16 %v717, %v710
      %v963 = vpack.c.b16 %v718, %v711
      %v964 = vpack.c.b16 %v719, %v712
      %v965 = vpack.c.b16 %v720, %v713
      %v966 = vpack.c.b16 %v721, %v714
      %v967 = vpack.c.b16 %v722, %v715
      %v968 = vpack.c.b16 %v723, %v716
      %v969 = vpack.c.b16 %v731, %v724
      %v970 = vpack.c.b16 %v732, %v725
      %v971 = vpack.c.b16 %v733, %v726
      %v972 = vpack.c.b16 %v734, %v727
      %v973 = vpack.c.b16 %v735, %v728
      %v974 = vpack.c.b16 %v736, %v729
      %v975 = vpack.c.b16 %v737, %v730
      %v976 = vpack.c.b16 %v745, %v738
      %v977 = vpack.c.b16 %v746, %v739
      %v978 = vpack.c.b16 %v747, %v740
      %v979 = vpack.c.b16 %v748, %v741
      %v980 = vpack.c.b16 %v749, %v742
      %v981 = vpack.c.b16 %v750, %v743
      %v982 = vpack.c.b16 %v751, %v744
      %v983 = vpack.c.b16 %v759, %v752
      %v984 = vpack.c.b16 %v760, %v753
      %v985 = vpack.c.b16 %v761, %v754
      %v986 = vpack.c.b16 %v762, %v755
      %v987 = vpack.c.b16 %v763, %v756
      %v988 = vpack.c.b16 %v764, %v757
      %v989 = vpack.c.b16 %v765, %v758
      %v990 = vpack.c.b16 %v773, %v766
      %v991 = vpack.c.b16 %v774, %v767
      %v992 = vpack.c.b16 %v775, %v768
      %v993 = vpack.c.b16 %v776, %v769
      %v994 = vpack.c.b16 %v777, %v770
      %v995 = vpack.c.b16 %v778, %v771
      %v996 = vpack.c.b16 %v779, %v772
      %v997 = vpack.c.b16 %v787, %v780
      %v998 = vpack.c.b16 %v788, %v781
      %v999 = vpack.c.b16 %v789, %v782
      %v1000 = vpack.c.b16 %v790, %v783
      %v1001 = vpack.c.b16 %v791, %v784
      %v1002 = vpack.c.b16 %v792, %v785
      %v1003 = vpack.c.b16 %v793, %v786
      %v1004 = vpack.c.b16 %v801, %v794
      %v1005 = vpack.c.b16 %v802, %v795
      %v1006 = vpack.c.b16 %v803, %v796
      %v1007 = vpack.c.b16 %v804, %v797
      %v1008 = vpack.c.b16 %v805, %v798
      %v1009 = vpack.c.b16 %v806, %v799
      %v1010 = vpack.c.b16 %v807, %v800
      %v1011 = vpack.c.b16 %v815, %v808
      %v1012 = vpack.c.b16 %v816, %v809
      %v1013 = vpack.c.b16 %v817, %v810
      %v1014 = vpack.c.b16 %v818, %v811
      %v1015 = vpack.c.b16 %v819, %v812
      %v1016 = vpack.c.b16 %v820, %v813
      %v1017 = vpack.c.b16 %v821, %v814
      %v1018 = vpack.c.b16 %v829, %v822
      %v1019 = vpack.c.b16 %v830, %v823
      %v1020 = vpack.c.b16 %v831, %v824
      %v1021 = vpack.c.b16 %v832, %v825
      %v1022 = vpack.c.b16 %v833, %v826
      %v1023 = vpack.c.b16 %v834, %v827
      %v1024 = vpack.c.b16 %v835, %v828
      %v1025 = vpack.c.b16 %v843, %v836
      %v1026 = vpack.c.b16 %v844, %v837
      %v1027 = vpack.c.b16 %v845, %v838
      %v1028 = vpack.c.b16 %v846, %v839
      %v1029 = vpack.c.b16 %v847, %v840
      %v1030 = vpack.c.b16 %v848, %v841
      %v1031 = vpack.c.b16 %v849, %v842
      %v1032 = vpack.c.b16 %v857, %v850
      %v1033 = vpack.c.b16 %v858, %v851
      %v1034 = vpack.c.b16 %v859, %v852
      %v1035 = vpack.c.b16 %v860, %v853
      %v1036 = vpack.c.b16 %v861, %v854
      %v1037 = vpack.c.b16 %v862, %v855
      %v1038 = vpack.c.b16 %v863, %v856
      %v1039 = vpack.c.b16 %v871, %v864
      %v1040 = vpack.c.b16 %v872, %v865
      %v1041 = vpack.c.b16 %v873, %v866
      %v1042 = vpack.c.b16 %v874, %v867
      %v1043 = vpack.c.b16 %v875, %v868
      %v1044 = vpack.c.b16 %v876, %v869
      %v1045 = vpack.c.b16 %v877, %v870
      %v1046 = vpack.c.b16 %v885, %v878
      %v1047 = vpack.c.b16 %v886, %v879
      %v1048 = vpack.c.b16 %v887, %v880
      %v1049 = vpack.c.b16 %v888, %v881
      %v1050 = vpack.c.b16 %v889, %v882
      %v1051 = vpack.c.b16 %v890, %v883
      %v1052 = vpack.c.b16 %v891, %v884
      %v1053 = vpack.c.b16 %v899, %v892
      %v1054 = vpack.c.b16 %v900, %v893
      %v1055 = vpack.c.b16 %v901, %v894
      %v1056 = vpack.c.b16 %v902, %v895
      %v1057 = vpack.c.b16 %v903, %v896
      %v1058 = vpack.c.b16 %v904, %v897
      %v1059 = vpack.c.b16 %v905, %v898
      %v1060 = vpack.c.b16 %v913, %v906
      %v1061 = vpack.c.b16 %v914, %v907
      %v1062 = vpack.c.b16 %v915, %v908
      %v1063 = vpack.c.b16 %v916, %v909
      %v1064 = vpack.c.b16 %v917, %v910
      %v1065 = vpack.c.b16 %v918, %v911
      %v1066 = vpack.c.b16 %v919, %v912
      %v1067 = vpack.c.b16 %v927, %v920
      %v1068 = vpack.c.b16 %v928, %v921
      %v1069 = vpack.c.b16 %v929, %v922
      %v1070 = vpack.c.b16 %v930, %v923
      %v1071 = vpack.c.b16 %v931, %v924
      %v1072 = vpack.c.b16 %v932, %v925
      %v1073 = vpack.c.b16 %v933, %v926
      %v1326 = vunpack.c.l.b16 %v382
      %v1327 = vunpack.c.l.b16 %v383
      %v1328 = vunpack.c.l.b16 %v384
      %v1329 = vunpack.c.l.b16 %v385
      %v1330 = vunpack.c.l.b16 %v386
      %v1331 = vunpack.c.l.b16 %v387
      %v1332 = vunpack.c.l.b16 %v388
      %v1333 = vunpack.c.l.b16 %v389
      %v1334 = vunpack.c.l.b16 %v390
      %v1335 = vunpack.c.l.b16 %v391
      %v1336 = vunpack.c.l.b16 %v392
      %v1337 = vunpack.c.l.b16 %v393
      %v1338 = vunpack.c.l.b16 %v394
      %v1339 = vunpack.c.l.b16 %v395
      %v1340 = vunpack.c.l.b16 %v396
      %v1341 = vunpack.c.l.b16 %v397
      %v1342 = vunpack.c.l.b16 %v398
      %v1343 = vunpack.c.l.b16 %v399
      %v1344 = vunpack.c.l.b16 %v400
      %v1345 = vunpack.c.l.b16 %v401
      %v1346 = vunpack.c.l.b16 %v402
      %v1347 = vunpack.c.l.b16 %v403
      %v1348 = vunpack.c.l.b16 %v404
      %v1349 = vunpack.c.l.b16 %v405
      %v1350 = vunpack.c.l.b16 %v406
      %v1351 = vunpack.c.l.b16 %v407
      %v1352 = vunpack.c.l.b16 %v408
      %v1353 = vunpack.c.l.b16 %v409
      %v1354 = vunpack.c.l.b16 %v410
      %v1355 = vunpack.c.l.b16 %v411
      %v1356 = vunpack.c.l.b16 %v412
      %v1357 = vunpack.c.l.b16 %v413
      %v1358 = vunpack.c.l.b16 %v414
      %v1359 = vunpack.c.l.b16 %v415
      %v1360 = vunpack.c.l.b16 %v416
      %v1361 = vunpack.c.l.b16 %v417
      %v1362 = vunpack.c.l.b16 %v418
      %v1363 = vunpack.c.l.b16 %v419
      %v1364 = vunpack.c.l.b16 %v420
      %v1365 = vunpack.c.l.b16 %v421
      %v1366 = vunpack.c.l.b16 %v422
      %v1367 = vunpack.c.l.b16 %v423
      %v1368 = vunpack.c.l.b16 %v424
      %v1369 = vunpack.c.l.b16 %v425
      %v1370 = vunpack.c.l.b16 %v426
      %v1371 = vunpack.c.l.b16 %v427
      %v1372 = vunpack.c.l.b16 %v428
      %v1373 = vunpack.c.l.b16 %v429
      %v1374 = vunpack.c.l.b16 %v430
      %v1375 = vunpack.c.l.b16 %v431
      %v1376 = vunpack.c.l.b16 %v432
      %v1377 = vunpack.c.l.b16 %v433
      %v1378 = vunpack.c.l.b16 %v434
      %v1379 = vunpack.c.l.b16 %v435
      %v1380 = vunpack.c.l.b16 %v436
      %v1381 = vunpack.c.l.b16 %v437
      %v1382 = vunpack.c.l.b16 %v438
      %v1383 = vunpack.c.l.b16 %v439
      %v1384 = vunpack.c.l.b16 %v440
      %v1385 = vunpack.c.l.b16 %v441
      %v1386 = vunpack.c.l.b16 %v442
      %v1387 = vunpack.c.l.b16 %v443
      %v1388 = vunpack.c.l.b16 %v444
      %v1389 = vunpack.c.l.b16 %v445
      %v1390 = vunpack.c.l.b16 %v446
      %v1391 = vunpack.c.l.b16 %v447
      %v1392 = vunpack.c.l.b16 %v448
      %v1393 = vunpack.c.l.b16 %v449
      %v1394 = vunpack.c.l.b16 %v450
      %v1395 = vunpack.c.l.b16 %v451
      %v1396 = vunpack.c.l.b16 %v452
      %v1397 = vunpack.c.l.b16 %v453
      %v1398 = vunpack.c.l.b16 %v454
      %v1399 = vunpack.c.l.b16 %v455
      %v1400 = vunpack.c.l.b16 %v456
      %v1401 = vunpack.c.l.b16 %v457
      %v1402 = vunpack.c.l.b16 %v458
      %v1403 = vunpack.c.l.b16 %v459
      %v1404 = vunpack.c.l.b16 %v460
      %v1405 = vunpack.c.l.b16 %v461
      %v1406 = vunpack.c.l.b16 %v462
      %v1407 = vunpack.c.l.b16 %v463
      %v1408 = vunpack.c.l.b16 %v464
      %v1409 = vunpack.c.l.b16 %v465
      %v1410 = vunpack.c.l.b16 %v466
      %v1411 = vunpack.c.l.b16 %v467
      %v1412 = vunpack.c.l.b16 %v468
      %v1413 = vunpack.c.l.b16 %v469
      %v1414 = vunpack.c.l.b16 %v470
      %v1415 = vunpack.c.l.b16 %v471
      %v1416 = vunpack.c.l.b16 %v472
      %v1417 = vunpack.c.l.b16 %v473
      %v1418 = vunpack.c.l.b16 %v474
      %v1419 = vunpack.c.l.b16 %v475
      %v1420 = vunpack.c.l.b16 %v476
      %v1421 = vunpack.c.l.b16 %v477
      %v1422 = vunpack.c.l.b16 %v478
      %v1423 = vunpack.c.l.b16 %v479
      %v1424 = vunpack.c.l.b16 %v480
      %v1425 = vunpack.c.l.b16 %v481
      %v1426 = vunpack.c.l.b16 %v482
      %v1427 = vunpack.c.l.b16 %v483
      %v1428 = vunpack.c.l.b16 %v484
      %v1429 = vunpack.c.l.b16 %v485
      %v1430 = vunpack.c.l.b16 %v486
      %v1431 = vunpack.c.l.b16 %v487
      %v1432 = vunpack.c.l.b16 %v488
      %v1433 = vunpack.c.l.b16 %v489
      %v1434 = vunpack.c.l.b16 %v490
      %v1435 = vunpack.c.l.b16 %v491
      %v1436 = vunpack.c.l.b16 %v492
      %v1437 = vunpack.c.l.b16 %v493
      %v1438 = vpack.c.b16 %v1327, %v1326
      %v1439 = vpack.c.b16 %v1329, %v1328
      %v1440 = vpack.c.b16 %v1331, %v1330
      %v1441 = vpack.c.b16 %v1333, %v1332
      %v1442 = vpack.c.b16 %v1335, %v1334
      %v1443 = vpack.c.b16 %v1337, %v1336
      %v1444 = vpack.c.b16 %v1339, %v1338
      %v1445 = vpack.c.b16 %v1341, %v1340
      %v1446 = vpack.c.b16 %v1343, %v1342
      %v1447 = vpack.c.b16 %v1345, %v1344
      %v1448 = vpack.c.b16 %v1347, %v1346
      %v1449 = vpack.c.b16 %v1349, %v1348
      %v1450 = vpack.c.b16 %v1351, %v1350
      %v1451 = vpack.c.b16 %v1353, %v1352
      %v1452 = vpack.c.b16 %v1355, %v1354
      %v1453 = vpack.c.b16 %v1357, %v1356
      %v1454 = vpack.c.b16 %v1359, %v1358
      %v1455 = vpack.c.b16 %v1361, %v1360
      %v1456 = vpack.c.b16 %v1363, %v1362
      %v1457 = vpack.c.b16 %v1365, %v1364
      %v1458 = vpack.c.b16 %v1367, %v1366
      %v1459 = vpack.c.b16 %v1369, %v1368
      %v1460 = vpack.c.b16 %v1371, %v1370
      %v1461 = vpack.c.b16 %v1373, %v1372
      %v1462 = vpack.c.b16 %v1375, %v1374
      %v1463 = vpack.c.b16 %v1377, %v1376
      %v1464 = vpack.c.b16 %v1379, %v1378
      %v1465 = vpack.c.b16 %v1381, %v1380
      %v1466 = vpack.c.b16 %v1383, %v1382
      %v1467 = vpack.c.b16 %v1385, %v1384
      %v1468 = vpack.c.b16 %v1387, %v1386
      %v1469 = vpack.c.b16 %v1389, %v1388
      %v1470 = vpack.c.b16 %v1391, %v1390
      %v1471 = vpack.c.b16 %v1393, %v1392
      %v1472 = vpack.c.b16 %v1395, %v1394
      %v1473 = vpack.c.b16 %v1397, %v1396
      %v1474 = vpack.c.b16 %v1399, %v1398
      %v1475 = vpack.c.b16 %v1401, %v1400
      %v1476 = vpack.c.b16 %v1403, %v1402
      %v1477 = vpack.c.b16 %v1405, %v1404
      %v1478 = vpack.c.b16 %v1407, %v1406
      %v1479 = vpack.c.b16 %v1409, %v1408
      %v1480 = vpack.c.b16 %v1411, %v1410
      %v1481 = vpack.c.b16 %v1413, %v1412
      %v1482 = vpack.c.b16 %v1415, %v1414
      %v1483 = vpack.c.b16 %v1417, %v1416
      %v1484 = vpack.c.b16 %v1419, %v1418
      %v1485 = vpack.c.b16 %v1421, %v1420
      %v1486 = vpack.c.b16 %v1423, %v1422
      %v1487 = vpack.c.b16 %v1425, %v1424
      %v1488 = vpack.c.b16 %v1427, %v1426
      %v1489 = vpack.c.b16 %v1429, %v1428
      %v1490 = vpack.c.b16 %v1431, %v1430
      %v1491 = vpack.c.b16 %v1433, %v1432
      %v1492 = vpack.c.b16 %v1435, %v1434
      %v1493 = vpack.c.b16 %v1437, %v1436
      %1550 = vmatprep.subr.bf16.mxu0 0
      %1551 = vmatpush1.bf16.msra.mxu0 %v1438
      %1552 = vmatprep.subr.bf16.mxu0 0
      %1553 = vmatpush1.bf16.msra.mxu0 %v1439
      %1554 = vmatprep.subr.bf16.mxu0 0
      %1555 = vmatpush1.bf16.msra.mxu0 %v1440
      %1556 = vmatprep.subr.bf16.mxu0 0
      %1557 = vmatpush1.bf16.msra.mxu0 %v1441
      %1558 = vmatprep.subr.bf16.mxu0 0
      %1559 = vmatpush1.bf16.msra.mxu0 %v1442
      %1560 = vmatprep.subr.bf16.mxu0 0
      %1561 = vmatpush1.bf16.msra.mxu0 %v1443
      %1562 = vmatprep.subr.bf16.mxu0 0
      %1563 = vmatpush1.bf16.msra.mxu0 %v1444
      %1564 = vmatprep.subr.bf16.mxu0 0
      %1565 = vmatpush1.bf16.msra.mxu0 %v1445
      %1566 = vmatprep.subr.bf16.mxu0 0
      %1567 = vmatpush1.bf16.msra.mxu0 %v1446
      %1568 = vmatprep.subr.bf16.mxu0 0
      %1569 = vmatpush1.bf16.msra.mxu0 %v1447
      %1570 = vmatprep.subr.bf16.mxu0 0
      %1571 = vmatpush1.bf16.msra.mxu0 %v1448
      %1572 = vmatprep.subr.bf16.mxu0 0
      %1573 = vmatpush1.bf16.msra.mxu0 %v1449
      %1574 = vmatprep.subr.bf16.mxu0 0
      %1575 = vmatpush1.bf16.msra.mxu0 %v1450
      %1576 = vmatprep.subr.bf16.mxu0 0
      %1577 = vmatpush1.bf16.msra.mxu0 %v1451
      %1578 = vmatprep.subr.bf16.mxu0 0
      %1579 = vmatpush1.bf16.msra.mxu0 %v1452
      %1580 = vmatprep.subr.bf16.mxu0 0
      %1581 = vmatpush1.bf16.msra.mxu0 %v1453
      %1582 = vmatprep.mubr.bf16.mxu0 %v935
      %1583 = vmatmul.mubr.bf16.gmra.mrb[0].mxu0 %v934
      %v1584 = vpop.f32.mrb[0].mxu0
      %v1585 = vadd.f32 0.0, %v1584
      %v1586 = vpop.f32.mrb[0].mxu0
      %v1587 = vpop.f32.mrb[0].mxu0
      %v1588 = vadd.f32 0.0, %v1587
      %v1589 = vpop.f32.mrb[0].mxu0
      %1590 = vmatprep.mubr.bf16.mxu0 %v942
      %1591 = vmatmul.mubr.bf16.gmra.mrb[0].mxu0 %v941
      %v1592 = vpop.f32.mrb[0].mxu0
      %v1593 = vadd.f32 0.0, %v1592
      %v1594 = vpop.f32.mrb[0].mxu0
      %v1595 = vpop.f32.mrb[0].mxu0
      %v1596 = vadd.f32 0.0, %v1595
      %v1597 = vpop.f32.mrb[0].mxu0
      %1598 = vmatprep.mubr.bf16.mxu0 %v949
      %1599 = vmatmul.mubr.bf16.gmra.mrb[0].mxu0 %v948
      %v1600 = vpop.f32.mrb[0].mxu0
      %v1601 = vadd.f32 0.0, %v1600
      %v1602 = vpop.f32.mrb[0].mxu0
      %v1603 = vpop.f32.mrb[0].mxu0
      %v1604 = vadd.f32 0.0, %v1603
      %v1605 = vpop.f32.mrb[0].mxu0
      %1606 = vmatprep.mubr.bf16.mxu0 %v956
      %1607 = vmatmul.mubr.bf16.gmra.mrb[0].mxu0 %v955
      %v1608 = vpop.f32.mrb[0].mxu0
      %v1609 = vadd.f32 0.0, %v1608
      %v1610 = vpop.f32.mrb[0].mxu0
      %v1611 = vpop.f32.mrb[0].mxu0
      %v1612 = vadd.f32 0.0, %v1611
      %v1613 = vpop.f32.mrb[0].mxu0
      %1614 = vmatprep.mubr.bf16.mxu0 %v963
      %1615 = vmatmul.mubr.bf16.gmra.mrb[0].mxu0 %v962
      %v1616 = vpop.f32.mrb[0].mxu0
      %v1617 = vadd.f32 0.0, %v1616
      %v1618 = vpop.f32.mrb[0].mxu0
      %v1619 = vpop.f32.mrb[0].mxu0
      %v1620 = vadd.f32 0.0, %v1619
      %v1621 = vpop.f32.mrb[0].mxu0
      %1622 = vmatprep.mubr.bf16.mxu0 %v970
      %1623 = vmatmul.mubr.bf16.gmra.mrb[0].mxu0 %v969
      %v1624 = vpop.f32.mrb[0].mxu0
      %v1625 = vadd.f32 0.0, %v1624
      %v1626 = vpop.f32.mrb[0].mxu0
      %v1627 = vpop.f32.mrb[0].mxu0
      %v1628 = vadd.f32 0.0, %v1627
      %v1629 = vpop.f32.mrb[0].mxu0
      %1630 = vmatprep.mubr.bf16.mxu0 %v977
      %1631 = vmatmul.mubr.bf16.gmra.mrb[0].mxu0 %v976
      %v1632 = vpop.f32.mrb[0].mxu0
      %v1633 = vadd.f32 0.0, %v1632
      %v1634 = vpop.f32.mrb[0].mxu0
      %v1635 = vpop.f32.mrb[0].mxu0
      %v1636 = vadd.f32 0.0, %v1635
      %v1637 = vpop.f32.mrb[0].mxu0
      %1638 = vmatprep.mubr.bf16.mxu0 %v984
      %1639 = vmatmul.mubr.bf16.gmra.mrb[0].mxu0 %v983
      %v1640 = vpop.f32.mrb[0].mxu0
      %v1641 = vadd.f32 0.0, %v1640
      %v1642 = vpop.f32.mrb[0].mxu0
      %v1643 = vpop.f32.mrb[0].mxu0
      %v1644 = vadd.f32 0.0, %v1643
      %v1645 = vpop.f32.mrb[0].mxu0
      %1646 = vmatprep.mubr.bf16.mxu0 %v991
      %1647 = vmatmul.mubr.bf16.gmra.mrb[0].mxu0 %v990
      %v1648 = vpop.f32.mrb[0].mxu0
      %v1649 = vadd.f32 0.0, %v1648
      %v1650 = vpop.f32.mrb[0].mxu0
      %v1651 = vpop.f32.mrb[0].mxu0
      %v1652 = vadd.f32 0.0, %v1651
      %v1653 = vpop.f32.mrb[0].mxu0
      %1654 = vmatprep.mubr.bf16.mxu0 %v998
      %1655 = vmatmul.mubr.bf16.gmra.mrb[0].mxu0 %v997
      %v1656 = vpop.f32.mrb[0].mxu0
      %v1657 = vadd.f32 0.0, %v1656
      %v1658 = vpop.f32.mrb[0].mxu0
      %v1659 = vpop.f32.mrb[0].mxu0
      %v1660 = vadd.f32 0.0, %v1659
      %v1661 = vpop.f32.mrb[0].mxu0
      %1662 = vmatprep.mubr.bf16.mxu0 %v1005
      %1663 = vmatmul.mubr.bf16.gmra.mrb[0].mxu0 %v1004
      %v1664 = vpop.f32.mrb[0].mxu0
      %v1665 = vadd.f32 0.0, %v1664
      %v1666 = vpop.f32.mrb[0].mxu0
      %v1667 = vpop.f32.mrb[0].mxu0
      %v1668 = vadd.f32 0.0, %v1667
      %v1669 = vpop.f32.mrb[0].mxu0
      %1670 = vmatprep.mubr.bf16.mxu0 %v1012
      %1671 = vmatmul.mubr.bf16.gmra.mrb[0].mxu0 %v1011
      %v1672 = vpop.f32.mrb[0].mxu0
      %v1673 = vadd.f32 0.0, %v1672
      %v1674 = vpop.f32.mrb[0].mxu0
      %v1675 = vpop.f32.mrb[0].mxu0
      %v1676 = vadd.f32 0.0, %v1675
      %v1677 = vpop.f32.mrb[0].mxu0
      %1678 = vmatprep.mubr.bf16.mxu0 %v1019
      %1679 = vmatmul.mubr.bf16.gmra.mrb[0].mxu0 %v1018
      %v1680 = vpop.f32.mrb[0].mxu0
      %v1681 = vadd.f32 0.0, %v1680
      %v1682 = vpop.f32.mrb[0].mxu0
      %v1683 = vpop.f32.mrb[0].mxu0
      %v1684 = vadd.f32 0.0, %v1683
      %v1685 = vpop.f32.mrb[0].mxu0
      %1686 = vmatprep.mubr.bf16.mxu0 %v1026
      %1687 = vmatmul.mubr.bf16.gmra.mrb[0].mxu0 %v1025
      %v1688 = vpop.f32.mrb[0].mxu0
      %v1689 = vadd.f32 0.0, %v1688
      %v1690 = vpop.f32.mrb[0].mxu0
      %v1691 = vpop.f32.mrb[0].mxu0
      %v1692 = vadd.f32 0.0, %v1691
      %v1693 = vpop.f32.mrb[0].mxu0
      %1694 = vmatprep.mubr.bf16.mxu0 %v1033
      %1695 = vmatmul.mubr.bf16.gmra.mrb[0].mxu0 %v1032
      %v1696 = vpop.f32.mrb[0].mxu0
      %v1697 = vadd.f32 0.0, %v1696
      %v1698 = vpop.f32.mrb[0].mxu0
      %v1699 = vpop.f32.mrb[0].mxu0
      %v1700 = vadd.f32 0.0, %v1699
      %v1701 = vpop.f32.mrb[0].mxu0
      %1702 = vmatprep.mubr.bf16.mxu0 %v1040
      %1703 = vmatmul.mubr.bf16.gmra.mrb[0].mxu0 %v1039
      %v1704 = vpop.f32.mrb[0].mxu0
      %v1705 = vadd.f32 0.0, %v1704
      %v1706 = vpop.f32.mrb[0].mxu0
      %v1707 = vpop.f32.mrb[0].mxu0
      %v1708 = vadd.f32 0.0, %v1707
      %v1709 = vpop.f32.mrb[0].mxu0
      %1710 = vmatprep.mubr.bf16.mxu0 %v1047
      %1711 = vmatmul.mubr.bf16.gmra.mrb[0].mxu0 %v1046
      %v1712 = vpop.f32.mrb[0].mxu0
      %v1713 = vadd.f32 0.0, %v1712
      %v1714 = vpop.f32.mrb[0].mxu0
      %v1715 = vpop.f32.mrb[0].mxu0
      %v1716 = vadd.f32 0.0, %v1715
      %v1717 = vpop.f32.mrb[0].mxu0
      %1718 = vmatprep.mubr.bf16.mxu0 %v1054
      %1719 = vmatmul.mubr.bf16.gmra.mrb[0].mxu0 %v1053
      %v1720 = vpop.f32.mrb[0].mxu0
      %v1721 = vadd.f32 0.0, %v1720
      %v1722 = vpop.f32.mrb[0].mxu0
      %v1723 = vpop.f32.mrb[0].mxu0
      %v1724 = vadd.f32 0.0, %v1723
      %v1725 = vpop.f32.mrb[0].mxu0
      %1726 = vmatprep.mubr.bf16.mxu0 %v1061
      %1727 = vmatmul.mubr.bf16.gmra.mrb[0].mxu0 %v1060
      %v1728 = vpop.f32.mrb[0].mxu0
      %v1729 = vadd.f32 0.0, %v1728
      %v1730 = vpop.f32.mrb[0].mxu0
      %v1731 = vpop.f32.mrb[0].mxu0
      %v1732 = vadd.f32 0.0, %v1731
      %v1733 = vpop.f32.mrb[0].mxu0
      %1734 = vmatprep.mubr.bf16.mxu0 %v1068
      %1735 = vmatmul.mubr.bf16.gmra.mrb[0].mxu0 %v1067
      %v1736 = vpop.f32.mrb[0].mxu0
      %v1737 = vadd.f32 0.0, %v1736
      %v1738 = vpop.f32.mrb[0].mxu0
      %v1739 = vpop.f32.mrb[0].mxu0
      %v1740 = vadd.f32 0.0, %v1739
      %v1741 = vpop.f32.mrb[0].mxu0
      %1742 = vdwg.mxu0
      %1743 = vmatprep.subr.bf16.mxu0 0
      %1744 = vmatpush1.bf16.msra.mxu0 %v1454
      %1745 = vmatprep.subr.bf16.mxu0 0
      %1746 = vmatpush1.bf16.msra.mxu0 %v1455
      %1747 = vmatprep.subr.bf16.mxu0 0
      %1748 = vmatpush1.bf16.msra.mxu0 %v1456
      %1749 = vmatprep.subr.bf16.mxu0 0
      %1750 = vmatpush1.bf16.msra.mxu0 %v1457
      %1751 = vmatprep.subr.bf16.mxu0 0
      %1752 = vmatpush1.bf16.msra.mxu0 %v1458
      %1753 = vmatprep.subr.bf16.mxu0 0
      %1754 = vmatpush1.bf16.msra.mxu0 %v1459
      %1755 = vmatprep.subr.bf16.mxu0 0
      %1756 = vmatpush1.bf16.msra.mxu0 %v1460
      %1757 = vmatprep.subr.bf16.mxu0 0
      %1758 = vmatpush1.bf16.msra.mxu0 %v1461
      %1759 = vmatprep.subr.bf16.mxu0 0
      %1760 = vmatpush1.bf16.msra.mxu0 %v1462
      %1761 = vmatprep.subr.bf16.mxu0 0
      %1762 = vmatpush1.bf16.msra.mxu0 %v1463
      %1763 = vmatprep.subr.bf16.mxu0 0
      %1764 = vmatpush1.bf16.msra.mxu0 %v1464
      %1765 = vmatprep.subr.bf16.mxu0 0
      %1766 = vmatpush1.bf16.msra.mxu0 %v1465
      %1767 = vmatprep.subr.bf16.mxu0 0
      %1768 = vmatpush1.bf16.msra.mxu0 %v1466
      %1769 = vmatprep.subr.bf16.mxu0 0
      %1770 = vmatpush1.bf16.msra.mxu0 %v1467
      %1771 = vmatprep.subr.bf16.mxu0 0
      %1772 = vmatpush1.bf16.msra.mxu0 %v1468
      %1773 = vmatprep.subr.bf16.mxu0 0
      %1774 = vmatpush1.bf16.msra.mxu0 %v1469
      %1775 = vmatprep.mubr.bf16.mxu0 %v937
      %1776 = vmatmul.mubr.bf16.gmra.mrb[0].mxu0 %v936
      %v1777 = vpop.f32.mrb[0].mxu0
      %v1778 = vadd.f32 %v1585, %v1777
      %v1779 = vpop.f32.mrb[0].mxu0
      %v1780 = vpop.f32.mrb[0].mxu0
      %v1781 = vadd.f32 %v1588, %v1780
      %v1782 = vpop.f32.mrb[0].mxu0
      %1783 = vmatprep.mubr.bf16.mxu0 %v944
      %1784 = vmatmul.mubr.bf16.gmra.mrb[0].mxu0 %v943
      %v1785 = vpop.f32.mrb[0].mxu0
      %v1786 = vadd.f32 %v1593, %v1785
      %v1787 = vpop.f32.mrb[0].mxu0
      %v1788 = vpop.f32.mrb[0].mxu0
      %v1789 = vadd.f32 %v1596, %v1788
      %v1790 = vpop.f32.mrb[0].mxu0
      %1791 = vmatprep.mubr.bf16.mxu0 %v951
      %1792 = vmatmul.mubr.bf16.gmra.mrb[0].mxu0 %v950
      %v1793 = vpop.f32.mrb[0].mxu0
      %v1794 = vadd.f32 %v1601, %v1793
      %v1795 = vpop.f32.mrb[0].mxu0
      %v1796 = vpop.f32.mrb[0].mxu0
      %v1797 = vadd.f32 %v1604, %v1796
      %v1798 = vpop.f32.mrb[0].mxu0
      %1799 = vmatprep.mubr.bf16.mxu0 %v958
      %1800 = vmatmul.mubr.bf16.gmra.mrb[0].mxu0 %v957
      %v1801 = vpop.f32.mrb[0].mxu0
      %v1802 = vadd.f32 %v1609, %v1801
      %v1803 = vpop.f32.mrb[0].mxu0
      %v1804 = vpop.f32.mrb[0].mxu0
      %v1805 = vadd.f32 %v1612, %v1804
      %v1806 = vpop.f32.mrb[0].mxu0
      %1807 = vmatprep.mubr.bf16.mxu0 %v965
      %1808 = vmatmul.mubr.bf16.gmra.mrb[0].mxu0 %v964
      %v1809 = vpop.f32.mrb[0].mxu0
      %v1810 = vadd.f32 %v1617, %v1809
      %v1811 = vpop.f32.mrb[0].mxu0
      %v1812 = vpop.f32.mrb[0].mxu0
      %v1813 = vadd.f32 %v1620, %v1812
      %v1814 = vpop.f32.mrb[0].mxu0
      %1815 = vmatprep.mubr.bf16.mxu0 %v972
      %1816 = vmatmul.mubr.bf16.gmra.mrb[0].mxu0 %v971
      %v1817 = vpop.f32.mrb[0].mxu0
      %v1818 = vadd.f32 %v1625, %v1817
      %v1819 = vpop.f32.mrb[0].mxu0
      %v1820 = vpop.f32.mrb[0].mxu0
      %v1821 = vadd.f32 %v1628, %v1820
      %v1822 = vpop.f32.mrb[0].mxu0
      %1823 = vmatprep.mubr.bf16.mxu0 %v979
      %1824 = vmatmul.mubr.bf16.gmra.mrb[0].mxu0 %v978
      %v1825 = vpop.f32.mrb[0].mxu0
      %v1826 = vadd.f32 %v1633, %v1825
      %v1827 = vpop.f32.mrb[0].mxu0
      %v1828 = vpop.f32.mrb[0].mxu0
      %v1829 = vadd.f32 %v1636, %v1828
      %v1830 = vpop.f32.mrb[0].mxu0
      %1831 = vmatprep.mubr.bf16.mxu0 %v986
      %1832 = vmatmul.mubr.bf16.gmra.mrb[0].mxu0 %v985
      %v1833 = vpop.f32.mrb[0].mxu0
      %v1834 = vadd.f32 %v1641, %v1833
      %v1835 = vpop.f32.mrb[0].mxu0
      %v1836 = vpop.f32.mrb[0].mxu0
      %v1837 = vadd.f32 %v1644, %v1836
      %v1838 = vpop.f32.mrb[0].mxu0
      %1839 = vmatprep.mubr.bf16.mxu0 %v993
      %1840 = vmatmul.mubr.bf16.gmra.mrb[0].mxu0 %v992
      %v1841 = vpop.f32.mrb[0].mxu0
      %v1842 = vadd.f32 %v1649, %v1841
      %v1843 = vpop.f32.mrb[0].mxu0
      %v1844 = vpop.f32.mrb[0].mxu0
      %v1845 = vadd.f32 %v1652, %v1844
      %v1846 = vpop.f32.mrb[0].mxu0
      %1847 = vmatprep.mubr.bf16.mxu0 %v1000
      %1848 = vmatmul.mubr.bf16.gmra.mrb[0].mxu0 %v999
      %v1849 = vpop.f32.mrb[0].mxu0
      %v1850 = vadd.f32 %v1657, %v1849
      %v1851 = vpop.f32.mrb[0].mxu0
      %v1852 = vpop.f32.mrb[0].mxu0
      %v1853 = vadd.f32 %v1660, %v1852
      %v1854 = vpop.f32.mrb[0].mxu0
      %1855 = vmatprep.mubr.bf16.mxu0 %v1007
      %1856 = vmatmul.mubr.bf16.gmra.mrb[0].mxu0 %v1006
      %v1857 = vpop.f32.mrb[0].mxu0
      %v1858 = vadd.f32 %v1665, %v1857
      %v1859 = vpop.f32.mrb[0].mxu0
      %v1860 = vpop.f32.mrb[0].mxu0
      %v1861 = vadd.f32 %v1668, %v1860
      %v1862 = vpop.f32.mrb[0].mxu0
      %1863 = vmatprep.mubr.bf16.mxu0 %v1014
      %1864 = vmatmul.mubr.bf16.gmra.mrb[0].mxu0 %v1013
      %v1865 = vpop.f32.mrb[0].mxu0
      %v1866 = vadd.f32 %v1673, %v1865
      %v1867 = vpop.f32.mrb[0].mxu0
      %v1868 = vpop.f32.mrb[0].mxu0
      %v1869 = vadd.f32 %v1676, %v1868
      %v1870 = vpop.f32.mrb[0].mxu0
      %1871 = vmatprep.mubr.bf16.mxu0 %v1021
      %1872 = vmatmul.mubr.bf16.gmra.mrb[0].mxu0 %v1020
      %v1873 = vpop.f32.mrb[0].mxu0
      %v1874 = vadd.f32 %v1681, %v1873
      %v1875 = vpop.f32.mrb[0].mxu0
      %v1876 = vpop.f32.mrb[0].mxu0
      %v1877 = vadd.f32 %v1684, %v1876
      %v1878 = vpop.f32.mrb[0].mxu0
      %1879 = vmatprep.mubr.bf16.mxu0 %v1028
      %1880 = vmatmul.mubr.bf16.gmra.mrb[0].mxu0 %v1027
      %v1881 = vpop.f32.mrb[0].mxu0
      %v1882 = vadd.f32 %v1689, %v1881
      %v1883 = vpop.f32.mrb[0].mxu0
      %v1884 = vpop.f32.mrb[0].mxu0
      %v1885 = vadd.f32 %v1692, %v1884
      %v1886 = vpop.f32.mrb[0].mxu0
      %1887 = vmatprep.mubr.bf16.mxu0 %v1035
      %1888 = vmatmul.mubr.bf16.gmra.mrb[0].mxu0 %v1034
      %v1889 = vpop.f32.mrb[0].mxu0
      %v1890 = vadd.f32 %v1697, %v1889
      %v1891 = vpop.f32.mrb[0].mxu0
      %v1892 = vpop.f32.mrb[0].mxu0
      %v1893 = vadd.f32 %v1700, %v1892
      %v1894 = vpop.f32.mrb[0].mxu0
      %1895 = vmatprep.mubr.bf16.mxu0 %v1042
      %1896 = vmatmul.mubr.bf16.gmra.mrb[0].mxu0 %v1041
      %v1897 = vpop.f32.mrb[0].mxu0
      %v1898 = vadd.f32 %v1705, %v1897
      %v1899 = vpop.f32.mrb[0].mxu0
      %v1900 = vpop.f32.mrb[0].mxu0
      %v1901 = vadd.f32 %v1708, %v1900
      %v1902 = vpop.f32.mrb[0].mxu0
      %1903 = vmatprep.mubr.bf16.mxu0 %v1049
      %1904 = vmatmul.mubr.bf16.gmra.mrb[0].mxu0 %v1048
      %v1905 = vpop.f32.mrb[0].mxu0
      %v1906 = vadd.f32 %v1713, %v1905
      %v1907 = vpop.f32.mrb[0].mxu0
      %v1908 = vpop.f32.mrb[0].mxu0
      %v1909 = vadd.f32 %v1716, %v1908
      %v1910 = vpop.f32.mrb[0].mxu0
      %1911 = vmatprep.mubr.bf16.mxu0 %v1056
      %1912 = vmatmul.mubr.bf16.gmra.mrb[0].mxu0 %v1055
      %v1913 = vpop.f32.mrb[0].mxu0
      %v1914 = vadd.f32 %v1721, %v1913
      %v1915 = vpop.f32.mrb[0].mxu0
      %v1916 = vpop.f32.mrb[0].mxu0
      %v1917 = vadd.f32 %v1724, %v1916
      %v1918 = vpop.f32.mrb[0].mxu0
      %1919 = vmatprep.mubr.bf16.mxu0 %v1063
      %1920 = vmatmul.mubr.bf16.gmra.mrb[0].mxu0 %v1062
      %v1921 = vpop.f32.mrb[0].mxu0
      %v1922 = vadd.f32 %v1729, %v1921
      %v1923 = vpop.f32.mrb[0].mxu0
      %v1924 = vpop.f32.mrb[0].mxu0
      %v1925 = vadd.f32 %v1732, %v1924
      %v1926 = vpop.f32.mrb[0].mxu0
      %1927 = vmatprep.mubr.bf16.mxu0 %v1070
      %1928 = vmatmul.mubr.bf16.gmra.mrb[0].mxu0 %v1069
      %v1929 = vpop.f32.mrb[0].mxu0
      %v1930 = vadd.f32 %v1737, %v1929
      %v1931 = vpop.f32.mrb[0].mxu0
      %v1932 = vpop.f32.mrb[0].mxu0
      %v1933 = vadd.f32 %v1740, %v1932
      %v1934 = vpop.f32.mrb[0].mxu0
      %1935 = vdwg.mxu0
      %1936 = vmatprep.subr.bf16.mxu0 0
      %1937 = vmatpush1.bf16.msra.mxu0 %v1470
      %1938 = vmatprep.subr.bf16.mxu0 0
      %1939 = vmatpush1.bf16.msra.mxu0 %v1471
      %1940 = vmatprep.subr.bf16.mxu0 0
      %1941 = vmatpush1.bf16.msra.mxu0 %v1472
      %1942 = vmatprep.subr.bf16.mxu0 0
      %1943 = vmatpush1.bf16.msra.mxu0 %v1473
      %1944 = vmatprep.subr.bf16.mxu0 0
      %1945 = vmatpush1.bf16.msra.mxu0 %v1474
      %1946 = vmatprep.subr.bf16.mxu0 0
      %1947 = vmatpush1.bf16.msra.mxu0 %v1475
      %1948 = vmatprep.subr.bf16.mxu0 0
      %1949 = vmatpush1.bf16.msra.mxu0 %v1476
      %1950 = vmatprep.subr.bf16.mxu0 0
      %1951 = vmatpush1.bf16.msra.mxu0 %v1477
      %1952 = vmatprep.subr.bf16.mxu0 0
      %1953 = vmatpush1.bf16.msra.mxu0 %v1478
      %1954 = vmatprep.subr.bf16.mxu0 0
      %1955 = vmatpush1.bf16.msra.mxu0 %v1479
      %1956 = vmatprep.subr.bf16.mxu0 0
      %1957 = vmatpush1.bf16.msra.mxu0 %v1480
      %1958 = vmatprep.subr.bf16.mxu0 0
      %1959 = vmatpush1.bf16.msra.mxu0 %v1481
      %1960 = vmatprep.subr.bf16.mxu0 0
      %1961 = vmatpush1.bf16.msra.mxu0 %v1482
      %1962 = vmatprep.subr.bf16.mxu0 0
      %1963 = vmatpush1.bf16.msra.mxu0 %v1483
      %1964 = vmatprep.subr.bf16.mxu0 0
      %1965 = vmatpush1.bf16.msra.mxu0 %v1484
      %1966 = vmatprep.subr.bf16.mxu0 0
      %1967 = vmatpush1.bf16.msra.mxu0 %v1485
      %1968 = vmatprep.mubr.bf16.mxu0 %v939
      %1969 = vmatmul.mubr.bf16.gmra.mrb[0].mxu0 %v938
      %v1970 = vpop.f32.mrb[0].mxu0
      %v1971 = vadd.f32 %v1778, %v1970
      %v1972 = vpop.f32.mrb[0].mxu0
      %v1973 = vpop.f32.mrb[0].mxu0
      %v1974 = vadd.f32 %v1781, %v1973
      %v1975 = vpop.f32.mrb[0].mxu0
      %1976 = vmatprep.mubr.bf16.mxu0 %v946
      %1977 = vmatmul.mubr.bf16.gmra.mrb[0].mxu0 %v945
      %v1978 = vpop.f32.mrb[0].mxu0
      %v1979 = vadd.f32 %v1786, %v1978
      %v1980 = vpop.f32.mrb[0].mxu0
      %v1981 = vpop.f32.mrb[0].mxu0
      %v1982 = vadd.f32 %v1789, %v1981
      %v1983 = vpop.f32.mrb[0].mxu0
      %1984 = vmatprep.mubr.bf16.mxu0 %v953
      %1985 = vmatmul.mubr.bf16.gmra.mrb[0].mxu0 %v952
      %v1986 = vpop.f32.mrb[0].mxu0
      %v1987 = vadd.f32 %v1794, %v1986
      %v1988 = vpop.f32.mrb[0].mxu0
      %v1989 = vpop.f32.mrb[0].mxu0
      %v1990 = vadd.f32 %v1797, %v1989
      %v1991 = vpop.f32.mrb[0].mxu0
      %1992 = vmatprep.mubr.bf16.mxu0 %v960
      %1993 = vmatmul.mubr.bf16.gmra.mrb[0].mxu0 %v959
      %v1994 = vpop.f32.mrb[0].mxu0
      %v1995 = vadd.f32 %v1802, %v1994
      %v1996 = vpop.f32.mrb[0].mxu0
      %v1997 = vpop.f32.mrb[0].mxu0
      %v1998 = vadd.f32 %v1805, %v1997
      %v1999 = vpop.f32.mrb[0].mxu0
      %2000 = vmatprep.mubr.bf16.mxu0 %v967
      %2001 = vmatmul.mubr.bf16.gmra.mrb[0].mxu0 %v966
      %v2002 = vpop.f32.mrb[0].mxu0
      %v2003 = vadd.f32 %v1810, %v2002
      %v2004 = vpop.f32.mrb[0].mxu0
      %v2005 = vpop.f32.mrb[0].mxu0
      %v2006 = vadd.f32 %v1813, %v2005
      %v2007 = vpop.f32.mrb[0].mxu0
      %2008 = vmatprep.mubr.bf16.mxu0 %v974
      %2009 = vmatmul.mubr.bf16.gmra.mrb[0].mxu0 %v973
      %v2010 = vpop.f32.mrb[0].mxu0
      %v2011 = vadd.f32 %v1818, %v2010
      %v2012 = vpop.f32.mrb[0].mxu0
      %v2013 = vpop.f32.mrb[0].mxu0
      %v2014 = vadd.f32 %v1821, %v2013
      %v2015 = vpop.f32.mrb[0].mxu0
      %2016 = vmatprep.mubr.bf16.mxu0 %v981
      %2017 = vmatmul.mubr.bf16.gmra.mrb[0].mxu0 %v980
      %v2018 = vpop.f32.mrb[0].mxu0
      %v2019 = vadd.f32 %v1826, %v2018
      %v2020 = vpop.f32.mrb[0].mxu0
      %v2021 = vpop.f32.mrb[0].mxu0
      %v2022 = vadd.f32 %v1829, %v2021
      %v2023 = vpop.f32.mrb[0].mxu0
      %2024 = vmatprep.mubr.bf16.mxu0 %v988
      %2025 = vmatmul.mubr.bf16.gmra.mrb[0].mxu0 %v987
      %v2026 = vpop.f32.mrb[0].mxu0
      %v2027 = vadd.f32 %v1834, %v2026
      %v2028 = vpop.f32.mrb[0].mxu0
      %v2029 = vpop.f32.mrb[0].mxu0
      %v2030 = vadd.f32 %v1837, %v2029
      %v2031 = vpop.f32.mrb[0].mxu0
      %2032 = vmatprep.mubr.bf16.mxu0 %v995
      %2033 = vmatmul.mubr.bf16.gmra.mrb[0].mxu0 %v994
      %v2034 = vpop.f32.mrb[0].mxu0
      %v2035 = vadd.f32 %v1842, %v2034
      %v2036 = vpop.f32.mrb[0].mxu0
      %v2037 = vpop.f32.mrb[0].mxu0
      %v2038 = vadd.f32 %v1845, %v2037
      %v2039 = vpop.f32.mrb[0].mxu0
      %2040 = vmatprep.mubr.bf16.mxu0 %v1002
      %2041 = vmatmul.mubr.bf16.gmra.mrb[0].mxu0 %v1001
      %v2042 = vpop.f32.mrb[0].mxu0
      %v2043 = vadd.f32 %v1850, %v2042
      %v2044 = vpop.f32.mrb[0].mxu0
      %v2045 = vpop.f32.mrb[0].mxu0
      %v2046 = vadd.f32 %v1853, %v2045
      %v2047 = vpop.f32.mrb[0].mxu0
      %2048 = vmatprep.mubr.bf16.mxu0 %v1009
      %2049 = vmatmul.mubr.bf16.gmra.mrb[0].mxu0 %v1008
      %v2050 = vpop.f32.mrb[0].mxu0
      %v2051 = vadd.f32 %v1858, %v2050
      %v2052 = vpop.f32.mrb[0].mxu0
      %v2053 = vpop.f32.mrb[0].mxu0
      %v2054 = vadd.f32 %v1861, %v2053
      %v2055 = vpop.f32.mrb[0].mxu0
      %2056 = vmatprep.mubr.bf16.mxu0 %v1016
      %2057 = vmatmul.mubr.bf16.gmra.mrb[0].mxu0 %v1015
      %v2058 = vpop.f32.mrb[0].mxu0
      %v2059 = vadd.f32 %v1866, %v2058
      %v2060 = vpop.f32.mrb[0].mxu0
      %v2061 = vpop.f32.mrb[0].mxu0
      %v2062 = vadd.f32 %v1869, %v2061
      %v2063 = vpop.f32.mrb[0].mxu0
      %2064 = vmatprep.mubr.bf16.mxu0 %v1023
      %2065 = vmatmul.mubr.bf16.gmra.mrb[0].mxu0 %v1022
      %v2066 = vpop.f32.mrb[0].mxu0
      %v2067 = vadd.f32 %v1874, %v2066
      %v2068 = vpop.f32.mrb[0].mxu0
      %v2069 = vpop.f32.mrb[0].mxu0
      %v2070 = vadd.f32 %v1877, %v2069
      %v2071 = vpop.f32.mrb[0].mxu0
      %2072 = vmatprep.mubr.bf16.mxu0 %v1030
      %2073 = vmatmul.mubr.bf16.gmra.mrb[0].mxu0 %v1029
      %v2074 = vpop.f32.mrb[0].mxu0
      %v2075 = vadd.f32 %v1882, %v2074
      %v2076 = vpop.f32.mrb[0].mxu0
      %v2077 = vpop.f32.mrb[0].mxu0
      %v2078 = vadd.f32 %v1885, %v2077
      %v2079 = vpop.f32.mrb[0].mxu0
      %2080 = vmatprep.mubr.bf16.mxu0 %v1037
      %2081 = vmatmul.mubr.bf16.gmra.mrb[0].mxu0 %v1036
      %v2082 = vpop.f32.mrb[0].mxu0
      %v2083 = vadd.f32 %v1890, %v2082
      %v2084 = vpop.f32.mrb[0].mxu0
      %v2085 = vpop.f32.mrb[0].mxu0
      %v2086 = vadd.f32 %v1893, %v2085
      %v2087 = vpop.f32.mrb[0].mxu0
      %2088 = vmatprep.mubr.bf16.mxu0 %v1044
      %2089 = vmatmul.mubr.bf16.gmra.mrb[0].mxu0 %v1043
      %v2090 = vpop.f32.mrb[0].mxu0
      %v2091 = vadd.f32 %v1898, %v2090
      %v2092 = vpop.f32.mrb[0].mxu0
      %v2093 = vpop.f32.mrb[0].mxu0
      %v2094 = vadd.f32 %v1901, %v2093
      %v2095 = vpop.f32.mrb[0].mxu0
      %2096 = vmatprep.mubr.bf16.mxu0 %v1051
      %2097 = vmatmul.mubr.bf16.gmra.mrb[0].mxu0 %v1050
      %v2098 = vpop.f32.mrb[0].mxu0
      %v2099 = vadd.f32 %v1906, %v2098
      %v2100 = vpop.f32.mrb[0].mxu0
      %v2101 = vpop.f32.mrb[0].mxu0
      %v2102 = vadd.f32 %v1909, %v2101
      %v2103 = vpop.f32.mrb[0].mxu0
      %2104 = vmatprep.mubr.bf16.mxu0 %v1058
      %2105 = vmatmul.mubr.bf16.gmra.mrb[0].mxu0 %v1057
      %v2106 = vpop.f32.mrb[0].mxu0
      %v2107 = vadd.f32 %v1914, %v2106
      %v2108 = vpop.f32.mrb[0].mxu0
      %v2109 = vpop.f32.mrb[0].mxu0
      %v2110 = vadd.f32 %v1917, %v2109
      %v2111 = vpop.f32.mrb[0].mxu0
      %2112 = vmatprep.mubr.bf16.mxu0 %v1065
      %2113 = vmatmul.mubr.bf16.gmra.mrb[0].mxu0 %v1064
      %v2114 = vpop.f32.mrb[0].mxu0
      %v2115 = vadd.f32 %v1922, %v2114
      %v2116 = vpop.f32.mrb[0].mxu0
      %v2117 = vpop.f32.mrb[0].mxu0
      %v2118 = vadd.f32 %v1925, %v2117
      %v2119 = vpop.f32.mrb[0].mxu0
      %2120 = vmatprep.mubr.bf16.mxu0 %v1072
      %2121 = vmatmul.mubr.bf16.gmra.mrb[0].mxu0 %v1071
      %v2122 = vpop.f32.mrb[0].mxu0
      %v2123 = vadd.f32 %v1930, %v2122
      %v2124 = vpop.f32.mrb[0].mxu0
      %v2125 = vpop.f32.mrb[0].mxu0
      %v2126 = vadd.f32 %v1933, %v2125
      %v2127 = vpop.f32.mrb[0].mxu0
      %2128 = vdwg.mxu0
      %2129 = vmatprep.subr.bf16.mxu0 0
      %2130 = vmatpush1.bf16.msra.mxu0 %v1486
      %2131 = vmatprep.subr.bf16.mxu0 0
      %2132 = vmatpush1.bf16.msra.mxu0 %v1487
      %2133 = vmatprep.subr.bf16.mxu0 0
      %2134 = vmatpush1.bf16.msra.mxu0 %v1488
      %2135 = vmatprep.subr.bf16.mxu0 0
      %2136 = vmatpush1.bf16.msra.mxu0 %v1489
      %2137 = vmatprep.subr.bf16.mxu0 0
      %2138 = vmatpush1.bf16.msra.mxu0 %v1490
      %2139 = vmatprep.subr.bf16.mxu0 0
      %2140 = vmatpush1.bf16.msra.mxu0 %v1491
      %2141 = vmatprep.subr.bf16.mxu0 0
      %2142 = vmatpush1.bf16.msra.mxu0 %v1492
      %2143 = vmatprep.subr.bf16.mxu0 0
      %2144 = vmatpush1.bf16.msra.mxu0 %v1493
      %2145 = vmatprep.subr.bf16.mxu0 0
      %2146 = vmatpush1.bf16.msra.mxu0 0
      %2147 = vmatprep.subr.bf16.mxu0 0
      %2148 = vmatpush1.bf16.msra.mxu0 0
      %2149 = vmatprep.subr.bf16.mxu0 0
      %2150 = vmatpush1.bf16.msra.mxu0 0
      %2151 = vmatprep.subr.bf16.mxu0 0
      %2152 = vmatpush1.bf16.msra.mxu0 0
      %2153 = vmatprep.subr.bf16.mxu0 0
      %2154 = vmatpush1.bf16.msra.mxu0 0
      %2155 = vmatprep.subr.bf16.mxu0 0
      %2156 = vmatpush1.bf16.msra.mxu0 0
      %2157 = vmatprep.subr.bf16.mxu0 0
      %2158 = vmatpush1.bf16.msra.mxu0 0
      %2159 = vmatprep.subr.bf16.mxu0 0
      %2160 = vmatpush1.bf16.msra.mxu0 0
      %2161 = vmatprep.mubr.bf16.mxu0 0
      %2162 = vmatmul.mubr.bf16.gmra.mrb[0].mxu0 %v940
      %v2163 = vpop.f32.mrb[0].mxu0
      %v2164 = vadd.f32 %v1971, %v2163
      %v2165 = vpop.f32.mrb[0].mxu0
      %v2166 = vpop.f32.mrb[0].mxu0
      %v2167 = vadd.f32 %v1974, %v2166
      %v2168 = vpop.f32.mrb[0].mxu0
      %2169 = vmatprep.mubr.bf16.mxu0 0
      %2170 = vmatmul.mubr.bf16.gmra.mrb[0].mxu0 %v947
      %v2171 = vpop.f32.mrb[0].mxu0
      %v2172 = vadd.f32 %v1979, %v2171
      %v2173 = vpop.f32.mrb[0].mxu0
      %v2174 = vpop.f32.mrb[0].mxu0
      %v2175 = vadd.f32 %v1982, %v2174
      %v2176 = vpop.f32.mrb[0].mxu0
      %2177 = vmatprep.mubr.bf16.mxu0 0
      %2178 = vmatmul.mubr.bf16.gmra.mrb[0].mxu0 %v954
      %v2179 = vpop.f32.mrb[0].mxu0
      %v2180 = vadd.f32 %v1987, %v2179
      %v2181 = vpop.f32.mrb[0].mxu0
      %v2182 = vpop.f32.mrb[0].mxu0
      %v2183 = vadd.f32 %v1990, %v2182
      %v2184 = vpop.f32.mrb[0].mxu0
      %2185 = vmatprep.mubr.bf16.mxu0 0
      %2186 = vmatmul.mubr.bf16.gmra.mrb[0].mxu0 %v961
      %v2187 = vpop.f32.mrb[0].mxu0
      %v2188 = vadd.f32 %v1995, %v2187
      %v2189 = vpop.f32.mrb[0].mxu0
      %v2190 = vpop.f32.mrb[0].mxu0
      %v2191 = vadd.f32 %v1998, %v2190
      %v2192 = vpop.f32.mrb[0].mxu0
      %2193 = vmatprep.mubr.bf16.mxu0 0
      %2194 = vmatmul.mubr.bf16.gmra.mrb[0].mxu0 %v968
      %v2195 = vpop.f32.mrb[0].mxu0
      %v2196 = vadd.f32 %v2003, %v2195
      %v2197 = vpop.f32.mrb[0].mxu0
      %v2198 = vpop.f32.mrb[0].mxu0
      %v2199 = vadd.f32 %v2006, %v2198
      %v2200 = vpop.f32.mrb[0].mxu0
      %2201 = vmatprep.mubr.bf16.mxu0 0
      %2202 = vmatmul.mubr.bf16.gmra.mrb[0].mxu0 %v975
      %v2203 = vpop.f32.mrb[0].mxu0
      %v2204 = vadd.f32 %v2011, %v2203
      %v2205 = vpop.f32.mrb[0].mxu0
      %v2206 = vpop.f32.mrb[0].mxu0
      %v2207 = vadd.f32 %v2014, %v2206
      %v2208 = vpop.f32.mrb[0].mxu0
      %2209 = vmatprep.mubr.bf16.mxu0 0
      %2210 = vmatmul.mubr.bf16.gmra.mrb[0].mxu0 %v982
      %v2211 = vpop.f32.mrb[0].mxu0
      %v2212 = vadd.f32 %v2019, %v2211
      %v2213 = vpop.f32.mrb[0].mxu0
      %v2214 = vpop.f32.mrb[0].mxu0
      %v2215 = vadd.f32 %v2022, %v2214
      %v2216 = vpop.f32.mrb[0].mxu0
      %2217 = vmatprep.mubr.bf16.mxu0 0
      %2218 = vmatmul.mubr.bf16.gmra.mrb[0].mxu0 %v989
      %v2219 = vpop.f32.mrb[0].mxu0
      %v2220 = vadd.f32 %v2027, %v2219
      %v2221 = vpop.f32.mrb[0].mxu0
      %v2222 = vpop.f32.mrb[0].mxu0
      %v2223 = vadd.f32 %v2030, %v2222
      %v2224 = vpop.f32.mrb[0].mxu0
      %2225 = vmatprep.mubr.bf16.mxu0 0
      %2226 = vmatmul.mubr.bf16.gmra.mrb[0].mxu0 %v996
      %v2227 = vpop.f32.mrb[0].mxu0
      %v2228 = vadd.f32 %v2035, %v2227
      %v2229 = vpop.f32.mrb[0].mxu0
      %v2230 = vpop.f32.mrb[0].mxu0
      %v2231 = vadd.f32 %v2038, %v2230
      %v2232 = vpop.f32.mrb[0].mxu0
      %2233 = vmatprep.mubr.bf16.mxu0 0
      %2234 = vmatmul.mubr.bf16.gmra.mrb[0].mxu0 %v1003
      %v2235 = vpop.f32.mrb[0].mxu0
      %v2236 = vadd.f32 %v2043, %v2235
      %v2237 = vpop.f32.mrb[0].mxu0
      %v2238 = vpop.f32.mrb[0].mxu0
      %v2239 = vadd.f32 %v2046, %v2238
      %v2240 = vpop.f32.mrb[0].mxu0
      %2241 = vmatprep.mubr.bf16.mxu0 0
      %2242 = vmatmul.mubr.bf16.gmra.mrb[0].mxu0 %v1010
      %v2243 = vpop.f32.mrb[0].mxu0
      %v2244 = vadd.f32 %v2051, %v2243
      %v2245 = vpop.f32.mrb[0].mxu0
      %v2246 = vpop.f32.mrb[0].mxu0
      %v2247 = vadd.f32 %v2054, %v2246
      %v2248 = vpop.f32.mrb[0].mxu0
      %2249 = vmatprep.mubr.bf16.mxu0 0
      %2250 = vmatmul.mubr.bf16.gmra.mrb[0].mxu0 %v1017
      %v2251 = vpop.f32.mrb[0].mxu0
      %v2252 = vadd.f32 %v2059, %v2251
      %v2253 = vpop.f32.mrb[0].mxu0
      %v2254 = vpop.f32.mrb[0].mxu0
      %v2255 = vadd.f32 %v2062, %v2254
      %v2256 = vpop.f32.mrb[0].mxu0
      %2257 = vmatprep.mubr.bf16.mxu0 0
      %2258 = vmatmul.mubr.bf16.gmra.mrb[0].mxu0 %v1024
      %v2259 = vpop.f32.mrb[0].mxu0
      %v2260 = vadd.f32 %v2067, %v2259
      %v2261 = vpop.f32.mrb[0].mxu0
      %v2262 = vpop.f32.mrb[0].mxu0
      %v2263 = vadd.f32 %v2070, %v2262
      %v2264 = vpop.f32.mrb[0].mxu0
      %2265 = vmatprep.mubr.bf16.mxu0 0
      %2266 = vmatmul.mubr.bf16.gmra.mrb[0].mxu0 %v1031
      %v2267 = vpop.f32.mrb[0].mxu0
      %v2268 = vadd.f32 %v2075, %v2267
      %v2269 = vpop.f32.mrb[0].mxu0
      %v2270 = vpop.f32.mrb[0].mxu0
      %v2271 = vadd.f32 %v2078, %v2270
      %v2272 = vpop.f32.mrb[0].mxu0
      %2273 = vmatprep.mubr.bf16.mxu0 0
      %2274 = vmatmul.mubr.bf16.gmra.mrb[0].mxu0 %v1038
      %v2275 = vpop.f32.mrb[0].mxu0
      %v2276 = vadd.f32 %v2083, %v2275
      %v2277 = vpop.f32.mrb[0].mxu0
      %v2278 = vpop.f32.mrb[0].mxu0
      %v2279 = vadd.f32 %v2086, %v2278
      %v2280 = vpop.f32.mrb[0].mxu0
      %2281 = vmatprep.mubr.bf16.mxu0 0
      %2282 = vmatmul.mubr.bf16.gmra.mrb[0].mxu0 %v1045
      %v2283 = vpop.f32.mrb[0].mxu0
      %v2284 = vadd.f32 %v2091, %v2283
      %v2285 = vpop.f32.mrb[0].mxu0
      %v2286 = vpop.f32.mrb[0].mxu0
      %v2287 = vadd.f32 %v2094, %v2286
      %v2288 = vpop.f32.mrb[0].mxu0
      %2289 = vmatprep.mubr.bf16.mxu0 0
      %2290 = vmatmul.mubr.bf16.gmra.mrb[0].mxu0 %v1052
      %v2291 = vpop.f32.mrb[0].mxu0
      %v2292 = vadd.f32 %v2099, %v2291
      %v2293 = vpop.f32.mrb[0].mxu0
      %v2294 = vpop.f32.mrb[0].mxu0
      %v2295 = vadd.f32 %v2102, %v2294
      %v2296 = vpop.f32.mrb[0].mxu0
      %2297 = vmatprep.mubr.bf16.mxu0 0
      %2298 = vmatmul.mubr.bf16.gmra.mrb[0].mxu0 %v1059
      %v2299 = vpop.f32.mrb[0].mxu0
      %v2300 = vadd.f32 %v2107, %v2299
      %v2301 = vpop.f32.mrb[0].mxu0
      %v2302 = vpop.f32.mrb[0].mxu0
      %v2303 = vadd.f32 %v2110, %v2302
      %v2304 = vpop.f32.mrb[0].mxu0
      %2305 = vmatprep.mubr.bf16.mxu0 0
      %2306 = vmatmul.mubr.bf16.gmra.mrb[0].mxu0 %v1066
      %v2307 = vpop.f32.mrb[0].mxu0
      %v2308 = vadd.f32 %v2115, %v2307
      %v2309 = vpop.f32.mrb[0].mxu0
      %v2310 = vpop.f32.mrb[0].mxu0
      %v2311 = vadd.f32 %v2118, %v2310
      %v2312 = vpop.f32.mrb[0].mxu0
      %2313 = vmatprep.mubr.bf16.mxu0 0
      %2314 = vmatmul.mubr.bf16.gmra.mrb[0].mxu0 %v1073
      %v2315 = vpop.f32.mrb[0].mxu0
      %v2316 = vadd.f32 %v2123, %v2315
      %v2317 = vpop.f32.mrb[0].mxu0
      %v2318 = vpop.f32.mrb[0].mxu0
      %v2319 = vadd.f32 %v2126, %v2318
      %v2320 = vpop.f32.mrb[0].mxu0
      %2321 = vdwg.mxu0
      %v2322 = vpack.c.bf16 %v2167, %v2164
      %v2323 = vpack.c.bf16 %v2175, %v2172
      %v2324 = vpack.c.bf16 %v2183, %v2180
      %v2325 = vpack.c.bf16 %v2191, %v2188
      %v2326 = vpack.c.bf16 %v2199, %v2196
      %v2327 = vpack.c.bf16 %v2207, %v2204
      %v2328 = vpack.c.bf16 %v2215, %v2212
      %v2329 = vpack.c.bf16 %v2223, %v2220
      %v2330 = vpack.c.bf16 %v2231, %v2228
      %v2331 = vpack.c.bf16 %v2239, %v2236
      %v2332 = vpack.c.bf16 %v2247, %v2244
      %v2333 = vpack.c.bf16 %v2255, %v2252
      %v2334 = vpack.c.bf16 %v2263, %v2260
      %v2335 = vpack.c.bf16 %v2271, %v2268
      %v2336 = vpack.c.bf16 %v2279, %v2276
      %v2337 = vpack.c.bf16 %v2287, %v2284
      %v2338 = vpack.c.bf16 %v2295, %v2292
      %v2339 = vpack.c.bf16 %v2303, %v2300
      %v2340 = vpack.c.bf16 %v2311, %v2308
      %v2341 = vpack.c.bf16 %v2319, %v2316
      %v2362 = vunpack.c.l.b16 %v2322
      %v2363 = vunpack.c.h.b16 %v2322
      %v2364 = vunpack.c.l.b16 %v2323
      %v2365 = vunpack.c.h.b16 %v2323
      %v2366 = vunpack.c.l.b16 %v2324
      %v2367 = vunpack.c.h.b16 %v2324
      %v2368 = vunpack.c.l.b16 %v2325
      %v2369 = vunpack.c.h.b16 %v2325
      %v2370 = vunpack.c.l.b16 %v2326
      %v2371 = vunpack.c.h.b16 %v2326
      %v2372 = vunpack.c.l.b16 %v2327
      %v2373 = vunpack.c.h.b16 %v2327
      %v2374 = vunpack.c.l.b16 %v2328
      %v2375 = vunpack.c.h.b16 %v2328
      %v2376 = vunpack.c.l.b16 %v2329
      %v2377 = vunpack.c.h.b16 %v2329
      %v2378 = vunpack.c.l.b16 %v2330
      %v2379 = vunpack.c.h.b16 %v2330
      %v2380 = vunpack.c.l.b16 %v2331
      %v2381 = vunpack.c.h.b16 %v2331
      %v2382 = vunpack.c.l.b16 %v2332
      %v2383 = vunpack.c.h.b16 %v2332
      %v2384 = vunpack.c.l.b16 %v2333
      %v2385 = vunpack.c.h.b16 %v2333
      %v2386 = vunpack.c.l.b16 %v2334
      %v2387 = vunpack.c.h.b16 %v2334
      %v2388 = vunpack.c.l.b16 %v2335
      %v2389 = vunpack.c.h.b16 %v2335
      %v2390 = vunpack.c.l.b16 %v2336
      %v2391 = vunpack.c.h.b16 %v2336
      %v2392 = vunpack.c.l.b16 %v2337
      %v2393 = vunpack.c.h.b16 %v2337
      %v2394 = vunpack.c.l.b16 %v2338
      %v2395 = vunpack.c.h.b16 %v2338
      %v2396 = vunpack.c.l.b16 %v2339
      %v2397 = vunpack.c.h.b16 %v2339
      %v2398 = vunpack.c.l.b16 %v2340
      %v2399 = vunpack.c.h.b16 %v2340
      %v2400 = vunpack.c.l.b16 %v2341
      %v2401 = vunpack.c.h.b16 %v2341
      %v2402 = vpack.c.b16 %v2362, %v2362
      %v2403 = vpack.c.b16 %v2363, %v2363
      %v2404 = vpack.c.b16 %v2364, %v2364
      %v2405 = vpack.c.b16 %v2365, %v2365
      %v2406 = vpack.c.b16 %v2366, %v2366
      %v2407 = vpack.c.b16 %v2367, %v2367
      %v2408 = vpack.c.b16 %v2368, %v2368
      %v2409 = vpack.c.b16 %v2369, %v2369
      %v2410 = vpack.c.b16 %v2370, %v2370
      %v2411 = vpack.c.b16 %v2371, %v2371
      %v2412 = vpack.c.b16 %v2372, %v2372
      %v2413 = vpack.c.b16 %v2373, %v2373
      %v2414 = vpack.c.b16 %v2374, %v2374
      %v2415 = vpack.c.b16 %v2375, %v2375
      %v2416 = vpack.c.b16 %v2376, %v2376
      %v2417 = vpack.c.b16 %v2377, %v2377
      %v2418 = vpack.c.b16 %v2378, %v2378
      %v2419 = vpack.c.b16 %v2379, %v2379
      %v2420 = vpack.c.b16 %v2380, %v2380
      %v2421 = vpack.c.b16 %v2381, %v2381
      %v2422 = vpack.c.b16 %v2382, %v2382
      %v2423 = vpack.c.b16 %v2383, %v2383
      %v2424 = vpack.c.b16 %v2384, %v2384
      %v2425 = vpack.c.b16 %v2385, %v2385
      %v2426 = vpack.c.b16 %v2386, %v2386
      %v2427 = vpack.c.b16 %v2387, %v2387
      %v2428 = vpack.c.b16 %v2388, %v2388
      %v2429 = vpack.c.b16 %v2389, %v2389
      %v2430 = vpack.c.b16 %v2390, %v2390
      %v2431 = vpack.c.b16 %v2391, %v2391
      %v2432 = vpack.c.b16 %v2392, %v2392
      %v2433 = vpack.c.b16 %v2393, %v2393
      %v2434 = vpack.c.b16 %v2394, %v2394
      %v2435 = vpack.c.b16 %v2395, %v2395
      %v2436 = vpack.c.b16 %v2396, %v2396
      %v2437 = vpack.c.b16 %v2397, %v2397
      %v2438 = vpack.c.b16 %v2398, %v2398
      %v2439 = vpack.c.b16 %v2399, %v2399
      %v2440 = vpack.c.b16 %v2400, %v2400
      %v2441 = vpack.c.b16 %v2401, %v2401
      %2482 = vst [vmem:[%s213] sm:$0xf] %v2402
      %2483 = vst [vmem:[%s213 + $0x4] sm:$0xf] %v2403
      %2484 = vst [vmem:[%s213 + $0x8] sm:$0xf] %v2404
      %2485 = vst [vmem:[%s213 + $0xc] sm:$0xf] %v2405
      %2486 = vst [vmem:[%s213 + $0x10] sm:$0xf] %v2406
      %2487 = vst [vmem:[%s213 + $0x14] sm:$0xf] %v2407
      %2488 = vst [vmem:[%s213 + $0x18] sm:$0xf] %v2408
      %2489 = vst [vmem:[%s213 + $0x1c] sm:$0xf] %v2409
      %2490 = vst [vmem:[%s213 + $0x20] sm:$0xf] %v2410
      %2491 = vst [vmem:[%s213 + $0x24] sm:$0xf] %v2411
      %2492 = vst [vmem:[%s213 + $0x28] sm:$0xf] %v2412
      %2493 = vst [vmem:[%s213 + $0x2c] sm:$0xf] %v2413
      %2494 = vst [vmem:[%s213 + $0x30] sm:$0xf] %v2414
      %2495 = vst [vmem:[%s213 + $0x34] sm:$0xf] %v2415
      %2496 = vst [vmem:[%s213 + $0x38] sm:$0xf] %v2416
      %2497 = vst [vmem:[%s213 + $0x3c] sm:$0xf] %v2417
      %2498 = vst [vmem:[%s213 + $0x40] sm:$0xf] %v2418
      %2499 = vst [vmem:[%s213 + $0x44] sm:$0xf] %v2419
      %2500 = vst [vmem:[%s213 + $0x48] sm:$0xf] %v2420
      %2501 = vst [vmem:[%s213 + $0x4c] sm:$0xf] %v2421
      %2502 = vst [vmem:[%s213 + $0x50] sm:$0xf] %v2422
      %2503 = vst [vmem:[%s213 + $0x54] sm:$0xf] %v2423
      %2504 = vst [vmem:[%s213 + $0x58] sm:$0xf] %v2424
      %2505 = vst [vmem:[%s213 + $0x5c] sm:$0xf] %v2425
      %2506 = vst [vmem:[%s213 + $0x60] sm:$0xf] %v2426
      %2507 = vst [vmem:[%s213 + $0x64] sm:$0xf] %v2427
      %2508 = vst [vmem:[%s213 + $0x68] sm:$0xf] %v2428
      %2509 = vst [vmem:[%s213 + $0x6c] sm:$0xf] %v2429
      %2510 = vst [vmem:[%s213 + $0x70] sm:$0xf] %v2430
      %2511 = vst [vmem:[%s213 + $0x74] sm:$0xf] %v2431
      %2512 = vst [vmem:[%s213 + $0x78] sm:$0xf] %v2432
      %2513 = vst [vmem:[%s213 + $0x7c] sm:$0xf] %v2433
      %2514 = vst [vmem:[%s213 + $0x80] sm:$0xf] %v2434
      %2515 = vst [vmem:[%s213 + $0x84] sm:$0xf] %v2435
      %2516 = vst [vmem:[%s213 + $0x88] sm:$0xf] %v2436
      %2517 = vst [vmem:[%s213 + $0x8c] sm:$0xf] %v2437
      %2518 = vst [vmem:[%s213 + $0x90] sm:$0xf] %v2438
      %2519 = vst [vmem:[%s213 + $0x94] sm:$0xf] %v2439
      %2520 = vst [vmem:[%s213 + $0x98] sm:$0xf] %v2440
      %2521 = vst [vmem:[%s213 + $0x9c] sm:$0xf] %v2441
      %v2522 = vadd.f32 %v2164, %v2167
      %v2523 = vadd.f32 %v2522, %v2172
      %v2524 = vadd.f32 %v2523, %v2175
      %v2525 = vadd.f32 %v2524, %v2180
      %v2526 = vadd.f32 %v2525, %v2183
      %v2527 = vadd.f32 %v2526, %v2188
      %v2528 = vadd.f32 %v2527, %v2191
      %v2529 = vadd.f32 %v2528, %v2196
      %v2530 = vadd.f32 %v2529, %v2199
      %v2531 = vadd.f32 %v2530, %v2204
      %v2532 = vadd.f32 %v2531, %v2207
      %v2533 = vadd.f32 %v2532, %v2212
      %v2534 = vadd.f32 %v2533, %v2215
      %v2535 = vadd.f32 %v2534, %v2220
      %v2536 = vadd.f32 %v2535, %v2223
      %v2537 = vadd.f32 %v2536, %v2228
      %v2538 = vadd.f32 %v2537, %v2231
      %v2539 = vadd.f32 %v2538, %v2236
      %v2540 = vadd.f32 %v2539, %v2239
      %v2541 = vadd.f32 %v2540, %v2244
      %v2542 = vadd.f32 %v2541, %v2247
      %v2543 = vadd.f32 %v2542, %v2252
      %v2544 = vadd.f32 %v2543, %v2255
      %v2545 = vadd.f32 %v2544, %v2260
      %v2546 = vadd.f32 %v2545, %v2263
      %v2547 = vadd.f32 %v2546, %v2268
      %v2548 = vadd.f32 %v2547, %v2271
      %v2549 = vadd.f32 %v2548, %v2276
      %v2550 = vadd.f32 %v2549, %v2279
      %v2551 = vadd.f32 %v2550, %v2284
      %v2552 = vadd.f32 %v2551, %v2287
      %v2553 = vadd.f32 %v2552, %v2292
      %v2554 = vadd.f32 %v2553, %v2295
      %v2555 = vadd.f32 %v2554, %v2300
      %v2556 = vadd.f32 %v2555, %v2303
      %v2557 = vadd.f32 %v2556, %v2308
      %v2558 = vadd.f32 %v2557, %v2311
      %v2559 = vadd.f32 %v2558, %v2316
      %v2560 = vadd.f32 %v2559, %v2319
      %v2561 = vrot.slane %v2560, 4
      %v2562 = vadd.f32 %v2560, %v2561
      %v2563 = vrot.slane %v2562, 2
      %v2564 = vadd.f32 %v2562, %v2563
      %v2565 = vrot.slane %v2564, 1
      %v2566 = vadd.f32 %v2564, %v2565
      %2567 = vst [vmem:[%s217] sm:$0x1] %v2566
      %v2568 = vmul.f32 %v2164, %v2164
      %v2569 = vmul.f32 %v2167, %v2167
      %v2570 = vmul.f32 %v2172, %v2172
      %v2571 = vmul.f32 %v2175, %v2175
      %v2572 = vmul.f32 %v2180, %v2180
      %v2573 = vmul.f32 %v2183, %v2183
      %v2574 = vmul.f32 %v2188, %v2188
      %v2575 = vmul.f32 %v2191, %v2191
      %v2576 = vmul.f32 %v2196, %v2196
      %v2577 = vmul.f32 %v2199, %v2199
      %v2578 = vmul.f32 %v2204, %v2204
      %v2579 = vmul.f32 %v2207, %v2207
      %v2580 = vmul.f32 %v2212, %v2212
      %v2581 = vmul.f32 %v2215, %v2215
      %v2582 = vmul.f32 %v2220, %v2220
      %v2583 = vmul.f32 %v2223, %v2223
      %v2584 = vmul.f32 %v2228, %v2228
      %v2585 = vmul.f32 %v2231, %v2231
      %v2586 = vmul.f32 %v2236, %v2236
      %v2587 = vmul.f32 %v2239, %v2239
      %v2588 = vmul.f32 %v2244, %v2244
      %v2589 = vmul.f32 %v2247, %v2247
      %v2590 = vmul.f32 %v2252, %v2252
      %v2591 = vmul.f32 %v2255, %v2255
      %v2592 = vmul.f32 %v2260, %v2260
      %v2593 = vmul.f32 %v2263, %v2263
      %v2594 = vmul.f32 %v2268, %v2268
      %v2595 = vmul.f32 %v2271, %v2271
      %v2596 = vmul.f32 %v2276, %v2276
      %v2597 = vmul.f32 %v2279, %v2279
      %v2598 = vmul.f32 %v2284, %v2284
      %v2599 = vmul.f32 %v2287, %v2287
      %v2600 = vmul.f32 %v2292, %v2292
      %v2601 = vmul.f32 %v2295, %v2295
      %v2602 = vmul.f32 %v2300, %v2300
      %v2603 = vmul.f32 %v2303, %v2303
      %v2604 = vmul.f32 %v2308, %v2308
      %v2605 = vmul.f32 %v2311, %v2311
      %v2606 = vmul.f32 %v2316, %v2316
      %v2607 = vmul.f32 %v2319, %v2319
      %v2608 = vadd.f32 %v2568, %v2569
      %v2609 = vadd.f32 %v2608, %v2570
      %v2610 = vadd.f32 %v2609, %v2571
      %v2611 = vadd.f32 %v2610, %v2572
      %v2612 = vadd.f32 %v2611, %v2573
      %v2613 = vadd.f32 %v2612, %v2574
      %v2614 = vadd.f32 %v2613, %v2575
      %v2615 = vadd.f32 %v2614, %v2576
      %v2616 = vadd.f32 %v2615, %v2577
      %v2617 = vadd.f32 %v2616, %v2578
      %v2618 = vadd.f32 %v2617, %v2579
      %v2619 = vadd.f32 %v2618, %v2580
      %v2620 = vadd.f32 %v2619, %v2581
      %v2621 = vadd.f32 %v2620, %v2582
      %v2622 = vadd.f32 %v2621, %v2583
      %v2623 = vadd.f32 %v2622, %v2584
      %v2624 = vadd.f32 %v2623, %v2585
      %v2625 = vadd.f32 %v2624, %v2586
      %v2626 = vadd.f32 %v2625, %v2587
      %v2627 = vadd.f32 %v2626, %v2588
      %v2628 = vadd.f32 %v2627, %v2589
      %v2629 = vadd.f32 %v2628, %v2590
      %v2630 = vadd.f32 %v2629, %v2591
      %v2631 = vadd.f32 %v2630, %v2592
      %v2632 = vadd.f32 %v2631, %v2593
      %v2633 = vadd.f32 %v2632, %v2594
      %v2634 = vadd.f32 %v2633, %v2595
      %v2635 = vadd.f32 %v2634, %v2596
      %v2636 = vadd.f32 %v2635, %v2597
      %v2637 = vadd.f32 %v2636, %v2598
      %v2638 = vadd.f32 %v2637, %v2599
      %v2639 = vadd.f32 %v2638, %v2600
      %v2640 = vadd.f32 %v2639, %v2601
      %v2641 = vadd.f32 %v2640, %v2602
      %v2642 = vadd.f32 %v2641, %v2603
      %v2643 = vadd.f32 %v2642, %v2604
      %v2644 = vadd.f32 %v2643, %v2605
      %v2645 = vadd.f32 %v2644, %v2606
      %v2646 = vadd.f32 %v2645, %v2607
      %v2647 = vrot.slane %v2646, 4
      %v2648 = vadd.f32 %v2646, %v2647
      %v2649 = vrot.slane %v2648, 2
      %v2650 = vadd.f32 %v2648, %v2649
      %v2651 = vrot.slane %v2650, 1
      %v2652 = vadd.f32 %v2650, %v2651
      %2653 = vst [vmem:[%s220] sm:$0x1] %v2652
      %s2654 = smul.u32 40, %s16
      %p2655 = scmp.lt.s32.totalorder %s2654, 159
      %s2656 = scalar_select %p2655, %s2654, 159
      %s2657 = smul.addr %s2656, 4
      %s2658 = scalar_lea.vmem %s2, %s2657
      %p2659 = scmp.lt.s32.totalorder %s16, 3
      %s2660 = scalar_select %p2659, %s16, 3
      %s2661 = scalar_lea.vmem %s3, %s2660
      %p2662 = scmp.lt.s32.totalorder %s16, 3
      %s2663 = scalar_select %p2662, %s16, 3
      %s2664 = scalar_lea.vmem %s4, %s2663
      // Predicated region
      $region29: #{mnist_generator_forward.15} parent=27 // pred_check
        %p2665 = pneg %p81
      $region30: #{mnist_generator_forward.15} parent=27 // pred_check_branch
        %2667 = sbr.rel (%p2665) target = $region32
      $region31: #{mnist_generator_forward.15} parent=27 // pred_region
        %s2668 = smul.u32 40, %s16
      $region32: #{mnist_generator_forward.15} parent=27 // pred_fallthru
        _
      // Predicated region
      $region33: #{mnist_generator_forward.15} parent=27 // pred_check
        %p2669 = pneg %p107
      $region34: #{mnist_generator_forward.15} parent=27 // pred_check_branch
        %2671 = sbr.rel (%p2669) target = $region36
      $region35: #{mnist_generator_forward.15} parent=27 // pred_region
        _
      $region36: #{mnist_generator_forward.15} parent=27 // pred_fallthru
        _
      // Predicated region
      $region37: #{mnist_generator_forward.15} parent=27 // pred_check
        %p2672 = pneg %p133
      $region38: #{mnist_generator_forward.15} parent=27 // pred_check_branch
        %2674 = sbr.rel (%p2672) target = $region40
      $region39: #{mnist_generator_forward.15} parent=27 // pred_region
        _
      $region40: #{mnist_generator_forward.15} parent=27 // pred_fallthru
        _
    $region28: #{mnist_generator_forward.15} parent=5 // pred_fallthru
      _
    %p2675 = scmp.le.s32.totalorder 2, %s11
    // Predicated region
    $region41: #{mnist_generator_forward.15} parent=5 // pred_check
      %p2676 = pneg %p2675
    $region42: #{mnist_generator_forward.15} parent=5 // pred_check_branch
      %2678 = sbr.rel (%p2676) target = $region44
    $region43: #{mnist_generator_forward.15} parent=5 // pred_region
      %s2679 = ssub.s32 %s11, 2
      // Predicated region
      $region45: #{mnist_generator_forward.15} parent=43 // pred_check
        %p2680 = pneg %p87
      $region46: #{mnist_generator_forward.15} parent=43 // pred_check_branch
        %2682 = sbr.rel (%p2680) target = $region48
      $region47: #{mnist_generator_forward.15} parent=43 // pred_region
        %s2683 = smul.u32 40, %s17
        %p2684 = scmp.lt.s32.totalorder %s2683, 159
        %s2685 = scalar_select %p2684, %s2683, 159
        %s2686 = smul.addr %s2685, 4
        %s2687 = scalar_lea.vmem %s2, %s2686
      $region48: #{mnist_generator_forward.15} parent=43 // pred_fallthru
        _
      // Predicated region
      $region49: #{mnist_generator_forward.15} parent=43 // pred_check
        %p2688 = pneg %p113
      $region50: #{mnist_generator_forward.15} parent=43 // pred_check_branch
        %2690 = sbr.rel (%p2688) target = $region52
      $region51: #{mnist_generator_forward.15} parent=43 // pred_region
        %p2691 = scmp.lt.s32.totalorder %s17, 3
        %s2692 = scalar_select %p2691, %s17, 3
        %s2693 = scalar_lea.vmem %s3, %s2692
      $region52: #{mnist_generator_forward.15} parent=43 // pred_fallthru
        _
      // Predicated region
      $region53: #{mnist_generator_forward.15} parent=43 // pred_check
        %p2694 = pneg %p139
      $region54: #{mnist_generator_forward.15} parent=43 // pred_check_branch
        %2696 = sbr.rel (%p2694) target = $region56
      $region55: #{mnist_generator_forward.15} parent=43 // pred_region
        %p2697 = scmp.lt.s32.totalorder %s17, 3
        %s2698 = scalar_select %p2697, %s17, 3
        %s2699 = scalar_lea.vmem %s4, %s2698
      $region56: #{mnist_generator_forward.15} parent=43 // pred_fallthru
        _
    $region44: #{mnist_generator_forward.15} parent=5 // pred_fallthru
      _
  $region6: #{mnist_generator_forward.15} parent=0 // loop_footer
    %s15 = sadd.s32 1, %s11
  $region7: #{mnist_generator_forward.15} parent=0 // loop_footer_branch
    %10 = sbr.rel target = $region3
  $region8: #{mnist_generator_forward.15} parent=0 // loop_exit
    _

// kernel: mnist_generator_forward.16
$region0: #{mnist_generator_forward.16}
  #allocation0 [shape = 'u32[]', space=smem, size = 0x4, offset = 0x4, fixed_abs, tag = 'smem constant byte address 0x4 - core index']
  #allocation1 [shape = 'u32[144,128]{1,0:T(1,128)}', space=vmem, size = 0x12000, scoped, tag = 'internal scratch']
  %s0 = inlined_call_operand.vmem [shape: bf16[1280,128], index: 0, kind: input, shape index: {}]
  %s1 = inlined_call_operand.vmem [shape: f32[1,128], index: 1, kind: input, shape index: {}]
  %s2 = inlined_call_operand.vmem [shape: f32[1,128], index: 2, kind: input, shape index: {}]
  %s3 = inlined_call_operand.vmem [shape: bf16[1280,128], index: 3, kind: output, shape index: {}]
  %s4 = sld [smem:[#allocation0]]
  $region45: #{mnist_generator_forward.16} parent=0
    _
  %s6 = ssub.s32 1, %s4
  %s7 = scalar_select 0, %s6, %s4
  loop: start=0, step=1, limit=6
  $region2: #{mnist_generator_forward.16} parent=0 // loop_pre_header
    _
  $region3: #{mnist_generator_forward.16} parent=0 // loop_header
    %s9 = sphi 0, %s13
    %p10 = scmp.ge.s32.totalorder %s9, 6
    %s19 = sphi 0, %s21
    %s22 = sphi 0, %s19
    %s23 = sphi 0, %s22
    %s39 = sphi 0, %s23
    %s43 = sphi 0, %s43
    %s45 = sphi 0, %s43
    %s46 = sphi 0, %s45
    %s60 = sphi 0, %s46
    %s64 = sphi 0, %s64
    %s66 = sphi 0, %s64
    %s67 = sphi 0, %s66
    %s81 = sphi 0, %s67
    %s87 = sphi 0, %s89
    %s90 = sphi 0, %s87
    %s91 = sphi 0, %s90
    %s107 = sphi 0, %s91
  $region4: #{mnist_generator_forward.16} parent=0 // loop_header_branch
    %12 = sbr.rel (%p10) target = $region8
  $region5: #{mnist_generator_forward.16} parent=0 // loop_body
    %s14 = ssub.s32 %s9, 1
    %s15 = ssub.s32 %s9, 2
    %s16 = sadd.s32 %s9, 1
    %s17 = ssub.s32 %s9, %s16
    %p18 = scmp.eq.s32.totalorder %s17, 0
    %s20 = sadd.s32 %s19, 1
    %s21 = scalar_select %p18, %s19, %s20
    %p24 = pneg %p18
    %p25 = scmp.eq.s32.totalorder %s9, 3
    %p26 = por %p24, %p25
    %p27 = scmp.ne.s32.totalorder %s19, %s22
    %p28 = scmp.eq.s32.totalorder %s9, 0
    %p29 = por %p27, %p28
    %p30 = scmp.ne.s32.totalorder %s19, %s22
    %p31 = scmp.eq.s32.totalorder %s14, 3
    %p32 = por %p30, %p31
    %p33 = scmp.ne.s32.totalorder %s22, %s23
    %p34 = scmp.eq.s32.totalorder %s14, 0
    %p35 = por %p33, %p34
    %p36 = scmp.ne.s32.totalorder %s22, %s23
    %p37 = scmp.eq.s32.totalorder %s15, 3
    %p38 = por %p36, %p37
    %p40 = scmp.ne.s32.totalorder %s23, %s39
    %p41 = scmp.eq.s32.totalorder %s15, 0
    %p42 = por %p40, %p41
    %s44 = sadd.s32 %s43, 1
    %p47 = scmp.eq.s32.totalorder %s9, 3
    %p48 = scmp.ne.s32.totalorder %s43, %s45
    %p49 = scmp.eq.s32.totalorder %s9, 0
    %p50 = por %p48, %p49
    %p51 = scmp.ne.s32.totalorder %s43, %s45
    %p52 = scmp.eq.s32.totalorder %s14, 3
    %p53 = por %p51, %p52
    %p54 = scmp.ne.s32.totalorder %s45, %s46
    %p55 = scmp.eq.s32.totalorder %s14, 0
    %p56 = por %p54, %p55
    %p57 = scmp.ne.s32.totalorder %s45, %s46
    %p58 = scmp.eq.s32.totalorder %s15, 3
    %p59 = por %p57, %p58
    %p61 = scmp.ne.s32.totalorder %s46, %s60
    %p62 = scmp.eq.s32.totalorder %s15, 0
    %p63 = por %p61, %p62
    %s65 = sadd.s32 %s64, 1
    %p68 = scmp.eq.s32.totalorder %s9, 3
    %p69 = scmp.ne.s32.totalorder %s64, %s66
    %p70 = scmp.eq.s32.totalorder %s9, 0
    %p71 = por %p69, %p70
    %p72 = scmp.ne.s32.totalorder %s64, %s66
    %p73 = scmp.eq.s32.totalorder %s14, 3
    %p74 = por %p72, %p73
    %p75 = scmp.ne.s32.totalorder %s66, %s67
    %p76 = scmp.eq.s32.totalorder %s14, 0
    %p77 = por %p75, %p76
    %p78 = scmp.ne.s32.totalorder %s66, %s67
    %p79 = scmp.eq.s32.totalorder %s15, 3
    %p80 = por %p78, %p79
    %p82 = scmp.ne.s32.totalorder %s67, %s81
    %p83 = scmp.eq.s32.totalorder %s15, 0
    %p84 = por %p82, %p83
    %s85 = ssub.s32 %s9, %s16
    %p86 = scmp.eq.s32.totalorder %s85, 0
    %s88 = sadd.s32 %s87, 1
    %s89 = scalar_select %p86, %s87, %s88
    %p92 = pneg %p86
    %p93 = scmp.eq.s32.totalorder %s9, 3
    %p94 = por %p92, %p93
    %p95 = scmp.ne.s32.totalorder %s87, %s90
    %p96 = scmp.eq.s32.totalorder %s9, 0
    %p97 = por %p95, %p96
    %p98 = scmp.ne.s32.totalorder %s87, %s90
    %p99 = scmp.eq.s32.totalorder %s14, 3
    %p100 = por %p98, %p99
    %p101 = scmp.ne.s32.totalorder %s90, %s91
    %p102 = scmp.eq.s32.totalorder %s14, 0
    %p103 = por %p101, %p102
    %p104 = scmp.ne.s32.totalorder %s90, %s91
    %p105 = scmp.eq.s32.totalorder %s15, 3
    %p106 = por %p104, %p105
    %p108 = scmp.ne.s32.totalorder %s91, %s107
    %p109 = scmp.eq.s32.totalorder %s15, 0
    %p110 = por %p108, %p109
    %p111 = scmp.le.s32.totalorder 1, %s9
    %p112 = scmp.lt.s32.totalorder %s9, 5
    %p113 = pnand %p111, %p112
    %p114 = pneg %p113
    // Predicated region
    $region9: #{mnist_generator_forward.16} parent=5 // pred_check
      _
    $region10: #{mnist_generator_forward.16} parent=5 // pred_check_branch
      %116 = sbr.rel (%p113) target = $region12
    $region11: #{mnist_generator_forward.16} parent=5 // pred_region
      %s117 = ssub.s32 %s9, 1
      // Predicated region
      $region13: #{mnist_generator_forward.16} parent=11 // pred_check
        %p118 = pneg %p56
      $region14: #{mnist_generator_forward.16} parent=11 // pred_check_branch
        %120 = sbr.rel (%p118) target = $region16
      $region15: #{mnist_generator_forward.16} parent=11 // pred_region
        _
      $region16: #{mnist_generator_forward.16} parent=11 // pred_fallthru
        _
      // Predicated region
      $region17: #{mnist_generator_forward.16} parent=11 // pred_check
        %p121 = pneg %p77
      $region18: #{mnist_generator_forward.16} parent=11 // pred_check_branch
        %123 = sbr.rel (%p121) target = $region20
      $region19: #{mnist_generator_forward.16} parent=11 // pred_region
        _
      $region20: #{mnist_generator_forward.16} parent=11 // pred_fallthru
        _
    $region12: #{mnist_generator_forward.16} parent=5 // pred_fallthru
      _
    %p124 = scmp.lt.s32.totalorder %s9, 4
    // Predicated region
    $region21: #{mnist_generator_forward.16} parent=5 // pred_check
      %p125 = pneg %p124
    $region22: #{mnist_generator_forward.16} parent=5 // pred_check_branch
      %127 = sbr.rel (%p125) target = $region24
    $region23: #{mnist_generator_forward.16} parent=5 // pred_region
      // Predicated region
      $region25: #{mnist_generator_forward.16} parent=23 // pred_check
        %p128 = pneg %p29
      $region26: #{mnist_generator_forward.16} parent=23 // pred_check_branch
        %130 = sbr.rel (%p128) target = $region28
      $region27: #{mnist_generator_forward.16} parent=23 // pred_region
        %s131 = smul.u32 40, %s9
        %p132 = scmp.lt.s32.totalorder %s131, 159
        %s133 = scalar_select %p132, %s131, 159
        %s134 = smul.addr %s133, 4
        %s135 = scalar_lea.vmem %s0, %s134
        %s136 = smul.u32 40, %s9
      $region28: #{mnist_generator_forward.16} parent=23 // pred_fallthru
        _
    $region24: #{mnist_generator_forward.16} parent=5 // pred_fallthru
      _
    %p137 = scmp.le.s32.totalorder 1, %s9
    %p138 = scmp.lt.s32.totalorder %s9, 5
    %p139 = pnand %p137, %p138
    %p140 = pneg %p139
    // Predicated region
    $region29: #{mnist_generator_forward.16} parent=5 // pred_check
      _
    $region30: #{mnist_generator_forward.16} parent=5 // pred_check_branch
      %142 = sbr.rel (%p139) target = $region32
    $region31: #{mnist_generator_forward.16} parent=5 // pred_region
      %s143 = ssub.s32 %s9, 1
      %s144 = smul.u32 40, %s14
      %p145 = scmp.lt.s32.totalorder %s144, 159
      %s146 = scalar_select %p145, %s144, 159
      %s147 = smul.addr %s146, 4
      %s148 = scalar_lea.vmem %s0, %s147
      %p149 = pneg %p35
      %p150 = pneg %p32
      %p151 = pneg %p56
      %p152 = pneg %p53
      %p153 = pneg %p77
      %p154 = pneg %p74
      %p155 = pneg %p103
      %p156 = pneg %p100
      %s157 = smul.u32 40, %s14
      %p158 = scmp.lt.s32.totalorder %s157, 159
      %s159 = scalar_select %p158, %s157, 159
      %s160 = smul.addr %s159, 4
      %s161 = scalar_lea.vmem %s3, %s160
      %s162 = smul.u32 40, %s14
      %p163 = scmp.lt.s32.totalorder %s162, 159
      %s164 = scalar_select %p163, %s162, 159
      %s165 = smul.addr %s164, 4
      %s166 = scalar_lea.vmem %s0, %s165
      %s167 = smul.u32 40, %s14
      %s168 = smul.u32 40, %s14
      %p169 = scmp.lt.s32.totalorder %s168, 159
      %s170 = scalar_select %p169, %s168, 159
      %s171 = smul.addr %s170, 4
      %s172 = scalar_lea.vmem %s3, %s171
      %s173 = smul.u32 40, %s14
      %v174 = vld [vmem:[%s166] sm:$0xf]
      %v175 = vld [vmem:[%s166 + $0x4] sm:$0xf]
      %v176 = vld [vmem:[%s166 + $0x8] sm:$0xf]
      %v177 = vld [vmem:[%s166 + $0xc] sm:$0xf]
      %v178 = vld [vmem:[%s166 + $0x10] sm:$0xf]
      %v179 = vld [vmem:[%s166 + $0x14] sm:$0xf]
      %v180 = vld [vmem:[%s166 + $0x18] sm:$0xf]
      %v181 = vld [vmem:[%s166 + $0x1c] sm:$0xf]
      %v182 = vld [vmem:[%s166 + $0x20] sm:$0xf]
      %v183 = vld [vmem:[%s166 + $0x24] sm:$0xf]
      %v184 = vld [vmem:[%s166 + $0x28] sm:$0xf]
      %v185 = vld [vmem:[%s166 + $0x2c] sm:$0xf]
      %v186 = vld [vmem:[%s166 + $0x30] sm:$0xf]
      %v187 = vld [vmem:[%s166 + $0x34] sm:$0xf]
      %v188 = vld [vmem:[%s166 + $0x38] sm:$0xf]
      %v189 = vld [vmem:[%s166 + $0x3c] sm:$0xf]
      %v190 = vld [vmem:[%s166 + $0x40] sm:$0xf]
      %v191 = vld [vmem:[%s166 + $0x44] sm:$0xf]
      %v192 = vld [vmem:[%s166 + $0x48] sm:$0xf]
      %v193 = vld [vmem:[%s166 + $0x4c] sm:$0xf]
      %v194 = vld [vmem:[%s166 + $0x50] sm:$0xf]
      %v195 = vld [vmem:[%s166 + $0x54] sm:$0xf]
      %v196 = vld [vmem:[%s166 + $0x58] sm:$0xf]
      %v197 = vld [vmem:[%s166 + $0x5c] sm:$0xf]
      %v198 = vld [vmem:[%s166 + $0x60] sm:$0xf]
      %v199 = vld [vmem:[%s166 + $0x64] sm:$0xf]
      %v200 = vld [vmem:[%s166 + $0x68] sm:$0xf]
      %v201 = vld [vmem:[%s166 + $0x6c] sm:$0xf]
      %v202 = vld [vmem:[%s166 + $0x70] sm:$0xf]
      %v203 = vld [vmem:[%s166 + $0x74] sm:$0xf]
      %v204 = vld [vmem:[%s166 + $0x78] sm:$0xf]
      %v205 = vld [vmem:[%s166 + $0x7c] sm:$0xf]
      %v206 = vld [vmem:[%s166 + $0x80] sm:$0xf]
      %v207 = vld [vmem:[%s166 + $0x84] sm:$0xf]
      %v208 = vld [vmem:[%s166 + $0x88] sm:$0xf]
      %v209 = vld [vmem:[%s166 + $0x8c] sm:$0xf]
      %v210 = vld [vmem:[%s166 + $0x90] sm:$0xf]
      %v211 = vld [vmem:[%s166 + $0x94] sm:$0xf]
      %v212 = vld [vmem:[%s166 + $0x98] sm:$0xf]
      %v213 = vld [vmem:[%s166 + $0x9c] sm:$0xf]
      %v214 = vunpack.c.l.bf16 %v174
      %v215 = vunpack.c.l.bf16 %v175
      %v216 = vunpack.c.l.bf16 %v176
      %v217 = vunpack.c.l.bf16 %v177
      %v218 = vunpack.c.l.bf16 %v178
      %v219 = vunpack.c.l.bf16 %v179
      %v220 = vunpack.c.l.bf16 %v180
      %v221 = vunpack.c.l.bf16 %v181
      %v222 = vunpack.c.l.bf16 %v182
      %v223 = vunpack.c.l.bf16 %v183
      %v224 = vunpack.c.l.bf16 %v184
      %v225 = vunpack.c.l.bf16 %v185
      %v226 = vunpack.c.l.bf16 %v186
      %v227 = vunpack.c.l.bf16 %v187
      %v228 = vunpack.c.l.bf16 %v188
      %v229 = vunpack.c.l.bf16 %v189
      %v230 = vunpack.c.l.bf16 %v190
      %v231 = vunpack.c.l.bf16 %v191
      %v232 = vunpack.c.l.bf16 %v192
      %v233 = vunpack.c.l.bf16 %v193
      %v234 = vunpack.c.l.bf16 %v194
      %v235 = vunpack.c.l.bf16 %v195
      %v236 = vunpack.c.l.bf16 %v196
      %v237 = vunpack.c.l.bf16 %v197
      %v238 = vunpack.c.l.bf16 %v198
      %v239 = vunpack.c.l.bf16 %v199
      %v240 = vunpack.c.l.bf16 %v200
      %v241 = vunpack.c.l.bf16 %v201
      %v242 = vunpack.c.l.bf16 %v202
      %v243 = vunpack.c.l.bf16 %v203
      %v244 = vunpack.c.l.bf16 %v204
      %v245 = vunpack.c.l.bf16 %v205
      %v246 = vunpack.c.l.bf16 %v206
      %v247 = vunpack.c.l.bf16 %v207
      %v248 = vunpack.c.l.bf16 %v208
      %v249 = vunpack.c.l.bf16 %v209
      %v250 = vunpack.c.l.bf16 %v210
      %v251 = vunpack.c.l.bf16 %v211
      %v252 = vunpack.c.l.bf16 %v212
      %v253 = vunpack.c.l.bf16 %v213
      %v254 = vld [vmem:[%s1] sm:$0x1]
      %v256 = vlaneseq
      %v257 = vshrl.u32 %v256, 7
      %v258 = vsub.s32 0, %v257
      %v259 = vrot.slane %v254, %v258
      %v261 = vmul.f32 %v214, %v259
      %v262 = vmul.f32 %v215, %v259
      %v263 = vmul.f32 %v216, %v259
      %v264 = vmul.f32 %v217, %v259
      %v265 = vmul.f32 %v218, %v259
      %v266 = vmul.f32 %v219, %v259
      %v267 = vmul.f32 %v220, %v259
      %v268 = vmul.f32 %v221, %v259
      %v269 = vmul.f32 %v222, %v259
      %v270 = vmul.f32 %v223, %v259
      %v271 = vmul.f32 %v224, %v259
      %v272 = vmul.f32 %v225, %v259
      %v273 = vmul.f32 %v226, %v259
      %v274 = vmul.f32 %v227, %v259
      %v275 = vmul.f32 %v228, %v259
      %v276 = vmul.f32 %v229, %v259
      %v277 = vmul.f32 %v230, %v259
      %v278 = vmul.f32 %v231, %v259
      %v279 = vmul.f32 %v232, %v259
      %v280 = vmul.f32 %v233, %v259
      %v281 = vmul.f32 %v234, %v259
      %v282 = vmul.f32 %v235, %v259
      %v283 = vmul.f32 %v236, %v259
      %v284 = vmul.f32 %v237, %v259
      %v285 = vmul.f32 %v238, %v259
      %v286 = vmul.f32 %v239, %v259
      %v287 = vmul.f32 %v240, %v259
      %v288 = vmul.f32 %v241, %v259
      %v289 = vmul.f32 %v242, %v259
      %v290 = vmul.f32 %v243, %v259
      %v291 = vmul.f32 %v244, %v259
      %v292 = vmul.f32 %v245, %v259
      %v293 = vmul.f32 %v246, %v259
      %v294 = vmul.f32 %v247, %v259
      %v295 = vmul.f32 %v248, %v259
      %v296 = vmul.f32 %v249, %v259
      %v297 = vmul.f32 %v250, %v259
      %v298 = vmul.f32 %v251, %v259
      %v299 = vmul.f32 %v252, %v259
      %v300 = vmul.f32 %v253, %v259
      %v301 = vld [vmem:[%s2] sm:$0x1]
      %v303 = vlaneseq
      %v304 = vshrl.u32 %v303, 7
      %v305 = vsub.s32 0, %v304
      %v306 = vrot.slane %v301, %v305
      %v308 = vadd.f32 %v261, %v306
      %v309 = vadd.f32 %v262, %v306
      %v310 = vadd.f32 %v263, %v306
      %v311 = vadd.f32 %v264, %v306
      %v312 = vadd.f32 %v265, %v306
      %v313 = vadd.f32 %v266, %v306
      %v314 = vadd.f32 %v267, %v306
      %v315 = vadd.f32 %v268, %v306
      %v316 = vadd.f32 %v269, %v306
      %v317 = vadd.f32 %v270, %v306
      %v318 = vadd.f32 %v271, %v306
      %v319 = vadd.f32 %v272, %v306
      %v320 = vadd.f32 %v273, %v306
      %v321 = vadd.f32 %v274, %v306
      %v322 = vadd.f32 %v275, %v306
      %v323 = vadd.f32 %v276, %v306
      %v324 = vadd.f32 %v277, %v306
      %v325 = vadd.f32 %v278, %v306
      %v326 = vadd.f32 %v279, %v306
      %v327 = vadd.f32 %v280, %v306
      %v328 = vadd.f32 %v281, %v306
      %v329 = vadd.f32 %v282, %v306
      %v330 = vadd.f32 %v283, %v306
      %v331 = vadd.f32 %v284, %v306
      %v332 = vadd.f32 %v285, %v306
      %v333 = vadd.f32 %v286, %v306
      %v334 = vadd.f32 %v287, %v306
      %v335 = vadd.f32 %v288, %v306
      %v336 = vadd.f32 %v289, %v306
      %v337 = vadd.f32 %v290, %v306
      %v338 = vadd.f32 %v291, %v306
      %v339 = vadd.f32 %v292, %v306
      %v340 = vadd.f32 %v293, %v306
      %v341 = vadd.f32 %v294, %v306
      %v342 = vadd.f32 %v295, %v306
      %v343 = vadd.f32 %v296, %v306
      %v344 = vadd.f32 %v297, %v306
      %v345 = vadd.f32 %v298, %v306
      %v346 = vadd.f32 %v299, %v306
      %v347 = vadd.f32 %v300, %v306
      %v348 = vmax.f32 %v308, 0.0
      %v349 = vmax.f32 %v309, 0.0
      %v350 = vmax.f32 %v310, 0.0
      %v351 = vmax.f32 %v311, 0.0
      %v352 = vmax.f32 %v312, 0.0
      %v353 = vmax.f32 %v313, 0.0
      %v354 = vmax.f32 %v314, 0.0
      %v355 = vmax.f32 %v315, 0.0
      %v356 = vmax.f32 %v316, 0.0
      %v357 = vmax.f32 %v317, 0.0
      %v358 = vmax.f32 %v318, 0.0
      %v359 = vmax.f32 %v319, 0.0
      %v360 = vmax.f32 %v320, 0.0
      %v361 = vmax.f32 %v321, 0.0
      %v362 = vmax.f32 %v322, 0.0
      %v363 = vmax.f32 %v323, 0.0
      %v364 = vmax.f32 %v324, 0.0
      %v365 = vmax.f32 %v325, 0.0
      %v366 = vmax.f32 %v326, 0.0
      %v367 = vmax.f32 %v327, 0.0
      %v368 = vmax.f32 %v328, 0.0
      %v369 = vmax.f32 %v329, 0.0
      %v370 = vmax.f32 %v330, 0.0
      %v371 = vmax.f32 %v331, 0.0
      %v372 = vmax.f32 %v332, 0.0
      %v373 = vmax.f32 %v333, 0.0
      %v374 = vmax.f32 %v334, 0.0
      %v375 = vmax.f32 %v335, 0.0
      %v376 = vmax.f32 %v336, 0.0
      %v377 = vmax.f32 %v337, 0.0
      %v378 = vmax.f32 %v338, 0.0
      %v379 = vmax.f32 %v339, 0.0
      %v380 = vmax.f32 %v340, 0.0
      %v381 = vmax.f32 %v341, 0.0
      %v382 = vmax.f32 %v342, 0.0
      %v383 = vmax.f32 %v343, 0.0
      %v384 = vmax.f32 %v344, 0.0
      %v385 = vmax.f32 %v345, 0.0
      %v386 = vmax.f32 %v346, 0.0
      %v387 = vmax.f32 %v347, 0.0
      %v388 = vpack.c.bf16 %v349, %v348
      %v389 = vpack.c.bf16 %v351, %v350
      %v390 = vpack.c.bf16 %v353, %v352
      %v391 = vpack.c.bf16 %v355, %v354
      %v392 = vpack.c.bf16 %v357, %v356
      %v393 = vpack.c.bf16 %v359, %v358
      %v394 = vpack.c.bf16 %v361, %v360
      %v395 = vpack.c.bf16 %v363, %v362
      %v396 = vpack.c.bf16 %v365, %v364
      %v397 = vpack.c.bf16 %v367, %v366
      %v398 = vpack.c.bf16 %v369, %v368
      %v399 = vpack.c.bf16 %v371, %v370
      %v400 = vpack.c.bf16 %v373, %v372
      %v401 = vpack.c.bf16 %v375, %v374
      %v402 = vpack.c.bf16 %v377, %v376
      %v403 = vpack.c.bf16 %v379, %v378
      %v404 = vpack.c.bf16 %v381, %v380
      %v405 = vpack.c.bf16 %v383, %v382
      %v406 = vpack.c.bf16 %v385, %v384
      %v407 = vpack.c.bf16 %v387, %v386
      %v428 = vunpack.c.l.b16 %v388
      %v429 = vunpack.c.h.b16 %v388
      %v430 = vunpack.c.l.b16 %v389
      %v431 = vunpack.c.h.b16 %v389
      %v432 = vunpack.c.l.b16 %v390
      %v433 = vunpack.c.h.b16 %v390
      %v434 = vunpack.c.l.b16 %v391
      %v435 = vunpack.c.h.b16 %v391
      %v436 = vunpack.c.l.b16 %v392
      %v437 = vunpack.c.h.b16 %v392
      %v438 = vunpack.c.l.b16 %v393
      %v439 = vunpack.c.h.b16 %v393
      %v440 = vunpack.c.l.b16 %v394
      %v441 = vunpack.c.h.b16 %v394
      %v442 = vunpack.c.l.b16 %v395
      %v443 = vunpack.c.h.b16 %v395
      %v444 = vunpack.c.l.b16 %v396
      %v445 = vunpack.c.h.b16 %v396
      %v446 = vunpack.c.l.b16 %v397
      %v447 = vunpack.c.h.b16 %v397
      %v448 = vunpack.c.l.b16 %v398
      %v449 = vunpack.c.h.b16 %v398
      %v450 = vunpack.c.l.b16 %v399
      %v451 = vunpack.c.h.b16 %v399
      %v452 = vunpack.c.l.b16 %v400
      %v453 = vunpack.c.h.b16 %v400
      %v454 = vunpack.c.l.b16 %v401
      %v455 = vunpack.c.h.b16 %v401
      %v456 = vunpack.c.l.b16 %v402
      %v457 = vunpack.c.h.b16 %v402
      %v458 = vunpack.c.l.b16 %v403
      %v459 = vunpack.c.h.b16 %v403
      %v460 = vunpack.c.l.b16 %v404
      %v461 = vunpack.c.h.b16 %v404
      %v462 = vunpack.c.l.b16 %v405
      %v463 = vunpack.c.h.b16 %v405
      %v464 = vunpack.c.l.b16 %v406
      %v465 = vunpack.c.h.b16 %v406
      %v466 = vunpack.c.l.b16 %v407
      %v467 = vunpack.c.h.b16 %v407
      %v468 = vpack.c.b16 %v428, %v428
      %v469 = vpack.c.b16 %v429, %v429
      %v470 = vpack.c.b16 %v430, %v430
      %v471 = vpack.c.b16 %v431, %v431
      %v472 = vpack.c.b16 %v432, %v432
      %v473 = vpack.c.b16 %v433, %v433
      %v474 = vpack.c.b16 %v434, %v434
      %v475 = vpack.c.b16 %v435, %v435
      %v476 = vpack.c.b16 %v436, %v436
      %v477 = vpack.c.b16 %v437, %v437
      %v478 = vpack.c.b16 %v438, %v438
      %v479 = vpack.c.b16 %v439, %v439
      %v480 = vpack.c.b16 %v440, %v440
      %v481 = vpack.c.b16 %v441, %v441
      %v482 = vpack.c.b16 %v442, %v442
      %v483 = vpack.c.b16 %v443, %v443
      %v484 = vpack.c.b16 %v444, %v444
      %v485 = vpack.c.b16 %v445, %v445
      %v486 = vpack.c.b16 %v446, %v446
      %v487 = vpack.c.b16 %v447, %v447
      %v488 = vpack.c.b16 %v448, %v448
      %v489 = vpack.c.b16 %v449, %v449
      %v490 = vpack.c.b16 %v450, %v450
      %v491 = vpack.c.b16 %v451, %v451
      %v492 = vpack.c.b16 %v452, %v452
      %v493 = vpack.c.b16 %v453, %v453
      %v494 = vpack.c.b16 %v454, %v454
      %v495 = vpack.c.b16 %v455, %v455
      %v496 = vpack.c.b16 %v456, %v456
      %v497 = vpack.c.b16 %v457, %v457
      %v498 = vpack.c.b16 %v458, %v458
      %v499 = vpack.c.b16 %v459, %v459
      %v500 = vpack.c.b16 %v460, %v460
      %v501 = vpack.c.b16 %v461, %v461
      %v502 = vpack.c.b16 %v462, %v462
      %v503 = vpack.c.b16 %v463, %v463
      %v504 = vpack.c.b16 %v464, %v464
      %v505 = vpack.c.b16 %v465, %v465
      %v506 = vpack.c.b16 %v466, %v466
      %v507 = vpack.c.b16 %v467, %v467
      %548 = vst [vmem:[%s172] sm:$0xf] %v468
      %549 = vst [vmem:[%s172 + $0x4] sm:$0xf] %v469
      %550 = vst [vmem:[%s172 + $0x8] sm:$0xf] %v470
      %551 = vst [vmem:[%s172 + $0xc] sm:$0xf] %v471
      %552 = vst [vmem:[%s172 + $0x10] sm:$0xf] %v472
      %553 = vst [vmem:[%s172 + $0x14] sm:$0xf] %v473
      %554 = vst [vmem:[%s172 + $0x18] sm:$0xf] %v474
      %555 = vst [vmem:[%s172 + $0x1c] sm:$0xf] %v475
      %556 = vst [vmem:[%s172 + $0x20] sm:$0xf] %v476
      %557 = vst [vmem:[%s172 + $0x24] sm:$0xf] %v477
      %558 = vst [vmem:[%s172 + $0x28] sm:$0xf] %v478
      %559 = vst [vmem:[%s172 + $0x2c] sm:$0xf] %v479
      %560 = vst [vmem:[%s172 + $0x30] sm:$0xf] %v480
      %561 = vst [vmem:[%s172 + $0x34] sm:$0xf] %v481
      %562 = vst [vmem:[%s172 + $0x38] sm:$0xf] %v482
      %563 = vst [vmem:[%s172 + $0x3c] sm:$0xf] %v483
      %564 = vst [vmem:[%s172 + $0x40] sm:$0xf] %v484
      %565 = vst [vmem:[%s172 + $0x44] sm:$0xf] %v485
      %566 = vst [vmem:[%s172 + $0x48] sm:$0xf] %v486
      %567 = vst [vmem:[%s172 + $0x4c] sm:$0xf] %v487
      %568 = vst [vmem:[%s172 + $0x50] sm:$0xf] %v488
      %569 = vst [vmem:[%s172 + $0x54] sm:$0xf] %v489
      %570 = vst [vmem:[%s172 + $0x58] sm:$0xf] %v490
      %571 = vst [vmem:[%s172 + $0x5c] sm:$0xf] %v491
      %572 = vst [vmem:[%s172 + $0x60] sm:$0xf] %v492
      %573 = vst [vmem:[%s172 + $0x64] sm:$0xf] %v493
      %574 = vst [vmem:[%s172 + $0x68] sm:$0xf] %v494
      %575 = vst [vmem:[%s172 + $0x6c] sm:$0xf] %v495
      %576 = vst [vmem:[%s172 + $0x70] sm:$0xf] %v496
      %577 = vst [vmem:[%s172 + $0x74] sm:$0xf] %v497
      %578 = vst [vmem:[%s172 + $0x78] sm:$0xf] %v498
      %579 = vst [vmem:[%s172 + $0x7c] sm:$0xf] %v499
      %580 = vst [vmem:[%s172 + $0x80] sm:$0xf] %v500
      %581 = vst [vmem:[%s172 + $0x84] sm:$0xf] %v501
      %582 = vst [vmem:[%s172 + $0x88] sm:$0xf] %v502
      %583 = vst [vmem:[%s172 + $0x8c] sm:$0xf] %v503
      %584 = vst [vmem:[%s172 + $0x90] sm:$0xf] %v504
      %585 = vst [vmem:[%s172 + $0x94] sm:$0xf] %v505
      %586 = vst [vmem:[%s172 + $0x98] sm:$0xf] %v506
      %587 = vst [vmem:[%s172 + $0x9c] sm:$0xf] %v507
      %s588 = smul.u32 40, %s14
      %p589 = scmp.lt.s32.totalorder %s588, 159
      %s590 = scalar_select %p589, %s588, 159
      %s591 = smul.addr %s590, 4
      %s592 = scalar_lea.vmem %s3, %s591
      // Predicated region
      $region33: #{mnist_generator_forward.16} parent=31 // pred_check
        %p593 = pneg %p100
      $region34: #{mnist_generator_forward.16} parent=31 // pred_check_branch
        %595 = sbr.rel (%p593) target = $region36
      $region35: #{mnist_generator_forward.16} parent=31 // pred_region
        %s596 = smul.u32 40, %s14
      $region36: #{mnist_generator_forward.16} parent=31 // pred_fallthru
        _
    $region32: #{mnist_generator_forward.16} parent=5 // pred_fallthru
      _
    %p597 = scmp.le.s32.totalorder 2, %s9
    // Predicated region
    $region37: #{mnist_generator_forward.16} parent=5 // pred_check
      %p598 = pneg %p597
    $region38: #{mnist_generator_forward.16} parent=5 // pred_check_branch
      %600 = sbr.rel (%p598) target = $region40
    $region39: #{mnist_generator_forward.16} parent=5 // pred_region
      %s601 = ssub.s32 %s9, 2
      // Predicated region
      $region41: #{mnist_generator_forward.16} parent=39 // pred_check
        %p602 = pneg %p106
      $region42: #{mnist_generator_forward.16} parent=39 // pred_check_branch
        %604 = sbr.rel (%p602) target = $region44
      $region43: #{mnist_generator_forward.16} parent=39 // pred_region
        %s605 = smul.u32 40, %s15
        %p606 = scmp.lt.s32.totalorder %s605, 159
        %s607 = scalar_select %p606, %s605, 159
        %s608 = smul.addr %s607, 4
        %s609 = scalar_lea.vmem %s3, %s608
      $region44: #{mnist_generator_forward.16} parent=39 // pred_fallthru
        _
    $region40: #{mnist_generator_forward.16} parent=5 // pred_fallthru
      _
  $region6: #{mnist_generator_forward.16} parent=0 // loop_footer
    %s13 = sadd.s32 1, %s9
  $region7: #{mnist_generator_forward.16} parent=0 // loop_footer_branch
    %8 = sbr.rel target = $region3
  $region8: #{mnist_generator_forward.16} parent=0 // loop_exit
    _

// kernel: mnist_generator_forward.17
$region0: #{mnist_generator_forward.17}
  #allocation0 [shape = 'u32[]', space=smem, size = 0x4, offset = 0x4, fixed_abs, tag = 'smem constant byte address 0x4 - core index']
  #allocation1 [shape = 'u32[144,128]{1,0:T(1,128)}', space=vmem, size = 0x12000, scoped, tag = 'internal scratch']
  %s0 = inlined_call_operand.vmem [shape: bf16[1568,512], index: 0, kind: input, shape index: {}]
  %s1 = inlined_call_operand.vmem [shape: bf16[512,128], index: 1, kind: input, shape index: {}]
  %s2 = inlined_call_operand.vmem [shape: f32[1568,128], index: 2, kind: output, shape index: {}]
  %s3 = sld [smem:[#allocation0]]
  $region41: #{mnist_generator_forward.17} parent=0
    _
  %s5 = ssub.s32 1, %s3
  %s6 = scalar_select 0, %s5, %s3
  loop: start=0, step=1, limit=6
  $region2: #{mnist_generator_forward.17} parent=0 // loop_pre_header
    _
  $region3: #{mnist_generator_forward.17} parent=0 // loop_header
    %s8 = sphi 0, %s12
    %p9 = scmp.ge.s32.totalorder %s8, 6
    %s18 = sphi 0, %s20
    %s21 = sphi 0, %s18
    %s22 = sphi 0, %s21
    %s38 = sphi 0, %s22
    %s42 = sphi 0, %s42
    %s44 = sphi 0, %s42
    %s45 = sphi 0, %s44
    %s59 = sphi 0, %s45
    %s65 = sphi 0, %s67
    %s68 = sphi 0, %s65
    %s69 = sphi 0, %s68
    %s85 = sphi 0, %s69
  $region4: #{mnist_generator_forward.17} parent=0 // loop_header_branch
    %11 = sbr.rel (%p9) target = $region8
  $region5: #{mnist_generator_forward.17} parent=0 // loop_body
    %s13 = ssub.s32 %s8, 1
    %s14 = ssub.s32 %s8, 2
    %s15 = sadd.s32 %s8, 1
    %s16 = ssub.s32 %s8, %s15
    %p17 = scmp.eq.s32.totalorder %s16, 0
    %s19 = sadd.s32 %s18, 1
    %s20 = scalar_select %p17, %s18, %s19
    %p23 = pneg %p17
    %p24 = scmp.eq.s32.totalorder %s8, 3
    %p25 = por %p23, %p24
    %p26 = scmp.ne.s32.totalorder %s18, %s21
    %p27 = scmp.eq.s32.totalorder %s8, 0
    %p28 = por %p26, %p27
    %p29 = scmp.ne.s32.totalorder %s18, %s21
    %p30 = scmp.eq.s32.totalorder %s13, 3
    %p31 = por %p29, %p30
    %p32 = scmp.ne.s32.totalorder %s21, %s22
    %p33 = scmp.eq.s32.totalorder %s13, 0
    %p34 = por %p32, %p33
    %p35 = scmp.ne.s32.totalorder %s21, %s22
    %p36 = scmp.eq.s32.totalorder %s14, 3
    %p37 = por %p35, %p36
    %p39 = scmp.ne.s32.totalorder %s22, %s38
    %p40 = scmp.eq.s32.totalorder %s14, 0
    %p41 = por %p39, %p40
    %s43 = sadd.s32 %s42, 1
    %p46 = scmp.eq.s32.totalorder %s8, 3
    %p47 = scmp.ne.s32.totalorder %s42, %s44
    %p48 = scmp.eq.s32.totalorder %s8, 0
    %p49 = por %p47, %p48
    %p50 = scmp.ne.s32.totalorder %s42, %s44
    %p51 = scmp.eq.s32.totalorder %s13, 3
    %p52 = por %p50, %p51
    %p53 = scmp.ne.s32.totalorder %s44, %s45
    %p54 = scmp.eq.s32.totalorder %s13, 0
    %p55 = por %p53, %p54
    %p56 = scmp.ne.s32.totalorder %s44, %s45
    %p57 = scmp.eq.s32.totalorder %s14, 3
    %p58 = por %p56, %p57
    %p60 = scmp.ne.s32.totalorder %s45, %s59
    %p61 = scmp.eq.s32.totalorder %s14, 0
    %p62 = por %p60, %p61
    %s63 = ssub.s32 %s8, %s15
    %p64 = scmp.eq.s32.totalorder %s63, 0
    %s66 = sadd.s32 %s65, 1
    %s67 = scalar_select %p64, %s65, %s66
    %p70 = pneg %p64
    %p71 = scmp.eq.s32.totalorder %s8, 3
    %p72 = por %p70, %p71
    %p73 = scmp.ne.s32.totalorder %s65, %s68
    %p74 = scmp.eq.s32.totalorder %s8, 0
    %p75 = por %p73, %p74
    %p76 = scmp.ne.s32.totalorder %s65, %s68
    %p77 = scmp.eq.s32.totalorder %s13, 3
    %p78 = por %p76, %p77
    %p79 = scmp.ne.s32.totalorder %s68, %s69
    %p80 = scmp.eq.s32.totalorder %s13, 0
    %p81 = por %p79, %p80
    %p82 = scmp.ne.s32.totalorder %s68, %s69
    %p83 = scmp.eq.s32.totalorder %s14, 3
    %p84 = por %p82, %p83
    %p86 = scmp.ne.s32.totalorder %s69, %s85
    %p87 = scmp.eq.s32.totalorder %s14, 0
    %p88 = por %p86, %p87
    %p89 = scmp.le.s32.totalorder 1, %s8
    %p90 = scmp.lt.s32.totalorder %s8, 5
    %p91 = pnand %p89, %p90
    %p92 = pneg %p91
    // Predicated region
    $region9: #{mnist_generator_forward.17} parent=5 // pred_check
      _
    $region10: #{mnist_generator_forward.17} parent=5 // pred_check_branch
      %94 = sbr.rel (%p91) target = $region12
    $region11: #{mnist_generator_forward.17} parent=5 // pred_region
      %s95 = ssub.s32 %s8, 1
      // Predicated region
      $region13: #{mnist_generator_forward.17} parent=11 // pred_check
        %p96 = pneg %p55
      $region14: #{mnist_generator_forward.17} parent=11 // pred_check_branch
        %98 = sbr.rel (%p96) target = $region16
      $region15: #{mnist_generator_forward.17} parent=11 // pred_region
        _
      $region16: #{mnist_generator_forward.17} parent=11 // pred_fallthru
        _
    $region12: #{mnist_generator_forward.17} parent=5 // pred_fallthru
      _
    %p99 = scmp.lt.s32.totalorder %s8, 4
    // Predicated region
    $region17: #{mnist_generator_forward.17} parent=5 // pred_check
      %p100 = pneg %p99
    $region18: #{mnist_generator_forward.17} parent=5 // pred_check_branch
      %102 = sbr.rel (%p100) target = $region20
    $region19: #{mnist_generator_forward.17} parent=5 // pred_region
      // Predicated region
      $region21: #{mnist_generator_forward.17} parent=19 // pred_check
        %p103 = pneg %p28
      $region22: #{mnist_generator_forward.17} parent=19 // pred_check_branch
        %105 = sbr.rel (%p103) target = $region24
      $region23: #{mnist_generator_forward.17} parent=19 // pred_region
        %s106 = smul.u32 49, %s8
        %p107 = scmp.lt.s32.totalorder %s106, 195
        %s108 = scalar_select %p107, %s106, 195
        %s109 = smul.addr %s108, 4
        %s110 = smul.addr %s109, 4
        %s111 = scalar_lea.vmem %s0, %s110
        %s112 = smul.u32 49, %s8
      $region24: #{mnist_generator_forward.17} parent=19 // pred_fallthru
        _
    $region20: #{mnist_generator_forward.17} parent=5 // pred_fallthru
      _
    %p113 = scmp.le.s32.totalorder 1, %s8
    %p114 = scmp.lt.s32.totalorder %s8, 5
    %p115 = pnand %p113, %p114
    %p116 = pneg %p115
    // Predicated region
    $region25: #{mnist_generator_forward.17} parent=5 // pred_check
      _
    $region26: #{mnist_generator_forward.17} parent=5 // pred_check_branch
      %118 = sbr.rel (%p115) target = $region28
    $region27: #{mnist_generator_forward.17} parent=5 // pred_region
      %s119 = ssub.s32 %s8, 1
      %s120 = smul.u32 49, %s13
      %p121 = scmp.lt.s32.totalorder %s120, 195
      %s122 = scalar_select %p121, %s120, 195
      %s123 = smul.addr %s122, 4
      %s124 = smul.addr %s123, 4
      %s125 = scalar_lea.vmem %s0, %s124
      %p126 = pneg %p34
      %p127 = pneg %p31
      %p128 = pneg %p55
      %p129 = pneg %p52
      %p130 = pneg %p81
      %p131 = pneg %p78
      %s132 = smul.u32 49, %s13
      %p133 = scmp.lt.s32.totalorder %s132, 195
      %s134 = scalar_select %p133, %s132, 195
      %s135 = smul.addr %s134, 8
      %s136 = scalar_lea.vmem %s2, %s135
      %s137 = smul.u32 49, %s13
      %p138 = scmp.lt.s32.totalorder %s137, 195
      %s139 = scalar_select %p138, %s137, 195
      %s140 = smul.addr %s139, 4
      %s141 = smul.addr %s140, 4
      %s142 = scalar_lea.vmem %s0, %s141
      %s143 = smul.u32 49, %s13
      %s144 = smul.u32 49, %s13
      %p145 = scmp.lt.s32.totalorder %s144, 195
      %s146 = scalar_select %p145, %s144, 195
      %s147 = smul.addr %s146, 8
      %s148 = scalar_lea.vmem %s2, %s147
      %s149 = smul.u32 49, %s13
      %v151 = vld [vmem:[%s142] sm:$0xff]
      %v152 = vld [vmem:[%s142 + $0x8] sm:$0xff]
      %v153 = vld [vmem:[%s142 + $0x10] sm:$0xff]
      %v154 = vld [vmem:[%s142 + $0x18] sm:$0xff]
      %v155 = vld [vmem:[%s142 + $0x20] sm:$0xff]
      %v156 = vld [vmem:[%s142 + $0x28] sm:$0xff]
      %v157 = vld [vmem:[%s142 + $0x30] sm:$0xff]
      %v158 = vld [vmem:[%s142 + $0x38] sm:$0xff]
      %v159 = vld [vmem:[%s142 + $0x40] sm:$0xff]
      %v160 = vld [vmem:[%s142 + $0x48] sm:$0xff]
      %v161 = vld [vmem:[%s142 + $0x50] sm:$0xff]
      %v162 = vld [vmem:[%s142 + $0x58] sm:$0xff]
      %v163 = vld [vmem:[%s142 + $0x60] sm:$0xff]
      %v164 = vld [vmem:[%s142 + $0x68] sm:$0xff]
      %v165 = vld [vmem:[%s142 + $0x70] sm:$0xff]
      %v166 = vld [vmem:[%s142 + $0x78] sm:$0xff]
      %v167 = vld [vmem:[%s142 + $0x80] sm:$0xff]
      %v168 = vld [vmem:[%s142 + $0x88] sm:$0xff]
      %v169 = vld [vmem:[%s142 + $0x90] sm:$0xff]
      %v170 = vld [vmem:[%s142 + $0x98] sm:$0xff]
      %v171 = vld [vmem:[%s142 + $0xa0] sm:$0xff]
      %v172 = vld [vmem:[%s142 + $0xa8] sm:$0xff]
      %v173 = vld [vmem:[%s142 + $0xb0] sm:$0xff]
      %v174 = vld [vmem:[%s142 + $0xb8] sm:$0xff]
      %v175 = vld [vmem:[%s142 + $0xc0] sm:$0xff]
      %v176 = vld [vmem:[%s142 + $0xc8] sm:$0xff]
      %v177 = vld [vmem:[%s142 + $0xd0] sm:$0xff]
      %v178 = vld [vmem:[%s142 + $0xd8] sm:$0xff]
      %v179 = vld [vmem:[%s142 + $0xe0] sm:$0xff]
      %v180 = vld [vmem:[%s142 + $0xe8] sm:$0xff]
      %v181 = vld [vmem:[%s142 + $0xf0] sm:$0xff]
      %v182 = vld [vmem:[%s142 + $0xf8] sm:$0xff]
      %v183 = vld [vmem:[%s142 + $0x100] sm:$0xff]
      %v184 = vld [vmem:[%s142 + $0x108] sm:$0xff]
      %v185 = vld [vmem:[%s142 + $0x110] sm:$0xff]
      %v186 = vld [vmem:[%s142 + $0x118] sm:$0xff]
      %v187 = vld [vmem:[%s142 + $0x120] sm:$0xff]
      %v188 = vld [vmem:[%s142 + $0x128] sm:$0xff]
      %v189 = vld [vmem:[%s142 + $0x130] sm:$0xff]
      %v190 = vld [vmem:[%s142 + $0x138] sm:$0xff]
      %v191 = vld [vmem:[%s142 + $0x140] sm:$0xff]
      %v192 = vld [vmem:[%s142 + $0x148] sm:$0xff]
      %v193 = vld [vmem:[%s142 + $0x150] sm:$0xff]
      %v194 = vld [vmem:[%s142 + $0x158] sm:$0xff]
      %v195 = vld [vmem:[%s142 + $0x160] sm:$0xff]
      %v196 = vld [vmem:[%s142 + $0x168] sm:$0xff]
      %v197 = vld [vmem:[%s142 + $0x170] sm:$0xff]
      %v198 = vld [vmem:[%s142 + $0x178] sm:$0xff]
      %v199 = vld [vmem:[%s142 + $0x180] sm:$0xff]
      %v200 = vld [vmem:[%s142 + $0x188] sm:$0xff]
      %v201 = vld [vmem:[%s142 + $0x190] sm:$0xff]
      %v202 = vld [vmem:[%s142 + $0x198] sm:$0xff]
      %v203 = vld [vmem:[%s142 + $0x1a0] sm:$0xff]
      %v204 = vld [vmem:[%s142 + $0x1a8] sm:$0xff]
      %v205 = vld [vmem:[%s142 + $0x1b0] sm:$0xff]
      %v206 = vld [vmem:[%s142 + $0x1b8] sm:$0xff]
      %v207 = vld [vmem:[%s142 + $0x1c0] sm:$0xff]
      %v208 = vld [vmem:[%s142 + $0x1c8] sm:$0xff]
      %v209 = vld [vmem:[%s142 + $0x1d0] sm:$0xff]
      %v210 = vld [vmem:[%s142 + $0x1d8] sm:$0xff]
      %v211 = vld [vmem:[%s142 + $0x1e0] sm:$0xff]
      %v212 = vld [vmem:[%s142 + $0x1e8] sm:$0xff]
      %v213 = vld [vmem:[%s142 + $0x1f0] sm:$0xff]
      %v214 = vld [vmem:[%s142 + $0x1f8] sm:$0xff]
      %v215 = vld [vmem:[%s142 + $0x200] sm:$0xff]
      %v216 = vld [vmem:[%s142 + $0x208] sm:$0xff]
      %v217 = vld [vmem:[%s142 + $0x210] sm:$0xff]
      %v218 = vld [vmem:[%s142 + $0x218] sm:$0xff]
      %v219 = vld [vmem:[%s142 + $0x220] sm:$0xff]
      %v220 = vld [vmem:[%s142 + $0x228] sm:$0xff]
      %v221 = vld [vmem:[%s142 + $0x230] sm:$0xff]
      %v222 = vld [vmem:[%s142 + $0x238] sm:$0xff]
      %v223 = vld [vmem:[%s142 + $0x240] sm:$0xff]
      %v224 = vld [vmem:[%s142 + $0x248] sm:$0xff]
      %v225 = vld [vmem:[%s142 + $0x250] sm:$0xff]
      %v226 = vld [vmem:[%s142 + $0x258] sm:$0xff]
      %v227 = vld [vmem:[%s142 + $0x260] sm:$0xff]
      %v228 = vld [vmem:[%s142 + $0x268] sm:$0xff]
      %v229 = vld [vmem:[%s142 + $0x270] sm:$0xff]
      %v230 = vld [vmem:[%s142 + $0x278] sm:$0xff]
      %v231 = vld [vmem:[%s142 + $0x280] sm:$0xff]
      %v232 = vld [vmem:[%s142 + $0x288] sm:$0xff]
      %v233 = vld [vmem:[%s142 + $0x290] sm:$0xff]
      %v234 = vld [vmem:[%s142 + $0x298] sm:$0xff]
      %v235 = vld [vmem:[%s142 + $0x2a0] sm:$0xff]
      %v236 = vld [vmem:[%s142 + $0x2a8] sm:$0xff]
      %v237 = vld [vmem:[%s142 + $0x2b0] sm:$0xff]
      %v238 = vld [vmem:[%s142 + $0x2b8] sm:$0xff]
      %v239 = vld [vmem:[%s142 + $0x2c0] sm:$0xff]
      %v240 = vld [vmem:[%s142 + $0x2c8] sm:$0xff]
      %v241 = vld [vmem:[%s142 + $0x2d0] sm:$0xff]
      %v242 = vld [vmem:[%s142 + $0x2d8] sm:$0xff]
      %v243 = vld [vmem:[%s142 + $0x2e0] sm:$0xff]
      %v244 = vld [vmem:[%s142 + $0x2e8] sm:$0xff]
      %v245 = vld [vmem:[%s142 + $0x2f0] sm:$0xff]
      %v246 = vld [vmem:[%s142 + $0x2f8] sm:$0xff]
      %v247 = vld [vmem:[%s142 + $0x300] sm:$0xff]
      %v248 = vld [vmem:[%s142 + $0x308] sm:$0xff]
      %v249 = vld [vmem:[%s1] sm:$0xf]
      %v250 = vld [vmem:[%s1 + $0x4] sm:$0xf]
      %v251 = vld [vmem:[%s1 + $0x8] sm:$0xf]
      %v252 = vld [vmem:[%s1 + $0xc] sm:$0xf]
      %v253 = vld [vmem:[%s1 + $0x10] sm:$0xf]
      %v254 = vld [vmem:[%s1 + $0x14] sm:$0xf]
      %v255 = vld [vmem:[%s1 + $0x18] sm:$0xf]
      %v256 = vld [vmem:[%s1 + $0x1c] sm:$0xf]
      %v257 = vld [vmem:[%s1 + $0x20] sm:$0xf]
      %v258 = vld [vmem:[%s1 + $0x24] sm:$0xf]
      %v259 = vld [vmem:[%s1 + $0x28] sm:$0xf]
      %v260 = vld [vmem:[%s1 + $0x2c] sm:$0xf]
      %v261 = vld [vmem:[%s1 + $0x30] sm:$0xf]
      %v262 = vld [vmem:[%s1 + $0x34] sm:$0xf]
      %v263 = vld [vmem:[%s1 + $0x38] sm:$0xf]
      %v264 = vld [vmem:[%s1 + $0x3c] sm:$0xf]
      %v265 = vld [vmem:[%s1 + $0x40] sm:$0xf]
      %v266 = vld [vmem:[%s1 + $0x44] sm:$0xf]
      %v267 = vld [vmem:[%s1 + $0x48] sm:$0xf]
      %v268 = vld [vmem:[%s1 + $0x4c] sm:$0xf]
      %v269 = vld [vmem:[%s1 + $0x50] sm:$0xf]
      %v270 = vld [vmem:[%s1 + $0x54] sm:$0xf]
      %v271 = vld [vmem:[%s1 + $0x58] sm:$0xf]
      %v272 = vld [vmem:[%s1 + $0x5c] sm:$0xf]
      %v273 = vld [vmem:[%s1 + $0x60] sm:$0xf]
      %v274 = vld [vmem:[%s1 + $0x64] sm:$0xf]
      %v275 = vld [vmem:[%s1 + $0x68] sm:$0xf]
      %v276 = vld [vmem:[%s1 + $0x6c] sm:$0xf]
      %v277 = vld [vmem:[%s1 + $0x70] sm:$0xf]
      %v278 = vld [vmem:[%s1 + $0x74] sm:$0xf]
      %v279 = vld [vmem:[%s1 + $0x78] sm:$0xf]
      %v280 = vld [vmem:[%s1 + $0x7c] sm:$0xf]
      %v281 = vld [vmem:[%s1 + $0x80] sm:$0xf]
      %v282 = vld [vmem:[%s1 + $0x84] sm:$0xf]
      %v283 = vld [vmem:[%s1 + $0x88] sm:$0xf]
      %v284 = vld [vmem:[%s1 + $0x8c] sm:$0xf]
      %v285 = vld [vmem:[%s1 + $0x90] sm:$0xf]
      %v286 = vld [vmem:[%s1 + $0x94] sm:$0xf]
      %v287 = vld [vmem:[%s1 + $0x98] sm:$0xf]
      %v288 = vld [vmem:[%s1 + $0x9c] sm:$0xf]
      %v289 = vld [vmem:[%s1 + $0xa0] sm:$0xf]
      %v290 = vld [vmem:[%s1 + $0xa4] sm:$0xf]
      %v291 = vld [vmem:[%s1 + $0xa8] sm:$0xf]
      %v292 = vld [vmem:[%s1 + $0xac] sm:$0xf]
      %v293 = vld [vmem:[%s1 + $0xb0] sm:$0xf]
      %v294 = vld [vmem:[%s1 + $0xb4] sm:$0xf]
      %v295 = vld [vmem:[%s1 + $0xb8] sm:$0xf]
      %v296 = vld [vmem:[%s1 + $0xbc] sm:$0xf]
      %v297 = vld [vmem:[%s1 + $0xc0] sm:$0xf]
      %v298 = vld [vmem:[%s1 + $0xc4] sm:$0xf]
      %v299 = vld [vmem:[%s1 + $0xc8] sm:$0xf]
      %v300 = vld [vmem:[%s1 + $0xcc] sm:$0xf]
      %v301 = vld [vmem:[%s1 + $0xd0] sm:$0xf]
      %v302 = vld [vmem:[%s1 + $0xd4] sm:$0xf]
      %v303 = vld [vmem:[%s1 + $0xd8] sm:$0xf]
      %v304 = vld [vmem:[%s1 + $0xdc] sm:$0xf]
      %v305 = vld [vmem:[%s1 + $0xe0] sm:$0xf]
      %v306 = vld [vmem:[%s1 + $0xe4] sm:$0xf]
      %v307 = vld [vmem:[%s1 + $0xe8] sm:$0xf]
      %v308 = vld [vmem:[%s1 + $0xec] sm:$0xf]
      %v309 = vld [vmem:[%s1 + $0xf0] sm:$0xf]
      %v310 = vld [vmem:[%s1 + $0xf4] sm:$0xf]
      %v311 = vld [vmem:[%s1 + $0xf8] sm:$0xf]
      %v312 = vld [vmem:[%s1 + $0xfc] sm:$0xf]
      %v411 = vunpack.c.l.b16 %v151
      %v412 = vunpack.c.h.b16 %v151
      %v413 = vunpack.c.l.b16 %v152
      %v414 = vunpack.c.h.b16 %v152
      %v415 = vunpack.c.l.b16 %v153
      %v416 = vunpack.c.h.b16 %v153
      %v417 = vunpack.c.l.b16 %v154
      %v418 = vunpack.c.h.b16 %v154
      %v419 = vunpack.c.l.b16 %v155
      %v420 = vunpack.c.h.b16 %v155
      %v421 = vunpack.c.l.b16 %v156
      %v422 = vunpack.c.h.b16 %v156
      %v423 = vunpack.c.l.b16 %v157
      %v424 = vunpack.c.h.b16 %v157
      %v425 = vunpack.c.l.b16 %v158
      %v426 = vunpack.c.h.b16 %v158
      %v427 = vunpack.c.l.b16 %v159
      %v428 = vunpack.c.h.b16 %v159
      %v429 = vunpack.c.l.b16 %v160
      %v430 = vunpack.c.h.b16 %v160
      %v431 = vunpack.c.l.b16 %v161
      %v432 = vunpack.c.h.b16 %v161
      %v433 = vunpack.c.l.b16 %v162
      %v434 = vunpack.c.h.b16 %v162
      %v435 = vunpack.c.l.b16 %v163
      %v436 = vunpack.c.h.b16 %v163
      %v437 = vunpack.c.l.b16 %v164
      %v438 = vunpack.c.h.b16 %v164
      %v439 = vunpack.c.l.b16 %v165
      %v440 = vunpack.c.h.b16 %v165
      %v441 = vunpack.c.l.b16 %v166
      %v442 = vunpack.c.h.b16 %v166
      %v443 = vunpack.c.l.b16 %v167
      %v444 = vunpack.c.h.b16 %v167
      %v445 = vunpack.c.l.b16 %v168
      %v446 = vunpack.c.h.b16 %v168
      %v447 = vunpack.c.l.b16 %v169
      %v448 = vunpack.c.h.b16 %v169
      %v449 = vunpack.c.l.b16 %v170
      %v450 = vunpack.c.h.b16 %v170
      %v451 = vunpack.c.l.b16 %v171
      %v452 = vunpack.c.h.b16 %v171
      %v453 = vunpack.c.l.b16 %v172
      %v454 = vunpack.c.h.b16 %v172
      %v455 = vunpack.c.l.b16 %v173
      %v456 = vunpack.c.h.b16 %v173
      %v457 = vunpack.c.l.b16 %v174
      %v458 = vunpack.c.h.b16 %v174
      %v459 = vunpack.c.l.b16 %v175
      %v460 = vunpack.c.h.b16 %v175
      %v461 = vunpack.c.l.b16 %v176
      %v462 = vunpack.c.h.b16 %v176
      %v463 = vunpack.c.l.b16 %v177
      %v464 = vunpack.c.h.b16 %v177
      %v465 = vunpack.c.l.b16 %v178
      %v466 = vunpack.c.h.b16 %v178
      %v467 = vunpack.c.l.b16 %v179
      %v468 = vunpack.c.h.b16 %v179
      %v469 = vunpack.c.l.b16 %v180
      %v470 = vunpack.c.h.b16 %v180
      %v471 = vunpack.c.l.b16 %v181
      %v472 = vunpack.c.h.b16 %v181
      %v473 = vunpack.c.l.b16 %v182
      %v474 = vunpack.c.h.b16 %v182
      %v475 = vunpack.c.l.b16 %v183
      %v476 = vunpack.c.h.b16 %v183
      %v477 = vunpack.c.l.b16 %v184
      %v478 = vunpack.c.h.b16 %v184
      %v479 = vunpack.c.l.b16 %v185
      %v480 = vunpack.c.h.b16 %v185
      %v481 = vunpack.c.l.b16 %v186
      %v482 = vunpack.c.h.b16 %v186
      %v483 = vunpack.c.l.b16 %v187
      %v484 = vunpack.c.h.b16 %v187
      %v485 = vunpack.c.l.b16 %v188
      %v486 = vunpack.c.h.b16 %v188
      %v487 = vunpack.c.l.b16 %v189
      %v488 = vunpack.c.h.b16 %v189
      %v489 = vunpack.c.l.b16 %v190
      %v490 = vunpack.c.h.b16 %v190
      %v491 = vunpack.c.l.b16 %v191
      %v492 = vunpack.c.h.b16 %v191
      %v493 = vunpack.c.l.b16 %v192
      %v494 = vunpack.c.h.b16 %v192
      %v495 = vunpack.c.l.b16 %v193
      %v496 = vunpack.c.h.b16 %v193
      %v497 = vunpack.c.l.b16 %v194
      %v498 = vunpack.c.h.b16 %v194
      %v499 = vunpack.c.l.b16 %v195
      %v500 = vunpack.c.h.b16 %v195
      %v501 = vunpack.c.l.b16 %v196
      %v502 = vunpack.c.h.b16 %v196
      %v503 = vunpack.c.l.b16 %v197
      %v504 = vunpack.c.h.b16 %v197
      %v505 = vunpack.c.l.b16 %v198
      %v506 = vunpack.c.h.b16 %v198
      %v507 = vunpack.c.l.b16 %v199
      %v508 = vunpack.c.h.b16 %v199
      %v509 = vunpack.c.l.b16 %v200
      %v510 = vunpack.c.h.b16 %v200
      %v511 = vunpack.c.l.b16 %v201
      %v512 = vunpack.c.h.b16 %v201
      %v513 = vunpack.c.l.b16 %v202
      %v514 = vunpack.c.h.b16 %v202
      %v515 = vunpack.c.l.b16 %v203
      %v516 = vunpack.c.h.b16 %v203
      %v517 = vunpack.c.l.b16 %v204
      %v518 = vunpack.c.h.b16 %v204
      %v519 = vunpack.c.l.b16 %v205
      %v520 = vunpack.c.h.b16 %v205
      %v521 = vunpack.c.l.b16 %v206
      %v522 = vunpack.c.h.b16 %v206
      %v523 = vunpack.c.l.b16 %v207
      %v524 = vunpack.c.h.b16 %v207
      %v525 = vunpack.c.l.b16 %v208
      %v526 = vunpack.c.h.b16 %v208
      %v527 = vunpack.c.l.b16 %v209
      %v528 = vunpack.c.h.b16 %v209
      %v529 = vunpack.c.l.b16 %v210
      %v530 = vunpack.c.h.b16 %v210
      %v531 = vunpack.c.l.b16 %v211
      %v532 = vunpack.c.h.b16 %v211
      %v533 = vunpack.c.l.b16 %v212
      %v534 = vunpack.c.h.b16 %v212
      %v535 = vunpack.c.l.b16 %v213
      %v536 = vunpack.c.h.b16 %v213
      %v537 = vunpack.c.l.b16 %v214
      %v538 = vunpack.c.h.b16 %v214
      %v539 = vunpack.c.l.b16 %v215
      %v540 = vunpack.c.h.b16 %v215
      %v541 = vunpack.c.l.b16 %v216
      %v542 = vunpack.c.h.b16 %v216
      %v543 = vunpack.c.l.b16 %v217
      %v544 = vunpack.c.h.b16 %v217
      %v545 = vunpack.c.l.b16 %v218
      %v546 = vunpack.c.h.b16 %v218
      %v547 = vunpack.c.l.b16 %v219
      %v548 = vunpack.c.h.b16 %v219
      %v549 = vunpack.c.l.b16 %v220
      %v550 = vunpack.c.h.b16 %v220
      %v551 = vunpack.c.l.b16 %v221
      %v552 = vunpack.c.h.b16 %v221
      %v553 = vunpack.c.l.b16 %v222
      %v554 = vunpack.c.h.b16 %v222
      %v555 = vunpack.c.l.b16 %v223
      %v556 = vunpack.c.h.b16 %v223
      %v557 = vunpack.c.l.b16 %v224
      %v558 = vunpack.c.h.b16 %v224
      %v559 = vunpack.c.l.b16 %v225
      %v560 = vunpack.c.h.b16 %v225
      %v561 = vunpack.c.l.b16 %v226
      %v562 = vunpack.c.h.b16 %v226
      %v563 = vunpack.c.l.b16 %v227
      %v564 = vunpack.c.h.b16 %v227
      %v565 = vunpack.c.l.b16 %v228
      %v566 = vunpack.c.h.b16 %v228
      %v567 = vunpack.c.l.b16 %v229
      %v568 = vunpack.c.h.b16 %v229
      %v569 = vunpack.c.l.b16 %v230
      %v570 = vunpack.c.h.b16 %v230
      %v571 = vunpack.c.l.b16 %v231
      %v572 = vunpack.c.h.b16 %v231
      %v573 = vunpack.c.l.b16 %v232
      %v574 = vunpack.c.h.b16 %v232
      %v575 = vunpack.c.l.b16 %v233
      %v576 = vunpack.c.h.b16 %v233
      %v577 = vunpack.c.l.b16 %v234
      %v578 = vunpack.c.h.b16 %v234
      %v579 = vunpack.c.l.b16 %v235
      %v580 = vunpack.c.h.b16 %v235
      %v581 = vunpack.c.l.b16 %v236
      %v582 = vunpack.c.h.b16 %v236
      %v583 = vunpack.c.l.b16 %v237
      %v584 = vunpack.c.h.b16 %v237
      %v585 = vunpack.c.l.b16 %v238
      %v586 = vunpack.c.h.b16 %v238
      %v587 = vunpack.c.l.b16 %v239
      %v588 = vunpack.c.h.b16 %v239
      %v589 = vunpack.c.l.b16 %v240
      %v590 = vunpack.c.h.b16 %v240
      %v591 = vunpack.c.l.b16 %v241
      %v592 = vunpack.c.h.b16 %v241
      %v593 = vunpack.c.l.b16 %v242
      %v594 = vunpack.c.h.b16 %v242
      %v595 = vunpack.c.l.b16 %v243
      %v596 = vunpack.c.h.b16 %v243
      %v597 = vunpack.c.l.b16 %v244
      %v598 = vunpack.c.h.b16 %v244
      %v599 = vunpack.c.l.b16 %v245
      %v600 = vunpack.c.h.b16 %v245
      %v601 = vunpack.c.l.b16 %v246
      %v602 = vunpack.c.h.b16 %v246
      %v603 = vunpack.c.l.b16 %v247
      %v604 = vunpack.c.h.b16 %v247
      %v605 = vunpack.c.l.b16 %v248
      %v606 = vunpack.c.h.b16 %v248
      %v607 = vpack.c.b16 %v415, %v411
      %v608 = vpack.c.b16 %v416, %v412
      %v609 = vpack.c.b16 %v417, %v413
      %v610 = vpack.c.b16 %v418, %v414
      %v611 = vpack.c.b16 %v423, %v419
      %v612 = vpack.c.b16 %v424, %v420
      %v613 = vpack.c.b16 %v425, %v421
      %v614 = vpack.c.b16 %v426, %v422
      %v615 = vpack.c.b16 %v431, %v427
      %v616 = vpack.c.b16 %v432, %v428
      %v617 = vpack.c.b16 %v433, %v429
      %v618 = vpack.c.b16 %v434, %v430
      %v619 = vpack.c.b16 %v439, %v435
      %v620 = vpack.c.b16 %v440, %v436
      %v621 = vpack.c.b16 %v441, %v437
      %v622 = vpack.c.b16 %v442, %v438
      %v623 = vpack.c.b16 %v447, %v443
      %v624 = vpack.c.b16 %v448, %v444
      %v625 = vpack.c.b16 %v449, %v445
      %v626 = vpack.c.b16 %v450, %v446
      %v627 = vpack.c.b16 %v455, %v451
      %v628 = vpack.c.b16 %v456, %v452
      %v629 = vpack.c.b16 %v457, %v453
      %v630 = vpack.c.b16 %v458, %v454
      %v631 = vpack.c.b16 %v463, %v459
      %v632 = vpack.c.b16 %v464, %v460
      %v633 = vpack.c.b16 %v465, %v461
      %v634 = vpack.c.b16 %v466, %v462
      %v635 = vpack.c.b16 %v471, %v467
      %v636 = vpack.c.b16 %v472, %v468
      %v637 = vpack.c.b16 %v473, %v469
      %v638 = vpack.c.b16 %v474, %v470
      %v639 = vpack.c.b16 %v479, %v475
      %v640 = vpack.c.b16 %v480, %v476
      %v641 = vpack.c.b16 %v481, %v477
      %v642 = vpack.c.b16 %v482, %v478
      %v643 = vpack.c.b16 %v487, %v483
      %v644 = vpack.c.b16 %v488, %v484
      %v645 = vpack.c.b16 %v489, %v485
      %v646 = vpack.c.b16 %v490, %v486
      %v647 = vpack.c.b16 %v495, %v491
      %v648 = vpack.c.b16 %v496, %v492
      %v649 = vpack.c.b16 %v497, %v493
      %v650 = vpack.c.b16 %v498, %v494
      %v651 = vpack.c.b16 %v503, %v499
      %v652 = vpack.c.b16 %v504, %v500
      %v653 = vpack.c.b16 %v505, %v501
      %v654 = vpack.c.b16 %v506, %v502
      %v655 = vpack.c.b16 %v511, %v507
      %v656 = vpack.c.b16 %v512, %v508
      %v657 = vpack.c.b16 %v513, %v509
      %v658 = vpack.c.b16 %v514, %v510
      %v659 = vpack.c.b16 %v519, %v515
      %v660 = vpack.c.b16 %v520, %v516
      %v661 = vpack.c.b16 %v521, %v517
      %v662 = vpack.c.b16 %v522, %v518
      %v663 = vpack.c.b16 %v527, %v523
      %v664 = vpack.c.b16 %v528, %v524
      %v665 = vpack.c.b16 %v529, %v525
      %v666 = vpack.c.b16 %v530, %v526
      %v667 = vpack.c.b16 %v535, %v531
      %v668 = vpack.c.b16 %v536, %v532
      %v669 = vpack.c.b16 %v537, %v533
      %v670 = vpack.c.b16 %v538, %v534
      %v671 = vpack.c.b16 %v543, %v539
      %v672 = vpack.c.b16 %v544, %v540
      %v673 = vpack.c.b16 %v545, %v541
      %v674 = vpack.c.b16 %v546, %v542
      %v675 = vpack.c.b16 %v551, %v547
      %v676 = vpack.c.b16 %v552, %v548
      %v677 = vpack.c.b16 %v553, %v549
      %v678 = vpack.c.b16 %v554, %v550
      %v679 = vpack.c.b16 %v559, %v555
      %v680 = vpack.c.b16 %v560, %v556
      %v681 = vpack.c.b16 %v561, %v557
      %v682 = vpack.c.b16 %v562, %v558
      %v683 = vpack.c.b16 %v567, %v563
      %v684 = vpack.c.b16 %v568, %v564
      %v685 = vpack.c.b16 %v569, %v565
      %v686 = vpack.c.b16 %v570, %v566
      %v687 = vpack.c.b16 %v575, %v571
      %v688 = vpack.c.b16 %v576, %v572
      %v689 = vpack.c.b16 %v577, %v573
      %v690 = vpack.c.b16 %v578, %v574
      %v691 = vpack.c.b16 %v583, %v579
      %v692 = vpack.c.b16 %v584, %v580
      %v693 = vpack.c.b16 %v585, %v581
      %v694 = vpack.c.b16 %v586, %v582
      %v695 = vpack.c.b16 %v591, %v587
      %v696 = vpack.c.b16 %v592, %v588
      %v697 = vpack.c.b16 %v593, %v589
      %v698 = vpack.c.b16 %v594, %v590
      %v699 = vpack.c.b16 %v599, %v595
      %v700 = vpack.c.b16 %v600, %v596
      %v701 = vpack.c.b16 %v601, %v597
      %v702 = vpack.c.b16 %v602, %v598
      %v703 = vpack.c.b16 %v603, %v603
      %v704 = vpack.c.b16 %v604, %v604
      %v705 = vpack.c.b16 %v605, %v605
      %v706 = vpack.c.b16 %v606, %v606
      %v871 = vunpack.c.l.b16 %v249
      %v872 = vunpack.c.l.b16 %v250
      %v873 = vunpack.c.l.b16 %v251
      %v874 = vunpack.c.l.b16 %v252
      %v875 = vunpack.c.l.b16 %v253
      %v876 = vunpack.c.l.b16 %v254
      %v877 = vunpack.c.l.b16 %v255
      %v878 = vunpack.c.l.b16 %v256
      %v879 = vunpack.c.l.b16 %v257
      %v880 = vunpack.c.l.b16 %v258
      %v881 = vunpack.c.l.b16 %v259
      %v882 = vunpack.c.l.b16 %v260
      %v883 = vunpack.c.l.b16 %v261
      %v884 = vunpack.c.l.b16 %v262
      %v885 = vunpack.c.l.b16 %v263
      %v886 = vunpack.c.l.b16 %v264
      %v887 = vunpack.c.l.b16 %v265
      %v888 = vunpack.c.l.b16 %v266
      %v889 = vunpack.c.l.b16 %v267
      %v890 = vunpack.c.l.b16 %v268
      %v891 = vunpack.c.l.b16 %v269
      %v892 = vunpack.c.l.b16 %v270
      %v893 = vunpack.c.l.b16 %v271
      %v894 = vunpack.c.l.b16 %v272
      %v895 = vunpack.c.l.b16 %v273
      %v896 = vunpack.c.l.b16 %v274
      %v897 = vunpack.c.l.b16 %v275
      %v898 = vunpack.c.l.b16 %v276
      %v899 = vunpack.c.l.b16 %v277
      %v900 = vunpack.c.l.b16 %v278
      %v901 = vunpack.c.l.b16 %v279
      %v902 = vunpack.c.l.b16 %v280
      %v903 = vunpack.c.l.b16 %v281
      %v904 = vunpack.c.l.b16 %v282
      %v905 = vunpack.c.l.b16 %v283
      %v906 = vunpack.c.l.b16 %v284
      %v907 = vunpack.c.l.b16 %v285
      %v908 = vunpack.c.l.b16 %v286
      %v909 = vunpack.c.l.b16 %v287
      %v910 = vunpack.c.l.b16 %v288
      %v911 = vunpack.c.l.b16 %v289
      %v912 = vunpack.c.l.b16 %v290
      %v913 = vunpack.c.l.b16 %v291
      %v914 = vunpack.c.l.b16 %v292
      %v915 = vunpack.c.l.b16 %v293
      %v916 = vunpack.c.l.b16 %v294
      %v917 = vunpack.c.l.b16 %v295
      %v918 = vunpack.c.l.b16 %v296
      %v919 = vunpack.c.l.b16 %v297
      %v920 = vunpack.c.l.b16 %v298
      %v921 = vunpack.c.l.b16 %v299
      %v922 = vunpack.c.l.b16 %v300
      %v923 = vunpack.c.l.b16 %v301
      %v924 = vunpack.c.l.b16 %v302
      %v925 = vunpack.c.l.b16 %v303
      %v926 = vunpack.c.l.b16 %v304
      %v927 = vunpack.c.l.b16 %v305
      %v928 = vunpack.c.l.b16 %v306
      %v929 = vunpack.c.l.b16 %v307
      %v930 = vunpack.c.l.b16 %v308
      %v931 = vunpack.c.l.b16 %v309
      %v932 = vunpack.c.l.b16 %v310
      %v933 = vunpack.c.l.b16 %v311
      %v934 = vunpack.c.l.b16 %v312
      %v935 = vpack.c.b16 %v872, %v871
      %v936 = vpack.c.b16 %v874, %v873
      %v937 = vpack.c.b16 %v876, %v875
      %v938 = vpack.c.b16 %v878, %v877
      %v939 = vpack.c.b16 %v880, %v879
      %v940 = vpack.c.b16 %v882, %v881
      %v941 = vpack.c.b16 %v884, %v883
      %v942 = vpack.c.b16 %v886, %v885
      %v943 = vpack.c.b16 %v888, %v887
      %v944 = vpack.c.b16 %v890, %v889
      %v945 = vpack.c.b16 %v892, %v891
      %v946 = vpack.c.b16 %v894, %v893
      %v947 = vpack.c.b16 %v896, %v895
      %v948 = vpack.c.b16 %v898, %v897
      %v949 = vpack.c.b16 %v900, %v899
      %v950 = vpack.c.b16 %v902, %v901
      %v951 = vpack.c.b16 %v904, %v903
      %v952 = vpack.c.b16 %v906, %v905
      %v953 = vpack.c.b16 %v908, %v907
      %v954 = vpack.c.b16 %v910, %v909
      %v955 = vpack.c.b16 %v912, %v911
      %v956 = vpack.c.b16 %v914, %v913
      %v957 = vpack.c.b16 %v916, %v915
      %v958 = vpack.c.b16 %v918, %v917
      %v959 = vpack.c.b16 %v920, %v919
      %v960 = vpack.c.b16 %v922, %v921
      %v961 = vpack.c.b16 %v924, %v923
      %v962 = vpack.c.b16 %v926, %v925
      %v963 = vpack.c.b16 %v928, %v927
      %v964 = vpack.c.b16 %v930, %v929
      %v965 = vpack.c.b16 %v932, %v931
      %v966 = vpack.c.b16 %v934, %v933
      %999 = vmatprep.subr.bf16.mxu0 0
      %1000 = vmatpush1.bf16.msra.mxu0 %v935
      %1001 = vmatprep.subr.bf16.mxu0 0
      %1002 = vmatpush1.bf16.msra.mxu0 %v936
      %1003 = vmatprep.subr.bf16.mxu0 0
      %1004 = vmatpush1.bf16.msra.mxu0 %v937
      %1005 = vmatprep.subr.bf16.mxu0 0
      %1006 = vmatpush1.bf16.msra.mxu0 %v938
      %1007 = vmatprep.subr.bf16.mxu0 0
      %1008 = vmatpush1.bf16.msra.mxu0 %v939
      %1009 = vmatprep.subr.bf16.mxu0 0
      %1010 = vmatpush1.bf16.msra.mxu0 %v940
      %1011 = vmatprep.subr.bf16.mxu0 0
      %1012 = vmatpush1.bf16.msra.mxu0 %v941
      %1013 = vmatprep.subr.bf16.mxu0 0
      %1014 = vmatpush1.bf16.msra.mxu0 %v942
      %1015 = vmatprep.subr.bf16.mxu0 0
      %1016 = vmatpush1.bf16.msra.mxu0 %v943
      %1017 = vmatprep.subr.bf16.mxu0 0
      %1018 = vmatpush1.bf16.msra.mxu0 %v944
      %1019 = vmatprep.subr.bf16.mxu0 0
      %1020 = vmatpush1.bf16.msra.mxu0 %v945
      %1021 = vmatprep.subr.bf16.mxu0 0
      %1022 = vmatpush1.bf16.msra.mxu0 %v946
      %1023 = vmatprep.subr.bf16.mxu0 0
      %1024 = vmatpush1.bf16.msra.mxu0 %v947
      %1025 = vmatprep.subr.bf16.mxu0 0
      %1026 = vmatpush1.bf16.msra.mxu0 %v948
      %1027 = vmatprep.subr.bf16.mxu0 0
      %1028 = vmatpush1.bf16.msra.mxu0 %v949
      %1029 = vmatprep.subr.bf16.mxu0 0
      %1030 = vmatpush1.bf16.msra.mxu0 %v950
      %1031 = vmatprep.mubr.bf16.mxu0 %v608
      %1032 = vmatmul.mubr.bf16.gmra.mrb[0].mxu0 %v607
      %v1033 = vpop.f32.mrb[0].mxu0
      %v1034 = vadd.f32 0.0, %v1033
      %v1035 = vpop.f32.mrb[0].mxu0
      %v1036 = vpop.f32.mrb[0].mxu0
      %v1037 = vadd.f32 0.0, %v1036
      %v1038 = vpop.f32.mrb[0].mxu0
      %1039 = vmatprep.mubr.bf16.mxu0 %v612
      %1040 = vmatmul.mubr.bf16.gmra.mrb[0].mxu0 %v611
      %v1041 = vpop.f32.mrb[0].mxu0
      %v1042 = vadd.f32 0.0, %v1041
      %v1043 = vpop.f32.mrb[0].mxu0
      %v1044 = vpop.f32.mrb[0].mxu0
      %v1045 = vadd.f32 0.0, %v1044
      %v1046 = vpop.f32.mrb[0].mxu0
      %1047 = vmatprep.mubr.bf16.mxu0 %v616
      %1048 = vmatmul.mubr.bf16.gmra.mrb[0].mxu0 %v615
      %v1049 = vpop.f32.mrb[0].mxu0
      %v1050 = vadd.f32 0.0, %v1049
      %v1051 = vpop.f32.mrb[0].mxu0
      %v1052 = vpop.f32.mrb[0].mxu0
      %v1053 = vadd.f32 0.0, %v1052
      %v1054 = vpop.f32.mrb[0].mxu0
      %1055 = vmatprep.mubr.bf16.mxu0 %v620
      %1056 = vmatmul.mubr.bf16.gmra.mrb[0].mxu0 %v619
      %v1057 = vpop.f32.mrb[0].mxu0
      %v1058 = vadd.f32 0.0, %v1057
      %v1059 = vpop.f32.mrb[0].mxu0
      %v1060 = vpop.f32.mrb[0].mxu0
      %v1061 = vadd.f32 0.0, %v1060
      %v1062 = vpop.f32.mrb[0].mxu0
      %1063 = vmatprep.mubr.bf16.mxu0 %v624
      %1064 = vmatmul.mubr.bf16.gmra.mrb[0].mxu0 %v623
      %v1065 = vpop.f32.mrb[0].mxu0
      %v1066 = vadd.f32 0.0, %v1065
      %v1067 = vpop.f32.mrb[0].mxu0
      %v1068 = vpop.f32.mrb[0].mxu0
      %v1069 = vadd.f32 0.0, %v1068
      %v1070 = vpop.f32.mrb[0].mxu0
      %1071 = vmatprep.mubr.bf16.mxu0 %v628
      %1072 = vmatmul.mubr.bf16.gmra.mrb[0].mxu0 %v627
      %v1073 = vpop.f32.mrb[0].mxu0
      %v1074 = vadd.f32 0.0, %v1073
      %v1075 = vpop.f32.mrb[0].mxu0
      %v1076 = vpop.f32.mrb[0].mxu0
      %v1077 = vadd.f32 0.0, %v1076
      %v1078 = vpop.f32.mrb[0].mxu0
      %1079 = vmatprep.mubr.bf16.mxu0 %v632
      %1080 = vmatmul.mubr.bf16.gmra.mrb[0].mxu0 %v631
      %v1081 = vpop.f32.mrb[0].mxu0
      %v1082 = vadd.f32 0.0, %v1081
      %v1083 = vpop.f32.mrb[0].mxu0
      %v1084 = vpop.f32.mrb[0].mxu0
      %v1085 = vadd.f32 0.0, %v1084
      %v1086 = vpop.f32.mrb[0].mxu0
      %1087 = vmatprep.mubr.bf16.mxu0 %v636
      %1088 = vmatmul.mubr.bf16.gmra.mrb[0].mxu0 %v635
      %v1089 = vpop.f32.mrb[0].mxu0
      %v1090 = vadd.f32 0.0, %v1089
      %v1091 = vpop.f32.mrb[0].mxu0
      %v1092 = vpop.f32.mrb[0].mxu0
      %v1093 = vadd.f32 0.0, %v1092
      %v1094 = vpop.f32.mrb[0].mxu0
      %1095 = vmatprep.mubr.bf16.mxu0 %v640
      %1096 = vmatmul.mubr.bf16.gmra.mrb[0].mxu0 %v639
      %v1097 = vpop.f32.mrb[0].mxu0
      %v1098 = vadd.f32 0.0, %v1097
      %v1099 = vpop.f32.mrb[0].mxu0
      %v1100 = vpop.f32.mrb[0].mxu0
      %v1101 = vadd.f32 0.0, %v1100
      %v1102 = vpop.f32.mrb[0].mxu0
      %1103 = vmatprep.mubr.bf16.mxu0 %v644
      %1104 = vmatmul.mubr.bf16.gmra.mrb[0].mxu0 %v643
      %v1105 = vpop.f32.mrb[0].mxu0
      %v1106 = vadd.f32 0.0, %v1105
      %v1107 = vpop.f32.mrb[0].mxu0
      %v1108 = vpop.f32.mrb[0].mxu0
      %v1109 = vadd.f32 0.0, %v1108
      %v1110 = vpop.f32.mrb[0].mxu0
      %1111 = vmatprep.mubr.bf16.mxu0 %v648
      %1112 = vmatmul.mubr.bf16.gmra.mrb[0].mxu0 %v647
      %v1113 = vpop.f32.mrb[0].mxu0
      %v1114 = vadd.f32 0.0, %v1113
      %v1115 = vpop.f32.mrb[0].mxu0
      %v1116 = vpop.f32.mrb[0].mxu0
      %v1117 = vadd.f32 0.0, %v1116
      %v1118 = vpop.f32.mrb[0].mxu0
      %1119 = vmatprep.mubr.bf16.mxu0 %v652
      %1120 = vmatmul.mubr.bf16.gmra.mrb[0].mxu0 %v651
      %v1121 = vpop.f32.mrb[0].mxu0
      %v1122 = vadd.f32 0.0, %v1121
      %v1123 = vpop.f32.mrb[0].mxu0
      %v1124 = vpop.f32.mrb[0].mxu0
      %v1125 = vadd.f32 0.0, %v1124
      %v1126 = vpop.f32.mrb[0].mxu0
      %1127 = vmatprep.mubr.bf16.mxu0 %v656
      %1128 = vmatmul.mubr.bf16.gmra.mrb[0].mxu0 %v655
      %v1129 = vpop.f32.mrb[0].mxu0
      %v1130 = vadd.f32 0.0, %v1129
      %v1131 = vpop.f32.mrb[0].mxu0
      %v1132 = vpop.f32.mrb[0].mxu0
      %v1133 = vadd.f32 0.0, %v1132
      %v1134 = vpop.f32.mrb[0].mxu0
      %1135 = vmatprep.mubr.bf16.mxu0 %v660
      %1136 = vmatmul.mubr.bf16.gmra.mrb[0].mxu0 %v659
      %v1137 = vpop.f32.mrb[0].mxu0
      %v1138 = vadd.f32 0.0, %v1137
      %v1139 = vpop.f32.mrb[0].mxu0
      %v1140 = vpop.f32.mrb[0].mxu0
      %v1141 = vadd.f32 0.0, %v1140
      %v1142 = vpop.f32.mrb[0].mxu0
      %1143 = vmatprep.mubr.bf16.mxu0 %v664
      %1144 = vmatmul.mubr.bf16.gmra.mrb[0].mxu0 %v663
      %v1145 = vpop.f32.mrb[0].mxu0
      %v1146 = vadd.f32 0.0, %v1145
      %v1147 = vpop.f32.mrb[0].mxu0
      %v1148 = vpop.f32.mrb[0].mxu0
      %v1149 = vadd.f32 0.0, %v1148
      %v1150 = vpop.f32.mrb[0].mxu0
      %1151 = vmatprep.mubr.bf16.mxu0 %v668
      %1152 = vmatmul.mubr.bf16.gmra.mrb[0].mxu0 %v667
      %v1153 = vpop.f32.mrb[0].mxu0
      %v1154 = vadd.f32 0.0, %v1153
      %v1155 = vpop.f32.mrb[0].mxu0
      %v1156 = vpop.f32.mrb[0].mxu0
      %v1157 = vadd.f32 0.0, %v1156
      %v1158 = vpop.f32.mrb[0].mxu0
      %1159 = vmatprep.mubr.bf16.mxu0 %v672
      %1160 = vmatmul.mubr.bf16.gmra.mrb[0].mxu0 %v671
      %v1161 = vpop.f32.mrb[0].mxu0
      %v1162 = vadd.f32 0.0, %v1161
      %v1163 = vpop.f32.mrb[0].mxu0
      %v1164 = vpop.f32.mrb[0].mxu0
      %v1165 = vadd.f32 0.0, %v1164
      %v1166 = vpop.f32.mrb[0].mxu0
      %1167 = vmatprep.mubr.bf16.mxu0 %v676
      %1168 = vmatmul.mubr.bf16.gmra.mrb[0].mxu0 %v675
      %v1169 = vpop.f32.mrb[0].mxu0
      %v1170 = vadd.f32 0.0, %v1169
      %v1171 = vpop.f32.mrb[0].mxu0
      %v1172 = vpop.f32.mrb[0].mxu0
      %v1173 = vadd.f32 0.0, %v1172
      %v1174 = vpop.f32.mrb[0].mxu0
      %1175 = vmatprep.mubr.bf16.mxu0 %v680
      %1176 = vmatmul.mubr.bf16.gmra.mrb[0].mxu0 %v679
      %v1177 = vpop.f32.mrb[0].mxu0
      %v1178 = vadd.f32 0.0, %v1177
      %v1179 = vpop.f32.mrb[0].mxu0
      %v1180 = vpop.f32.mrb[0].mxu0
      %v1181 = vadd.f32 0.0, %v1180
      %v1182 = vpop.f32.mrb[0].mxu0
      %1183 = vmatprep.mubr.bf16.mxu0 %v684
      %1184 = vmatmul.mubr.bf16.gmra.mrb[0].mxu0 %v683
      %v1185 = vpop.f32.mrb[0].mxu0
      %v1186 = vadd.f32 0.0, %v1185
      %v1187 = vpop.f32.mrb[0].mxu0
      %v1188 = vpop.f32.mrb[0].mxu0
      %v1189 = vadd.f32 0.0, %v1188
      %v1190 = vpop.f32.mrb[0].mxu0
      %1191 = vmatprep.mubr.bf16.mxu0 %v688
      %1192 = vmatmul.mubr.bf16.gmra.mrb[0].mxu0 %v687
      %v1193 = vpop.f32.mrb[0].mxu0
      %v1194 = vadd.f32 0.0, %v1193
      %v1195 = vpop.f32.mrb[0].mxu0
      %v1196 = vpop.f32.mrb[0].mxu0
      %v1197 = vadd.f32 0.0, %v1196
      %v1198 = vpop.f32.mrb[0].mxu0
      %1199 = vmatprep.mubr.bf16.mxu0 %v692
      %1200 = vmatmul.mubr.bf16.gmra.mrb[0].mxu0 %v691
      %v1201 = vpop.f32.mrb[0].mxu0
      %v1202 = vadd.f32 0.0, %v1201
      %v1203 = vpop.f32.mrb[0].mxu0
      %v1204 = vpop.f32.mrb[0].mxu0
      %v1205 = vadd.f32 0.0, %v1204
      %v1206 = vpop.f32.mrb[0].mxu0
      %1207 = vmatprep.mubr.bf16.mxu0 %v696
      %1208 = vmatmul.mubr.bf16.gmra.mrb[0].mxu0 %v695
      %v1209 = vpop.f32.mrb[0].mxu0
      %v1210 = vadd.f32 0.0, %v1209
      %v1211 = vpop.f32.mrb[0].mxu0
      %v1212 = vpop.f32.mrb[0].mxu0
      %v1213 = vadd.f32 0.0, %v1212
      %v1214 = vpop.f32.mrb[0].mxu0
      %1215 = vmatprep.mubr.bf16.mxu0 %v700
      %1216 = vmatmul.mubr.bf16.gmra.mrb[0].mxu0 %v699
      %v1217 = vpop.f32.mrb[0].mxu0
      %v1218 = vadd.f32 0.0, %v1217
      %v1219 = vpop.f32.mrb[0].mxu0
      %v1220 = vpop.f32.mrb[0].mxu0
      %v1221 = vadd.f32 0.0, %v1220
      %v1222 = vpop.f32.mrb[0].mxu0
      %1223 = vmatprep.mubr.bf16.mxu0 %v704
      %1224 = vmatmul.mubr.bf16.gmra.mrb[0].mxu0 %v703
      %v1225 = vpop.f32.mrb[0].mxu0
      %v1226 = vadd.f32 0.0, %v1225
      %v1227 = vpop.f32.mrb[0].mxu0
      %v1228 = vpop.f32.mrb[0].mxu0
      %v1229 = vpop.f32.mrb[0].mxu0
      %1230 = vdwg.mxu0
      %1231 = vmatprep.subr.bf16.mxu0 0
      %1232 = vmatpush1.bf16.msra.mxu0 %v951
      %1233 = vmatprep.subr.bf16.mxu0 0
      %1234 = vmatpush1.bf16.msra.mxu0 %v952
      %1235 = vmatprep.subr.bf16.mxu0 0
      %1236 = vmatpush1.bf16.msra.mxu0 %v953
      %1237 = vmatprep.subr.bf16.mxu0 0
      %1238 = vmatpush1.bf16.msra.mxu0 %v954
      %1239 = vmatprep.subr.bf16.mxu0 0
      %1240 = vmatpush1.bf16.msra.mxu0 %v955
      %1241 = vmatprep.subr.bf16.mxu0 0
      %1242 = vmatpush1.bf16.msra.mxu0 %v956
      %1243 = vmatprep.subr.bf16.mxu0 0
      %1244 = vmatpush1.bf16.msra.mxu0 %v957
      %1245 = vmatprep.subr.bf16.mxu0 0
      %1246 = vmatpush1.bf16.msra.mxu0 %v958
      %1247 = vmatprep.subr.bf16.mxu0 0
      %1248 = vmatpush1.bf16.msra.mxu0 %v959
      %1249 = vmatprep.subr.bf16.mxu0 0
      %1250 = vmatpush1.bf16.msra.mxu0 %v960
      %1251 = vmatprep.subr.bf16.mxu0 0
      %1252 = vmatpush1.bf16.msra.mxu0 %v961
      %1253 = vmatprep.subr.bf16.mxu0 0
      %1254 = vmatpush1.bf16.msra.mxu0 %v962
      %1255 = vmatprep.subr.bf16.mxu0 0
      %1256 = vmatpush1.bf16.msra.mxu0 %v963
      %1257 = vmatprep.subr.bf16.mxu0 0
      %1258 = vmatpush1.bf16.msra.mxu0 %v964
      %1259 = vmatprep.subr.bf16.mxu0 0
      %1260 = vmatpush1.bf16.msra.mxu0 %v965
      %1261 = vmatprep.subr.bf16.mxu0 0
      %1262 = vmatpush1.bf16.msra.mxu0 %v966
      %1263 = vmatprep.mubr.bf16.mxu0 %v610
      %1264 = vmatmul.mubr.bf16.gmra.mrb[0].mxu0 %v609
      %v1265 = vpop.f32.mrb[0].mxu0
      %v1266 = vadd.f32 %v1034, %v1265
      %v1267 = vpop.f32.mrb[0].mxu0
      %v1268 = vpop.f32.mrb[0].mxu0
      %v1269 = vadd.f32 %v1037, %v1268
      %v1270 = vpop.f32.mrb[0].mxu0
      %1271 = vmatprep.mubr.bf16.mxu0 %v614
      %1272 = vmatmul.mubr.bf16.gmra.mrb[0].mxu0 %v613
      %v1273 = vpop.f32.mrb[0].mxu0
      %v1274 = vadd.f32 %v1042, %v1273
      %v1275 = vpop.f32.mrb[0].mxu0
      %v1276 = vpop.f32.mrb[0].mxu0
      %v1277 = vadd.f32 %v1045, %v1276
      %v1278 = vpop.f32.mrb[0].mxu0
      %1279 = vmatprep.mubr.bf16.mxu0 %v618
      %1280 = vmatmul.mubr.bf16.gmra.mrb[0].mxu0 %v617
      %v1281 = vpop.f32.mrb[0].mxu0
      %v1282 = vadd.f32 %v1050, %v1281
      %v1283 = vpop.f32.mrb[0].mxu0
      %v1284 = vpop.f32.mrb[0].mxu0
      %v1285 = vadd.f32 %v1053, %v1284
      %v1286 = vpop.f32.mrb[0].mxu0
      %1287 = vmatprep.mubr.bf16.mxu0 %v622
      %1288 = vmatmul.mubr.bf16.gmra.mrb[0].mxu0 %v621
      %v1289 = vpop.f32.mrb[0].mxu0
      %v1290 = vadd.f32 %v1058, %v1289
      %v1291 = vpop.f32.mrb[0].mxu0
      %v1292 = vpop.f32.mrb[0].mxu0
      %v1293 = vadd.f32 %v1061, %v1292
      %v1294 = vpop.f32.mrb[0].mxu0
      %1295 = vmatprep.mubr.bf16.mxu0 %v626
      %1296 = vmatmul.mubr.bf16.gmra.mrb[0].mxu0 %v625
      %v1297 = vpop.f32.mrb[0].mxu0
      %v1298 = vadd.f32 %v1066, %v1297
      %v1299 = vpop.f32.mrb[0].mxu0
      %v1300 = vpop.f32.mrb[0].mxu0
      %v1301 = vadd.f32 %v1069, %v1300
      %v1302 = vpop.f32.mrb[0].mxu0
      %1303 = vmatprep.mubr.bf16.mxu0 %v630
      %1304 = vmatmul.mubr.bf16.gmra.mrb[0].mxu0 %v629
      %v1305 = vpop.f32.mrb[0].mxu0
      %v1306 = vadd.f32 %v1074, %v1305
      %v1307 = vpop.f32.mrb[0].mxu0
      %v1308 = vpop.f32.mrb[0].mxu0
      %v1309 = vadd.f32 %v1077, %v1308
      %v1310 = vpop.f32.mrb[0].mxu0
      %1311 = vmatprep.mubr.bf16.mxu0 %v634
      %1312 = vmatmul.mubr.bf16.gmra.mrb[0].mxu0 %v633
      %v1313 = vpop.f32.mrb[0].mxu0
      %v1314 = vadd.f32 %v1082, %v1313
      %v1315 = vpop.f32.mrb[0].mxu0
      %v1316 = vpop.f32.mrb[0].mxu0
      %v1317 = vadd.f32 %v1085, %v1316
      %v1318 = vpop.f32.mrb[0].mxu0
      %1319 = vmatprep.mubr.bf16.mxu0 %v638
      %1320 = vmatmul.mubr.bf16.gmra.mrb[0].mxu0 %v637
      %v1321 = vpop.f32.mrb[0].mxu0
      %v1322 = vadd.f32 %v1090, %v1321
      %v1323 = vpop.f32.mrb[0].mxu0
      %v1324 = vpop.f32.mrb[0].mxu0
      %v1325 = vadd.f32 %v1093, %v1324
      %v1326 = vpop.f32.mrb[0].mxu0
      %1327 = vmatprep.mubr.bf16.mxu0 %v642
      %1328 = vmatmul.mubr.bf16.gmra.mrb[0].mxu0 %v641
      %v1329 = vpop.f32.mrb[0].mxu0
      %v1330 = vadd.f32 %v1098, %v1329
      %v1331 = vpop.f32.mrb[0].mxu0
      %v1332 = vpop.f32.mrb[0].mxu0
      %v1333 = vadd.f32 %v1101, %v1332
      %v1334 = vpop.f32.mrb[0].mxu0
      %1335 = vmatprep.mubr.bf16.mxu0 %v646
      %1336 = vmatmul.mubr.bf16.gmra.mrb[0].mxu0 %v645
      %v1337 = vpop.f32.mrb[0].mxu0
      %v1338 = vadd.f32 %v1106, %v1337
      %v1339 = vpop.f32.mrb[0].mxu0
      %v1340 = vpop.f32.mrb[0].mxu0
      %v1341 = vadd.f32 %v1109, %v1340
      %v1342 = vpop.f32.mrb[0].mxu0
      %1343 = vmatprep.mubr.bf16.mxu0 %v650
      %1344 = vmatmul.mubr.bf16.gmra.mrb[0].mxu0 %v649
      %v1345 = vpop.f32.mrb[0].mxu0
      %v1346 = vadd.f32 %v1114, %v1345
      %v1347 = vpop.f32.mrb[0].mxu0
      %v1348 = vpop.f32.mrb[0].mxu0
      %v1349 = vadd.f32 %v1117, %v1348
      %v1350 = vpop.f32.mrb[0].mxu0
      %1351 = vmatprep.mubr.bf16.mxu0 %v654
      %1352 = vmatmul.mubr.bf16.gmra.mrb[0].mxu0 %v653
      %v1353 = vpop.f32.mrb[0].mxu0
      %v1354 = vadd.f32 %v1122, %v1353
      %v1355 = vpop.f32.mrb[0].mxu0
      %v1356 = vpop.f32.mrb[0].mxu0
      %v1357 = vadd.f32 %v1125, %v1356
      %v1358 = vpop.f32.mrb[0].mxu0
      %1359 = vmatprep.mubr.bf16.mxu0 %v658
      %1360 = vmatmul.mubr.bf16.gmra.mrb[0].mxu0 %v657
      %v1361 = vpop.f32.mrb[0].mxu0
      %v1362 = vadd.f32 %v1130, %v1361
      %v1363 = vpop.f32.mrb[0].mxu0
      %v1364 = vpop.f32.mrb[0].mxu0
      %v1365 = vadd.f32 %v1133, %v1364
      %v1366 = vpop.f32.mrb[0].mxu0
      %1367 = vmatprep.mubr.bf16.mxu0 %v662
      %1368 = vmatmul.mubr.bf16.gmra.mrb[0].mxu0 %v661
      %v1369 = vpop.f32.mrb[0].mxu0
      %v1370 = vadd.f32 %v1138, %v1369
      %v1371 = vpop.f32.mrb[0].mxu0
      %v1372 = vpop.f32.mrb[0].mxu0
      %v1373 = vadd.f32 %v1141, %v1372
      %v1374 = vpop.f32.mrb[0].mxu0
      %1375 = vmatprep.mubr.bf16.mxu0 %v666
      %1376 = vmatmul.mubr.bf16.gmra.mrb[0].mxu0 %v665
      %v1377 = vpop.f32.mrb[0].mxu0
      %v1378 = vadd.f32 %v1146, %v1377
      %v1379 = vpop.f32.mrb[0].mxu0
      %v1380 = vpop.f32.mrb[0].mxu0
      %v1381 = vadd.f32 %v1149, %v1380
      %v1382 = vpop.f32.mrb[0].mxu0
      %1383 = vmatprep.mubr.bf16.mxu0 %v670
      %1384 = vmatmul.mubr.bf16.gmra.mrb[0].mxu0 %v669
      %v1385 = vpop.f32.mrb[0].mxu0
      %v1386 = vadd.f32 %v1154, %v1385
      %v1387 = vpop.f32.mrb[0].mxu0
      %v1388 = vpop.f32.mrb[0].mxu0
      %v1389 = vadd.f32 %v1157, %v1388
      %v1390 = vpop.f32.mrb[0].mxu0
      %1391 = vmatprep.mubr.bf16.mxu0 %v674
      %1392 = vmatmul.mubr.bf16.gmra.mrb[0].mxu0 %v673
      %v1393 = vpop.f32.mrb[0].mxu0
      %v1394 = vadd.f32 %v1162, %v1393
      %v1395 = vpop.f32.mrb[0].mxu0
      %v1396 = vpop.f32.mrb[0].mxu0
      %v1397 = vadd.f32 %v1165, %v1396
      %v1398 = vpop.f32.mrb[0].mxu0
      %1399 = vmatprep.mubr.bf16.mxu0 %v678
      %1400 = vmatmul.mubr.bf16.gmra.mrb[0].mxu0 %v677
      %v1401 = vpop.f32.mrb[0].mxu0
      %v1402 = vadd.f32 %v1170, %v1401
      %v1403 = vpop.f32.mrb[0].mxu0
      %v1404 = vpop.f32.mrb[0].mxu0
      %v1405 = vadd.f32 %v1173, %v1404
      %v1406 = vpop.f32.mrb[0].mxu0
      %1407 = vmatprep.mubr.bf16.mxu0 %v682
      %1408 = vmatmul.mubr.bf16.gmra.mrb[0].mxu0 %v681
      %v1409 = vpop.f32.mrb[0].mxu0
      %v1410 = vadd.f32 %v1178, %v1409
      %v1411 = vpop.f32.mrb[0].mxu0
      %v1412 = vpop.f32.mrb[0].mxu0
      %v1413 = vadd.f32 %v1181, %v1412
      %v1414 = vpop.f32.mrb[0].mxu0
      %1415 = vmatprep.mubr.bf16.mxu0 %v686
      %1416 = vmatmul.mubr.bf16.gmra.mrb[0].mxu0 %v685
      %v1417 = vpop.f32.mrb[0].mxu0
      %v1418 = vadd.f32 %v1186, %v1417
      %v1419 = vpop.f32.mrb[0].mxu0
      %v1420 = vpop.f32.mrb[0].mxu0
      %v1421 = vadd.f32 %v1189, %v1420
      %v1422 = vpop.f32.mrb[0].mxu0
      %1423 = vmatprep.mubr.bf16.mxu0 %v690
      %1424 = vmatmul.mubr.bf16.gmra.mrb[0].mxu0 %v689
      %v1425 = vpop.f32.mrb[0].mxu0
      %v1426 = vadd.f32 %v1194, %v1425
      %v1427 = vpop.f32.mrb[0].mxu0
      %v1428 = vpop.f32.mrb[0].mxu0
      %v1429 = vadd.f32 %v1197, %v1428
      %v1430 = vpop.f32.mrb[0].mxu0
      %1431 = vmatprep.mubr.bf16.mxu0 %v694
      %1432 = vmatmul.mubr.bf16.gmra.mrb[0].mxu0 %v693
      %v1433 = vpop.f32.mrb[0].mxu0
      %v1434 = vadd.f32 %v1202, %v1433
      %v1435 = vpop.f32.mrb[0].mxu0
      %v1436 = vpop.f32.mrb[0].mxu0
      %v1437 = vadd.f32 %v1205, %v1436
      %v1438 = vpop.f32.mrb[0].mxu0
      %1439 = vmatprep.mubr.bf16.mxu0 %v698
      %1440 = vmatmul.mubr.bf16.gmra.mrb[0].mxu0 %v697
      %v1441 = vpop.f32.mrb[0].mxu0
      %v1442 = vadd.f32 %v1210, %v1441
      %v1443 = vpop.f32.mrb[0].mxu0
      %v1444 = vpop.f32.mrb[0].mxu0
      %v1445 = vadd.f32 %v1213, %v1444
      %v1446 = vpop.f32.mrb[0].mxu0
      %1447 = vmatprep.mubr.bf16.mxu0 %v702
      %1448 = vmatmul.mubr.bf16.gmra.mrb[0].mxu0 %v701
      %v1449 = vpop.f32.mrb[0].mxu0
      %v1450 = vadd.f32 %v1218, %v1449
      %v1451 = vpop.f32.mrb[0].mxu0
      %v1452 = vpop.f32.mrb[0].mxu0
      %v1453 = vadd.f32 %v1221, %v1452
      %v1454 = vpop.f32.mrb[0].mxu0
      %1455 = vmatprep.mubr.bf16.mxu0 %v706
      %1456 = vmatmul.mubr.bf16.gmra.mrb[0].mxu0 %v705
      %v1457 = vpop.f32.mrb[0].mxu0
      %v1458 = vadd.f32 %v1226, %v1457
      %v1459 = vpop.f32.mrb[0].mxu0
      %v1460 = vpop.f32.mrb[0].mxu0
      %v1461 = vpop.f32.mrb[0].mxu0
      %1462 = vdwg.mxu0
      %v1463 = vtanh.pop %v1266
      %v1464 = vtanh.pop %v1269
      %v1465 = vtanh.pop %v1274
      %v1466 = vtanh.pop %v1277
      %v1467 = vtanh.pop %v1282
      %v1468 = vtanh.pop %v1285
      %v1469 = vtanh.pop %v1290
      %v1470 = vtanh.pop %v1293
      %v1471 = vtanh.pop %v1298
      %v1472 = vtanh.pop %v1301
      %v1473 = vtanh.pop %v1306
      %v1474 = vtanh.pop %v1309
      %v1475 = vtanh.pop %v1314
      %v1476 = vtanh.pop %v1317
      %v1477 = vtanh.pop %v1322
      %v1478 = vtanh.pop %v1325
      %v1479 = vtanh.pop %v1330
      %v1480 = vtanh.pop %v1333
      %v1481 = vtanh.pop %v1338
      %v1482 = vtanh.pop %v1341
      %v1483 = vtanh.pop %v1346
      %v1484 = vtanh.pop %v1349
      %v1485 = vtanh.pop %v1354
      %v1486 = vtanh.pop %v1357
      %v1487 = vtanh.pop %v1362
      %v1488 = vtanh.pop %v1365
      %v1489 = vtanh.pop %v1370
      %v1490 = vtanh.pop %v1373
      %v1491 = vtanh.pop %v1378
      %v1492 = vtanh.pop %v1381
      %v1493 = vtanh.pop %v1386
      %v1494 = vtanh.pop %v1389
      %v1495 = vtanh.pop %v1394
      %v1496 = vtanh.pop %v1397
      %v1497 = vtanh.pop %v1402
      %v1498 = vtanh.pop %v1405
      %v1499 = vtanh.pop %v1410
      %v1500 = vtanh.pop %v1413
      %v1501 = vtanh.pop %v1418
      %v1502 = vtanh.pop %v1421
      %v1503 = vtanh.pop %v1426
      %v1504 = vtanh.pop %v1429
      %v1505 = vtanh.pop %v1434
      %v1506 = vtanh.pop %v1437
      %v1507 = vtanh.pop %v1442
      %v1508 = vtanh.pop %v1445
      %v1509 = vtanh.pop %v1450
      %v1510 = vtanh.pop %v1453
      %v1511 = vtanh.pop %v1458
      %1512 = vst [vmem:[%s148] sm:$0xff] %v1463
      %1513 = vst [vmem:[%s148 + $0x8] sm:$0xff] %v1464
      %1514 = vst [vmem:[%s148 + $0x10] sm:$0xff] %v1465
      %1515 = vst [vmem:[%s148 + $0x18] sm:$0xff] %v1466
      %1516 = vst [vmem:[%s148 + $0x20] sm:$0xff] %v1467
      %1517 = vst [vmem:[%s148 + $0x28] sm:$0xff] %v1468
      %1518 = vst [vmem:[%s148 + $0x30] sm:$0xff] %v1469
      %1519 = vst [vmem:[%s148 + $0x38] sm:$0xff] %v1470
      %1520 = vst [vmem:[%s148 + $0x40] sm:$0xff] %v1471
      %1521 = vst [vmem:[%s148 + $0x48] sm:$0xff] %v1472
      %1522 = vst [vmem:[%s148 + $0x50] sm:$0xff] %v1473
      %1523 = vst [vmem:[%s148 + $0x58] sm:$0xff] %v1474
      %1524 = vst [vmem:[%s148 + $0x60] sm:$0xff] %v1475
      %1525 = vst [vmem:[%s148 + $0x68] sm:$0xff] %v1476
      %1526 = vst [vmem:[%s148 + $0x70] sm:$0xff] %v1477
      %1527 = vst [vmem:[%s148 + $0x78] sm:$0xff] %v1478
      %1528 = vst [vmem:[%s148 + $0x80] sm:$0xff] %v1479
      %1529 = vst [vmem:[%s148 + $0x88] sm:$0xff] %v1480
      %1530 = vst [vmem:[%s148 + $0x90] sm:$0xff] %v1481
      %1531 = vst [vmem:[%s148 + $0x98] sm:$0xff] %v1482
      %1532 = vst [vmem:[%s148 + $0xa0] sm:$0xff] %v1483
      %1533 = vst [vmem:[%s148 + $0xa8] sm:$0xff] %v1484
      %1534 = vst [vmem:[%s148 + $0xb0] sm:$0xff] %v1485
      %1535 = vst [vmem:[%s148 + $0xb8] sm:$0xff] %v1486
      %1536 = vst [vmem:[%s148 + $0xc0] sm:$0xff] %v1487
      %1537 = vst [vmem:[%s148 + $0xc8] sm:$0xff] %v1488
      %1538 = vst [vmem:[%s148 + $0xd0] sm:$0xff] %v1489
      %1539 = vst [vmem:[%s148 + $0xd8] sm:$0xff] %v1490
      %1540 = vst [vmem:[%s148 + $0xe0] sm:$0xff] %v1491
      %1541 = vst [vmem:[%s148 + $0xe8] sm:$0xff] %v1492
      %1542 = vst [vmem:[%s148 + $0xf0] sm:$0xff] %v1493
      %1543 = vst [vmem:[%s148 + $0xf8] sm:$0xff] %v1494
      %1544 = vst [vmem:[%s148 + $0x100] sm:$0xff] %v1495
      %1545 = vst [vmem:[%s148 + $0x108] sm:$0xff] %v1496
      %1546 = vst [vmem:[%s148 + $0x110] sm:$0xff] %v1497
      %1547 = vst [vmem:[%s148 + $0x118] sm:$0xff] %v1498
      %1548 = vst [vmem:[%s148 + $0x120] sm:$0xff] %v1499
      %1549 = vst [vmem:[%s148 + $0x128] sm:$0xff] %v1500
      %1550 = vst [vmem:[%s148 + $0x130] sm:$0xff] %v1501
      %1551 = vst [vmem:[%s148 + $0x138] sm:$0xff] %v1502
      %1552 = vst [vmem:[%s148 + $0x140] sm:$0xff] %v1503
      %1553 = vst [vmem:[%s148 + $0x148] sm:$0xff] %v1504
      %1554 = vst [vmem:[%s148 + $0x150] sm:$0xff] %v1505
      %1555 = vst [vmem:[%s148 + $0x158] sm:$0xff] %v1506
      %1556 = vst [vmem:[%s148 + $0x160] sm:$0xff] %v1507
      %1557 = vst [vmem:[%s148 + $0x168] sm:$0xff] %v1508
      %1558 = vst [vmem:[%s148 + $0x170] sm:$0xff] %v1509
      %1559 = vst [vmem:[%s148 + $0x178] sm:$0xff] %v1510
      %1560 = vst [vmem:[%s148 + $0x180] sm:$0xff] %v1511
      %s1561 = smul.u32 49, %s13
      %p1562 = scmp.lt.s32.totalorder %s1561, 195
      %s1563 = scalar_select %p1562, %s1561, 195
      %s1564 = smul.addr %s1563, 8
      %s1565 = scalar_lea.vmem %s2, %s1564
      // Predicated region
      $region29: #{mnist_generator_forward.17} parent=27 // pred_check
        %p1566 = pneg %p78
      $region30: #{mnist_generator_forward.17} parent=27 // pred_check_branch
        %1568 = sbr.rel (%p1566) target = $region32
      $region31: #{mnist_generator_forward.17} parent=27 // pred_region
        %s1569 = smul.u32 49, %s13
      $region32: #{mnist_generator_forward.17} parent=27 // pred_fallthru
        _
    $region28: #{mnist_generator_forward.17} parent=5 // pred_fallthru
      _
    %p1570 = scmp.le.s32.totalorder 2, %s8
    // Predicated region
    $region33: #{mnist_generator_forward.17} parent=5 // pred_check
      %p1571 = pneg %p1570
    $region34: #{mnist_generator_forward.17} parent=5 // pred_check_branch
      %1573 = sbr.rel (%p1571) target = $region36
    $region35: #{mnist_generator_forward.17} parent=5 // pred_region
      %s1574 = ssub.s32 %s8, 2
      // Predicated region
      $region37: #{mnist_generator_forward.17} parent=35 // pred_check
        %p1575 = pneg %p84
      $region38: #{mnist_generator_forward.17} parent=35 // pred_check_branch
        %1577 = sbr.rel (%p1575) target = $region40
      $region39: #{mnist_generator_forward.17} parent=35 // pred_region
        %s1578 = smul.u32 49, %s14
        %p1579 = scmp.lt.s32.totalorder %s1578, 195
        %s1580 = scalar_select %p1579, %s1578, 195
        %s1581 = smul.addr %s1580, 8
        %s1582 = scalar_lea.vmem %s2, %s1581
      $region40: #{mnist_generator_forward.17} parent=35 // pred_fallthru
        _
    $region36: #{mnist_generator_forward.17} parent=5 // pred_fallthru
      _
  $region6: #{mnist_generator_forward.17} parent=0 // loop_footer
    %s12 = sadd.s32 1, %s8
  $region7: #{mnist_generator_forward.17} parent=0 // loop_footer_branch
    %7 = sbr.rel target = $region3
  $region8: #{mnist_generator_forward.17} parent=0 // loop_exit
    _

</llo_original>
